<compile_context>
chip_gen: v7x
topology: tpu7x:2x2x1
jax: 0.10.0
libtpu: 0.0.40
codegen_flags: <defaults>
</compile_context>

<pallas_src>
import functools

import jax
import jax.numpy as jnp
from jax import lax
from jax.experimental import pallas as pl
from jax.experimental.pallas import tpu as pltpu


# -----------------------------------------------------------------------------
# Fully fused Encoder kernel (one batch element per grid step)
# -----------------------------------------------------------------------------
def _make_encoder_kernel(H, W, Cin, Cout):
    def conv3x3(pad_ref, patch_ref, w_ref, b_ref, cin):
        # im2col: assemble the (H*W, 9*cin) patch in VMEM (static lane-offset
        # column writes), then a single accumulating MXU matmul with the
        # pre-flattened (9*cin, Cout) weights (BN scale already folded in).
        for kh in range(3):
            for kw in range(3):
                t = kh * 3 + kw
                patch_ref[:, t * cin:(t + 1) * cin] = (
                    pad_ref[kh:kh + H, kw:kw + W, :].reshape(H * W, cin))
        acc = jnp.dot(patch_ref[...], w_ref[...],
                      preferred_element_type=jnp.float32)
        return acc + b_ref[...]          # folded BN bias

    def kernel(x_ref, w1_ref, b1_ref, w2_ref, b2_ref, w3_ref, b3_ref,
               o_ref, padx, pady, px, py):
        # Zero the halo buffers (1-pixel zero border == padding=1); interiors
        # are overwritten below.  Re-zeroed every grid step so the kernel is
        # correct when the batch axis is split across TensorCores (each core
        # has its own scratch and may never see program_id == 0).
        padx[...] = jnp.zeros_like(padx)
        pady[...] = jnp.zeros_like(pady)

        # ---- stem: conv -> BN -> ReLU --------------------------------------
        padx[1:H + 1, 1:W + 1, :] = x_ref[0].astype(jnp.float32)
        y = jnp.maximum(conv3x3(padx, px, w1_ref, b1_ref, Cin), 0.0)
        # y (residual) stays live in the (H*W, Cout) accumulator layout.

        # ---- BasicBlock conv1 -> BN -> ReLU --------------------------------
        pady[1:H + 1, 1:W + 1, :] = y.reshape(H, W, Cout)
        z = jnp.maximum(conv3x3(pady, py, w2_ref, b2_ref, Cout), 0.0)

        # ---- BasicBlock conv2 -> BN -> +residual -> ReLU --------------------
        pady[1:H + 1, 1:W + 1, :] = z.reshape(H, W, Cout)
        out = conv3x3(pady, py, w3_ref, b3_ref, Cout) + y
        o_ref[0] = jnp.maximum(out, 0.0).reshape(H, W, Cout).astype(o_ref.dtype)

    return kernel


# -----------------------------------------------------------------------------
# Parameter construction (deterministic, synthetic) + BN folding helpers
# -----------------------------------------------------------------------------
def _fold_bn(gamma, beta, mean, var, eps=1e-5):
    scale = gamma * lax.rsqrt(var + eps)
    bias = beta - mean * scale
    return scale, bias


def _prep_conv(w_oihw, gamma, beta, mean, var, eps=1e-5):
    # (Cout, Cin, 3, 3) -> (9*Cin, Cout), row index = (kh*3 + kw)*Cin + ci,
    # with the inference-BN per-output-channel scale folded into the weights.
    scale, bias = _fold_bn(gamma, beta, mean, var, eps)
    cout = w_oihw.shape[0]
    w = jnp.transpose(w_oihw, (2, 3, 1, 0)).reshape(-1, cout)   # (9*Cin, Cout)
    w = w * scale[None, :]
    return w, bias.reshape(1, cout)


def init_encoder_params(key, in_channels, out_channels):
    keys = jax.random.split(key, 15)
    k = iter(keys)

    def conv_w(cin, cout):
        return 0.1 * jax.random.normal(next(k), (cout, cin, 3, 3), jnp.float32)

    def bn(c):
        gamma = 1.0 + 0.1 * jax.random.normal(next(k), (c,), jnp.float32)
        beta = 0.1 * jax.random.normal(next(k), (c,), jnp.float32)
        mean = 0.1 * jax.random.normal(next(k), (c,), jnp.float32)
        var = jax.random.uniform(next(k), (c,), jnp.float32, 0.5, 1.5)
        return gamma, beta, mean, var

    p = {}
    p["conv_w"] = conv_w(in_channels, out_channels)
    p["bn"] = bn(out_channels)
    p["bb_conv1_w"] = conv_w(out_channels, out_channels)
    p["bb_bn1"] = bn(out_channels)
    p["bb_conv2_w"] = conv_w(out_channels, out_channels)
    p["bb_bn2"] = bn(out_channels)
    return p


# -----------------------------------------------------------------------------
# Encoder forward (single fused Pallas call)
# -----------------------------------------------------------------------------
@functools.partial(jax.jit, static_argnames=("stride",))
def encoder_forward(x_nchw, params, *, stride=1):
    if stride != 1:
        # TODO(synk): implement stride > 1 in the fused kernel.
        raise NotImplementedError("Encoder Pallas kernel only supports stride=1")

    N, Cin, H, W = x_nchw.shape
    Cout = params["conv_w"].shape[0]

    # NCHW (PyTorch) -> NHWC (channels last -> lane axis)
    x = jnp.transpose(x_nchw, (0, 2, 3, 1))

    w1, b1 = _prep_conv(params["conv_w"], *params["bn"])
    w2, b2 = _prep_conv(params["bb_conv1_w"], *params["bb_bn1"])
    w3, b3 = _prep_conv(params["bb_conv2_w"], *params["bb_bn2"])

    def _img(n):
        return (n, 0, 0, 0)

    def _fixed2(n):
        return (0, 0)

    in_specs = [
        pl.BlockSpec((1, H, W, Cin), _img),          # x
        pl.BlockSpec((9 * Cin, Cout), _fixed2),      # stem conv weights (scale-folded)
        pl.BlockSpec((1, Cout), _fixed2),            # stem BN bias
        pl.BlockSpec((9 * Cout, Cout), _fixed2),     # block conv1 weights
        pl.BlockSpec((1, Cout), _fixed2),
        pl.BlockSpec((9 * Cout, Cout), _fixed2),     # block conv2 weights
        pl.BlockSpec((1, Cout), _fixed2),
    ]

    kernel = _make_encoder_kernel(H, W, Cin, Cout)

    y = pl.pallas_call(
        kernel,
        out_shape=jax.ShapeDtypeStruct((N, H, W, Cout), x.dtype),
        grid=(N,),
        in_specs=in_specs,
        out_specs=pl.BlockSpec((1, H, W, Cout), _img),
        scratch_shapes=[
            pltpu.VMEM((H + 2, W + 2, Cin), jnp.float32),    # zero-padded x
            pltpu.VMEM((H + 2, W + 2, Cout), jnp.float32),   # zero-padded y / z
            pltpu.VMEM((H * W, 9 * Cin), jnp.float32),       # im2col patch (stem)
            pltpu.VMEM((H * W, 9 * Cout), jnp.float32),      # im2col patch (block)
        ],
        compiler_params=pltpu.CompilerParams(
            dimension_semantics=("parallel",),
            vmem_limit_bytes=32 * 1024 * 1024),
    )(x, w1, b1, w2, b2, w3, b3)

    # NHWC -> NCHW
    return jnp.transpose(y, (0, 3, 1, 2))


# -----------------------------------------------------------------------------
# Plain-JAX reference (for correctness check)
# -----------------------------------------------------------------------------
def _ref_conv_bn(x_nchw, w_oihw, scale, bias, relu, residual=None):
    y = lax.conv_general_dilated(
        x_nchw, w_oihw, window_strides=(1, 1), padding=((1, 1), (1, 1)),
        dimension_numbers=("NCHW", "OIHW", "NCHW"))
    y = y * scale[None, :, None, None] + bias[None, :, None, None]
    if residual is not None:
        y = y + residual
    if relu:
        y = jnp.maximum(y, 0.0)
    return y


def encoder_forward_ref(x_nchw, params):
    s0, b0 = _fold_bn(*params["bn"])
    s1, b1 = _fold_bn(*params["bb_bn1"])
    s2, b2 = _fold_bn(*params["bb_bn2"])
    y = _ref_conv_bn(x_nchw, params["conv_w"], s0, b0, True)
    r = y
    z = _ref_conv_bn(y, params["bb_conv1_w"], s1, b1, True)
    z = _ref_conv_bn(z, params["bb_conv2_w"], s2, b2, True, residual=r)
    return z


# -----------------------------------------------------------------------------
if __name__ == "__main__":
    key = jax.random.PRNGKey(0)
    kx, kp = jax.random.split(key)

    N, Cin, Cout, H, W = 2, 4, 8, 16, 16   # small shapes; stride = 1 (default)
    x = jax.random.normal(kx, (N, Cin, H, W), jnp.float32)   # NCHW like PyTorch
    params = init_encoder_params(kp, Cin, Cout)

    out = encoder_forward(x, params)
    out = jax.block_until_ready(out)

    ref = encoder_forward_ref(x, params)
    assert out.shape == (N, Cout, H, W), out.shape
    assert jnp.allclose(out, ref, atol=1e-4, rtol=1e-4), (
        float(jnp.max(jnp.abs(out - ref))))

    print("KERNEL_OK")
</pallas_src>

<mosaic_0001>
module attributes {stable_mosaic.version = 11 : i64} {
  func.func @kernel(%arg0: i32, %arg1: memref<1x16x16x4xf32, #tpu.memory_space<vmem>>, %arg2: memref<36x8xf32, #tpu.memory_space<vmem>>, %arg3: memref<1x8xf32, #tpu.memory_space<vmem>>, %arg4: memref<72x8xf32, #tpu.memory_space<vmem>>, %arg5: memref<1x8xf32, #tpu.memory_space<vmem>>, %arg6: memref<72x8xf32, #tpu.memory_space<vmem>>, %arg7: memref<1x8xf32, #tpu.memory_space<vmem>>, %arg8: memref<1x16x16x8xf32, #tpu.memory_space<vmem>>, %arg9: memref<18x18x4xf32, #tpu.memory_space<vmem>>, %arg10: memref<18x18x8xf32, #tpu.memory_space<vmem>>, %arg11: memref<256x36xf32, #tpu.memory_space<vmem>>, %arg12: memref<256x72xf32, #tpu.memory_space<vmem>>) attributes {dimension_semantics = [#tpu.dimension_semantics<parallel>], iteration_bounds = array<i64: 2>, scalar_prefetch = 0 : i64, scratch_operands = 4 : i64, tpu.core_type = #tpu.core_type<tc>, window_params = [{transform_indices = @transform_0, window_bounds = array<i64: 1, 16, 16, 4>}, {pipeline_mode = #tpu.pipeline_mode<synchronous>, transform_indices = @transform_1, window_bounds = array<i64: 36, 8>}, {pipeline_mode = #tpu.pipeline_mode<synchronous>, transform_indices = @transform_2, window_bounds = array<i64: 1, 8>}, {pipeline_mode = #tpu.pipeline_mode<synchronous>, transform_indices = @transform_3, window_bounds = array<i64: 72, 8>}, {pipeline_mode = #tpu.pipeline_mode<synchronous>, transform_indices = @transform_4, window_bounds = array<i64: 1, 8>}, {pipeline_mode = #tpu.pipeline_mode<synchronous>, transform_indices = @transform_5, window_bounds = array<i64: 72, 8>}, {pipeline_mode = #tpu.pipeline_mode<synchronous>, transform_indices = @transform_6, window_bounds = array<i64: 1, 8>}, {transform_indices = @transform_7, window_bounds = array<i64: 1, 16, 16, 8>}]} {
    %cst = arith.constant 0.000000e+00 : f32
    %0 = vector.broadcast %cst : f32 to vector<18x18x4xf32>
    %c0 = arith.constant 0 : index
    %c0_0 = arith.constant 0 : index
    %c0_1 = arith.constant 0 : index
    %1 = vector.load %arg9[%c0, %c0_0, %c0_1] : memref<18x18x4xf32, #tpu.memory_space<vmem>>, vector<18x18x4xf32>
    tpu.vector_store %arg9[%c0, %c0_0, %c0_1], %0 {strides = array<i32>} : memref<18x18x4xf32, #tpu.memory_space<vmem>>, vector<18x18x4xf32>,
    %cst_2 = arith.constant 0.000000e+00 : f32
    %2 = vector.broadcast %cst_2 : f32 to vector<18x18x8xf32>
    %c0_3 = arith.constant 0 : index
    %c0_4 = arith.constant 0 : index
    %c0_5 = arith.constant 0 : index
    %3 = vector.load %arg10[%c0_3, %c0_4, %c0_5] : memref<18x18x8xf32, #tpu.memory_space<vmem>>, vector<18x18x8xf32>
    tpu.vector_store %arg10[%c0_3, %c0_4, %c0_5], %2 {strides = array<i32>} : memref<18x18x8xf32, #tpu.memory_space<vmem>>, vector<18x18x8xf32>,
    %c0_6 = arith.constant 0 : index
    %c0_7 = arith.constant 0 : index
    %c0_8 = arith.constant 0 : index
    %c0_9 = arith.constant 0 : index
    %4 = vector.load %arg1[%c0_6, %c0_7, %c0_8, %c0_9] : memref<1x16x16x4xf32, #tpu.memory_space<vmem>>, vector<1x16x16x4xf32>
    %5 = vector.shape_cast %4 : vector<1x16x16x4xf32> to vector<16x16x4xf32>
    %c1 = arith.constant 1 : index
    %c1_10 = arith.constant 1 : index
    %c0_11 = arith.constant 0 : index
    %6 = vector.load %arg9[%c1, %c1_10, %c0_11] : memref<18x18x4xf32, #tpu.memory_space<vmem>>, vector<16x16x4xf32>
    tpu.vector_store %arg9[%c1, %c1_10, %c0_11], %5 {strides = array<i32>} : memref<18x18x4xf32, #tpu.memory_space<vmem>>, vector<16x16x4xf32>,
    %c0_12 = arith.constant 0 : index
    %c0_13 = arith.constant 0 : index
    %c0_14 = arith.constant 0 : index
    %7 = vector.load %arg9[%c0_12, %c0_13, %c0_14] : memref<18x18x4xf32, #tpu.memory_space<vmem>>, vector<16x16x4xf32>
    %8 = vector.shape_cast %7 : vector<16x16x4xf32> to vector<256x4xf32>
    %c0_15 = arith.constant 0 : index
    %c0_16 = arith.constant 0 : index
    %9 = vector.load %arg11[%c0_15, %c0_16] : memref<256x36xf32, #tpu.memory_space<vmem>>, vector<256x4xf32>
    tpu.vector_store %arg11[%c0_15, %c0_16], %8 {strides = array<i32>} : memref<256x36xf32, #tpu.memory_space<vmem>>, vector<256x4xf32>,
    %c0_17 = arith.constant 0 : index
    %c1_18 = arith.constant 1 : index
    %c0_19 = arith.constant 0 : index
    %10 = vector.load %arg9[%c0_17, %c1_18, %c0_19] : memref<18x18x4xf32, #tpu.memory_space<vmem>>, vector<16x16x4xf32>
    %11 = vector.shape_cast %10 : vector<16x16x4xf32> to vector<256x4xf32>
    %c0_20 = arith.constant 0 : index
    %c4 = arith.constant 4 : index
    %12 = vector.load %arg11[%c0_20, %c4] : memref<256x36xf32, #tpu.memory_space<vmem>>, vector<256x4xf32>
    tpu.vector_store %arg11[%c0_20, %c4], %11 {strides = array<i32>} : memref<256x36xf32, #tpu.memory_space<vmem>>, vector<256x4xf32>,
    %c0_21 = arith.constant 0 : index
    %c2 = arith.constant 2 : index
    %c0_22 = arith.constant 0 : index
    %13 = vector.load %arg9[%c0_21, %c2, %c0_22] : memref<18x18x4xf32, #tpu.memory_space<vmem>>, vector<16x16x4xf32>
    %14 = vector.shape_cast %13 : vector<16x16x4xf32> to vector<256x4xf32>
    %c0_23 = arith.constant 0 : index
    %c8 = arith.constant 8 : index
    %15 = vector.load %arg11[%c0_23, %c8] : memref<256x36xf32, #tpu.memory_space<vmem>>, vector<256x4xf32>
    tpu.vector_store %arg11[%c0_23, %c8], %14 {strides = array<i32>} : memref<256x36xf32, #tpu.memory_space<vmem>>, vector<256x4xf32>,
    %c1_24 = arith.constant 1 : index
    %c0_25 = arith.constant 0 : index
    %c0_26 = arith.constant 0 : index
    %16 = vector.load %arg9[%c1_24, %c0_25, %c0_26] : memref<18x18x4xf32, #tpu.memory_space<vmem>>, vector<16x16x4xf32>
    %17 = vector.shape_cast %16 : vector<16x16x4xf32> to vector<256x4xf32>
    %c0_27 = arith.constant 0 : index
    %c12 = arith.constant 12 : index
    %18 = vector.load %arg11[%c0_27, %c12] : memref<256x36xf32, #tpu.memory_space<vmem>>, vector<256x4xf32>
    tpu.vector_store %arg11[%c0_27, %c12], %17 {strides = array<i32>} : memref<256x36xf32, #tpu.memory_space<vmem>>, vector<256x4xf32>,
    %c1_28 = arith.constant 1 : index
    %c1_29 = arith.constant 1 : index
    %c0_30 = arith.constant 0 : index
    %19 = vector.load %arg9[%c1_28, %c1_29, %c0_30] : memref<18x18x4xf32, #tpu.memory_space<vmem>>, vector<16x16x4xf32>
    %20 = vector.shape_cast %19 : vector<16x16x4xf32> to vector<256x4xf32>
    %c0_31 = arith.constant 0 : index
    %c16 = arith.constant 16 : index
    %21 = vector.load %arg11[%c0_31, %c16] : memref<256x36xf32, #tpu.memory_space<vmem>>, vector<256x4xf32>
    tpu.vector_store %arg11[%c0_31, %c16], %20 {strides = array<i32>} : memref<256x36xf32, #tpu.memory_space<vmem>>, vector<256x4xf32>,
    %c1_32 = arith.constant 1 : index
    %c2_33 = arith.constant 2 : index
    %c0_34 = arith.constant 0 : index
    %22 = vector.load %arg9[%c1_32, %c2_33, %c0_34] : memref<18x18x4xf32, #tpu.memory_space<vmem>>, vector<16x16x4xf32>
    %23 = vector.shape_cast %22 : vector<16x16x4xf32> to vector<256x4xf32>
    %c0_35 = arith.constant 0 : index
    %c20 = arith.constant 20 : index
    %24 = vector.load %arg11[%c0_35, %c20] : memref<256x36xf32, #tpu.memory_space<vmem>>, vector<256x4xf32>
    tpu.vector_store %arg11[%c0_35, %c20], %23 {strides = array<i32>} : memref<256x36xf32, #tpu.memory_space<vmem>>, vector<256x4xf32>,
    %c2_36 = arith.constant 2 : index
    %c0_37 = arith.constant 0 : index
    %c0_38 = arith.constant 0 : index
    %25 = vector.load %arg9[%c2_36, %c0_37, %c0_38] : memref<18x18x4xf32, #tpu.memory_space<vmem>>, vector<16x16x4xf32>
    %26 = vector.shape_cast %25 : vector<16x16x4xf32> to vector<256x4xf32>
    %c0_39 = arith.constant 0 : index
    %c24 = arith.constant 24 : index
    %27 = vector.load %arg11[%c0_39, %c24] : memref<256x36xf32, #tpu.memory_space<vmem>>, vector<256x4xf32>
    tpu.vector_store %arg11[%c0_39, %c24], %26 {strides = array<i32>} : memref<256x36xf32, #tpu.memory_space<vmem>>, vector<256x4xf32>,
    %c2_40 = arith.constant 2 : index
    %c1_41 = arith.constant 1 : index
    %c0_42 = arith.constant 0 : index
    %28 = vector.load %arg9[%c2_40, %c1_41, %c0_42] : memref<18x18x4xf32, #tpu.memory_space<vmem>>, vector<16x16x4xf32>
    %29 = vector.shape_cast %28 : vector<16x16x4xf32> to vector<256x4xf32>
    %c0_43 = arith.constant 0 : index
    %c28 = arith.constant 28 : index
    %30 = vector.load %arg11[%c0_43, %c28] : memref<256x36xf32, #tpu.memory_space<vmem>>, vector<256x4xf32>
    tpu.vector_store %arg11[%c0_43, %c28], %29 {strides = array<i32>} : memref<256x36xf32, #tpu.memory_space<vmem>>, vector<256x4xf32>,
    %c2_44 = arith.constant 2 : index
    %c2_45 = arith.constant 2 : index
    %c0_46 = arith.constant 0 : index
    %31 = vector.load %arg9[%c2_44, %c2_45, %c0_46] : memref<18x18x4xf32, #tpu.memory_space<vmem>>, vector<16x16x4xf32>
    %32 = vector.shape_cast %31 : vector<16x16x4xf32> to vector<256x4xf32>
    %c0_47 = arith.constant 0 : index
    %c32 = arith.constant 32 : index
    %33 = vector.load %arg11[%c0_47, %c32] : memref<256x36xf32, #tpu.memory_space<vmem>>, vector<256x4xf32>
    tpu.vector_store %arg11[%c0_47, %c32], %32 {strides = array<i32>} : memref<256x36xf32, #tpu.memory_space<vmem>>, vector<256x4xf32>,
    %c0_48 = arith.constant 0 : index
    %c0_49 = arith.constant 0 : index
    %34 = vector.load %arg11[%c0_48, %c0_49] : memref<256x36xf32, #tpu.memory_space<vmem>>, vector<256x36xf32>
    %c0_50 = arith.constant 0 : index
    %c0_51 = arith.constant 0 : index
    %35 = vector.load %arg2[%c0_50, %c0_51] : memref<36x8xf32, #tpu.memory_space<vmem>>, vector<36x8xf32>
    %cst_52 = arith.constant dense<0.000000e+00> : vector<256x8xf32>
    %36 = tpu.matmul %34, %35, %cst_52 {dimension_numbers = #tpu.dot_dimension_numbers<[1], [0], [0], [1], [0, 0, 1, 1], [], []>} : vector<256x36xf32>, vector<36x8xf32>, vector<256x8xf32> -> vector<256x8xf32>
    %c0_53 = arith.constant 0 : index
    %c0_54 = arith.constant 0 : index
    %37 = vector.load %arg3[%c0_53, %c0_54] : memref<1x8xf32, #tpu.memory_space<vmem>>, vector<1x8xf32>
    %38 = vector.broadcast %37 : vector<1x8xf32> to vector<256x8xf32>
    %39 = arith.addf %36, %38 : vector<256x8xf32>
    %cst_55 = arith.constant 0.000000e+00 : f32
    %40 = vector.broadcast %cst_55 : f32 to vector<256x8xf32>
    %41 = arith.maximumf %39, %40 : vector<256x8xf32>
    %42 = vector.shape_cast %41 : vector<256x8xf32> to vector<16x16x8xf32>
    %c1_56 = arith.constant 1 : index
    %c1_57 = arith.constant 1 : index
    %c0_58 = arith.constant 0 : index
    %43 = vector.load %arg10[%c1_56, %c1_57, %c0_58] : memref<18x18x8xf32, #tpu.memory_space<vmem>>, vector<16x16x8xf32>
    tpu.vector_store %arg10[%c1_56, %c1_57, %c0_58], %42 {strides = array<i32>} : memref<18x18x8xf32, #tpu.memory_space<vmem>>, vector<16x16x8xf32>,
    %c0_59 = arith.constant 0 : index
    %c0_60 = arith.constant 0 : index
    %c0_61 = arith.constant 0 : index
    %44 = vector.load %arg10[%c0_59, %c0_60, %c0_61] : memref<18x18x8xf32, #tpu.memory_space<vmem>>, vector<16x16x8xf32>
    %45 = vector.shape_cast %44 : vector<16x16x8xf32> to vector<256x8xf32>
    %c0_62 = arith.constant 0 : index
    %c0_63 = arith.constant 0 : index
    %46 = vector.load %arg12[%c0_62, %c0_63] : memref<256x72xf32, #tpu.memory_space<vmem>>, vector<256x8xf32>
    tpu.vector_store %arg12[%c0_62, %c0_63], %45 {strides = array<i32>} : memref<256x72xf32, #tpu.memory_space<vmem>>, vector<256x8xf32>,
    %c0_64 = arith.constant 0 : index
    %c1_65 = arith.constant 1 : index
    %c0_66 = arith.constant 0 : index
    %47 = vector.load %arg10[%c0_64, %c1_65, %c0_66] : memref<18x18x8xf32, #tpu.memory_space<vmem>>, vector<16x16x8xf32>
    %48 = vector.shape_cast %47 : vector<16x16x8xf32> to vector<256x8xf32>
    %c0_67 = arith.constant 0 : index
    %c8_68 = arith.constant 8 : index
    %49 = vector.load %arg12[%c0_67, %c8_68] : memref<256x72xf32, #tpu.memory_space<vmem>>, vector<256x8xf32>
    tpu.vector_store %arg12[%c0_67, %c8_68], %48 {strides = array<i32>} : memref<256x72xf32, #tpu.memory_space<vmem>>, vector<256x8xf32>,
    %c0_69 = arith.constant 0 : index
    %c2_70 = arith.constant 2 : index
    %c0_71 = arith.constant 0 : index
    %50 = vector.load %arg10[%c0_69, %c2_70, %c0_71] : memref<18x18x8xf32, #tpu.memory_space<vmem>>, vector<16x16x8xf32>
    %51 = vector.shape_cast %50 : vector<16x16x8xf32> to vector<256x8xf32>
    %c0_72 = arith.constant 0 : index
    %c16_73 = arith.constant 16 : index
    %52 = vector.load %arg12[%c0_72, %c16_73] : memref<256x72xf32, #tpu.memory_space<vmem>>, vector<256x8xf32>
    tpu.vector_store %arg12[%c0_72, %c16_73], %51 {strides = array<i32>} : memref<256x72xf32, #tpu.memory_space<vmem>>, vector<256x8xf32>,
    %c1_74 = arith.constant 1 : index
    %c0_75 = arith.constant 0 : index
    %c0_76 = arith.constant 0 : index
    %53 = vector.load %arg10[%c1_74, %c0_75, %c0_76] : memref<18x18x8xf32, #tpu.memory_space<vmem>>, vector<16x16x8xf32>
    %54 = vector.shape_cast %53 : vector<16x16x8xf32> to vector<256x8xf32>
    %c0_77 = arith.constant 0 : index
    %c24_78 = arith.constant 24 : index
    %55 = vector.load %arg12[%c0_77, %c24_78] : memref<256x72xf32, #tpu.memory_space<vmem>>, vector<256x8xf32>
    tpu.vector_store %arg12[%c0_77, %c24_78], %54 {strides = array<i32>} : memref<256x72xf32, #tpu.memory_space<vmem>>, vector<256x8xf32>,
    %c1_79 = arith.constant 1 : index
    %c1_80 = arith.constant 1 : index
    %c0_81 = arith.constant 0 : index
    %56 = vector.load %arg10[%c1_79, %c1_80, %c0_81] : memref<18x18x8xf32, #tpu.memory_space<vmem>>, vector<16x16x8xf32>
    %57 = vector.shape_cast %56 : vector<16x16x8xf32> to vector<256x8xf32>
    %c0_82 = arith.constant 0 : index
    %c32_83 = arith.constant 32 : index
    %58 = vector.load %arg12[%c0_82, %c32_83] : memref<256x72xf32, #tpu.memory_space<vmem>>, vector<256x8xf32>
    tpu.vector_store %arg12[%c0_82, %c32_83], %57 {strides = array<i32>} : memref<256x72xf32, #tpu.memory_space<vmem>>, vector<256x8xf32>,
    %c1_84 = arith.constant 1 : index
    %c2_85 = arith.constant 2 : index
    %c0_86 = arith.constant 0 : index
    %59 = vector.load %arg10[%c1_84, %c2_85, %c0_86] : memref<18x18x8xf32, #tpu.memory_space<vmem>>, vector<16x16x8xf32>
    %60 = vector.shape_cast %59 : vector<16x16x8xf32> to vector<256x8xf32>
    %c0_87 = arith.constant 0 : index
    %c40 = arith.constant 40 : index
    %61 = vector.load %arg12[%c0_87, %c40] : memref<256x72xf32, #tpu.memory_space<vmem>>, vector<256x8xf32>
    tpu.vector_store %arg12[%c0_87, %c40], %60 {strides = array<i32>} : memref<256x72xf32, #tpu.memory_space<vmem>>, vector<256x8xf32>,
    %c2_88 = arith.constant 2 : index
    %c0_89 = arith.constant 0 : index
    %c0_90 = arith.constant 0 : index
    %62 = vector.load %arg10[%c2_88, %c0_89, %c0_90] : memref<18x18x8xf32, #tpu.memory_space<vmem>>, vector<16x16x8xf32>
    %63 = vector.shape_cast %62 : vector<16x16x8xf32> to vector<256x8xf32>
    %c0_91 = arith.constant 0 : index
    %c48 = arith.constant 48 : index
    %64 = vector.load %arg12[%c0_91, %c48] : memref<256x72xf32, #tpu.memory_space<vmem>>, vector<256x8xf32>
    tpu.vector_store %arg12[%c0_91, %c48], %63 {strides = array<i32>} : memref<256x72xf32, #tpu.memory_space<vmem>>, vector<256x8xf32>,
    %c2_92 = arith.constant 2 : index
    %c1_93 = arith.constant 1 : index
    %c0_94 = arith.constant 0 : index
    %65 = vector.load %arg10[%c2_92, %c1_93, %c0_94] : memref<18x18x8xf32, #tpu.memory_space<vmem>>, vector<16x16x8xf32>
    %66 = vector.shape_cast %65 : vector<16x16x8xf32> to vector<256x8xf32>
    %c0_95 = arith.constant 0 : index
    %c56 = arith.constant 56 : index
    %67 = vector.load %arg12[%c0_95, %c56] : memref<256x72xf32, #tpu.memory_space<vmem>>, vector<256x8xf32>
    tpu.vector_store %arg12[%c0_95, %c56], %66 {strides = array<i32>} : memref<256x72xf32, #tpu.memory_space<vmem>>, vector<256x8xf32>,
    %c2_96 = arith.constant 2 : index
    %c2_97 = arith.constant 2 : index
    %c0_98 = arith.constant 0 : index
    %68 = vector.load %arg10[%c2_96, %c2_97, %c0_98] : memref<18x18x8xf32, #tpu.memory_space<vmem>>, vector<16x16x8xf32>
    %69 = vector.shape_cast %68 : vector<16x16x8xf32> to vector<256x8xf32>
    %c0_99 = arith.constant 0 : index
    %c64 = arith.constant 64 : index
    %70 = vector.load %arg12[%c0_99, %c64] : memref<256x72xf32, #tpu.memory_space<vmem>>, vector<256x8xf32>
    tpu.vector_store %arg12[%c0_99, %c64], %69 {strides = array<i32>} : memref<256x72xf32, #tpu.memory_space<vmem>>, vector<256x8xf32>,
    %c0_100 = arith.constant 0 : index
    %c0_101 = arith.constant 0 : index
    %71 = vector.load %arg12[%c0_100, %c0_101] : memref<256x72xf32, #tpu.memory_space<vmem>>, vector<256x72xf32>
    %c0_102 = arith.constant 0 : index
    %c0_103 = arith.constant 0 : index
    %72 = vector.load %arg4[%c0_102, %c0_103] : memref<72x8xf32, #tpu.memory_space<vmem>>, vector<72x8xf32>
    %cst_104 = arith.constant dense<0.000000e+00> : vector<256x8xf32>
    %73 = tpu.matmul %71, %72, %cst_104 {dimension_numbers = #tpu.dot_dimension_numbers<[1], [0], [0], [1], [0, 0, 1, 1], [], []>} : vector<256x72xf32>, vector<72x8xf32>, vector<256x8xf32> -> vector<256x8xf32>
    %c0_105 = arith.constant 0 : index
    %c0_106 = arith.constant 0 : index
    %74 = vector.load %arg5[%c0_105, %c0_106] : memref<1x8xf32, #tpu.memory_space<vmem>>, vector<1x8xf32>
    %75 = vector.broadcast %74 : vector<1x8xf32> to vector<256x8xf32>
    %76 = arith.addf %73, %75 : vector<256x8xf32>
    %cst_107 = arith.constant 0.000000e+00 : f32
    %77 = vector.broadcast %cst_107 : f32 to vector<256x8xf32>
    %78 = arith.maximumf %76, %77 : vector<256x8xf32>
    %79 = vector.shape_cast %78 : vector<256x8xf32> to vector<16x16x8xf32>
    %c1_108 = arith.constant 1 : index
    %c1_109 = arith.constant 1 : index
    %c0_110 = arith.constant 0 : index
    %80 = vector.load %arg10[%c1_108, %c1_109, %c0_110] : memref<18x18x8xf32, #tpu.memory_space<vmem>>, vector<16x16x8xf32>
    tpu.vector_store %arg10[%c1_108, %c1_109, %c0_110], %79 {strides = array<i32>} : memref<18x18x8xf32, #tpu.memory_space<vmem>>, vector<16x16x8xf32>,
    %c0_111 = arith.constant 0 : index
    %c0_112 = arith.constant 0 : index
    %c0_113 = arith.constant 0 : index
    %81 = vector.load %arg10[%c0_111, %c0_112, %c0_113] : memref<18x18x8xf32, #tpu.memory_space<vmem>>, vector<16x16x8xf32>
    %82 = vector.shape_cast %81 : vector<16x16x8xf32> to vector<256x8xf32>
    %c0_114 = arith.constant 0 : index
    %c0_115 = arith.constant 0 : index
    %83 = vector.load %arg12[%c0_114, %c0_115] : memref<256x72xf32, #tpu.memory_space<vmem>>, vector<256x8xf32>
    tpu.vector_store %arg12[%c0_114, %c0_115], %82 {strides = array<i32>} : memref<256x72xf32, #tpu.memory_space<vmem>>, vector<256x8xf32>,
    %c0_116 = arith.constant 0 : index
    %c1_117 = arith.constant 1 : index
    %c0_118 = arith.constant 0 : index
    %84 = vector.load %arg10[%c0_116, %c1_117, %c0_118] : memref<18x18x8xf32, #tpu.memory_space<vmem>>, vector<16x16x8xf32>
    %85 = vector.shape_cast %84 : vector<16x16x8xf32> to vector<256x8xf32>
    %c0_119 = arith.constant 0 : index
    %c8_120 = arith.constant 8 : index
    %86 = vector.load %arg12[%c0_119, %c8_120] : memref<256x72xf32, #tpu.memory_space<vmem>>, vector<256x8xf32>
    tpu.vector_store %arg12[%c0_119, %c8_120], %85 {strides = array<i32>} : memref<256x72xf32, #tpu.memory_space<vmem>>, vector<256x8xf32>,
    %c0_121 = arith.constant 0 : index
    %c2_122 = arith.constant 2 : index
    %c0_123 = arith.constant 0 : index
    %87 = vector.load %arg10[%c0_121, %c2_122, %c0_123] : memref<18x18x8xf32, #tpu.memory_space<vmem>>, vector<16x16x8xf32>
    %88 = vector.shape_cast %87 : vector<16x16x8xf32> to vector<256x8xf32>
    %c0_124 = arith.constant 0 : index
    %c16_125 = arith.constant 16 : index
    %89 = vector.load %arg12[%c0_124, %c16_125] : memref<256x72xf32, #tpu.memory_space<vmem>>, vector<256x8xf32>
    tpu.vector_store %arg12[%c0_124, %c16_125], %88 {strides = array<i32>} : memref<256x72xf32, #tpu.memory_space<vmem>>, vector<256x8xf32>,
    %c1_126 = arith.constant 1 : index
    %c0_127 = arith.constant 0 : index
    %c0_128 = arith.constant 0 : index
    %90 = vector.load %arg10[%c1_126, %c0_127, %c0_128] : memref<18x18x8xf32, #tpu.memory_space<vmem>>, vector<16x16x8xf32>
    %91 = vector.shape_cast %90 : vector<16x16x8xf32> to vector<256x8xf32>
    %c0_129 = arith.constant 0 : index
    %c24_130 = arith.constant 24 : index
    %92 = vector.load %arg12[%c0_129, %c24_130] : memref<256x72xf32, #tpu.memory_space<vmem>>, vector<256x8xf32>
    tpu.vector_store %arg12[%c0_129, %c24_130], %91 {strides = array<i32>} : memref<256x72xf32, #tpu.memory_space<vmem>>, vector<256x8xf32>,
    %c1_131 = arith.constant 1 : index
    %c1_132 = arith.constant 1 : index
    %c0_133 = arith.constant 0 : index
    %93 = vector.load %arg10[%c1_131, %c1_132, %c0_133] : memref<18x18x8xf32, #tpu.memory_space<vmem>>, vector<16x16x8xf32>
    %94 = vector.shape_cast %93 : vector<16x16x8xf32> to vector<256x8xf32>
    %c0_134 = arith.constant 0 : index
    %c32_135 = arith.constant 32 : index
    %95 = vector.load %arg12[%c0_134, %c32_135] : memref<256x72xf32, #tpu.memory_space<vmem>>, vector<256x8xf32>
    tpu.vector_store %arg12[%c0_134, %c32_135], %94 {strides = array<i32>} : memref<256x72xf32, #tpu.memory_space<vmem>>, vector<256x8xf32>,
    %c1_136 = arith.constant 1 : index
    %c2_137 = arith.constant 2 : index
    %c0_138 = arith.constant 0 : index
    %96 = vector.load %arg10[%c1_136, %c2_137, %c0_138] : memref<18x18x8xf32, #tpu.memory_space<vmem>>, vector<16x16x8xf32>
    %97 = vector.shape_cast %96 : vector<16x16x8xf32> to vector<256x8xf32>
    %c0_139 = arith.constant 0 : index
    %c40_140 = arith.constant 40 : index
    %98 = vector.load %arg12[%c0_139, %c40_140] : memref<256x72xf32, #tpu.memory_space<vmem>>, vector<256x8xf32>
    tpu.vector_store %arg12[%c0_139, %c40_140], %97 {strides = array<i32>} : memref<256x72xf32, #tpu.memory_space<vmem>>, vector<256x8xf32>,
    %c2_141 = arith.constant 2 : index
    %c0_142 = arith.constant 0 : index
    %c0_143 = arith.constant 0 : index
    %99 = vector.load %arg10[%c2_141, %c0_142, %c0_143] : memref<18x18x8xf32, #tpu.memory_space<vmem>>, vector<16x16x8xf32>
    %100 = vector.shape_cast %99 : vector<16x16x8xf32> to vector<256x8xf32>
    %c0_144 = arith.constant 0 : index
    %c48_145 = arith.constant 48 : index
    %101 = vector.load %arg12[%c0_144, %c48_145] : memref<256x72xf32, #tpu.memory_space<vmem>>, vector<256x8xf32>
    tpu.vector_store %arg12[%c0_144, %c48_145], %100 {strides = array<i32>} : memref<256x72xf32, #tpu.memory_space<vmem>>, vector<256x8xf32>,
    %c2_146 = arith.constant 2 : index
    %c1_147 = arith.constant 1 : index
    %c0_148 = arith.constant 0 : index
    %102 = vector.load %arg10[%c2_146, %c1_147, %c0_148] : memref<18x18x8xf32, #tpu.memory_space<vmem>>, vector<16x16x8xf32>
    %103 = vector.shape_cast %102 : vector<16x16x8xf32> to vector<256x8xf32>
    %c0_149 = arith.constant 0 : index
    %c56_150 = arith.constant 56 : index
    %104 = vector.load %arg12[%c0_149, %c56_150] : memref<256x72xf32, #tpu.memory_space<vmem>>, vector<256x8xf32>
    tpu.vector_store %arg12[%c0_149, %c56_150], %103 {strides = array<i32>} : memref<256x72xf32, #tpu.memory_space<vmem>>, vector<256x8xf32>,
    %c2_151 = arith.constant 2 : index
    %c2_152 = arith.constant 2 : index
    %c0_153 = arith.constant 0 : index
    %105 = vector.load %arg10[%c2_151, %c2_152, %c0_153] : memref<18x18x8xf32, #tpu.memory_space<vmem>>, vector<16x16x8xf32>
    %106 = vector.shape_cast %105 : vector<16x16x8xf32> to vector<256x8xf32>
    %c0_154 = arith.constant 0 : index
    %c64_155 = arith.constant 64 : index
    %107 = vector.load %arg12[%c0_154, %c64_155] : memref<256x72xf32, #tpu.memory_space<vmem>>, vector<256x8xf32>
    tpu.vector_store %arg12[%c0_154, %c64_155], %106 {strides = array<i32>} : memref<256x72xf32, #tpu.memory_space<vmem>>, vector<256x8xf32>,
    %c0_156 = arith.constant 0 : index
    %c0_157 = arith.constant 0 : index
    %108 = vector.load %arg12[%c0_156, %c0_157] : memref<256x72xf32, #tpu.memory_space<vmem>>, vector<256x72xf32>
    %c0_158 = arith.constant 0 : index
    %c0_159 = arith.constant 0 : index
    %109 = vector.load %arg6[%c0_158, %c0_159] : memref<72x8xf32, #tpu.memory_space<vmem>>, vector<72x8xf32>
    %cst_160 = arith.constant dense<0.000000e+00> : vector<256x8xf32>
    %110 = tpu.matmul %108, %109, %cst_160 {dimension_numbers = #tpu.dot_dimension_numbers<[1], [0], [0], [1], [0, 0, 1, 1], [], []>} : vector<256x72xf32>, vector<72x8xf32>, vector<256x8xf32> -> vector<256x8xf32>
    %c0_161 = arith.constant 0 : index
    %c0_162 = arith.constant 0 : index
    %111 = vector.load %arg7[%c0_161, %c0_162] : memref<1x8xf32, #tpu.memory_space<vmem>>, vector<1x8xf32>
    %112 = vector.broadcast %111 : vector<1x8xf32> to vector<256x8xf32>
    %113 = arith.addf %110, %112 : vector<256x8xf32>
    %114 = arith.addf %113, %41 : vector<256x8xf32>
    %cst_163 = arith.constant 0.000000e+00 : f32
    %115 = vector.broadcast %cst_163 : f32 to vector<256x8xf32>
    %116 = arith.maximumf %114, %115 : vector<256x8xf32>
    %117 = vector.shape_cast %116 : vector<256x8xf32> to vector<16x16x8xf32>
    %c0_164 = arith.constant 0 : index
    %c0_165 = arith.constant 0 : index
    %c0_166 = arith.constant 0 : index
    %c0_167 = arith.constant 0 : index
    %118 = vector.load %arg8[%c0_164, %c0_165, %c0_166, %c0_167] : memref<1x16x16x8xf32, #tpu.memory_space<vmem>>, vector<1x16x16x8xf32>
    %119 = vector.shape_cast %118 : vector<1x16x16x8xf32> to vector<16x16x8xf32>
    %120 = vector.shape_cast %117 : vector<16x16x8xf32> to vector<1x16x16x8xf32>
    tpu.vector_store %arg8[%c0_164, %c0_165, %c0_166, %c0_167], %120 {strides = array<i32>} : memref<1x16x16x8xf32, #tpu.memory_space<vmem>>, vector<1x16x16x8xf32>,
    return
  }
  func.func @transform_0(%arg0: i32) -> (i32, i32, i32, i32) {
    %c0_i32 = arith.constant 0 : i32
    %c0_i32_0 = arith.constant 0 : i32
    %c0_i32_1 = arith.constant 0 : i32
    %c0_i32_2 = arith.constant 0 : i32
    return %arg0, %c0_i32, %c0_i32_0, %c0_i32_1 : i32, i32, i32, i32
  }
  func.func @transform_1(%arg0: i32) -> (i32, i32) {
    %c0_i32 = arith.constant 0 : i32
    %c0_i32_0 = arith.constant 0 : i32
    %c0_i32_1 = arith.constant 0 : i32
    return %c0_i32, %c0_i32_0 : i32, i32
  }
  func.func @transform_2(%arg0: i32) -> (i32, i32) {
    %c0_i32 = arith.constant 0 : i32
    %c0_i32_0 = arith.constant 0 : i32
    %c0_i32_1 = arith.constant 0 : i32
    return %c0_i32, %c0_i32_0 : i32, i32
  }
  func.func @transform_3(%arg0: i32) -> (i32, i32) {
    %c0_i32 = arith.constant 0 : i32
    %c0_i32_0 = arith.constant 0 : i32
    %c0_i32_1 = arith.constant 0 : i32
    return %c0_i32, %c0_i32_0 : i32, i32
  }
  func.func @transform_4(%arg0: i32) -> (i32, i32) {
    %c0_i32 = arith.constant 0 : i32
    %c0_i32_0 = arith.constant 0 : i32
    %c0_i32_1 = arith.constant 0 : i32
    return %c0_i32, %c0_i32_0 : i32, i32
  }
  func.func @transform_5(%arg0: i32) -> (i32, i32) {
    %c0_i32 = arith.constant 0 : i32
    %c0_i32_0 = arith.constant 0 : i32
    %c0_i32_1 = arith.constant 0 : i32
    return %c0_i32, %c0_i32_0 : i32, i32
  }
  func.func @transform_6(%arg0: i32) -> (i32, i32) {
    %c0_i32 = arith.constant 0 : i32
    %c0_i32_0 = arith.constant 0 : i32
    %c0_i32_1 = arith.constant 0 : i32
    return %c0_i32, %c0_i32_0 : i32, i32
  }
  func.func @transform_7(%arg0: i32) -> (i32, i32, i32, i32) {
    %c0_i32 = arith.constant 0 : i32
    %c0_i32_0 = arith.constant 0 : i32
    %c0_i32_1 = arith.constant 0 : i32
    %c0_i32_2 = arith.constant 0 : i32
    return %arg0, %c0_i32, %c0_i32_0, %c0_i32_1 : i32, i32, i32, i32
  }
}

</mosaic_0001>

<llo_original>
// kernel: encoder_forward.1
$region0: #{encoder_forward.1}
  #allocation0 [shape = 'u32[]', space=smem, size = 0x4, offset = 0x4, fixed_abs, tag = 'smem constant byte address 0x4 - core index']
  #allocation1 [shape = 'u32[144,128]{1,0:T(1,128)}', space=vmem, size = 0x12000, scoped, tag = 'internal scratch']
  #allocation2 [shape = 'f32[18,18,4]{2,1,0:T(8,128)}', space=vmem, size = 0x36000, scoped, tag = 'scratch operand']
  #allocation3 [shape = 'f32[18,18,8]{2,1,0:T(8,128)}', space=vmem, size = 0x36000, scoped, tag = 'scratch operand']
  #allocation4 [shape = 'f32[256,36]{1,0:T(8,128)}', space=vmem, size = 0x20000, scoped, tag = 'scratch operand']
  #allocation5 [shape = 'f32[256,72]{1,0:T(8,128)}', space=vmem, size = 0x20000, scoped, tag = 'scratch operand']
  %s0 = inlined_call_operand.vmem [shape: f32[2,16,16,4], index: 0, kind: input, shape index: {}]
  %s1 = inlined_call_operand.vmem [shape: f32[36,8], index: 1, kind: input, shape index: {}]
  %s2 = inlined_call_operand.vmem [shape: f32[1,8], index: 2, kind: input, shape index: {}]
  %s3 = inlined_call_operand.vmem [shape: f32[72,8], index: 3, kind: input, shape index: {}]
  %s4 = inlined_call_operand.vmem [shape: f32[1,8], index: 4, kind: input, shape index: {}]
  %s5 = inlined_call_operand.vmem [shape: f32[72,8], index: 5, kind: input, shape index: {}]
  %s6 = inlined_call_operand.vmem [shape: f32[1,8], index: 6, kind: input, shape index: {}]
  %s7 = inlined_call_operand.vmem [shape: f32[2,16,16,8], index: 7, kind: output, shape index: {}]
  %s8 = sld [smem:[#allocation0]]
  $region61: #{encoder_forward.1} parent=0
    _
  %s10 = ssub.s32 1, %s8
  %s11 = scalar_select 0, %s10, %s8
  loop: start=0, step=1, limit=4
  $region2: #{encoder_forward.1} parent=0 // loop_pre_header
    _
  $region3: #{encoder_forward.1} parent=0 // loop_header
    %s13 = sphi 0, %s17
    %p14 = scmp.ge.s32.totalorder %s13, 4
    %s23 = sphi 0, %s25
    %s26 = sphi 0, %s23
    %s27 = sphi 0, %s26
    %s43 = sphi 0, %s27
    %s47 = sphi 0, %s47
    %s49 = sphi 0, %s47
    %s50 = sphi 0, %s49
    %s64 = sphi 0, %s50
    %s68 = sphi 0, %s68
    %s70 = sphi 0, %s68
    %s71 = sphi 0, %s70
    %s85 = sphi 0, %s71
    %s89 = sphi 0, %s89
    %s91 = sphi 0, %s89
    %s92 = sphi 0, %s91
    %s106 = sphi 0, %s92
    %s110 = sphi 0, %s110
    %s112 = sphi 0, %s110
    %s113 = sphi 0, %s112
    %s127 = sphi 0, %s113
    %s131 = sphi 0, %s131
    %s133 = sphi 0, %s131
    %s134 = sphi 0, %s133
    %s148 = sphi 0, %s134
    %s152 = sphi 0, %s152
    %s154 = sphi 0, %s152
    %s155 = sphi 0, %s154
    %s169 = sphi 0, %s155
    %s175 = sphi 0, %s177
    %s178 = sphi 0, %s175
    %s179 = sphi 0, %s178
    %s195 = sphi 0, %s179
  $region4: #{encoder_forward.1} parent=0 // loop_header_branch
    %16 = sbr.rel (%p14) target = $region8
  $region5: #{encoder_forward.1} parent=0 // loop_body
    %s18 = ssub.s32 %s13, 1
    %s19 = ssub.s32 %s13, 2
    %s20 = sadd.s32 %s13, 1
    %s21 = ssub.s32 %s13, %s20
    %p22 = scmp.eq.s32.totalorder %s21, 0
    %s24 = sadd.s32 %s23, 1
    %s25 = scalar_select %p22, %s23, %s24
    %p28 = pneg %p22
    %p29 = scmp.eq.s32.totalorder %s13, 1
    %p30 = por %p28, %p29
    %p31 = scmp.ne.s32.totalorder %s23, %s26
    %p32 = scmp.eq.s32.totalorder %s13, 0
    %p33 = por %p31, %p32
    %p34 = scmp.ne.s32.totalorder %s23, %s26
    %p35 = scmp.eq.s32.totalorder %s18, 1
    %p36 = por %p34, %p35
    %p37 = scmp.ne.s32.totalorder %s26, %s27
    %p38 = scmp.eq.s32.totalorder %s18, 0
    %p39 = por %p37, %p38
    %p40 = scmp.ne.s32.totalorder %s26, %s27
    %p41 = scmp.eq.s32.totalorder %s19, 1
    %p42 = por %p40, %p41
    %p44 = scmp.ne.s32.totalorder %s27, %s43
    %p45 = scmp.eq.s32.totalorder %s19, 0
    %p46 = por %p44, %p45
    %s48 = sadd.s32 %s47, 1
    %p51 = scmp.eq.s32.totalorder %s13, 1
    %p52 = scmp.ne.s32.totalorder %s47, %s49
    %p53 = scmp.eq.s32.totalorder %s13, 0
    %p54 = por %p52, %p53
    %p55 = scmp.ne.s32.totalorder %s47, %s49
    %p56 = scmp.eq.s32.totalorder %s18, 1
    %p57 = por %p55, %p56
    %p58 = scmp.ne.s32.totalorder %s49, %s50
    %p59 = scmp.eq.s32.totalorder %s18, 0
    %p60 = por %p58, %p59
    %p61 = scmp.ne.s32.totalorder %s49, %s50
    %p62 = scmp.eq.s32.totalorder %s19, 1
    %p63 = por %p61, %p62
    %p65 = scmp.ne.s32.totalorder %s50, %s64
    %p66 = scmp.eq.s32.totalorder %s19, 0
    %p67 = por %p65, %p66
    %s69 = sadd.s32 %s68, 1
    %p72 = scmp.eq.s32.totalorder %s13, 1
    %p73 = scmp.ne.s32.totalorder %s68, %s70
    %p74 = scmp.eq.s32.totalorder %s13, 0
    %p75 = por %p73, %p74
    %p76 = scmp.ne.s32.totalorder %s68, %s70
    %p77 = scmp.eq.s32.totalorder %s18, 1
    %p78 = por %p76, %p77
    %p79 = scmp.ne.s32.totalorder %s70, %s71
    %p80 = scmp.eq.s32.totalorder %s18, 0
    %p81 = por %p79, %p80
    %p82 = scmp.ne.s32.totalorder %s70, %s71
    %p83 = scmp.eq.s32.totalorder %s19, 1
    %p84 = por %p82, %p83
    %p86 = scmp.ne.s32.totalorder %s71, %s85
    %p87 = scmp.eq.s32.totalorder %s19, 0
    %p88 = por %p86, %p87
    %s90 = sadd.s32 %s89, 1
    %p93 = scmp.eq.s32.totalorder %s13, 1
    %p94 = scmp.ne.s32.totalorder %s89, %s91
    %p95 = scmp.eq.s32.totalorder %s13, 0
    %p96 = por %p94, %p95
    %p97 = scmp.ne.s32.totalorder %s89, %s91
    %p98 = scmp.eq.s32.totalorder %s18, 1
    %p99 = por %p97, %p98
    %p100 = scmp.ne.s32.totalorder %s91, %s92
    %p101 = scmp.eq.s32.totalorder %s18, 0
    %p102 = por %p100, %p101
    %p103 = scmp.ne.s32.totalorder %s91, %s92
    %p104 = scmp.eq.s32.totalorder %s19, 1
    %p105 = por %p103, %p104
    %p107 = scmp.ne.s32.totalorder %s92, %s106
    %p108 = scmp.eq.s32.totalorder %s19, 0
    %p109 = por %p107, %p108
    %s111 = sadd.s32 %s110, 1
    %p114 = scmp.eq.s32.totalorder %s13, 1
    %p115 = scmp.ne.s32.totalorder %s110, %s112
    %p116 = scmp.eq.s32.totalorder %s13, 0
    %p117 = por %p115, %p116
    %p118 = scmp.ne.s32.totalorder %s110, %s112
    %p119 = scmp.eq.s32.totalorder %s18, 1
    %p120 = por %p118, %p119
    %p121 = scmp.ne.s32.totalorder %s112, %s113
    %p122 = scmp.eq.s32.totalorder %s18, 0
    %p123 = por %p121, %p122
    %p124 = scmp.ne.s32.totalorder %s112, %s113
    %p125 = scmp.eq.s32.totalorder %s19, 1
    %p126 = por %p124, %p125
    %p128 = scmp.ne.s32.totalorder %s113, %s127
    %p129 = scmp.eq.s32.totalorder %s19, 0
    %p130 = por %p128, %p129
    %s132 = sadd.s32 %s131, 1
    %p135 = scmp.eq.s32.totalorder %s13, 1
    %p136 = scmp.ne.s32.totalorder %s131, %s133
    %p137 = scmp.eq.s32.totalorder %s13, 0
    %p138 = por %p136, %p137
    %p139 = scmp.ne.s32.totalorder %s131, %s133
    %p140 = scmp.eq.s32.totalorder %s18, 1
    %p141 = por %p139, %p140
    %p142 = scmp.ne.s32.totalorder %s133, %s134
    %p143 = scmp.eq.s32.totalorder %s18, 0
    %p144 = por %p142, %p143
    %p145 = scmp.ne.s32.totalorder %s133, %s134
    %p146 = scmp.eq.s32.totalorder %s19, 1
    %p147 = por %p145, %p146
    %p149 = scmp.ne.s32.totalorder %s134, %s148
    %p150 = scmp.eq.s32.totalorder %s19, 0
    %p151 = por %p149, %p150
    %s153 = sadd.s32 %s152, 1
    %p156 = scmp.eq.s32.totalorder %s13, 1
    %p157 = scmp.ne.s32.totalorder %s152, %s154
    %p158 = scmp.eq.s32.totalorder %s13, 0
    %p159 = por %p157, %p158
    %p160 = scmp.ne.s32.totalorder %s152, %s154
    %p161 = scmp.eq.s32.totalorder %s18, 1
    %p162 = por %p160, %p161
    %p163 = scmp.ne.s32.totalorder %s154, %s155
    %p164 = scmp.eq.s32.totalorder %s18, 0
    %p165 = por %p163, %p164
    %p166 = scmp.ne.s32.totalorder %s154, %s155
    %p167 = scmp.eq.s32.totalorder %s19, 1
    %p168 = por %p166, %p167
    %p170 = scmp.ne.s32.totalorder %s155, %s169
    %p171 = scmp.eq.s32.totalorder %s19, 0
    %p172 = por %p170, %p171
    %s173 = ssub.s32 %s13, %s20
    %p174 = scmp.eq.s32.totalorder %s173, 0
    %s176 = sadd.s32 %s175, 1
    %s177 = scalar_select %p174, %s175, %s176
    %p180 = pneg %p174
    %p181 = scmp.eq.s32.totalorder %s13, 1
    %p182 = por %p180, %p181
    %p183 = scmp.ne.s32.totalorder %s175, %s178
    %p184 = scmp.eq.s32.totalorder %s13, 0
    %p185 = por %p183, %p184
    %p186 = scmp.ne.s32.totalorder %s175, %s178
    %p187 = scmp.eq.s32.totalorder %s18, 1
    %p188 = por %p186, %p187
    %p189 = scmp.ne.s32.totalorder %s178, %s179
    %p190 = scmp.eq.s32.totalorder %s18, 0
    %p191 = por %p189, %p190
    %p192 = scmp.ne.s32.totalorder %s178, %s179
    %p193 = scmp.eq.s32.totalorder %s19, 1
    %p194 = por %p192, %p193
    %p196 = scmp.ne.s32.totalorder %s179, %s195
    %p197 = scmp.eq.s32.totalorder %s19, 0
    %p198 = por %p196, %p197
    %p199 = scmp.le.s32.totalorder 1, %s13
    %p200 = scmp.lt.s32.totalorder %s13, 3
    %p201 = pnand %p199, %p200
    %p202 = pneg %p201
    // Predicated region
    $region9: #{encoder_forward.1} parent=5 // pred_check
      _
    $region10: #{encoder_forward.1} parent=5 // pred_check_branch
      %204 = sbr.rel (%p201) target = $region12
    $region11: #{encoder_forward.1} parent=5 // pred_region
      %s205 = ssub.s32 %s13, 1
      // Predicated region
      $region13: #{encoder_forward.1} parent=11 // pred_check
        %p206 = pneg %p60
      $region14: #{encoder_forward.1} parent=11 // pred_check_branch
        %208 = sbr.rel (%p206) target = $region16
      $region15: #{encoder_forward.1} parent=11 // pred_region
        _
      $region16: #{encoder_forward.1} parent=11 // pred_fallthru
        _
      // Predicated region
      $region17: #{encoder_forward.1} parent=11 // pred_check
        %p209 = pneg %p81
      $region18: #{encoder_forward.1} parent=11 // pred_check_branch
        %211 = sbr.rel (%p209) target = $region20
      $region19: #{encoder_forward.1} parent=11 // pred_region
        _
      $region20: #{encoder_forward.1} parent=11 // pred_fallthru
        _
      // Predicated region
      $region21: #{encoder_forward.1} parent=11 // pred_check
        %p212 = pneg %p102
      $region22: #{encoder_forward.1} parent=11 // pred_check_branch
        %214 = sbr.rel (%p212) target = $region24
      $region23: #{encoder_forward.1} parent=11 // pred_region
        _
      $region24: #{encoder_forward.1} parent=11 // pred_fallthru
        _
      // Predicated region
      $region25: #{encoder_forward.1} parent=11 // pred_check
        %p215 = pneg %p123
      $region26: #{encoder_forward.1} parent=11 // pred_check_branch
        %217 = sbr.rel (%p215) target = $region28
      $region27: #{encoder_forward.1} parent=11 // pred_region
        _
      $region28: #{encoder_forward.1} parent=11 // pred_fallthru
        _
      // Predicated region
      $region29: #{encoder_forward.1} parent=11 // pred_check
        %p218 = pneg %p144
      $region30: #{encoder_forward.1} parent=11 // pred_check_branch
        %220 = sbr.rel (%p218) target = $region32
      $region31: #{encoder_forward.1} parent=11 // pred_region
        _
      $region32: #{encoder_forward.1} parent=11 // pred_fallthru
        _
      // Predicated region
      $region33: #{encoder_forward.1} parent=11 // pred_check
        %p221 = pneg %p165
      $region34: #{encoder_forward.1} parent=11 // pred_check_branch
        %223 = sbr.rel (%p221) target = $region36
      $region35: #{encoder_forward.1} parent=11 // pred_region
        _
      $region36: #{encoder_forward.1} parent=11 // pred_fallthru
        _
    $region12: #{encoder_forward.1} parent=5 // pred_fallthru
      _
    %p224 = scmp.lt.s32.totalorder %s13, 2
    // Predicated region
    $region37: #{encoder_forward.1} parent=5 // pred_check
      %p225 = pneg %p224
    $region38: #{encoder_forward.1} parent=5 // pred_check_branch
      %227 = sbr.rel (%p225) target = $region40
    $region39: #{encoder_forward.1} parent=5 // pred_region
      // Predicated region
      $region41: #{encoder_forward.1} parent=39 // pred_check
        %p228 = pneg %p33
      $region42: #{encoder_forward.1} parent=39 // pred_check_branch
        %230 = sbr.rel (%p228) target = $region44
      $region43: #{encoder_forward.1} parent=39 // pred_region
        %p231 = scmp.lt.s32.totalorder %s13, 1
        %s232 = scalar_select %p231, %s13, 1
        %s233 = smul.addr %s232, 32
        %s234 = smul.addr %s233, 8
        %s235 = scalar_lea.vmem %s0, %s234
      $region44: #{encoder_forward.1} parent=39 // pred_fallthru
        _
    $region40: #{encoder_forward.1} parent=5 // pred_fallthru
      _
    %p236 = scmp.le.s32.totalorder 1, %s13
    %p237 = scmp.lt.s32.totalorder %s13, 3
    %p238 = pnand %p236, %p237
    %p239 = pneg %p238
    // Predicated region
    $region45: #{encoder_forward.1} parent=5 // pred_check
      _
    $region46: #{encoder_forward.1} parent=5 // pred_check_branch
      %241 = sbr.rel (%p238) target = $region48
    $region47: #{encoder_forward.1} parent=5 // pred_region
      %s242 = ssub.s32 %s13, 1
      %p243 = scmp.lt.s32.totalorder %s18, 1
      %s244 = scalar_select %p243, %s18, 1
      %s245 = smul.addr %s244, 32
      %s246 = smul.addr %s245, 8
      %s247 = scalar_lea.vmem %s0, %s246
      %p248 = pneg %p39
      %p249 = pneg %p36
      %p250 = pneg %p60
      %p251 = pneg %p57
      %p252 = pneg %p81
      %p253 = pneg %p78
      %p254 = pneg %p102
      %p255 = pneg %p99
      %p256 = pneg %p123
      %p257 = pneg %p120
      %p258 = pneg %p144
      %p259 = pneg %p141
      %p260 = pneg %p165
      %p261 = pneg %p162
      %p262 = pneg %p191
      %p263 = pneg %p188
      %p264 = scmp.lt.s32.totalorder %s18, 1
      %s265 = scalar_select %p264, %s18, 1
      %s266 = smul.addr %s265, 32
      %s267 = smul.addr %s266, 8
      %s268 = scalar_lea.vmem %s7, %s267
      %p269 = scmp.lt.s32.totalorder %s18, 1
      %s270 = scalar_select %p269, %s18, 1
      %s271 = smul.addr %s270, 32
      %s272 = smul.addr %s271, 8
      %s273 = scalar_lea.vmem %s0, %s272
      %p274 = scmp.lt.s32.totalorder %s18, 1
      %s275 = scalar_select %p274, %s18, 1
      %s276 = smul.addr %s275, 32
      %s277 = smul.addr %s276, 8
      %s278 = scalar_lea.vmem %s7, %s277
      %vm279 = vcmask 31744
      %280 = vst.msk [vmem:[#allocation2] sm:$0xff] %vm279, 0.0
      %281 = vst.msk [vmem:[#allocation2 + $0x8] sm:$0xff] %vm279, 0.0
      %vm282 = vcmask 25600
      %283 = vst.msk [vmem:[#allocation2 + $0x10] sm:$0x3] %vm282, 0.0
      %284 = vst.msk [vmem:[#allocation2 + $0x18] sm:$0xff] %vm279, 0.0
      %285 = vst.msk [vmem:[#allocation2 + $0x20] sm:$0xff] %vm279, 0.0
      %286 = vst.msk [vmem:[#allocation2 + $0x28] sm:$0x3] %vm282, 0.0
      %287 = vst.msk [vmem:[#allocation2 + $0x30] sm:$0xff] %vm279, 0.0
      %288 = vst.msk [vmem:[#allocation2 + $0x38] sm:$0xff] %vm279, 0.0
      %289 = vst.msk [vmem:[#allocation2 + $0x40] sm:$0x3] %vm282, 0.0
      %290 = vst.msk [vmem:[#allocation2 + $0x48] sm:$0xff] %vm279, 0.0
      %291 = vst.msk [vmem:[#allocation2 + $0x50] sm:$0xff] %vm279, 0.0
      %292 = vst.msk [vmem:[#allocation2 + $0x58] sm:$0x3] %vm282, 0.0
      %293 = vst.msk [vmem:[#allocation2 + $0x60] sm:$0xff] %vm279, 0.0
      %294 = vst.msk [vmem:[#allocation2 + $0x68] sm:$0xff] %vm279, 0.0
      %295 = vst.msk [vmem:[#allocation2 + $0x70] sm:$0x3] %vm282, 0.0
      %296 = vst.msk [vmem:[#allocation2 + $0x78] sm:$0xff] %vm279, 0.0
      %297 = vst.msk [vmem:[#allocation2 + $0x80] sm:$0xff] %vm279, 0.0
      %298 = vst.msk [vmem:[#allocation2 + $0x88] sm:$0x3] %vm282, 0.0
      %299 = vst.msk [vmem:[#allocation2 + $0x90] sm:$0xff] %vm279, 0.0
      %300 = vst.msk [vmem:[#allocation2 + $0x98] sm:$0xff] %vm279, 0.0
      %301 = vst.msk [vmem:[#allocation2 + $0xa0] sm:$0x3] %vm282, 0.0
      %302 = vst.msk [vmem:[#allocation2 + $0xa8] sm:$0xff] %vm279, 0.0
      %303 = vst.msk [vmem:[#allocation2 + $0xb0] sm:$0xff] %vm279, 0.0
      %304 = vst.msk [vmem:[#allocation2 + $0xb8] sm:$0x3] %vm282, 0.0
      %305 = vst.msk [vmem:[#allocation2 + $0xc0] sm:$0xff] %vm279, 0.0
      %306 = vst.msk [vmem:[#allocation2 + $0xc8] sm:$0xff] %vm279, 0.0
      %307 = vst.msk [vmem:[#allocation2 + $0xd0] sm:$0x3] %vm282, 0.0
      %308 = vst.msk [vmem:[#allocation2 + $0xd8] sm:$0xff] %vm279, 0.0
      %309 = vst.msk [vmem:[#allocation2 + $0xe0] sm:$0xff] %vm279, 0.0
      %310 = vst.msk [vmem:[#allocation2 + $0xe8] sm:$0x3] %vm282, 0.0
      %311 = vst.msk [vmem:[#allocation2 + $0xf0] sm:$0xff] %vm279, 0.0
      %312 = vst.msk [vmem:[#allocation2 + $0xf8] sm:$0xff] %vm279, 0.0
      %313 = vst.msk [vmem:[#allocation2 + $0x100] sm:$0x3] %vm282, 0.0
      %314 = vst.msk [vmem:[#allocation2 + $0x108] sm:$0xff] %vm279, 0.0
      %315 = vst.msk [vmem:[#allocation2 + $0x110] sm:$0xff] %vm279, 0.0
      %316 = vst.msk [vmem:[#allocation2 + $0x118] sm:$0x3] %vm282, 0.0
      %317 = vst.msk [vmem:[#allocation2 + $0x120] sm:$0xff] %vm279, 0.0
      %318 = vst.msk [vmem:[#allocation2 + $0x128] sm:$0xff] %vm279, 0.0
      %319 = vst.msk [vmem:[#allocation2 + $0x130] sm:$0x3] %vm282, 0.0
      %320 = vst.msk [vmem:[#allocation2 + $0x138] sm:$0xff] %vm279, 0.0
      %321 = vst.msk [vmem:[#allocation2 + $0x140] sm:$0xff] %vm279, 0.0
      %322 = vst.msk [vmem:[#allocation2 + $0x148] sm:$0x3] %vm282, 0.0
      %323 = vst.msk [vmem:[#allocation2 + $0x150] sm:$0xff] %vm279, 0.0
      %324 = vst.msk [vmem:[#allocation2 + $0x158] sm:$0xff] %vm279, 0.0
      %325 = vst.msk [vmem:[#allocation2 + $0x160] sm:$0x3] %vm282, 0.0
      %326 = vst.msk [vmem:[#allocation2 + $0x168] sm:$0xff] %vm279, 0.0
      %327 = vst.msk [vmem:[#allocation2 + $0x170] sm:$0xff] %vm279, 0.0
      %328 = vst.msk [vmem:[#allocation2 + $0x178] sm:$0x3] %vm282, 0.0
      %329 = vst.msk [vmem:[#allocation2 + $0x180] sm:$0xff] %vm279, 0.0
      %330 = vst.msk [vmem:[#allocation2 + $0x188] sm:$0xff] %vm279, 0.0
      %331 = vst.msk [vmem:[#allocation2 + $0x190] sm:$0x3] %vm282, 0.0
      %332 = vst.msk [vmem:[#allocation2 + $0x198] sm:$0xff] %vm279, 0.0
      %333 = vst.msk [vmem:[#allocation2 + $0x1a0] sm:$0xff] %vm279, 0.0
      %334 = vst.msk [vmem:[#allocation2 + $0x1a8] sm:$0x3] %vm282, 0.0
      %vm335 = vcmask 64512
      %336 = vst.msk [vmem:[#allocation3] sm:$0xff] %vm335, 0.0
      %337 = vst.msk [vmem:[#allocation3 + $0x8] sm:$0xff] %vm335, 0.0
      %vm338 = vcmask 58368
      %339 = vst.msk [vmem:[#allocation3 + $0x10] sm:$0x3] %vm338, 0.0
      %340 = vst.msk [vmem:[#allocation3 + $0x18] sm:$0xff] %vm335, 0.0
      %341 = vst.msk [vmem:[#allocation3 + $0x20] sm:$0xff] %vm335, 0.0
      %342 = vst.msk [vmem:[#allocation3 + $0x28] sm:$0x3] %vm338, 0.0
      %343 = vst.msk [vmem:[#allocation3 + $0x30] sm:$0xff] %vm335, 0.0
      %344 = vst.msk [vmem:[#allocation3 + $0x38] sm:$0xff] %vm335, 0.0
      %345 = vst.msk [vmem:[#allocation3 + $0x40] sm:$0x3] %vm338, 0.0
      %346 = vst.msk [vmem:[#allocation3 + $0x48] sm:$0xff] %vm335, 0.0
      %347 = vst.msk [vmem:[#allocation3 + $0x50] sm:$0xff] %vm335, 0.0
      %348 = vst.msk [vmem:[#allocation3 + $0x58] sm:$0x3] %vm338, 0.0
      %349 = vst.msk [vmem:[#allocation3 + $0x60] sm:$0xff] %vm335, 0.0
      %350 = vst.msk [vmem:[#allocation3 + $0x68] sm:$0xff] %vm335, 0.0
      %351 = vst.msk [vmem:[#allocation3 + $0x70] sm:$0x3] %vm338, 0.0
      %352 = vst.msk [vmem:[#allocation3 + $0x78] sm:$0xff] %vm335, 0.0
      %353 = vst.msk [vmem:[#allocation3 + $0x80] sm:$0xff] %vm335, 0.0
      %354 = vst.msk [vmem:[#allocation3 + $0x88] sm:$0x3] %vm338, 0.0
      %355 = vst.msk [vmem:[#allocation3 + $0x90] sm:$0xff] %vm335, 0.0
      %356 = vst.msk [vmem:[#allocation3 + $0x98] sm:$0xff] %vm335, 0.0
      %357 = vst.msk [vmem:[#allocation3 + $0xa0] sm:$0x3] %vm338, 0.0
      %358 = vst.msk [vmem:[#allocation3 + $0xa8] sm:$0xff] %vm335, 0.0
      %359 = vst.msk [vmem:[#allocation3 + $0xb0] sm:$0xff] %vm335, 0.0
      %360 = vst.msk [vmem:[#allocation3 + $0xb8] sm:$0x3] %vm338, 0.0
      %361 = vst.msk [vmem:[#allocation3 + $0xc0] sm:$0xff] %vm335, 0.0
      %362 = vst.msk [vmem:[#allocation3 + $0xc8] sm:$0xff] %vm335, 0.0
      %363 = vst.msk [vmem:[#allocation3 + $0xd0] sm:$0x3] %vm338, 0.0
      %364 = vst.msk [vmem:[#allocation3 + $0xd8] sm:$0xff] %vm335, 0.0
      %365 = vst.msk [vmem:[#allocation3 + $0xe0] sm:$0xff] %vm335, 0.0
      %366 = vst.msk [vmem:[#allocation3 + $0xe8] sm:$0x3] %vm338, 0.0
      %367 = vst.msk [vmem:[#allocation3 + $0xf0] sm:$0xff] %vm335, 0.0
      %368 = vst.msk [vmem:[#allocation3 + $0xf8] sm:$0xff] %vm335, 0.0
      %369 = vst.msk [vmem:[#allocation3 + $0x100] sm:$0x3] %vm338, 0.0
      %370 = vst.msk [vmem:[#allocation3 + $0x108] sm:$0xff] %vm335, 0.0
      %371 = vst.msk [vmem:[#allocation3 + $0x110] sm:$0xff] %vm335, 0.0
      %372 = vst.msk [vmem:[#allocation3 + $0x118] sm:$0x3] %vm338, 0.0
      %373 = vst.msk [vmem:[#allocation3 + $0x120] sm:$0xff] %vm335, 0.0
      %374 = vst.msk [vmem:[#allocation3 + $0x128] sm:$0xff] %vm335, 0.0
      %375 = vst.msk [vmem:[#allocation3 + $0x130] sm:$0x3] %vm338, 0.0
      %376 = vst.msk [vmem:[#allocation3 + $0x138] sm:$0xff] %vm335, 0.0
      %377 = vst.msk [vmem:[#allocation3 + $0x140] sm:$0xff] %vm335, 0.0
      %378 = vst.msk [vmem:[#allocation3 + $0x148] sm:$0x3] %vm338, 0.0
      %379 = vst.msk [vmem:[#allocation3 + $0x150] sm:$0xff] %vm335, 0.0
      %380 = vst.msk [vmem:[#allocation3 + $0x158] sm:$0xff] %vm335, 0.0
      %381 = vst.msk [vmem:[#allocation3 + $0x160] sm:$0x3] %vm338, 0.0
      %382 = vst.msk [vmem:[#allocation3 + $0x168] sm:$0xff] %vm335, 0.0
      %383 = vst.msk [vmem:[#allocation3 + $0x170] sm:$0xff] %vm335, 0.0
      %384 = vst.msk [vmem:[#allocation3 + $0x178] sm:$0x3] %vm338, 0.0
      %385 = vst.msk [vmem:[#allocation3 + $0x180] sm:$0xff] %vm335, 0.0
      %386 = vst.msk [vmem:[#allocation3 + $0x188] sm:$0xff] %vm335, 0.0
      %387 = vst.msk [vmem:[#allocation3 + $0x190] sm:$0x3] %vm338, 0.0
      %388 = vst.msk [vmem:[#allocation3 + $0x198] sm:$0xff] %vm335, 0.0
      %389 = vst.msk [vmem:[#allocation3 + $0x1a0] sm:$0xff] %vm335, 0.0
      %390 = vst.msk [vmem:[#allocation3 + $0x1a8] sm:$0x3] %vm338, 0.0
      %v391 = vld [vmem:[%s273] sm:$0xff]
      %v392 = vld [vmem:[%s273 + $0x8] sm:$0xff]
      %v393 = vld [vmem:[%s273 + $0x10] sm:$0xff]
      %v394 = vld [vmem:[%s273 + $0x18] sm:$0xff]
      %v395 = vld [vmem:[%s273 + $0x20] sm:$0xff]
      %v396 = vld [vmem:[%s273 + $0x28] sm:$0xff]
      %v397 = vld [vmem:[%s273 + $0x30] sm:$0xff]
      %v398 = vld [vmem:[%s273 + $0x38] sm:$0xff]
      %v399 = vld [vmem:[%s273 + $0x40] sm:$0xff]
      %v400 = vld [vmem:[%s273 + $0x48] sm:$0xff]
      %v401 = vld [vmem:[%s273 + $0x50] sm:$0xff]
      %v402 = vld [vmem:[%s273 + $0x58] sm:$0xff]
      %v403 = vld [vmem:[%s273 + $0x60] sm:$0xff]
      %v404 = vld [vmem:[%s273 + $0x68] sm:$0xff]
      %v405 = vld [vmem:[%s273 + $0x70] sm:$0xff]
      %v406 = vld [vmem:[%s273 + $0x78] sm:$0xff]
      %v407 = vld [vmem:[%s273 + $0x80] sm:$0xff]
      %v408 = vld [vmem:[%s273 + $0x88] sm:$0xff]
      %v409 = vld [vmem:[%s273 + $0x90] sm:$0xff]
      %v410 = vld [vmem:[%s273 + $0x98] sm:$0xff]
      %v411 = vld [vmem:[%s273 + $0xa0] sm:$0xff]
      %v412 = vld [vmem:[%s273 + $0xa8] sm:$0xff]
      %v413 = vld [vmem:[%s273 + $0xb0] sm:$0xff]
      %v414 = vld [vmem:[%s273 + $0xb8] sm:$0xff]
      %v415 = vld [vmem:[%s273 + $0xc0] sm:$0xff]
      %v416 = vld [vmem:[%s273 + $0xc8] sm:$0xff]
      %v417 = vld [vmem:[%s273 + $0xd0] sm:$0xff]
      %v418 = vld [vmem:[%s273 + $0xd8] sm:$0xff]
      %v419 = vld [vmem:[%s273 + $0xe0] sm:$0xff]
      %v420 = vld [vmem:[%s273 + $0xe8] sm:$0xff]
      %v421 = vld [vmem:[%s273 + $0xf0] sm:$0xff]
      %v422 = vld [vmem:[%s273 + $0xf8] sm:$0xff]
      %s423 = scalar_lea.vmem [#allocation2], 24
      %424 = vst.msk [vmem:[%s423 + $0x1] sm:$0xff] %vm279, %v391
      %425 = vst.msk [vmem:[%s423 + $0x9] sm:$0xff] %vm279, %v392
      %426 = vst.msk [vmem:[%s423 + $0x19] sm:$0xff] %vm279, %v393
      %427 = vst.msk [vmem:[%s423 + $0x21] sm:$0xff] %vm279, %v394
      %428 = vst.msk [vmem:[%s423 + $0x31] sm:$0xff] %vm279, %v395
      %429 = vst.msk [vmem:[%s423 + $0x39] sm:$0xff] %vm279, %v396
      %430 = vst.msk [vmem:[%s423 + $0x49] sm:$0xff] %vm279, %v397
      %431 = vst.msk [vmem:[%s423 + $0x51] sm:$0xff] %vm279, %v398
      %432 = vst.msk [vmem:[%s423 + $0x61] sm:$0xff] %vm279, %v399
      %433 = vst.msk [vmem:[%s423 + $0x69] sm:$0xff] %vm279, %v400
      %434 = vst.msk [vmem:[%s423 + $0x79] sm:$0xff] %vm279, %v401
      %435 = vst.msk [vmem:[%s423 + $0x81] sm:$0xff] %vm279, %v402
      %436 = vst.msk [vmem:[%s423 + $0x91] sm:$0xff] %vm279, %v403
      %437 = vst.msk [vmem:[%s423 + $0x99] sm:$0xff] %vm279, %v404
      %438 = vst.msk [vmem:[%s423 + $0xa9] sm:$0xff] %vm279, %v405
      %439 = vst.msk [vmem:[%s423 + $0xb1] sm:$0xff] %vm279, %v406
      %440 = vst.msk [vmem:[%s423 + $0xc1] sm:$0xff] %vm279, %v407
      %441 = vst.msk [vmem:[%s423 + $0xc9] sm:$0xff] %vm279, %v408
      %442 = vst.msk [vmem:[%s423 + $0xd9] sm:$0xff] %vm279, %v409
      %443 = vst.msk [vmem:[%s423 + $0xe1] sm:$0xff] %vm279, %v410
      %444 = vst.msk [vmem:[%s423 + $0xf1] sm:$0xff] %vm279, %v411
      %445 = vst.msk [vmem:[%s423 + $0xf9] sm:$0xff] %vm279, %v412
      %446 = vst.msk [vmem:[%s423 + $0x109] sm:$0xff] %vm279, %v413
      %447 = vst.msk [vmem:[%s423 + $0x111] sm:$0xff] %vm279, %v414
      %448 = vst.msk [vmem:[%s423 + $0x121] sm:$0xff] %vm279, %v415
      %449 = vst.msk [vmem:[%s423 + $0x129] sm:$0xff] %vm279, %v416
      %450 = vst.msk [vmem:[%s423 + $0x139] sm:$0xff] %vm279, %v417
      %451 = vst.msk [vmem:[%s423 + $0x141] sm:$0xff] %vm279, %v418
      %452 = vst.msk [vmem:[%s423 + $0x151] sm:$0xff] %vm279, %v419
      %453 = vst.msk [vmem:[%s423 + $0x159] sm:$0xff] %vm279, %v420
      %454 = vst.msk [vmem:[%s423 + $0x169] sm:$0xff] %vm279, %v421
      %455 = vst.msk [vmem:[%s423 + $0x171] sm:$0xff] %vm279, %v422
      %v456 = vld [vmem:[#allocation2] sm:$0xff]
      %v457 = vld [vmem:[#allocation2 + $0x8] sm:$0xff]
      %v458 = vld [vmem:[#allocation2 + $0x18] sm:$0xff]
      %v459 = vld [vmem:[#allocation2 + $0x20] sm:$0xff]
      %v460 = vld [vmem:[#allocation2 + $0x30] sm:$0xff]
      %v461 = vld [vmem:[#allocation2 + $0x38] sm:$0xff]
      %v462 = vld [vmem:[#allocation2 + $0x48] sm:$0xff]
      %v463 = vld [vmem:[#allocation2 + $0x50] sm:$0xff]
      %v464 = vld [vmem:[#allocation2 + $0x60] sm:$0xff]
      %v465 = vld [vmem:[#allocation2 + $0x68] sm:$0xff]
      %v466 = vld [vmem:[#allocation2 + $0x78] sm:$0xff]
      %v467 = vld [vmem:[#allocation2 + $0x80] sm:$0xff]
      %v468 = vld [vmem:[#allocation2 + $0x90] sm:$0xff]
      %v469 = vld [vmem:[#allocation2 + $0x98] sm:$0xff]
      %v470 = vld [vmem:[#allocation2 + $0xa8] sm:$0xff]
      %v471 = vld [vmem:[#allocation2 + $0xb0] sm:$0xff]
      %v472 = vld [vmem:[#allocation2 + $0xc0] sm:$0xff]
      %v473 = vld [vmem:[#allocation2 + $0xc8] sm:$0xff]
      %v474 = vld [vmem:[#allocation2 + $0xd8] sm:$0xff]
      %v475 = vld [vmem:[#allocation2 + $0xe0] sm:$0xff]
      %v476 = vld [vmem:[#allocation2 + $0xf0] sm:$0xff]
      %v477 = vld [vmem:[#allocation2 + $0xf8] sm:$0xff]
      %v478 = vld [vmem:[#allocation2 + $0x108] sm:$0xff]
      %v479 = vld [vmem:[#allocation2 + $0x110] sm:$0xff]
      %v480 = vld [vmem:[#allocation2 + $0x120] sm:$0xff]
      %v481 = vld [vmem:[#allocation2 + $0x128] sm:$0xff]
      %v482 = vld [vmem:[#allocation2 + $0x138] sm:$0xff]
      %v483 = vld [vmem:[#allocation2 + $0x140] sm:$0xff]
      %v484 = vld [vmem:[#allocation2 + $0x150] sm:$0xff]
      %v485 = vld [vmem:[#allocation2 + $0x158] sm:$0xff]
      %v486 = vld [vmem:[#allocation2 + $0x168] sm:$0xff]
      %v487 = vld [vmem:[#allocation2 + $0x170] sm:$0xff]
      %488 = vst.msk [vmem:[#allocation4] sm:$0xff] %vm279, %v456
      %489 = vst.msk [vmem:[#allocation4 + $0x8] sm:$0xff] %vm279, %v457
      %490 = vst.msk [vmem:[#allocation4 + $0x10] sm:$0xff] %vm279, %v458
      %491 = vst.msk [vmem:[#allocation4 + $0x18] sm:$0xff] %vm279, %v459
      %492 = vst.msk [vmem:[#allocation4 + $0x20] sm:$0xff] %vm279, %v460
      %493 = vst.msk [vmem:[#allocation4 + $0x28] sm:$0xff] %vm279, %v461
      %494 = vst.msk [vmem:[#allocation4 + $0x30] sm:$0xff] %vm279, %v462
      %495 = vst.msk [vmem:[#allocation4 + $0x38] sm:$0xff] %vm279, %v463
      %496 = vst.msk [vmem:[#allocation4 + $0x40] sm:$0xff] %vm279, %v464
      %497 = vst.msk [vmem:[#allocation4 + $0x48] sm:$0xff] %vm279, %v465
      %498 = vst.msk [vmem:[#allocation4 + $0x50] sm:$0xff] %vm279, %v466
      %499 = vst.msk [vmem:[#allocation4 + $0x58] sm:$0xff] %vm279, %v467
      %500 = vst.msk [vmem:[#allocation4 + $0x60] sm:$0xff] %vm279, %v468
      %501 = vst.msk [vmem:[#allocation4 + $0x68] sm:$0xff] %vm279, %v469
      %502 = vst.msk [vmem:[#allocation4 + $0x70] sm:$0xff] %vm279, %v470
      %503 = vst.msk [vmem:[#allocation4 + $0x78] sm:$0xff] %vm279, %v471
      %504 = vst.msk [vmem:[#allocation4 + $0x80] sm:$0xff] %vm279, %v472
      %505 = vst.msk [vmem:[#allocation4 + $0x88] sm:$0xff] %vm279, %v473
      %506 = vst.msk [vmem:[#allocation4 + $0x90] sm:$0xff] %vm279, %v474
      %507 = vst.msk [vmem:[#allocation4 + $0x98] sm:$0xff] %vm279, %v475
      %508 = vst.msk [vmem:[#allocation4 + $0xa0] sm:$0xff] %vm279, %v476
      %509 = vst.msk [vmem:[#allocation4 + $0xa8] sm:$0xff] %vm279, %v477
      %510 = vst.msk [vmem:[#allocation4 + $0xb0] sm:$0xff] %vm279, %v478
      %511 = vst.msk [vmem:[#allocation4 + $0xb8] sm:$0xff] %vm279, %v479
      %512 = vst.msk [vmem:[#allocation4 + $0xc0] sm:$0xff] %vm279, %v480
      %513 = vst.msk [vmem:[#allocation4 + $0xc8] sm:$0xff] %vm279, %v481
      %514 = vst.msk [vmem:[#allocation4 + $0xd0] sm:$0xff] %vm279, %v482
      %515 = vst.msk [vmem:[#allocation4 + $0xd8] sm:$0xff] %vm279, %v483
      %516 = vst.msk [vmem:[#allocation4 + $0xe0] sm:$0xff] %vm279, %v484
      %517 = vst.msk [vmem:[#allocation4 + $0xe8] sm:$0xff] %vm279, %v485
      %518 = vst.msk [vmem:[#allocation4 + $0xf0] sm:$0xff] %vm279, %v486
      %519 = vst.msk [vmem:[#allocation4 + $0xf8] sm:$0xff] %vm279, %v487
      %v520 = vld [vmem:[#allocation2 + $0x1] sm:$0xff]
      %v521 = vld [vmem:[#allocation2 + $0x9] sm:$0xff]
      %v522 = vld [vmem:[#allocation2 + $0x19] sm:$0xff]
      %v523 = vld [vmem:[#allocation2 + $0x21] sm:$0xff]
      %v524 = vld [vmem:[#allocation2 + $0x31] sm:$0xff]
      %v525 = vld [vmem:[#allocation2 + $0x39] sm:$0xff]
      %v526 = vld [vmem:[#allocation2 + $0x49] sm:$0xff]
      %v527 = vld [vmem:[#allocation2 + $0x51] sm:$0xff]
      %v528 = vld [vmem:[#allocation2 + $0x61] sm:$0xff]
      %v529 = vld [vmem:[#allocation2 + $0x69] sm:$0xff]
      %v530 = vld [vmem:[#allocation2 + $0x79] sm:$0xff]
      %v531 = vld [vmem:[#allocation2 + $0x81] sm:$0xff]
      %v532 = vld [vmem:[#allocation2 + $0x91] sm:$0xff]
      %v533 = vld [vmem:[#allocation2 + $0x99] sm:$0xff]
      %v534 = vld [vmem:[#allocation2 + $0xa9] sm:$0xff]
      %v535 = vld [vmem:[#allocation2 + $0xb1] sm:$0xff]
      %v536 = vld [vmem:[#allocation2 + $0xc1] sm:$0xff]
      %v537 = vld [vmem:[#allocation2 + $0xc9] sm:$0xff]
      %v538 = vld [vmem:[#allocation2 + $0xd9] sm:$0xff]
      %v539 = vld [vmem:[#allocation2 + $0xe1] sm:$0xff]
      %v540 = vld [vmem:[#allocation2 + $0xf1] sm:$0xff]
      %v541 = vld [vmem:[#allocation2 + $0xf9] sm:$0xff]
      %v542 = vld [vmem:[#allocation2 + $0x109] sm:$0xff]
      %v543 = vld [vmem:[#allocation2 + $0x111] sm:$0xff]
      %v544 = vld [vmem:[#allocation2 + $0x121] sm:$0xff]
      %v545 = vld [vmem:[#allocation2 + $0x129] sm:$0xff]
      %v546 = vld [vmem:[#allocation2 + $0x139] sm:$0xff]
      %v547 = vld [vmem:[#allocation2 + $0x141] sm:$0xff]
      %v548 = vld [vmem:[#allocation2 + $0x151] sm:$0xff]
      %v549 = vld [vmem:[#allocation2 + $0x159] sm:$0xff]
      %v550 = vld [vmem:[#allocation2 + $0x169] sm:$0xff]
      %v551 = vld [vmem:[#allocation2 + $0x171] sm:$0xff]
      %584 = vrot.lane.b32.xlu0 %v520, 4
      %v585 = vpop.permute.xlu0 %584
      %586 = vrot.lane.b32.xlu0 %v521, 4
      %v587 = vpop.permute.xlu0 %586
      %588 = vrot.lane.b32.xlu0 %v522, 4
      %v589 = vpop.permute.xlu0 %588
      %590 = vrot.lane.b32.xlu0 %v523, 4
      %v591 = vpop.permute.xlu0 %590
      %592 = vrot.lane.b32.xlu0 %v524, 4
      %v593 = vpop.permute.xlu0 %592
      %594 = vrot.lane.b32.xlu0 %v525, 4
      %v595 = vpop.permute.xlu0 %594
      %596 = vrot.lane.b32.xlu0 %v526, 4
      %v597 = vpop.permute.xlu0 %596
      %598 = vrot.lane.b32.xlu0 %v527, 4
      %v599 = vpop.permute.xlu0 %598
      %600 = vrot.lane.b32.xlu0 %v528, 4
      %v601 = vpop.permute.xlu0 %600
      %602 = vrot.lane.b32.xlu0 %v529, 4
      %v603 = vpop.permute.xlu0 %602
      %604 = vrot.lane.b32.xlu0 %v530, 4
      %v605 = vpop.permute.xlu0 %604
      %606 = vrot.lane.b32.xlu0 %v531, 4
      %v607 = vpop.permute.xlu0 %606
      %608 = vrot.lane.b32.xlu0 %v532, 4
      %v609 = vpop.permute.xlu0 %608
      %610 = vrot.lane.b32.xlu0 %v533, 4
      %v611 = vpop.permute.xlu0 %610
      %612 = vrot.lane.b32.xlu0 %v534, 4
      %v613 = vpop.permute.xlu0 %612
      %614 = vrot.lane.b32.xlu0 %v535, 4
      %v615 = vpop.permute.xlu0 %614
      %616 = vrot.lane.b32.xlu0 %v536, 4
      %v617 = vpop.permute.xlu0 %616
      %618 = vrot.lane.b32.xlu0 %v537, 4
      %v619 = vpop.permute.xlu0 %618
      %620 = vrot.lane.b32.xlu0 %v538, 4
      %v621 = vpop.permute.xlu0 %620
      %622 = vrot.lane.b32.xlu0 %v539, 4
      %v623 = vpop.permute.xlu0 %622
      %624 = vrot.lane.b32.xlu0 %v540, 4
      %v625 = vpop.permute.xlu0 %624
      %626 = vrot.lane.b32.xlu0 %v541, 4
      %v627 = vpop.permute.xlu0 %626
      %628 = vrot.lane.b32.xlu0 %v542, 4
      %v629 = vpop.permute.xlu0 %628
      %630 = vrot.lane.b32.xlu0 %v543, 4
      %v631 = vpop.permute.xlu0 %630
      %632 = vrot.lane.b32.xlu0 %v544, 4
      %v633 = vpop.permute.xlu0 %632
      %634 = vrot.lane.b32.xlu0 %v545, 4
      %v635 = vpop.permute.xlu0 %634
      %636 = vrot.lane.b32.xlu0 %v546, 4
      %v637 = vpop.permute.xlu0 %636
      %638 = vrot.lane.b32.xlu0 %v547, 4
      %v639 = vpop.permute.xlu0 %638
      %640 = vrot.lane.b32.xlu0 %v548, 4
      %v641 = vpop.permute.xlu0 %640
      %642 = vrot.lane.b32.xlu0 %v549, 4
      %v643 = vpop.permute.xlu0 %642
      %644 = vrot.lane.b32.xlu0 %v550, 4
      %v645 = vpop.permute.xlu0 %644
      %646 = vrot.lane.b32.xlu0 %v551, 4
      %v647 = vpop.permute.xlu0 %646
      %vm680 = vcmask 64544
      %681 = vst.msk [vmem:[#allocation4] sm:$0xff] %vm680, %v585
      %682 = vst.msk [vmem:[#allocation4 + $0x8] sm:$0xff] %vm680, %v587
      %683 = vst.msk [vmem:[#allocation4 + $0x10] sm:$0xff] %vm680, %v589
      %684 = vst.msk [vmem:[#allocation4 + $0x18] sm:$0xff] %vm680, %v591
      %685 = vst.msk [vmem:[#allocation4 + $0x20] sm:$0xff] %vm680, %v593
      %686 = vst.msk [vmem:[#allocation4 + $0x28] sm:$0xff] %vm680, %v595
      %687 = vst.msk [vmem:[#allocation4 + $0x30] sm:$0xff] %vm680, %v597
      %688 = vst.msk [vmem:[#allocation4 + $0x38] sm:$0xff] %vm680, %v599
      %689 = vst.msk [vmem:[#allocation4 + $0x40] sm:$0xff] %vm680, %v601
      %690 = vst.msk [vmem:[#allocation4 + $0x48] sm:$0xff] %vm680, %v603
      %691 = vst.msk [vmem:[#allocation4 + $0x50] sm:$0xff] %vm680, %v605
      %692 = vst.msk [vmem:[#allocation4 + $0x58] sm:$0xff] %vm680, %v607
      %693 = vst.msk [vmem:[#allocation4 + $0x60] sm:$0xff] %vm680, %v609
      %694 = vst.msk [vmem:[#allocation4 + $0x68] sm:$0xff] %vm680, %v611
      %695 = vst.msk [vmem:[#allocation4 + $0x70] sm:$0xff] %vm680, %v613
      %696 = vst.msk [vmem:[#allocation4 + $0x78] sm:$0xff] %vm680, %v615
      %697 = vst.msk [vmem:[#allocation4 + $0x80] sm:$0xff] %vm680, %v617
      %698 = vst.msk [vmem:[#allocation4 + $0x88] sm:$0xff] %vm680, %v619
      %699 = vst.msk [vmem:[#allocation4 + $0x90] sm:$0xff] %vm680, %v621
      %700 = vst.msk [vmem:[#allocation4 + $0x98] sm:$0xff] %vm680, %v623
      %701 = vst.msk [vmem:[#allocation4 + $0xa0] sm:$0xff] %vm680, %v625
      %702 = vst.msk [vmem:[#allocation4 + $0xa8] sm:$0xff] %vm680, %v627
      %703 = vst.msk [vmem:[#allocation4 + $0xb0] sm:$0xff] %vm680, %v629
      %704 = vst.msk [vmem:[#allocation4 + $0xb8] sm:$0xff] %vm680, %v631
      %705 = vst.msk [vmem:[#allocation4 + $0xc0] sm:$0xff] %vm680, %v633
      %706 = vst.msk [vmem:[#allocation4 + $0xc8] sm:$0xff] %vm680, %v635
      %707 = vst.msk [vmem:[#allocation4 + $0xd0] sm:$0xff] %vm680, %v637
      %708 = vst.msk [vmem:[#allocation4 + $0xd8] sm:$0xff] %vm680, %v639
      %709 = vst.msk [vmem:[#allocation4 + $0xe0] sm:$0xff] %vm680, %v641
      %710 = vst.msk [vmem:[#allocation4 + $0xe8] sm:$0xff] %vm680, %v643
      %711 = vst.msk [vmem:[#allocation4 + $0xf0] sm:$0xff] %vm680, %v645
      %712 = vst.msk [vmem:[#allocation4 + $0xf8] sm:$0xff] %vm680, %v647
      %v713 = vld [vmem:[#allocation2 + $0x2] sm:$0xff]
      %v714 = vld [vmem:[#allocation2 + $0xa] sm:$0xff]
      %v715 = vld [vmem:[#allocation2 + $0x1a] sm:$0xff]
      %v716 = vld [vmem:[#allocation2 + $0x22] sm:$0xff]
      %v717 = vld [vmem:[#allocation2 + $0x32] sm:$0xff]
      %v718 = vld [vmem:[#allocation2 + $0x3a] sm:$0xff]
      %v719 = vld [vmem:[#allocation2 + $0x4a] sm:$0xff]
      %v720 = vld [vmem:[#allocation2 + $0x52] sm:$0xff]
      %v721 = vld [vmem:[#allocation2 + $0x62] sm:$0xff]
      %v722 = vld [vmem:[#allocation2 + $0x6a] sm:$0xff]
      %v723 = vld [vmem:[#allocation2 + $0x7a] sm:$0xff]
      %v724 = vld [vmem:[#allocation2 + $0x82] sm:$0xff]
      %v725 = vld [vmem:[#allocation2 + $0x92] sm:$0xff]
      %v726 = vld [vmem:[#allocation2 + $0x9a] sm:$0xff]
      %v727 = vld [vmem:[#allocation2 + $0xaa] sm:$0xff]
      %v728 = vld [vmem:[#allocation2 + $0xb2] sm:$0xff]
      %v729 = vld [vmem:[#allocation2 + $0xc2] sm:$0xff]
      %v730 = vld [vmem:[#allocation2 + $0xca] sm:$0xff]
      %v731 = vld [vmem:[#allocation2 + $0xda] sm:$0xff]
      %v732 = vld [vmem:[#allocation2 + $0xe2] sm:$0xff]
      %v733 = vld [vmem:[#allocation2 + $0xf2] sm:$0xff]
      %v734 = vld [vmem:[#allocation2 + $0xfa] sm:$0xff]
      %v735 = vld [vmem:[#allocation2 + $0x10a] sm:$0xff]
      %v736 = vld [vmem:[#allocation2 + $0x112] sm:$0xff]
      %v737 = vld [vmem:[#allocation2 + $0x122] sm:$0xff]
      %v738 = vld [vmem:[#allocation2 + $0x12a] sm:$0xff]
      %v739 = vld [vmem:[#allocation2 + $0x13a] sm:$0xff]
      %v740 = vld [vmem:[#allocation2 + $0x142] sm:$0xff]
      %v741 = vld [vmem:[#allocation2 + $0x152] sm:$0xff]
      %v742 = vld [vmem:[#allocation2 + $0x15a] sm:$0xff]
      %v743 = vld [vmem:[#allocation2 + $0x16a] sm:$0xff]
      %v744 = vld [vmem:[#allocation2 + $0x172] sm:$0xff]
      %777 = vrot.lane.b32.xlu0 %v713, 8
      %v778 = vpop.permute.xlu0 %777
      %779 = vrot.lane.b32.xlu0 %v714, 8
      %v780 = vpop.permute.xlu0 %779
      %781 = vrot.lane.b32.xlu0 %v715, 8
      %v782 = vpop.permute.xlu0 %781
      %783 = vrot.lane.b32.xlu0 %v716, 8
      %v784 = vpop.permute.xlu0 %783
      %785 = vrot.lane.b32.xlu0 %v717, 8
      %v786 = vpop.permute.xlu0 %785
      %787 = vrot.lane.b32.xlu0 %v718, 8
      %v788 = vpop.permute.xlu0 %787
      %789 = vrot.lane.b32.xlu0 %v719, 8
      %v790 = vpop.permute.xlu0 %789
      %791 = vrot.lane.b32.xlu0 %v720, 8
      %v792 = vpop.permute.xlu0 %791
      %793 = vrot.lane.b32.xlu0 %v721, 8
      %v794 = vpop.permute.xlu0 %793
      %795 = vrot.lane.b32.xlu0 %v722, 8
      %v796 = vpop.permute.xlu0 %795
      %797 = vrot.lane.b32.xlu0 %v723, 8
      %v798 = vpop.permute.xlu0 %797
      %799 = vrot.lane.b32.xlu0 %v724, 8
      %v800 = vpop.permute.xlu0 %799
      %801 = vrot.lane.b32.xlu0 %v725, 8
      %v802 = vpop.permute.xlu0 %801
      %803 = vrot.lane.b32.xlu0 %v726, 8
      %v804 = vpop.permute.xlu0 %803
      %805 = vrot.lane.b32.xlu0 %v727, 8
      %v806 = vpop.permute.xlu0 %805
      %807 = vrot.lane.b32.xlu0 %v728, 8
      %v808 = vpop.permute.xlu0 %807
      %809 = vrot.lane.b32.xlu0 %v729, 8
      %v810 = vpop.permute.xlu0 %809
      %811 = vrot.lane.b32.xlu0 %v730, 8
      %v812 = vpop.permute.xlu0 %811
      %813 = vrot.lane.b32.xlu0 %v731, 8
      %v814 = vpop.permute.xlu0 %813
      %815 = vrot.lane.b32.xlu0 %v732, 8
      %v816 = vpop.permute.xlu0 %815
      %817 = vrot.lane.b32.xlu0 %v733, 8
      %v818 = vpop.permute.xlu0 %817
      %819 = vrot.lane.b32.xlu0 %v734, 8
      %v820 = vpop.permute.xlu0 %819
      %821 = vrot.lane.b32.xlu0 %v735, 8
      %v822 = vpop.permute.xlu0 %821
      %823 = vrot.lane.b32.xlu0 %v736, 8
      %v824 = vpop.permute.xlu0 %823
      %825 = vrot.lane.b32.xlu0 %v737, 8
      %v826 = vpop.permute.xlu0 %825
      %827 = vrot.lane.b32.xlu0 %v738, 8
      %v828 = vpop.permute.xlu0 %827
      %829 = vrot.lane.b32.xlu0 %v739, 8
      %v830 = vpop.permute.xlu0 %829
      %831 = vrot.lane.b32.xlu0 %v740, 8
      %v832 = vpop.permute.xlu0 %831
      %833 = vrot.lane.b32.xlu0 %v741, 8
      %v834 = vpop.permute.xlu0 %833
      %835 = vrot.lane.b32.xlu0 %v742, 8
      %v836 = vpop.permute.xlu0 %835
      %837 = vrot.lane.b32.xlu0 %v743, 8
      %v838 = vpop.permute.xlu0 %837
      %839 = vrot.lane.b32.xlu0 %v744, 8
      %v840 = vpop.permute.xlu0 %839
      %vm873 = vcmask 97344
      %874 = vst.msk [vmem:[#allocation4] sm:$0xff] %vm873, %v778
      %875 = vst.msk [vmem:[#allocation4 + $0x8] sm:$0xff] %vm873, %v780
      %876 = vst.msk [vmem:[#allocation4 + $0x10] sm:$0xff] %vm873, %v782
      %877 = vst.msk [vmem:[#allocation4 + $0x18] sm:$0xff] %vm873, %v784
      %878 = vst.msk [vmem:[#allocation4 + $0x20] sm:$0xff] %vm873, %v786
      %879 = vst.msk [vmem:[#allocation4 + $0x28] sm:$0xff] %vm873, %v788
      %880 = vst.msk [vmem:[#allocation4 + $0x30] sm:$0xff] %vm873, %v790
      %881 = vst.msk [vmem:[#allocation4 + $0x38] sm:$0xff] %vm873, %v792
      %882 = vst.msk [vmem:[#allocation4 + $0x40] sm:$0xff] %vm873, %v794
      %883 = vst.msk [vmem:[#allocation4 + $0x48] sm:$0xff] %vm873, %v796
      %884 = vst.msk [vmem:[#allocation4 + $0x50] sm:$0xff] %vm873, %v798
      %885 = vst.msk [vmem:[#allocation4 + $0x58] sm:$0xff] %vm873, %v800
      %886 = vst.msk [vmem:[#allocation4 + $0x60] sm:$0xff] %vm873, %v802
      %887 = vst.msk [vmem:[#allocation4 + $0x68] sm:$0xff] %vm873, %v804
      %888 = vst.msk [vmem:[#allocation4 + $0x70] sm:$0xff] %vm873, %v806
      %889 = vst.msk [vmem:[#allocation4 + $0x78] sm:$0xff] %vm873, %v808
      %890 = vst.msk [vmem:[#allocation4 + $0x80] sm:$0xff] %vm873, %v810
      %891 = vst.msk [vmem:[#allocation4 + $0x88] sm:$0xff] %vm873, %v812
      %892 = vst.msk [vmem:[#allocation4 + $0x90] sm:$0xff] %vm873, %v814
      %893 = vst.msk [vmem:[#allocation4 + $0x98] sm:$0xff] %vm873, %v816
      %894 = vst.msk [vmem:[#allocation4 + $0xa0] sm:$0xff] %vm873, %v818
      %895 = vst.msk [vmem:[#allocation4 + $0xa8] sm:$0xff] %vm873, %v820
      %896 = vst.msk [vmem:[#allocation4 + $0xb0] sm:$0xff] %vm873, %v822
      %897 = vst.msk [vmem:[#allocation4 + $0xb8] sm:$0xff] %vm873, %v824
      %898 = vst.msk [vmem:[#allocation4 + $0xc0] sm:$0xff] %vm873, %v826
      %899 = vst.msk [vmem:[#allocation4 + $0xc8] sm:$0xff] %vm873, %v828
      %900 = vst.msk [vmem:[#allocation4 + $0xd0] sm:$0xff] %vm873, %v830
      %901 = vst.msk [vmem:[#allocation4 + $0xd8] sm:$0xff] %vm873, %v832
      %902 = vst.msk [vmem:[#allocation4 + $0xe0] sm:$0xff] %vm873, %v834
      %903 = vst.msk [vmem:[#allocation4 + $0xe8] sm:$0xff] %vm873, %v836
      %904 = vst.msk [vmem:[#allocation4 + $0xf0] sm:$0xff] %vm873, %v838
      %905 = vst.msk [vmem:[#allocation4 + $0xf8] sm:$0xff] %vm873, %v840
      %v906 = vld [vmem:[%s423] sm:$0xff]
      %v907 = vld [vmem:[%s423 + $0x8] sm:$0xff]
      %v908 = vld [vmem:[%s423 + $0x18] sm:$0xff]
      %v909 = vld [vmem:[%s423 + $0x20] sm:$0xff]
      %v910 = vld [vmem:[%s423 + $0x30] sm:$0xff]
      %v911 = vld [vmem:[%s423 + $0x38] sm:$0xff]
      %v912 = vld [vmem:[%s423 + $0x48] sm:$0xff]
      %v913 = vld [vmem:[%s423 + $0x50] sm:$0xff]
      %v914 = vld [vmem:[%s423 + $0x60] sm:$0xff]
      %v915 = vld [vmem:[%s423 + $0x68] sm:$0xff]
      %v916 = vld [vmem:[%s423 + $0x78] sm:$0xff]
      %v917 = vld [vmem:[%s423 + $0x80] sm:$0xff]
      %v918 = vld [vmem:[%s423 + $0x90] sm:$0xff]
      %v919 = vld [vmem:[%s423 + $0x98] sm:$0xff]
      %v920 = vld [vmem:[%s423 + $0xa8] sm:$0xff]
      %v921 = vld [vmem:[%s423 + $0xb0] sm:$0xff]
      %v922 = vld [vmem:[%s423 + $0xc0] sm:$0xff]
      %v923 = vld [vmem:[%s423 + $0xc8] sm:$0xff]
      %v924 = vld [vmem:[%s423 + $0xd8] sm:$0xff]
      %v925 = vld [vmem:[%s423 + $0xe0] sm:$0xff]
      %v926 = vld [vmem:[%s423 + $0xf0] sm:$0xff]
      %v927 = vld [vmem:[%s423 + $0xf8] sm:$0xff]
      %v928 = vld [vmem:[%s423 + $0x108] sm:$0xff]
      %v929 = vld [vmem:[%s423 + $0x110] sm:$0xff]
      %v930 = vld [vmem:[%s423 + $0x120] sm:$0xff]
      %v931 = vld [vmem:[%s423 + $0x128] sm:$0xff]
      %v932 = vld [vmem:[%s423 + $0x138] sm:$0xff]
      %v933 = vld [vmem:[%s423 + $0x140] sm:$0xff]
      %v934 = vld [vmem:[%s423 + $0x150] sm:$0xff]
      %v935 = vld [vmem:[%s423 + $0x158] sm:$0xff]
      %v936 = vld [vmem:[%s423 + $0x168] sm:$0xff]
      %v937 = vld [vmem:[%s423 + $0x170] sm:$0xff]
      %970 = vrot.lane.b32.xlu0 %v906, 12
      %v971 = vpop.permute.xlu0 %970
      %972 = vrot.lane.b32.xlu0 %v907, 12
      %v973 = vpop.permute.xlu0 %972
      %974 = vrot.lane.b32.xlu0 %v908, 12
      %v975 = vpop.permute.xlu0 %974
      %976 = vrot.lane.b32.xlu0 %v909, 12
      %v977 = vpop.permute.xlu0 %976
      %978 = vrot.lane.b32.xlu0 %v910, 12
      %v979 = vpop.permute.xlu0 %978
      %980 = vrot.lane.b32.xlu0 %v911, 12
      %v981 = vpop.permute.xlu0 %980
      %982 = vrot.lane.b32.xlu0 %v912, 12
      %v983 = vpop.permute.xlu0 %982
      %984 = vrot.lane.b32.xlu0 %v913, 12
      %v985 = vpop.permute.xlu0 %984
      %986 = vrot.lane.b32.xlu0 %v914, 12
      %v987 = vpop.permute.xlu0 %986
      %988 = vrot.lane.b32.xlu0 %v915, 12
      %v989 = vpop.permute.xlu0 %988
      %990 = vrot.lane.b32.xlu0 %v916, 12
      %v991 = vpop.permute.xlu0 %990
      %992 = vrot.lane.b32.xlu0 %v917, 12
      %v993 = vpop.permute.xlu0 %992
      %994 = vrot.lane.b32.xlu0 %v918, 12
      %v995 = vpop.permute.xlu0 %994
      %996 = vrot.lane.b32.xlu0 %v919, 12
      %v997 = vpop.permute.xlu0 %996
      %998 = vrot.lane.b32.xlu0 %v920, 12
      %v999 = vpop.permute.xlu0 %998
      %1000 = vrot.lane.b32.xlu0 %v921, 12
      %v1001 = vpop.permute.xlu0 %1000
      %1002 = vrot.lane.b32.xlu0 %v922, 12
      %v1003 = vpop.permute.xlu0 %1002
      %1004 = vrot.lane.b32.xlu0 %v923, 12
      %v1005 = vpop.permute.xlu0 %1004
      %1006 = vrot.lane.b32.xlu0 %v924, 12
      %v1007 = vpop.permute.xlu0 %1006
      %1008 = vrot.lane.b32.xlu0 %v925, 12
      %v1009 = vpop.permute.xlu0 %1008
      %1010 = vrot.lane.b32.xlu0 %v926, 12
      %v1011 = vpop.permute.xlu0 %1010
      %1012 = vrot.lane.b32.xlu0 %v927, 12
      %v1013 = vpop.permute.xlu0 %1012
      %1014 = vrot.lane.b32.xlu0 %v928, 12
      %v1015 = vpop.permute.xlu0 %1014
      %1016 = vrot.lane.b32.xlu0 %v929, 12
      %v1017 = vpop.permute.xlu0 %1016
      %1018 = vrot.lane.b32.xlu0 %v930, 12
      %v1019 = vpop.permute.xlu0 %1018
      %1020 = vrot.lane.b32.xlu0 %v931, 12
      %v1021 = vpop.permute.xlu0 %1020
      %1022 = vrot.lane.b32.xlu0 %v932, 12
      %v1023 = vpop.permute.xlu0 %1022
      %1024 = vrot.lane.b32.xlu0 %v933, 12
      %v1025 = vpop.permute.xlu0 %1024
      %1026 = vrot.lane.b32.xlu0 %v934, 12
      %v1027 = vpop.permute.xlu0 %1026
      %1028 = vrot.lane.b32.xlu0 %v935, 12
      %v1029 = vpop.permute.xlu0 %1028
      %1030 = vrot.lane.b32.xlu0 %v936, 12
      %v1031 = vpop.permute.xlu0 %1030
      %1032 = vrot.lane.b32.xlu0 %v937, 12
      %v1033 = vpop.permute.xlu0 %1032
      %vm1066 = vcmask 130144
      %1067 = vst.msk [vmem:[#allocation4] sm:$0xff] %vm1066, %v971
      %1068 = vst.msk [vmem:[#allocation4 + $0x8] sm:$0xff] %vm1066, %v973
      %1069 = vst.msk [vmem:[#allocation4 + $0x10] sm:$0xff] %vm1066, %v975
      %1070 = vst.msk [vmem:[#allocation4 + $0x18] sm:$0xff] %vm1066, %v977
      %1071 = vst.msk [vmem:[#allocation4 + $0x20] sm:$0xff] %vm1066, %v979
      %1072 = vst.msk [vmem:[#allocation4 + $0x28] sm:$0xff] %vm1066, %v981
      %1073 = vst.msk [vmem:[#allocation4 + $0x30] sm:$0xff] %vm1066, %v983
      %1074 = vst.msk [vmem:[#allocation4 + $0x38] sm:$0xff] %vm1066, %v985
      %1075 = vst.msk [vmem:[#allocation4 + $0x40] sm:$0xff] %vm1066, %v987
      %1076 = vst.msk [vmem:[#allocation4 + $0x48] sm:$0xff] %vm1066, %v989
      %1077 = vst.msk [vmem:[#allocation4 + $0x50] sm:$0xff] %vm1066, %v991
      %1078 = vst.msk [vmem:[#allocation4 + $0x58] sm:$0xff] %vm1066, %v993
      %1079 = vst.msk [vmem:[#allocation4 + $0x60] sm:$0xff] %vm1066, %v995
      %1080 = vst.msk [vmem:[#allocation4 + $0x68] sm:$0xff] %vm1066, %v997
      %1081 = vst.msk [vmem:[#allocation4 + $0x70] sm:$0xff] %vm1066, %v999
      %1082 = vst.msk [vmem:[#allocation4 + $0x78] sm:$0xff] %vm1066, %v1001
      %1083 = vst.msk [vmem:[#allocation4 + $0x80] sm:$0xff] %vm1066, %v1003
      %1084 = vst.msk [vmem:[#allocation4 + $0x88] sm:$0xff] %vm1066, %v1005
      %1085 = vst.msk [vmem:[#allocation4 + $0x90] sm:$0xff] %vm1066, %v1007
      %1086 = vst.msk [vmem:[#allocation4 + $0x98] sm:$0xff] %vm1066, %v1009
      %1087 = vst.msk [vmem:[#allocation4 + $0xa0] sm:$0xff] %vm1066, %v1011
      %1088 = vst.msk [vmem:[#allocation4 + $0xa8] sm:$0xff] %vm1066, %v1013
      %1089 = vst.msk [vmem:[#allocation4 + $0xb0] sm:$0xff] %vm1066, %v1015
      %1090 = vst.msk [vmem:[#allocation4 + $0xb8] sm:$0xff] %vm1066, %v1017
      %1091 = vst.msk [vmem:[#allocation4 + $0xc0] sm:$0xff] %vm1066, %v1019
      %1092 = vst.msk [vmem:[#allocation4 + $0xc8] sm:$0xff] %vm1066, %v1021
      %1093 = vst.msk [vmem:[#allocation4 + $0xd0] sm:$0xff] %vm1066, %v1023
      %1094 = vst.msk [vmem:[#allocation4 + $0xd8] sm:$0xff] %vm1066, %v1025
      %1095 = vst.msk [vmem:[#allocation4 + $0xe0] sm:$0xff] %vm1066, %v1027
      %1096 = vst.msk [vmem:[#allocation4 + $0xe8] sm:$0xff] %vm1066, %v1029
      %1097 = vst.msk [vmem:[#allocation4 + $0xf0] sm:$0xff] %vm1066, %v1031
      %1098 = vst.msk [vmem:[#allocation4 + $0xf8] sm:$0xff] %vm1066, %v1033
      %v1099 = vld [vmem:[%s423 + $0x1] sm:$0xff]
      %v1100 = vld [vmem:[%s423 + $0x9] sm:$0xff]
      %v1101 = vld [vmem:[%s423 + $0x19] sm:$0xff]
      %v1102 = vld [vmem:[%s423 + $0x21] sm:$0xff]
      %v1103 = vld [vmem:[%s423 + $0x31] sm:$0xff]
      %v1104 = vld [vmem:[%s423 + $0x39] sm:$0xff]
      %v1105 = vld [vmem:[%s423 + $0x49] sm:$0xff]
      %v1106 = vld [vmem:[%s423 + $0x51] sm:$0xff]
      %v1107 = vld [vmem:[%s423 + $0x61] sm:$0xff]
      %v1108 = vld [vmem:[%s423 + $0x69] sm:$0xff]
      %v1109 = vld [vmem:[%s423 + $0x79] sm:$0xff]
      %v1110 = vld [vmem:[%s423 + $0x81] sm:$0xff]
      %v1111 = vld [vmem:[%s423 + $0x91] sm:$0xff]
      %v1112 = vld [vmem:[%s423 + $0x99] sm:$0xff]
      %v1113 = vld [vmem:[%s423 + $0xa9] sm:$0xff]
      %v1114 = vld [vmem:[%s423 + $0xb1] sm:$0xff]
      %v1115 = vld [vmem:[%s423 + $0xc1] sm:$0xff]
      %v1116 = vld [vmem:[%s423 + $0xc9] sm:$0xff]
      %v1117 = vld [vmem:[%s423 + $0xd9] sm:$0xff]
      %v1118 = vld [vmem:[%s423 + $0xe1] sm:$0xff]
      %v1119 = vld [vmem:[%s423 + $0xf1] sm:$0xff]
      %v1120 = vld [vmem:[%s423 + $0xf9] sm:$0xff]
      %v1121 = vld [vmem:[%s423 + $0x109] sm:$0xff]
      %v1122 = vld [vmem:[%s423 + $0x111] sm:$0xff]
      %v1123 = vld [vmem:[%s423 + $0x121] sm:$0xff]
      %v1124 = vld [vmem:[%s423 + $0x129] sm:$0xff]
      %v1125 = vld [vmem:[%s423 + $0x139] sm:$0xff]
      %v1126 = vld [vmem:[%s423 + $0x141] sm:$0xff]
      %v1127 = vld [vmem:[%s423 + $0x151] sm:$0xff]
      %v1128 = vld [vmem:[%s423 + $0x159] sm:$0xff]
      %v1129 = vld [vmem:[%s423 + $0x169] sm:$0xff]
      %v1130 = vld [vmem:[%s423 + $0x171] sm:$0xff]
      %1163 = vrot.lane.b32.xlu0 %v1099, 16
      %v1164 = vpop.permute.xlu0 %1163
      %1165 = vrot.lane.b32.xlu0 %v1100, 16
      %v1166 = vpop.permute.xlu0 %1165
      %1167 = vrot.lane.b32.xlu0 %v1101, 16
      %v1168 = vpop.permute.xlu0 %1167
      %1169 = vrot.lane.b32.xlu0 %v1102, 16
      %v1170 = vpop.permute.xlu0 %1169
      %1171 = vrot.lane.b32.xlu0 %v1103, 16
      %v1172 = vpop.permute.xlu0 %1171
      %1173 = vrot.lane.b32.xlu0 %v1104, 16
      %v1174 = vpop.permute.xlu0 %1173
      %1175 = vrot.lane.b32.xlu0 %v1105, 16
      %v1176 = vpop.permute.xlu0 %1175
      %1177 = vrot.lane.b32.xlu0 %v1106, 16
      %v1178 = vpop.permute.xlu0 %1177
      %1179 = vrot.lane.b32.xlu0 %v1107, 16
      %v1180 = vpop.permute.xlu0 %1179
      %1181 = vrot.lane.b32.xlu0 %v1108, 16
      %v1182 = vpop.permute.xlu0 %1181
      %1183 = vrot.lane.b32.xlu0 %v1109, 16
      %v1184 = vpop.permute.xlu0 %1183
      %1185 = vrot.lane.b32.xlu0 %v1110, 16
      %v1186 = vpop.permute.xlu0 %1185
      %1187 = vrot.lane.b32.xlu0 %v1111, 16
      %v1188 = vpop.permute.xlu0 %1187
      %1189 = vrot.lane.b32.xlu0 %v1112, 16
      %v1190 = vpop.permute.xlu0 %1189
      %1191 = vrot.lane.b32.xlu0 %v1113, 16
      %v1192 = vpop.permute.xlu0 %1191
      %1193 = vrot.lane.b32.xlu0 %v1114, 16
      %v1194 = vpop.permute.xlu0 %1193
      %1195 = vrot.lane.b32.xlu0 %v1115, 16
      %v1196 = vpop.permute.xlu0 %1195
      %1197 = vrot.lane.b32.xlu0 %v1116, 16
      %v1198 = vpop.permute.xlu0 %1197
      %1199 = vrot.lane.b32.xlu0 %v1117, 16
      %v1200 = vpop.permute.xlu0 %1199
      %1201 = vrot.lane.b32.xlu0 %v1118, 16
      %v1202 = vpop.permute.xlu0 %1201
      %1203 = vrot.lane.b32.xlu0 %v1119, 16
      %v1204 = vpop.permute.xlu0 %1203
      %1205 = vrot.lane.b32.xlu0 %v1120, 16
      %v1206 = vpop.permute.xlu0 %1205
      %1207 = vrot.lane.b32.xlu0 %v1121, 16
      %v1208 = vpop.permute.xlu0 %1207
      %1209 = vrot.lane.b32.xlu0 %v1122, 16
      %v1210 = vpop.permute.xlu0 %1209
      %1211 = vrot.lane.b32.xlu0 %v1123, 16
      %v1212 = vpop.permute.xlu0 %1211
      %1213 = vrot.lane.b32.xlu0 %v1124, 16
      %v1214 = vpop.permute.xlu0 %1213
      %1215 = vrot.lane.b32.xlu0 %v1125, 16
      %v1216 = vpop.permute.xlu0 %1215
      %1217 = vrot.lane.b32.xlu0 %v1126, 16
      %v1218 = vpop.permute.xlu0 %1217
      %1219 = vrot.lane.b32.xlu0 %v1127, 16
      %v1220 = vpop.permute.xlu0 %1219
      %1221 = vrot.lane.b32.xlu0 %v1128, 16
      %v1222 = vpop.permute.xlu0 %1221
      %1223 = vrot.lane.b32.xlu0 %v1129, 16
      %v1224 = vpop.permute.xlu0 %1223
      %1225 = vrot.lane.b32.xlu0 %v1130, 16
      %v1226 = vpop.permute.xlu0 %1225
      %vm1259 = vcmask 162944
      %1260 = vst.msk [vmem:[#allocation4] sm:$0xff] %vm1259, %v1164
      %1261 = vst.msk [vmem:[#allocation4 + $0x8] sm:$0xff] %vm1259, %v1166
      %1262 = vst.msk [vmem:[#allocation4 + $0x10] sm:$0xff] %vm1259, %v1168
      %1263 = vst.msk [vmem:[#allocation4 + $0x18] sm:$0xff] %vm1259, %v1170
      %1264 = vst.msk [vmem:[#allocation4 + $0x20] sm:$0xff] %vm1259, %v1172
      %1265 = vst.msk [vmem:[#allocation4 + $0x28] sm:$0xff] %vm1259, %v1174
      %1266 = vst.msk [vmem:[#allocation4 + $0x30] sm:$0xff] %vm1259, %v1176
      %1267 = vst.msk [vmem:[#allocation4 + $0x38] sm:$0xff] %vm1259, %v1178
      %1268 = vst.msk [vmem:[#allocation4 + $0x40] sm:$0xff] %vm1259, %v1180
      %1269 = vst.msk [vmem:[#allocation4 + $0x48] sm:$0xff] %vm1259, %v1182
      %1270 = vst.msk [vmem:[#allocation4 + $0x50] sm:$0xff] %vm1259, %v1184
      %1271 = vst.msk [vmem:[#allocation4 + $0x58] sm:$0xff] %vm1259, %v1186
      %1272 = vst.msk [vmem:[#allocation4 + $0x60] sm:$0xff] %vm1259, %v1188
      %1273 = vst.msk [vmem:[#allocation4 + $0x68] sm:$0xff] %vm1259, %v1190
      %1274 = vst.msk [vmem:[#allocation4 + $0x70] sm:$0xff] %vm1259, %v1192
      %1275 = vst.msk [vmem:[#allocation4 + $0x78] sm:$0xff] %vm1259, %v1194
      %1276 = vst.msk [vmem:[#allocation4 + $0x80] sm:$0xff] %vm1259, %v1196
      %1277 = vst.msk [vmem:[#allocation4 + $0x88] sm:$0xff] %vm1259, %v1198
      %1278 = vst.msk [vmem:[#allocation4 + $0x90] sm:$0xff] %vm1259, %v1200
      %1279 = vst.msk [vmem:[#allocation4 + $0x98] sm:$0xff] %vm1259, %v1202
      %1280 = vst.msk [vmem:[#allocation4 + $0xa0] sm:$0xff] %vm1259, %v1204
      %1281 = vst.msk [vmem:[#allocation4 + $0xa8] sm:$0xff] %vm1259, %v1206
      %1282 = vst.msk [vmem:[#allocation4 + $0xb0] sm:$0xff] %vm1259, %v1208
      %1283 = vst.msk [vmem:[#allocation4 + $0xb8] sm:$0xff] %vm1259, %v1210
      %1284 = vst.msk [vmem:[#allocation4 + $0xc0] sm:$0xff] %vm1259, %v1212
      %1285 = vst.msk [vmem:[#allocation4 + $0xc8] sm:$0xff] %vm1259, %v1214
      %1286 = vst.msk [vmem:[#allocation4 + $0xd0] sm:$0xff] %vm1259, %v1216
      %1287 = vst.msk [vmem:[#allocation4 + $0xd8] sm:$0xff] %vm1259, %v1218
      %1288 = vst.msk [vmem:[#allocation4 + $0xe0] sm:$0xff] %vm1259, %v1220
      %1289 = vst.msk [vmem:[#allocation4 + $0xe8] sm:$0xff] %vm1259, %v1222
      %1290 = vst.msk [vmem:[#allocation4 + $0xf0] sm:$0xff] %vm1259, %v1224
      %1291 = vst.msk [vmem:[#allocation4 + $0xf8] sm:$0xff] %vm1259, %v1226
      %v1292 = vld [vmem:[%s423 + $0x2] sm:$0xff]
      %v1293 = vld [vmem:[%s423 + $0xa] sm:$0xff]
      %v1294 = vld [vmem:[%s423 + $0x1a] sm:$0xff]
      %v1295 = vld [vmem:[%s423 + $0x22] sm:$0xff]
      %v1296 = vld [vmem:[%s423 + $0x32] sm:$0xff]
      %v1297 = vld [vmem:[%s423 + $0x3a] sm:$0xff]
      %v1298 = vld [vmem:[%s423 + $0x4a] sm:$0xff]
      %v1299 = vld [vmem:[%s423 + $0x52] sm:$0xff]
      %v1300 = vld [vmem:[%s423 + $0x62] sm:$0xff]
      %v1301 = vld [vmem:[%s423 + $0x6a] sm:$0xff]
      %v1302 = vld [vmem:[%s423 + $0x7a] sm:$0xff]
      %v1303 = vld [vmem:[%s423 + $0x82] sm:$0xff]
      %v1304 = vld [vmem:[%s423 + $0x92] sm:$0xff]
      %v1305 = vld [vmem:[%s423 + $0x9a] sm:$0xff]
      %v1306 = vld [vmem:[%s423 + $0xaa] sm:$0xff]
      %v1307 = vld [vmem:[%s423 + $0xb2] sm:$0xff]
      %v1308 = vld [vmem:[%s423 + $0xc2] sm:$0xff]
      %v1309 = vld [vmem:[%s423 + $0xca] sm:$0xff]
      %v1310 = vld [vmem:[%s423 + $0xda] sm:$0xff]
      %v1311 = vld [vmem:[%s423 + $0xe2] sm:$0xff]
      %v1312 = vld [vmem:[%s423 + $0xf2] sm:$0xff]
      %v1313 = vld [vmem:[%s423 + $0xfa] sm:$0xff]
      %v1314 = vld [vmem:[%s423 + $0x10a] sm:$0xff]
      %v1315 = vld [vmem:[%s423 + $0x112] sm:$0xff]
      %v1316 = vld [vmem:[%s423 + $0x122] sm:$0xff]
      %v1317 = vld [vmem:[%s423 + $0x12a] sm:$0xff]
      %v1318 = vld [vmem:[%s423 + $0x13a] sm:$0xff]
      %v1319 = vld [vmem:[%s423 + $0x142] sm:$0xff]
      %v1320 = vld [vmem:[%s423 + $0x152] sm:$0xff]
      %v1321 = vld [vmem:[%s423 + $0x15a] sm:$0xff]
      %v1322 = vld [vmem:[%s423 + $0x16a] sm:$0xff]
      %v1323 = vld [vmem:[%s423 + $0x172] sm:$0xff]
      %1356 = vrot.lane.b32.xlu0 %v1292, 20
      %v1357 = vpop.permute.xlu0 %1356
      %1358 = vrot.lane.b32.xlu0 %v1293, 20
      %v1359 = vpop.permute.xlu0 %1358
      %1360 = vrot.lane.b32.xlu0 %v1294, 20
      %v1361 = vpop.permute.xlu0 %1360
      %1362 = vrot.lane.b32.xlu0 %v1295, 20
      %v1363 = vpop.permute.xlu0 %1362
      %1364 = vrot.lane.b32.xlu0 %v1296, 20
      %v1365 = vpop.permute.xlu0 %1364
      %1366 = vrot.lane.b32.xlu0 %v1297, 20
      %v1367 = vpop.permute.xlu0 %1366
      %1368 = vrot.lane.b32.xlu0 %v1298, 20
      %v1369 = vpop.permute.xlu0 %1368
      %1370 = vrot.lane.b32.xlu0 %v1299, 20
      %v1371 = vpop.permute.xlu0 %1370
      %1372 = vrot.lane.b32.xlu0 %v1300, 20
      %v1373 = vpop.permute.xlu0 %1372
      %1374 = vrot.lane.b32.xlu0 %v1301, 20
      %v1375 = vpop.permute.xlu0 %1374
      %1376 = vrot.lane.b32.xlu0 %v1302, 20
      %v1377 = vpop.permute.xlu0 %1376
      %1378 = vrot.lane.b32.xlu0 %v1303, 20
      %v1379 = vpop.permute.xlu0 %1378
      %1380 = vrot.lane.b32.xlu0 %v1304, 20
      %v1381 = vpop.permute.xlu0 %1380
      %1382 = vrot.lane.b32.xlu0 %v1305, 20
      %v1383 = vpop.permute.xlu0 %1382
      %1384 = vrot.lane.b32.xlu0 %v1306, 20
      %v1385 = vpop.permute.xlu0 %1384
      %1386 = vrot.lane.b32.xlu0 %v1307, 20
      %v1387 = vpop.permute.xlu0 %1386
      %1388 = vrot.lane.b32.xlu0 %v1308, 20
      %v1389 = vpop.permute.xlu0 %1388
      %1390 = vrot.lane.b32.xlu0 %v1309, 20
      %v1391 = vpop.permute.xlu0 %1390
      %1392 = vrot.lane.b32.xlu0 %v1310, 20
      %v1393 = vpop.permute.xlu0 %1392
      %1394 = vrot.lane.b32.xlu0 %v1311, 20
      %v1395 = vpop.permute.xlu0 %1394
      %1396 = vrot.lane.b32.xlu0 %v1312, 20
      %v1397 = vpop.permute.xlu0 %1396
      %1398 = vrot.lane.b32.xlu0 %v1313, 20
      %v1399 = vpop.permute.xlu0 %1398
      %1400 = vrot.lane.b32.xlu0 %v1314, 20
      %v1401 = vpop.permute.xlu0 %1400
      %1402 = vrot.lane.b32.xlu0 %v1315, 20
      %v1403 = vpop.permute.xlu0 %1402
      %1404 = vrot.lane.b32.xlu0 %v1316, 20
      %v1405 = vpop.permute.xlu0 %1404
      %1406 = vrot.lane.b32.xlu0 %v1317, 20
      %v1407 = vpop.permute.xlu0 %1406
      %1408 = vrot.lane.b32.xlu0 %v1318, 20
      %v1409 = vpop.permute.xlu0 %1408
      %1410 = vrot.lane.b32.xlu0 %v1319, 20
      %v1411 = vpop.permute.xlu0 %1410
      %1412 = vrot.lane.b32.xlu0 %v1320, 20
      %v1413 = vpop.permute.xlu0 %1412
      %1414 = vrot.lane.b32.xlu0 %v1321, 20
      %v1415 = vpop.permute.xlu0 %1414
      %1416 = vrot.lane.b32.xlu0 %v1322, 20
      %v1417 = vpop.permute.xlu0 %1416
      %1418 = vrot.lane.b32.xlu0 %v1323, 20
      %v1419 = vpop.permute.xlu0 %1418
      %vm1452 = vcmask 195744
      %1453 = vst.msk [vmem:[#allocation4] sm:$0xff] %vm1452, %v1357
      %1454 = vst.msk [vmem:[#allocation4 + $0x8] sm:$0xff] %vm1452, %v1359
      %1455 = vst.msk [vmem:[#allocation4 + $0x10] sm:$0xff] %vm1452, %v1361
      %1456 = vst.msk [vmem:[#allocation4 + $0x18] sm:$0xff] %vm1452, %v1363
      %1457 = vst.msk [vmem:[#allocation4 + $0x20] sm:$0xff] %vm1452, %v1365
      %1458 = vst.msk [vmem:[#allocation4 + $0x28] sm:$0xff] %vm1452, %v1367
      %1459 = vst.msk [vmem:[#allocation4 + $0x30] sm:$0xff] %vm1452, %v1369
      %1460 = vst.msk [vmem:[#allocation4 + $0x38] sm:$0xff] %vm1452, %v1371
      %1461 = vst.msk [vmem:[#allocation4 + $0x40] sm:$0xff] %vm1452, %v1373
      %1462 = vst.msk [vmem:[#allocation4 + $0x48] sm:$0xff] %vm1452, %v1375
      %1463 = vst.msk [vmem:[#allocation4 + $0x50] sm:$0xff] %vm1452, %v1377
      %1464 = vst.msk [vmem:[#allocation4 + $0x58] sm:$0xff] %vm1452, %v1379
      %1465 = vst.msk [vmem:[#allocation4 + $0x60] sm:$0xff] %vm1452, %v1381
      %1466 = vst.msk [vmem:[#allocation4 + $0x68] sm:$0xff] %vm1452, %v1383
      %1467 = vst.msk [vmem:[#allocation4 + $0x70] sm:$0xff] %vm1452, %v1385
      %1468 = vst.msk [vmem:[#allocation4 + $0x78] sm:$0xff] %vm1452, %v1387
      %1469 = vst.msk [vmem:[#allocation4 + $0x80] sm:$0xff] %vm1452, %v1389
      %1470 = vst.msk [vmem:[#allocation4 + $0x88] sm:$0xff] %vm1452, %v1391
      %1471 = vst.msk [vmem:[#allocation4 + $0x90] sm:$0xff] %vm1452, %v1393
      %1472 = vst.msk [vmem:[#allocation4 + $0x98] sm:$0xff] %vm1452, %v1395
      %1473 = vst.msk [vmem:[#allocation4 + $0xa0] sm:$0xff] %vm1452, %v1397
      %1474 = vst.msk [vmem:[#allocation4 + $0xa8] sm:$0xff] %vm1452, %v1399
      %1475 = vst.msk [vmem:[#allocation4 + $0xb0] sm:$0xff] %vm1452, %v1401
      %1476 = vst.msk [vmem:[#allocation4 + $0xb8] sm:$0xff] %vm1452, %v1403
      %1477 = vst.msk [vmem:[#allocation4 + $0xc0] sm:$0xff] %vm1452, %v1405
      %1478 = vst.msk [vmem:[#allocation4 + $0xc8] sm:$0xff] %vm1452, %v1407
      %1479 = vst.msk [vmem:[#allocation4 + $0xd0] sm:$0xff] %vm1452, %v1409
      %1480 = vst.msk [vmem:[#allocation4 + $0xd8] sm:$0xff] %vm1452, %v1411
      %1481 = vst.msk [vmem:[#allocation4 + $0xe0] sm:$0xff] %vm1452, %v1413
      %1482 = vst.msk [vmem:[#allocation4 + $0xe8] sm:$0xff] %vm1452, %v1415
      %1483 = vst.msk [vmem:[#allocation4 + $0xf0] sm:$0xff] %vm1452, %v1417
      %1484 = vst.msk [vmem:[#allocation4 + $0xf8] sm:$0xff] %vm1452, %v1419
      %s1485 = scalar_lea.vmem [#allocation2], 48
      %v1486 = vld [vmem:[%s1485] sm:$0xff]
      %v1487 = vld [vmem:[%s1485 + $0x8] sm:$0xff]
      %v1488 = vld [vmem:[%s1485 + $0x18] sm:$0xff]
      %v1489 = vld [vmem:[%s1485 + $0x20] sm:$0xff]
      %v1490 = vld [vmem:[%s1485 + $0x30] sm:$0xff]
      %v1491 = vld [vmem:[%s1485 + $0x38] sm:$0xff]
      %v1492 = vld [vmem:[%s1485 + $0x48] sm:$0xff]
      %v1493 = vld [vmem:[%s1485 + $0x50] sm:$0xff]
      %v1494 = vld [vmem:[%s1485 + $0x60] sm:$0xff]
      %v1495 = vld [vmem:[%s1485 + $0x68] sm:$0xff]
      %v1496 = vld [vmem:[%s1485 + $0x78] sm:$0xff]
      %v1497 = vld [vmem:[%s1485 + $0x80] sm:$0xff]
      %v1498 = vld [vmem:[%s1485 + $0x90] sm:$0xff]
      %v1499 = vld [vmem:[%s1485 + $0x98] sm:$0xff]
      %v1500 = vld [vmem:[%s1485 + $0xa8] sm:$0xff]
      %v1501 = vld [vmem:[%s1485 + $0xb0] sm:$0xff]
      %v1502 = vld [vmem:[%s1485 + $0xc0] sm:$0xff]
      %v1503 = vld [vmem:[%s1485 + $0xc8] sm:$0xff]
      %v1504 = vld [vmem:[%s1485 + $0xd8] sm:$0xff]
      %v1505 = vld [vmem:[%s1485 + $0xe0] sm:$0xff]
      %v1506 = vld [vmem:[%s1485 + $0xf0] sm:$0xff]
      %v1507 = vld [vmem:[%s1485 + $0xf8] sm:$0xff]
      %v1508 = vld [vmem:[%s1485 + $0x108] sm:$0xff]
      %v1509 = vld [vmem:[%s1485 + $0x110] sm:$0xff]
      %v1510 = vld [vmem:[%s1485 + $0x120] sm:$0xff]
      %v1511 = vld [vmem:[%s1485 + $0x128] sm:$0xff]
      %v1512 = vld [vmem:[%s1485 + $0x138] sm:$0xff]
      %v1513 = vld [vmem:[%s1485 + $0x140] sm:$0xff]
      %v1514 = vld [vmem:[%s1485 + $0x150] sm:$0xff]
      %v1515 = vld [vmem:[%s1485 + $0x158] sm:$0xff]
      %v1516 = vld [vmem:[%s1485 + $0x168] sm:$0xff]
      %v1517 = vld [vmem:[%s1485 + $0x170] sm:$0xff]
      %1550 = vrot.lane.b32.xlu0 %v1486, 24
      %v1551 = vpop.permute.xlu0 %1550
      %1552 = vrot.lane.b32.xlu0 %v1487, 24
      %v1553 = vpop.permute.xlu0 %1552
      %1554 = vrot.lane.b32.xlu0 %v1488, 24
      %v1555 = vpop.permute.xlu0 %1554
      %1556 = vrot.lane.b32.xlu0 %v1489, 24
      %v1557 = vpop.permute.xlu0 %1556
      %1558 = vrot.lane.b32.xlu0 %v1490, 24
      %v1559 = vpop.permute.xlu0 %1558
      %1560 = vrot.lane.b32.xlu0 %v1491, 24
      %v1561 = vpop.permute.xlu0 %1560
      %1562 = vrot.lane.b32.xlu0 %v1492, 24
      %v1563 = vpop.permute.xlu0 %1562
      %1564 = vrot.lane.b32.xlu0 %v1493, 24
      %v1565 = vpop.permute.xlu0 %1564
      %1566 = vrot.lane.b32.xlu0 %v1494, 24
      %v1567 = vpop.permute.xlu0 %1566
      %1568 = vrot.lane.b32.xlu0 %v1495, 24
      %v1569 = vpop.permute.xlu0 %1568
      %1570 = vrot.lane.b32.xlu0 %v1496, 24
      %v1571 = vpop.permute.xlu0 %1570
      %1572 = vrot.lane.b32.xlu0 %v1497, 24
      %v1573 = vpop.permute.xlu0 %1572
      %1574 = vrot.lane.b32.xlu0 %v1498, 24
      %v1575 = vpop.permute.xlu0 %1574
      %1576 = vrot.lane.b32.xlu0 %v1499, 24
      %v1577 = vpop.permute.xlu0 %1576
      %1578 = vrot.lane.b32.xlu0 %v1500, 24
      %v1579 = vpop.permute.xlu0 %1578
      %1580 = vrot.lane.b32.xlu0 %v1501, 24
      %v1581 = vpop.permute.xlu0 %1580
      %1582 = vrot.lane.b32.xlu0 %v1502, 24
      %v1583 = vpop.permute.xlu0 %1582
      %1584 = vrot.lane.b32.xlu0 %v1503, 24
      %v1585 = vpop.permute.xlu0 %1584
      %1586 = vrot.lane.b32.xlu0 %v1504, 24
      %v1587 = vpop.permute.xlu0 %1586
      %1588 = vrot.lane.b32.xlu0 %v1505, 24
      %v1589 = vpop.permute.xlu0 %1588
      %1590 = vrot.lane.b32.xlu0 %v1506, 24
      %v1591 = vpop.permute.xlu0 %1590
      %1592 = vrot.lane.b32.xlu0 %v1507, 24
      %v1593 = vpop.permute.xlu0 %1592
      %1594 = vrot.lane.b32.xlu0 %v1508, 24
      %v1595 = vpop.permute.xlu0 %1594
      %1596 = vrot.lane.b32.xlu0 %v1509, 24
      %v1597 = vpop.permute.xlu0 %1596
      %1598 = vrot.lane.b32.xlu0 %v1510, 24
      %v1599 = vpop.permute.xlu0 %1598
      %1600 = vrot.lane.b32.xlu0 %v1511, 24
      %v1601 = vpop.permute.xlu0 %1600
      %1602 = vrot.lane.b32.xlu0 %v1512, 24
      %v1603 = vpop.permute.xlu0 %1602
      %1604 = vrot.lane.b32.xlu0 %v1513, 24
      %v1605 = vpop.permute.xlu0 %1604
      %1606 = vrot.lane.b32.xlu0 %v1514, 24
      %v1607 = vpop.permute.xlu0 %1606
      %1608 = vrot.lane.b32.xlu0 %v1515, 24
      %v1609 = vpop.permute.xlu0 %1608
      %1610 = vrot.lane.b32.xlu0 %v1516, 24
      %v1611 = vpop.permute.xlu0 %1610
      %1612 = vrot.lane.b32.xlu0 %v1517, 24
      %v1613 = vpop.permute.xlu0 %1612
      %vm1646 = vcmask 228544
      %1647 = vst.msk [vmem:[#allocation4] sm:$0xff] %vm1646, %v1551
      %1648 = vst.msk [vmem:[#allocation4 + $0x8] sm:$0xff] %vm1646, %v1553
      %1649 = vst.msk [vmem:[#allocation4 + $0x10] sm:$0xff] %vm1646, %v1555
      %1650 = vst.msk [vmem:[#allocation4 + $0x18] sm:$0xff] %vm1646, %v1557
      %1651 = vst.msk [vmem:[#allocation4 + $0x20] sm:$0xff] %vm1646, %v1559
      %1652 = vst.msk [vmem:[#allocation4 + $0x28] sm:$0xff] %vm1646, %v1561
      %1653 = vst.msk [vmem:[#allocation4 + $0x30] sm:$0xff] %vm1646, %v1563
      %1654 = vst.msk [vmem:[#allocation4 + $0x38] sm:$0xff] %vm1646, %v1565
      %1655 = vst.msk [vmem:[#allocation4 + $0x40] sm:$0xff] %vm1646, %v1567
      %1656 = vst.msk [vmem:[#allocation4 + $0x48] sm:$0xff] %vm1646, %v1569
      %1657 = vst.msk [vmem:[#allocation4 + $0x50] sm:$0xff] %vm1646, %v1571
      %1658 = vst.msk [vmem:[#allocation4 + $0x58] sm:$0xff] %vm1646, %v1573
      %1659 = vst.msk [vmem:[#allocation4 + $0x60] sm:$0xff] %vm1646, %v1575
      %1660 = vst.msk [vmem:[#allocation4 + $0x68] sm:$0xff] %vm1646, %v1577
      %1661 = vst.msk [vmem:[#allocation4 + $0x70] sm:$0xff] %vm1646, %v1579
      %1662 = vst.msk [vmem:[#allocation4 + $0x78] sm:$0xff] %vm1646, %v1581
      %1663 = vst.msk [vmem:[#allocation4 + $0x80] sm:$0xff] %vm1646, %v1583
      %1664 = vst.msk [vmem:[#allocation4 + $0x88] sm:$0xff] %vm1646, %v1585
      %1665 = vst.msk [vmem:[#allocation4 + $0x90] sm:$0xff] %vm1646, %v1587
      %1666 = vst.msk [vmem:[#allocation4 + $0x98] sm:$0xff] %vm1646, %v1589
      %1667 = vst.msk [vmem:[#allocation4 + $0xa0] sm:$0xff] %vm1646, %v1591
      %1668 = vst.msk [vmem:[#allocation4 + $0xa8] sm:$0xff] %vm1646, %v1593
      %1669 = vst.msk [vmem:[#allocation4 + $0xb0] sm:$0xff] %vm1646, %v1595
      %1670 = vst.msk [vmem:[#allocation4 + $0xb8] sm:$0xff] %vm1646, %v1597
      %1671 = vst.msk [vmem:[#allocation4 + $0xc0] sm:$0xff] %vm1646, %v1599
      %1672 = vst.msk [vmem:[#allocation4 + $0xc8] sm:$0xff] %vm1646, %v1601
      %1673 = vst.msk [vmem:[#allocation4 + $0xd0] sm:$0xff] %vm1646, %v1603
      %1674 = vst.msk [vmem:[#allocation4 + $0xd8] sm:$0xff] %vm1646, %v1605
      %1675 = vst.msk [vmem:[#allocation4 + $0xe0] sm:$0xff] %vm1646, %v1607
      %1676 = vst.msk [vmem:[#allocation4 + $0xe8] sm:$0xff] %vm1646, %v1609
      %1677 = vst.msk [vmem:[#allocation4 + $0xf0] sm:$0xff] %vm1646, %v1611
      %1678 = vst.msk [vmem:[#allocation4 + $0xf8] sm:$0xff] %vm1646, %v1613
      %v1679 = vld [vmem:[%s1485 + $0x1] sm:$0xff]
      %v1680 = vld [vmem:[%s1485 + $0x9] sm:$0xff]
      %v1681 = vld [vmem:[%s1485 + $0x19] sm:$0xff]
      %v1682 = vld [vmem:[%s1485 + $0x21] sm:$0xff]
      %v1683 = vld [vmem:[%s1485 + $0x31] sm:$0xff]
      %v1684 = vld [vmem:[%s1485 + $0x39] sm:$0xff]
      %v1685 = vld [vmem:[%s1485 + $0x49] sm:$0xff]
      %v1686 = vld [vmem:[%s1485 + $0x51] sm:$0xff]
      %v1687 = vld [vmem:[%s1485 + $0x61] sm:$0xff]
      %v1688 = vld [vmem:[%s1485 + $0x69] sm:$0xff]
      %v1689 = vld [vmem:[%s1485 + $0x79] sm:$0xff]
      %v1690 = vld [vmem:[%s1485 + $0x81] sm:$0xff]
      %v1691 = vld [vmem:[%s1485 + $0x91] sm:$0xff]
      %v1692 = vld [vmem:[%s1485 + $0x99] sm:$0xff]
      %v1693 = vld [vmem:[%s1485 + $0xa9] sm:$0xff]
      %v1694 = vld [vmem:[%s1485 + $0xb1] sm:$0xff]
      %v1695 = vld [vmem:[%s1485 + $0xc1] sm:$0xff]
      %v1696 = vld [vmem:[%s1485 + $0xc9] sm:$0xff]
      %v1697 = vld [vmem:[%s1485 + $0xd9] sm:$0xff]
      %v1698 = vld [vmem:[%s1485 + $0xe1] sm:$0xff]
      %v1699 = vld [vmem:[%s1485 + $0xf1] sm:$0xff]
      %v1700 = vld [vmem:[%s1485 + $0xf9] sm:$0xff]
      %v1701 = vld [vmem:[%s1485 + $0x109] sm:$0xff]
      %v1702 = vld [vmem:[%s1485 + $0x111] sm:$0xff]
      %v1703 = vld [vmem:[%s1485 + $0x121] sm:$0xff]
      %v1704 = vld [vmem:[%s1485 + $0x129] sm:$0xff]
      %v1705 = vld [vmem:[%s1485 + $0x139] sm:$0xff]
      %v1706 = vld [vmem:[%s1485 + $0x141] sm:$0xff]
      %v1707 = vld [vmem:[%s1485 + $0x151] sm:$0xff]
      %v1708 = vld [vmem:[%s1485 + $0x159] sm:$0xff]
      %v1709 = vld [vmem:[%s1485 + $0x169] sm:$0xff]
      %v1710 = vld [vmem:[%s1485 + $0x171] sm:$0xff]
      %1743 = vrot.lane.b32.xlu0 %v1679, 28
      %v1744 = vpop.permute.xlu0 %1743
      %1745 = vrot.lane.b32.xlu0 %v1680, 28
      %v1746 = vpop.permute.xlu0 %1745
      %1747 = vrot.lane.b32.xlu0 %v1681, 28
      %v1748 = vpop.permute.xlu0 %1747
      %1749 = vrot.lane.b32.xlu0 %v1682, 28
      %v1750 = vpop.permute.xlu0 %1749
      %1751 = vrot.lane.b32.xlu0 %v1683, 28
      %v1752 = vpop.permute.xlu0 %1751
      %1753 = vrot.lane.b32.xlu0 %v1684, 28
      %v1754 = vpop.permute.xlu0 %1753
      %1755 = vrot.lane.b32.xlu0 %v1685, 28
      %v1756 = vpop.permute.xlu0 %1755
      %1757 = vrot.lane.b32.xlu0 %v1686, 28
      %v1758 = vpop.permute.xlu0 %1757
      %1759 = vrot.lane.b32.xlu0 %v1687, 28
      %v1760 = vpop.permute.xlu0 %1759
      %1761 = vrot.lane.b32.xlu0 %v1688, 28
      %v1762 = vpop.permute.xlu0 %1761
      %1763 = vrot.lane.b32.xlu0 %v1689, 28
      %v1764 = vpop.permute.xlu0 %1763
      %1765 = vrot.lane.b32.xlu0 %v1690, 28
      %v1766 = vpop.permute.xlu0 %1765
      %1767 = vrot.lane.b32.xlu0 %v1691, 28
      %v1768 = vpop.permute.xlu0 %1767
      %1769 = vrot.lane.b32.xlu0 %v1692, 28
      %v1770 = vpop.permute.xlu0 %1769
      %1771 = vrot.lane.b32.xlu0 %v1693, 28
      %v1772 = vpop.permute.xlu0 %1771
      %1773 = vrot.lane.b32.xlu0 %v1694, 28
      %v1774 = vpop.permute.xlu0 %1773
      %1775 = vrot.lane.b32.xlu0 %v1695, 28
      %v1776 = vpop.permute.xlu0 %1775
      %1777 = vrot.lane.b32.xlu0 %v1696, 28
      %v1778 = vpop.permute.xlu0 %1777
      %1779 = vrot.lane.b32.xlu0 %v1697, 28
      %v1780 = vpop.permute.xlu0 %1779
      %1781 = vrot.lane.b32.xlu0 %v1698, 28
      %v1782 = vpop.permute.xlu0 %1781
      %1783 = vrot.lane.b32.xlu0 %v1699, 28
      %v1784 = vpop.permute.xlu0 %1783
      %1785 = vrot.lane.b32.xlu0 %v1700, 28
      %v1786 = vpop.permute.xlu0 %1785
      %1787 = vrot.lane.b32.xlu0 %v1701, 28
      %v1788 = vpop.permute.xlu0 %1787
      %1789 = vrot.lane.b32.xlu0 %v1702, 28
      %v1790 = vpop.permute.xlu0 %1789
      %1791 = vrot.lane.b32.xlu0 %v1703, 28
      %v1792 = vpop.permute.xlu0 %1791
      %1793 = vrot.lane.b32.xlu0 %v1704, 28
      %v1794 = vpop.permute.xlu0 %1793
      %1795 = vrot.lane.b32.xlu0 %v1705, 28
      %v1796 = vpop.permute.xlu0 %1795
      %1797 = vrot.lane.b32.xlu0 %v1706, 28
      %v1798 = vpop.permute.xlu0 %1797
      %1799 = vrot.lane.b32.xlu0 %v1707, 28
      %v1800 = vpop.permute.xlu0 %1799
      %1801 = vrot.lane.b32.xlu0 %v1708, 28
      %v1802 = vpop.permute.xlu0 %1801
      %1803 = vrot.lane.b32.xlu0 %v1709, 28
      %v1804 = vpop.permute.xlu0 %1803
      %1805 = vrot.lane.b32.xlu0 %v1710, 28
      %v1806 = vpop.permute.xlu0 %1805
      %vm1839 = vcmask 261344
      %1840 = vst.msk [vmem:[#allocation4] sm:$0xff] %vm1839, %v1744
      %1841 = vst.msk [vmem:[#allocation4 + $0x8] sm:$0xff] %vm1839, %v1746
      %1842 = vst.msk [vmem:[#allocation4 + $0x10] sm:$0xff] %vm1839, %v1748
      %1843 = vst.msk [vmem:[#allocation4 + $0x18] sm:$0xff] %vm1839, %v1750
      %1844 = vst.msk [vmem:[#allocation4 + $0x20] sm:$0xff] %vm1839, %v1752
      %1845 = vst.msk [vmem:[#allocation4 + $0x28] sm:$0xff] %vm1839, %v1754
      %1846 = vst.msk [vmem:[#allocation4 + $0x30] sm:$0xff] %vm1839, %v1756
      %1847 = vst.msk [vmem:[#allocation4 + $0x38] sm:$0xff] %vm1839, %v1758
      %1848 = vst.msk [vmem:[#allocation4 + $0x40] sm:$0xff] %vm1839, %v1760
      %1849 = vst.msk [vmem:[#allocation4 + $0x48] sm:$0xff] %vm1839, %v1762
      %1850 = vst.msk [vmem:[#allocation4 + $0x50] sm:$0xff] %vm1839, %v1764
      %1851 = vst.msk [vmem:[#allocation4 + $0x58] sm:$0xff] %vm1839, %v1766
      %1852 = vst.msk [vmem:[#allocation4 + $0x60] sm:$0xff] %vm1839, %v1768
      %1853 = vst.msk [vmem:[#allocation4 + $0x68] sm:$0xff] %vm1839, %v1770
      %1854 = vst.msk [vmem:[#allocation4 + $0x70] sm:$0xff] %vm1839, %v1772
      %1855 = vst.msk [vmem:[#allocation4 + $0x78] sm:$0xff] %vm1839, %v1774
      %1856 = vst.msk [vmem:[#allocation4 + $0x80] sm:$0xff] %vm1839, %v1776
      %1857 = vst.msk [vmem:[#allocation4 + $0x88] sm:$0xff] %vm1839, %v1778
      %1858 = vst.msk [vmem:[#allocation4 + $0x90] sm:$0xff] %vm1839, %v1780
      %1859 = vst.msk [vmem:[#allocation4 + $0x98] sm:$0xff] %vm1839, %v1782
      %1860 = vst.msk [vmem:[#allocation4 + $0xa0] sm:$0xff] %vm1839, %v1784
      %1861 = vst.msk [vmem:[#allocation4 + $0xa8] sm:$0xff] %vm1839, %v1786
      %1862 = vst.msk [vmem:[#allocation4 + $0xb0] sm:$0xff] %vm1839, %v1788
      %1863 = vst.msk [vmem:[#allocation4 + $0xb8] sm:$0xff] %vm1839, %v1790
      %1864 = vst.msk [vmem:[#allocation4 + $0xc0] sm:$0xff] %vm1839, %v1792
      %1865 = vst.msk [vmem:[#allocation4 + $0xc8] sm:$0xff] %vm1839, %v1794
      %1866 = vst.msk [vmem:[#allocation4 + $0xd0] sm:$0xff] %vm1839, %v1796
      %1867 = vst.msk [vmem:[#allocation4 + $0xd8] sm:$0xff] %vm1839, %v1798
      %1868 = vst.msk [vmem:[#allocation4 + $0xe0] sm:$0xff] %vm1839, %v1800
      %1869 = vst.msk [vmem:[#allocation4 + $0xe8] sm:$0xff] %vm1839, %v1802
      %1870 = vst.msk [vmem:[#allocation4 + $0xf0] sm:$0xff] %vm1839, %v1804
      %1871 = vst.msk [vmem:[#allocation4 + $0xf8] sm:$0xff] %vm1839, %v1806
      %v1872 = vld [vmem:[%s1485 + $0x2] sm:$0xff]
      %v1873 = vld [vmem:[%s1485 + $0xa] sm:$0xff]
      %v1874 = vld [vmem:[%s1485 + $0x1a] sm:$0xff]
      %v1875 = vld [vmem:[%s1485 + $0x22] sm:$0xff]
      %v1876 = vld [vmem:[%s1485 + $0x32] sm:$0xff]
      %v1877 = vld [vmem:[%s1485 + $0x3a] sm:$0xff]
      %v1878 = vld [vmem:[%s1485 + $0x4a] sm:$0xff]
      %v1879 = vld [vmem:[%s1485 + $0x52] sm:$0xff]
      %v1880 = vld [vmem:[%s1485 + $0x62] sm:$0xff]
      %v1881 = vld [vmem:[%s1485 + $0x6a] sm:$0xff]
      %v1882 = vld [vmem:[%s1485 + $0x7a] sm:$0xff]
      %v1883 = vld [vmem:[%s1485 + $0x82] sm:$0xff]
      %v1884 = vld [vmem:[%s1485 + $0x92] sm:$0xff]
      %v1885 = vld [vmem:[%s1485 + $0x9a] sm:$0xff]
      %v1886 = vld [vmem:[%s1485 + $0xaa] sm:$0xff]
      %v1887 = vld [vmem:[%s1485 + $0xb2] sm:$0xff]
      %v1888 = vld [vmem:[%s1485 + $0xc2] sm:$0xff]
      %v1889 = vld [vmem:[%s1485 + $0xca] sm:$0xff]
      %v1890 = vld [vmem:[%s1485 + $0xda] sm:$0xff]
      %v1891 = vld [vmem:[%s1485 + $0xe2] sm:$0xff]
      %v1892 = vld [vmem:[%s1485 + $0xf2] sm:$0xff]
      %v1893 = vld [vmem:[%s1485 + $0xfa] sm:$0xff]
      %v1894 = vld [vmem:[%s1485 + $0x10a] sm:$0xff]
      %v1895 = vld [vmem:[%s1485 + $0x112] sm:$0xff]
      %v1896 = vld [vmem:[%s1485 + $0x122] sm:$0xff]
      %v1897 = vld [vmem:[%s1485 + $0x12a] sm:$0xff]
      %v1898 = vld [vmem:[%s1485 + $0x13a] sm:$0xff]
      %v1899 = vld [vmem:[%s1485 + $0x142] sm:$0xff]
      %v1900 = vld [vmem:[%s1485 + $0x152] sm:$0xff]
      %v1901 = vld [vmem:[%s1485 + $0x15a] sm:$0xff]
      %v1902 = vld [vmem:[%s1485 + $0x16a] sm:$0xff]
      %v1903 = vld [vmem:[%s1485 + $0x172] sm:$0xff]
      %1936 = vrot.lane.b32.xlu0 %v1872, 32
      %v1937 = vpop.permute.xlu0 %1936
      %1938 = vrot.lane.b32.xlu0 %v1873, 32
      %v1939 = vpop.permute.xlu0 %1938
      %1940 = vrot.lane.b32.xlu0 %v1874, 32
      %v1941 = vpop.permute.xlu0 %1940
      %1942 = vrot.lane.b32.xlu0 %v1875, 32
      %v1943 = vpop.permute.xlu0 %1942
      %1944 = vrot.lane.b32.xlu0 %v1876, 32
      %v1945 = vpop.permute.xlu0 %1944
      %1946 = vrot.lane.b32.xlu0 %v1877, 32
      %v1947 = vpop.permute.xlu0 %1946
      %1948 = vrot.lane.b32.xlu0 %v1878, 32
      %v1949 = vpop.permute.xlu0 %1948
      %1950 = vrot.lane.b32.xlu0 %v1879, 32
      %v1951 = vpop.permute.xlu0 %1950
      %1952 = vrot.lane.b32.xlu0 %v1880, 32
      %v1953 = vpop.permute.xlu0 %1952
      %1954 = vrot.lane.b32.xlu0 %v1881, 32
      %v1955 = vpop.permute.xlu0 %1954
      %1956 = vrot.lane.b32.xlu0 %v1882, 32
      %v1957 = vpop.permute.xlu0 %1956
      %1958 = vrot.lane.b32.xlu0 %v1883, 32
      %v1959 = vpop.permute.xlu0 %1958
      %1960 = vrot.lane.b32.xlu0 %v1884, 32
      %v1961 = vpop.permute.xlu0 %1960
      %1962 = vrot.lane.b32.xlu0 %v1885, 32
      %v1963 = vpop.permute.xlu0 %1962
      %1964 = vrot.lane.b32.xlu0 %v1886, 32
      %v1965 = vpop.permute.xlu0 %1964
      %1966 = vrot.lane.b32.xlu0 %v1887, 32
      %v1967 = vpop.permute.xlu0 %1966
      %1968 = vrot.lane.b32.xlu0 %v1888, 32
      %v1969 = vpop.permute.xlu0 %1968
      %1970 = vrot.lane.b32.xlu0 %v1889, 32
      %v1971 = vpop.permute.xlu0 %1970
      %1972 = vrot.lane.b32.xlu0 %v1890, 32
      %v1973 = vpop.permute.xlu0 %1972
      %1974 = vrot.lane.b32.xlu0 %v1891, 32
      %v1975 = vpop.permute.xlu0 %1974
      %1976 = vrot.lane.b32.xlu0 %v1892, 32
      %v1977 = vpop.permute.xlu0 %1976
      %1978 = vrot.lane.b32.xlu0 %v1893, 32
      %v1979 = vpop.permute.xlu0 %1978
      %1980 = vrot.lane.b32.xlu0 %v1894, 32
      %v1981 = vpop.permute.xlu0 %1980
      %1982 = vrot.lane.b32.xlu0 %v1895, 32
      %v1983 = vpop.permute.xlu0 %1982
      %1984 = vrot.lane.b32.xlu0 %v1896, 32
      %v1985 = vpop.permute.xlu0 %1984
      %1986 = vrot.lane.b32.xlu0 %v1897, 32
      %v1987 = vpop.permute.xlu0 %1986
      %1988 = vrot.lane.b32.xlu0 %v1898, 32
      %v1989 = vpop.permute.xlu0 %1988
      %1990 = vrot.lane.b32.xlu0 %v1899, 32
      %v1991 = vpop.permute.xlu0 %1990
      %1992 = vrot.lane.b32.xlu0 %v1900, 32
      %v1993 = vpop.permute.xlu0 %1992
      %1994 = vrot.lane.b32.xlu0 %v1901, 32
      %v1995 = vpop.permute.xlu0 %1994
      %1996 = vrot.lane.b32.xlu0 %v1902, 32
      %v1997 = vpop.permute.xlu0 %1996
      %1998 = vrot.lane.b32.xlu0 %v1903, 32
      %v1999 = vpop.permute.xlu0 %1998
      %vm2032 = vcmask 294144
      %2033 = vst.msk [vmem:[#allocation4] sm:$0xff] %vm2032, %v1937
      %2034 = vst.msk [vmem:[#allocation4 + $0x8] sm:$0xff] %vm2032, %v1939
      %2035 = vst.msk [vmem:[#allocation4 + $0x10] sm:$0xff] %vm2032, %v1941
      %2036 = vst.msk [vmem:[#allocation4 + $0x18] sm:$0xff] %vm2032, %v1943
      %2037 = vst.msk [vmem:[#allocation4 + $0x20] sm:$0xff] %vm2032, %v1945
      %2038 = vst.msk [vmem:[#allocation4 + $0x28] sm:$0xff] %vm2032, %v1947
      %2039 = vst.msk [vmem:[#allocation4 + $0x30] sm:$0xff] %vm2032, %v1949
      %2040 = vst.msk [vmem:[#allocation4 + $0x38] sm:$0xff] %vm2032, %v1951
      %2041 = vst.msk [vmem:[#allocation4 + $0x40] sm:$0xff] %vm2032, %v1953
      %2042 = vst.msk [vmem:[#allocation4 + $0x48] sm:$0xff] %vm2032, %v1955
      %2043 = vst.msk [vmem:[#allocation4 + $0x50] sm:$0xff] %vm2032, %v1957
      %2044 = vst.msk [vmem:[#allocation4 + $0x58] sm:$0xff] %vm2032, %v1959
      %2045 = vst.msk [vmem:[#allocation4 + $0x60] sm:$0xff] %vm2032, %v1961
      %2046 = vst.msk [vmem:[#allocation4 + $0x68] sm:$0xff] %vm2032, %v1963
      %2047 = vst.msk [vmem:[#allocation4 + $0x70] sm:$0xff] %vm2032, %v1965
      %2048 = vst.msk [vmem:[#allocation4 + $0x78] sm:$0xff] %vm2032, %v1967
      %2049 = vst.msk [vmem:[#allocation4 + $0x80] sm:$0xff] %vm2032, %v1969
      %2050 = vst.msk [vmem:[#allocation4 + $0x88] sm:$0xff] %vm2032, %v1971
      %2051 = vst.msk [vmem:[#allocation4 + $0x90] sm:$0xff] %vm2032, %v1973
      %2052 = vst.msk [vmem:[#allocation4 + $0x98] sm:$0xff] %vm2032, %v1975
      %2053 = vst.msk [vmem:[#allocation4 + $0xa0] sm:$0xff] %vm2032, %v1977
      %2054 = vst.msk [vmem:[#allocation4 + $0xa8] sm:$0xff] %vm2032, %v1979
      %2055 = vst.msk [vmem:[#allocation4 + $0xb0] sm:$0xff] %vm2032, %v1981
      %2056 = vst.msk [vmem:[#allocation4 + $0xb8] sm:$0xff] %vm2032, %v1983
      %2057 = vst.msk [vmem:[#allocation4 + $0xc0] sm:$0xff] %vm2032, %v1985
      %2058 = vst.msk [vmem:[#allocation4 + $0xc8] sm:$0xff] %vm2032, %v1987
      %2059 = vst.msk [vmem:[#allocation4 + $0xd0] sm:$0xff] %vm2032, %v1989
      %2060 = vst.msk [vmem:[#allocation4 + $0xd8] sm:$0xff] %vm2032, %v1991
      %2061 = vst.msk [vmem:[#allocation4 + $0xe0] sm:$0xff] %vm2032, %v1993
      %2062 = vst.msk [vmem:[#allocation4 + $0xe8] sm:$0xff] %vm2032, %v1995
      %2063 = vst.msk [vmem:[#allocation4 + $0xf0] sm:$0xff] %vm2032, %v1997
      %2064 = vst.msk [vmem:[#allocation4 + $0xf8] sm:$0xff] %vm2032, %v1999
      %v2065 = vld [vmem:[#allocation4] sm:$0xff]
      %v2066 = vld [vmem:[#allocation4 + $0x8] sm:$0xff]
      %v2067 = vld [vmem:[#allocation4 + $0x10] sm:$0xff]
      %v2068 = vld [vmem:[#allocation4 + $0x18] sm:$0xff]
      %v2069 = vld [vmem:[#allocation4 + $0x20] sm:$0xff]
      %v2070 = vld [vmem:[#allocation4 + $0x28] sm:$0xff]
      %v2071 = vld [vmem:[#allocation4 + $0x30] sm:$0xff]
      %v2072 = vld [vmem:[#allocation4 + $0x38] sm:$0xff]
      %v2073 = vld [vmem:[#allocation4 + $0x40] sm:$0xff]
      %v2074 = vld [vmem:[#allocation4 + $0x48] sm:$0xff]
      %v2075 = vld [vmem:[#allocation4 + $0x50] sm:$0xff]
      %v2076 = vld [vmem:[#allocation4 + $0x58] sm:$0xff]
      %v2077 = vld [vmem:[#allocation4 + $0x60] sm:$0xff]
      %v2078 = vld [vmem:[#allocation4 + $0x68] sm:$0xff]
      %v2079 = vld [vmem:[#allocation4 + $0x70] sm:$0xff]
      %v2080 = vld [vmem:[#allocation4 + $0x78] sm:$0xff]
      %v2081 = vld [vmem:[#allocation4 + $0x80] sm:$0xff]
      %v2082 = vld [vmem:[#allocation4 + $0x88] sm:$0xff]
      %v2083 = vld [vmem:[#allocation4 + $0x90] sm:$0xff]
      %v2084 = vld [vmem:[#allocation4 + $0x98] sm:$0xff]
      %v2085 = vld [vmem:[#allocation4 + $0xa0] sm:$0xff]
      %v2086 = vld [vmem:[#allocation4 + $0xa8] sm:$0xff]
      %v2087 = vld [vmem:[#allocation4 + $0xb0] sm:$0xff]
      %v2088 = vld [vmem:[#allocation4 + $0xb8] sm:$0xff]
      %v2089 = vld [vmem:[#allocation4 + $0xc0] sm:$0xff]
      %v2090 = vld [vmem:[#allocation4 + $0xc8] sm:$0xff]
      %v2091 = vld [vmem:[#allocation4 + $0xd0] sm:$0xff]
      %v2092 = vld [vmem:[#allocation4 + $0xd8] sm:$0xff]
      %v2093 = vld [vmem:[#allocation4 + $0xe0] sm:$0xff]
      %v2094 = vld [vmem:[#allocation4 + $0xe8] sm:$0xff]
      %v2095 = vld [vmem:[#allocation4 + $0xf0] sm:$0xff]
      %v2096 = vld [vmem:[#allocation4 + $0xf8] sm:$0xff]
      %v2097 = vld [vmem:[%s1] sm:$0xff]
      %v2098 = vld [vmem:[%s1 + $0x8] sm:$0xff]
      %v2099 = vld [vmem:[%s1 + $0x10] sm:$0xff]
      %v2100 = vld [vmem:[%s1 + $0x18] sm:$0xff]
      %v2101 = vld [vmem:[%s1 + $0x20] sm:$0xf]
      %v2102 = vld [vmem:[%s2] sm:$0x1]
      %v2104 = vlaneseq
      %v2105 = vshrl.u32 %v2104, 7
      %v2106 = vsub.s32 0, %v2105
      %v2107 = vrot.slane %v2102, %v2106
      %vm2109 = vcmask 293888
      %v2111 = vsel %vm2109, %v2065, 0
      %v2114 = vsel %vm2109, %v2066, 0
      %v2117 = vsel %vm2109, %v2067, 0
      %v2120 = vsel %vm2109, %v2068, 0
      %v2123 = vsel %vm2109, %v2069, 0
      %v2126 = vsel %vm2109, %v2070, 0
      %v2129 = vsel %vm2109, %v2071, 0
      %v2132 = vsel %vm2109, %v2072, 0
      %v2135 = vsel %vm2109, %v2073, 0
      %v2138 = vsel %vm2109, %v2074, 0
      %v2141 = vsel %vm2109, %v2075, 0
      %v2144 = vsel %vm2109, %v2076, 0
      %v2147 = vsel %vm2109, %v2077, 0
      %v2150 = vsel %vm2109, %v2078, 0
      %v2153 = vsel %vm2109, %v2079, 0
      %v2156 = vsel %vm2109, %v2080, 0
      %v2159 = vsel %vm2109, %v2081, 0
      %v2162 = vsel %vm2109, %v2082, 0
      %v2165 = vsel %vm2109, %v2083, 0
      %v2168 = vsel %vm2109, %v2084, 0
      %v2171 = vsel %vm2109, %v2085, 0
      %v2174 = vsel %vm2109, %v2086, 0
      %v2177 = vsel %vm2109, %v2087, 0
      %v2180 = vsel %vm2109, %v2088, 0
      %v2183 = vsel %vm2109, %v2089, 0
      %v2186 = vsel %vm2109, %v2090, 0
      %v2189 = vsel %vm2109, %v2091, 0
      %v2192 = vsel %vm2109, %v2092, 0
      %v2195 = vsel %vm2109, %v2093, 0
      %v2198 = vsel %vm2109, %v2094, 0
      %v2201 = vsel %vm2109, %v2095, 0
      %v2204 = vsel %vm2109, %v2096, 0
      %vm2206 = vcmask 1043456
      %v2208 = vsel %vm2206, %v2101, 0
      %2210 = vmatprep.subr.mxu0 0.0
      %2211 = vmatpush1.msra.mxu0 %v2097
      %2212 = vmatprep.subr.mxu0 0.0
      %2213 = vmatpush1.msra.mxu0 %v2098
      %2214 = vmatprep.subr.mxu0 0.0
      %2215 = vmatpush1.msra.mxu0 %v2099
      %2216 = vmatprep.subr.mxu0 0.0
      %2217 = vmatpush1.msra.mxu0 %v2100
      %2218 = vmatprep.subr.mxu0 0.0
      %2219 = vmatpush1.msra.mxu0 %v2208
      %2220 = vmatprep.subr.mxu0 0.0
      %2221 = vmatpush1.msra.mxu0 0.0
      %2222 = vmatprep.subr.mxu0 0.0
      %2223 = vmatpush1.msra.mxu0 0.0
      %2224 = vmatprep.subr.mxu0 0.0
      %2225 = vmatpush1.msra.mxu0 0.0
      %2226 = vmatprep.subr.mxu0 0.0
      %2227 = vmatpush1.msra.mxu0 0.0
      %2228 = vmatprep.subr.mxu0 0.0
      %2229 = vmatpush1.msra.mxu0 0.0
      %2230 = vmatprep.subr.mxu0 0.0
      %2231 = vmatpush1.msra.mxu0 0.0
      %2232 = vmatprep.subr.mxu0 0.0
      %2233 = vmatpush1.msra.mxu0 0.0
      %2234 = vmatprep.subr.mxu0 0.0
      %2235 = vmatpush1.msra.mxu0 0.0
      %2236 = vmatprep.subr.mxu0 0.0
      %2237 = vmatpush1.msra.mxu0 0.0
      %2238 = vmatprep.subr.mxu0 0.0
      %2239 = vmatpush1.msra.mxu0 0.0
      %2240 = vmatprep.subr.mxu0 0.0
      %2241 = vmatpush1.msra.mxu0 0.0
      %2242 = vmatprep.subr.mxu0 0.0
      %2243 = vmatpush1.msra.mxu0 0.0
      %2244 = vmatprep.subr.mxu0 0.0
      %2245 = vmatpush1.msra.mxu0 0.0
      %2246 = vmatprep.subr.mxu0 0.0
      %2247 = vmatpush1.msra.mxu0 0.0
      %2248 = vmatprep.subr.mxu0 0.0
      %2249 = vmatpush1.msra.mxu0 0.0
      %2250 = vmatprep.subr.mxu0 0.0
      %2251 = vmatpush1.msra.mxu0 0.0
      %2252 = vmatprep.subr.mxu0 0.0
      %2253 = vmatpush1.msra.mxu0 0.0
      %2254 = vmatprep.subr.mxu0 0.0
      %2255 = vmatpush1.msra.mxu0 0.0
      %2256 = vmatprep.subr.mxu0 0.0
      %2257 = vmatpush1.msra.mxu0 0.0
      %2258 = vmatprep.subr.mxu0 0.0
      %2259 = vmatpush1.msra.mxu0 0.0
      %2260 = vmatprep.subr.mxu0 0.0
      %2261 = vmatpush1.msra.mxu0 0.0
      %2262 = vmatprep.subr.mxu0 0.0
      %2263 = vmatpush1.msra.mxu0 0.0
      %2264 = vmatprep.subr.mxu0 0.0
      %2265 = vmatpush1.msra.mxu0 0.0
      %2266 = vmatprep.subr.mxu0 0.0
      %2267 = vmatpush1.msra.mxu0 0.0
      %2268 = vmatprep.subr.mxu0 0.0
      %2269 = vmatpush1.msra.mxu0 0.0
      %2270 = vmatprep.subr.mxu0 0.0
      %2271 = vmatpush1.msra.mxu0 0.0
      %2272 = vmatprep.subr.mxu0 0.0
      %2273 = vmatpush1.msra.mxu0 0.0
      %2274 = vmatprep.mubr.f32.mxu0 0.0
      %2275 = vmatmul.mubr.f32.gmra.mrb[0].mxu0 %v2111
      %v2276 = vpop.f32.mrb[0].mxu0
      %v2277 = vadd.f32 %v2107, %v2276
      %v2278 = vpop.f32.mrb[0].mxu0
      %2279 = vmatprep.mubr.f32.mxu0 0.0
      %2280 = vmatmul.mubr.f32.gmra.mrb[0].mxu0 %v2114
      %v2281 = vpop.f32.mrb[0].mxu0
      %v2282 = vadd.f32 %v2107, %v2281
      %v2283 = vpop.f32.mrb[0].mxu0
      %2284 = vmatprep.mubr.f32.mxu0 0.0
      %2285 = vmatmul.mubr.f32.gmra.mrb[0].mxu0 %v2117
      %v2286 = vpop.f32.mrb[0].mxu0
      %v2287 = vadd.f32 %v2107, %v2286
      %v2288 = vpop.f32.mrb[0].mxu0
      %2289 = vmatprep.mubr.f32.mxu0 0.0
      %2290 = vmatmul.mubr.f32.gmra.mrb[0].mxu0 %v2120
      %v2291 = vpop.f32.mrb[0].mxu0
      %v2292 = vadd.f32 %v2107, %v2291
      %v2293 = vpop.f32.mrb[0].mxu0
      %2294 = vmatprep.mubr.f32.mxu0 0.0
      %2295 = vmatmul.mubr.f32.gmra.mrb[0].mxu0 %v2123
      %v2296 = vpop.f32.mrb[0].mxu0
      %v2297 = vadd.f32 %v2107, %v2296
      %v2298 = vpop.f32.mrb[0].mxu0
      %2299 = vmatprep.mubr.f32.mxu0 0.0
      %2300 = vmatmul.mubr.f32.gmra.mrb[0].mxu0 %v2126
      %v2301 = vpop.f32.mrb[0].mxu0
      %v2302 = vadd.f32 %v2107, %v2301
      %v2303 = vpop.f32.mrb[0].mxu0
      %2304 = vmatprep.mubr.f32.mxu0 0.0
      %2305 = vmatmul.mubr.f32.gmra.mrb[0].mxu0 %v2129
      %v2306 = vpop.f32.mrb[0].mxu0
      %v2307 = vadd.f32 %v2107, %v2306
      %v2308 = vpop.f32.mrb[0].mxu0
      %2309 = vmatprep.mubr.f32.mxu0 0.0
      %2310 = vmatmul.mubr.f32.gmra.mrb[0].mxu0 %v2132
      %v2311 = vpop.f32.mrb[0].mxu0
      %v2312 = vadd.f32 %v2107, %v2311
      %v2313 = vpop.f32.mrb[0].mxu0
      %2314 = vmatprep.mubr.f32.mxu0 0.0
      %2315 = vmatmul.mubr.f32.gmra.mrb[0].mxu0 %v2135
      %v2316 = vpop.f32.mrb[0].mxu0
      %v2317 = vadd.f32 %v2107, %v2316
      %v2318 = vpop.f32.mrb[0].mxu0
      %2319 = vmatprep.mubr.f32.mxu0 0.0
      %2320 = vmatmul.mubr.f32.gmra.mrb[0].mxu0 %v2138
      %v2321 = vpop.f32.mrb[0].mxu0
      %v2322 = vadd.f32 %v2107, %v2321
      %v2323 = vpop.f32.mrb[0].mxu0
      %2324 = vmatprep.mubr.f32.mxu0 0.0
      %2325 = vmatmul.mubr.f32.gmra.mrb[0].mxu0 %v2141
      %v2326 = vpop.f32.mrb[0].mxu0
      %v2327 = vadd.f32 %v2107, %v2326
      %v2328 = vpop.f32.mrb[0].mxu0
      %2329 = vmatprep.mubr.f32.mxu0 0.0
      %2330 = vmatmul.mubr.f32.gmra.mrb[0].mxu0 %v2144
      %v2331 = vpop.f32.mrb[0].mxu0
      %v2332 = vadd.f32 %v2107, %v2331
      %v2333 = vpop.f32.mrb[0].mxu0
      %2334 = vmatprep.mubr.f32.mxu0 0.0
      %2335 = vmatmul.mubr.f32.gmra.mrb[0].mxu0 %v2147
      %v2336 = vpop.f32.mrb[0].mxu0
      %v2337 = vadd.f32 %v2107, %v2336
      %v2338 = vpop.f32.mrb[0].mxu0
      %2339 = vmatprep.mubr.f32.mxu0 0.0
      %2340 = vmatmul.mubr.f32.gmra.mrb[0].mxu0 %v2150
      %v2341 = vpop.f32.mrb[0].mxu0
      %v2342 = vadd.f32 %v2107, %v2341
      %v2343 = vpop.f32.mrb[0].mxu0
      %2344 = vmatprep.mubr.f32.mxu0 0.0
      %2345 = vmatmul.mubr.f32.gmra.mrb[0].mxu0 %v2153
      %v2346 = vpop.f32.mrb[0].mxu0
      %v2347 = vadd.f32 %v2107, %v2346
      %v2348 = vpop.f32.mrb[0].mxu0
      %2349 = vmatprep.mubr.f32.mxu0 0.0
      %2350 = vmatmul.mubr.f32.gmra.mrb[0].mxu0 %v2156
      %v2351 = vpop.f32.mrb[0].mxu0
      %v2352 = vadd.f32 %v2107, %v2351
      %v2353 = vpop.f32.mrb[0].mxu0
      %2354 = vmatprep.mubr.f32.mxu0 0.0
      %2355 = vmatmul.mubr.f32.gmra.mrb[0].mxu0 %v2159
      %v2356 = vpop.f32.mrb[0].mxu0
      %v2357 = vadd.f32 %v2107, %v2356
      %v2358 = vpop.f32.mrb[0].mxu0
      %2359 = vmatprep.mubr.f32.mxu0 0.0
      %2360 = vmatmul.mubr.f32.gmra.mrb[0].mxu0 %v2162
      %v2361 = vpop.f32.mrb[0].mxu0
      %v2362 = vadd.f32 %v2107, %v2361
      %v2363 = vpop.f32.mrb[0].mxu0
      %2364 = vmatprep.mubr.f32.mxu0 0.0
      %2365 = vmatmul.mubr.f32.gmra.mrb[0].mxu0 %v2165
      %v2366 = vpop.f32.mrb[0].mxu0
      %v2367 = vadd.f32 %v2107, %v2366
      %v2368 = vpop.f32.mrb[0].mxu0
      %2369 = vmatprep.mubr.f32.mxu0 0.0
      %2370 = vmatmul.mubr.f32.gmra.mrb[0].mxu0 %v2168
      %v2371 = vpop.f32.mrb[0].mxu0
      %v2372 = vadd.f32 %v2107, %v2371
      %v2373 = vpop.f32.mrb[0].mxu0
      %2374 = vmatprep.mubr.f32.mxu0 0.0
      %2375 = vmatmul.mubr.f32.gmra.mrb[0].mxu0 %v2171
      %v2376 = vpop.f32.mrb[0].mxu0
      %v2377 = vadd.f32 %v2107, %v2376
      %v2378 = vpop.f32.mrb[0].mxu0
      %2379 = vmatprep.mubr.f32.mxu0 0.0
      %2380 = vmatmul.mubr.f32.gmra.mrb[0].mxu0 %v2174
      %v2381 = vpop.f32.mrb[0].mxu0
      %v2382 = vadd.f32 %v2107, %v2381
      %v2383 = vpop.f32.mrb[0].mxu0
      %2384 = vmatprep.mubr.f32.mxu0 0.0
      %2385 = vmatmul.mubr.f32.gmra.mrb[0].mxu0 %v2177
      %v2386 = vpop.f32.mrb[0].mxu0
      %v2387 = vadd.f32 %v2107, %v2386
      %v2388 = vpop.f32.mrb[0].mxu0
      %2389 = vmatprep.mubr.f32.mxu0 0.0
      %2390 = vmatmul.mubr.f32.gmra.mrb[0].mxu0 %v2180
      %v2391 = vpop.f32.mrb[0].mxu0
      %v2392 = vadd.f32 %v2107, %v2391
      %v2393 = vpop.f32.mrb[0].mxu0
      %2394 = vmatprep.mubr.f32.mxu0 0.0
      %2395 = vmatmul.mubr.f32.gmra.mrb[0].mxu0 %v2183
      %v2396 = vpop.f32.mrb[0].mxu0
      %v2397 = vadd.f32 %v2107, %v2396
      %v2398 = vpop.f32.mrb[0].mxu0
      %2399 = vmatprep.mubr.f32.mxu0 0.0
      %2400 = vmatmul.mubr.f32.gmra.mrb[0].mxu0 %v2186
      %v2401 = vpop.f32.mrb[0].mxu0
      %v2402 = vadd.f32 %v2107, %v2401
      %v2403 = vpop.f32.mrb[0].mxu0
      %2404 = vmatprep.mubr.f32.mxu0 0.0
      %2405 = vmatmul.mubr.f32.gmra.mrb[0].mxu0 %v2189
      %v2406 = vpop.f32.mrb[0].mxu0
      %v2407 = vadd.f32 %v2107, %v2406
      %v2408 = vpop.f32.mrb[0].mxu0
      %2409 = vmatprep.mubr.f32.mxu0 0.0
      %2410 = vmatmul.mubr.f32.gmra.mrb[0].mxu0 %v2192
      %v2411 = vpop.f32.mrb[0].mxu0
      %v2412 = vadd.f32 %v2107, %v2411
      %v2413 = vpop.f32.mrb[0].mxu0
      %2414 = vmatprep.mubr.f32.mxu0 0.0
      %2415 = vmatmul.mubr.f32.gmra.mrb[0].mxu0 %v2195
      %v2416 = vpop.f32.mrb[0].mxu0
      %v2417 = vadd.f32 %v2107, %v2416
      %v2418 = vpop.f32.mrb[0].mxu0
      %2419 = vmatprep.mubr.f32.mxu0 0.0
      %2420 = vmatmul.mubr.f32.gmra.mrb[0].mxu0 %v2198
      %v2421 = vpop.f32.mrb[0].mxu0
      %v2422 = vadd.f32 %v2107, %v2421
      %v2423 = vpop.f32.mrb[0].mxu0
      %2424 = vmatprep.mubr.f32.mxu0 0.0
      %2425 = vmatmul.mubr.f32.gmra.mrb[0].mxu0 %v2201
      %v2426 = vpop.f32.mrb[0].mxu0
      %v2427 = vadd.f32 %v2107, %v2426
      %v2428 = vpop.f32.mrb[0].mxu0
      %2429 = vmatprep.mubr.f32.mxu0 0.0
      %2430 = vmatmul.mubr.f32.gmra.mrb[0].mxu0 %v2204
      %v2431 = vpop.f32.mrb[0].mxu0
      %v2432 = vadd.f32 %v2107, %v2431
      %v2433 = vpop.f32.mrb[0].mxu0
      %2434 = vdwg.mxu0
      %v2435 = vmax.f32 %v2277, 0.0
      %v2436 = vmax.f32 %v2282, 0.0
      %v2437 = vmax.f32 %v2287, 0.0
      %v2438 = vmax.f32 %v2292, 0.0
      %v2439 = vmax.f32 %v2297, 0.0
      %v2440 = vmax.f32 %v2302, 0.0
      %v2441 = vmax.f32 %v2307, 0.0
      %v2442 = vmax.f32 %v2312, 0.0
      %v2443 = vmax.f32 %v2317, 0.0
      %v2444 = vmax.f32 %v2322, 0.0
      %v2445 = vmax.f32 %v2327, 0.0
      %v2446 = vmax.f32 %v2332, 0.0
      %v2447 = vmax.f32 %v2337, 0.0
      %v2448 = vmax.f32 %v2342, 0.0
      %v2449 = vmax.f32 %v2347, 0.0
      %v2450 = vmax.f32 %v2352, 0.0
      %v2451 = vmax.f32 %v2357, 0.0
      %v2452 = vmax.f32 %v2362, 0.0
      %v2453 = vmax.f32 %v2367, 0.0
      %v2454 = vmax.f32 %v2372, 0.0
      %v2455 = vmax.f32 %v2377, 0.0
      %v2456 = vmax.f32 %v2382, 0.0
      %v2457 = vmax.f32 %v2387, 0.0
      %v2458 = vmax.f32 %v2392, 0.0
      %v2459 = vmax.f32 %v2397, 0.0
      %v2460 = vmax.f32 %v2402, 0.0
      %v2461 = vmax.f32 %v2407, 0.0
      %v2462 = vmax.f32 %v2412, 0.0
      %v2463 = vmax.f32 %v2417, 0.0
      %v2464 = vmax.f32 %v2422, 0.0
      %v2465 = vmax.f32 %v2427, 0.0
      %v2466 = vmax.f32 %v2432, 0.0
      %s2467 = scalar_lea.vmem [#allocation3], 24
      %2468 = vst.msk [vmem:[%s2467 + $0x1] sm:$0xff] %vm335, %v2435
      %2469 = vst.msk [vmem:[%s2467 + $0x9] sm:$0xff] %vm335, %v2436
      %2470 = vst.msk [vmem:[%s2467 + $0x19] sm:$0xff] %vm335, %v2437
      %2471 = vst.msk [vmem:[%s2467 + $0x21] sm:$0xff] %vm335, %v2438
      %2472 = vst.msk [vmem:[%s2467 + $0x31] sm:$0xff] %vm335, %v2439
      %2473 = vst.msk [vmem:[%s2467 + $0x39] sm:$0xff] %vm335, %v2440
      %2474 = vst.msk [vmem:[%s2467 + $0x49] sm:$0xff] %vm335, %v2441
      %2475 = vst.msk [vmem:[%s2467 + $0x51] sm:$0xff] %vm335, %v2442
      %2476 = vst.msk [vmem:[%s2467 + $0x61] sm:$0xff] %vm335, %v2443
      %2477 = vst.msk [vmem:[%s2467 + $0x69] sm:$0xff] %vm335, %v2444
      %2478 = vst.msk [vmem:[%s2467 + $0x79] sm:$0xff] %vm335, %v2445
      %2479 = vst.msk [vmem:[%s2467 + $0x81] sm:$0xff] %vm335, %v2446
      %2480 = vst.msk [vmem:[%s2467 + $0x91] sm:$0xff] %vm335, %v2447
      %2481 = vst.msk [vmem:[%s2467 + $0x99] sm:$0xff] %vm335, %v2448
      %2482 = vst.msk [vmem:[%s2467 + $0xa9] sm:$0xff] %vm335, %v2449
      %2483 = vst.msk [vmem:[%s2467 + $0xb1] sm:$0xff] %vm335, %v2450
      %2484 = vst.msk [vmem:[%s2467 + $0xc1] sm:$0xff] %vm335, %v2451
      %2485 = vst.msk [vmem:[%s2467 + $0xc9] sm:$0xff] %vm335, %v2452
      %2486 = vst.msk [vmem:[%s2467 + $0xd9] sm:$0xff] %vm335, %v2453
      %2487 = vst.msk [vmem:[%s2467 + $0xe1] sm:$0xff] %vm335, %v2454
      %2488 = vst.msk [vmem:[%s2467 + $0xf1] sm:$0xff] %vm335, %v2455
      %2489 = vst.msk [vmem:[%s2467 + $0xf9] sm:$0xff] %vm335, %v2456
      %2490 = vst.msk [vmem:[%s2467 + $0x109] sm:$0xff] %vm335, %v2457
      %2491 = vst.msk [vmem:[%s2467 + $0x111] sm:$0xff] %vm335, %v2458
      %2492 = vst.msk [vmem:[%s2467 + $0x121] sm:$0xff] %vm335, %v2459
      %2493 = vst.msk [vmem:[%s2467 + $0x129] sm:$0xff] %vm335, %v2460
      %2494 = vst.msk [vmem:[%s2467 + $0x139] sm:$0xff] %vm335, %v2461
      %2495 = vst.msk [vmem:[%s2467 + $0x141] sm:$0xff] %vm335, %v2462
      %2496 = vst.msk [vmem:[%s2467 + $0x151] sm:$0xff] %vm335, %v2463
      %2497 = vst.msk [vmem:[%s2467 + $0x159] sm:$0xff] %vm335, %v2464
      %2498 = vst.msk [vmem:[%s2467 + $0x169] sm:$0xff] %vm335, %v2465
      %2499 = vst.msk [vmem:[%s2467 + $0x171] sm:$0xff] %vm335, %v2466
      %v2500 = vld [vmem:[#allocation3] sm:$0xff]
      %v2501 = vld [vmem:[#allocation3 + $0x8] sm:$0xff]
      %v2502 = vld [vmem:[#allocation3 + $0x18] sm:$0xff]
      %v2503 = vld [vmem:[#allocation3 + $0x20] sm:$0xff]
      %v2504 = vld [vmem:[#allocation3 + $0x30] sm:$0xff]
      %v2505 = vld [vmem:[#allocation3 + $0x38] sm:$0xff]
      %v2506 = vld [vmem:[#allocation3 + $0x48] sm:$0xff]
      %v2507 = vld [vmem:[#allocation3 + $0x50] sm:$0xff]
      %v2508 = vld [vmem:[#allocation3 + $0x60] sm:$0xff]
      %v2509 = vld [vmem:[#allocation3 + $0x68] sm:$0xff]
      %v2510 = vld [vmem:[#allocation3 + $0x78] sm:$0xff]
      %v2511 = vld [vmem:[#allocation3 + $0x80] sm:$0xff]
      %v2512 = vld [vmem:[#allocation3 + $0x90] sm:$0xff]
      %v2513 = vld [vmem:[#allocation3 + $0x98] sm:$0xff]
      %v2514 = vld [vmem:[#allocation3 + $0xa8] sm:$0xff]
      %v2515 = vld [vmem:[#allocation3 + $0xb0] sm:$0xff]
      %v2516 = vld [vmem:[#allocation3 + $0xc0] sm:$0xff]
      %v2517 = vld [vmem:[#allocation3 + $0xc8] sm:$0xff]
      %v2518 = vld [vmem:[#allocation3 + $0xd8] sm:$0xff]
      %v2519 = vld [vmem:[#allocation3 + $0xe0] sm:$0xff]
      %v2520 = vld [vmem:[#allocation3 + $0xf0] sm:$0xff]
      %v2521 = vld [vmem:[#allocation3 + $0xf8] sm:$0xff]
      %v2522 = vld [vmem:[#allocation3 + $0x108] sm:$0xff]
      %v2523 = vld [vmem:[#allocation3 + $0x110] sm:$0xff]
      %v2524 = vld [vmem:[#allocation3 + $0x120] sm:$0xff]
      %v2525 = vld [vmem:[#allocation3 + $0x128] sm:$0xff]
      %v2526 = vld [vmem:[#allocation3 + $0x138] sm:$0xff]
      %v2527 = vld [vmem:[#allocation3 + $0x140] sm:$0xff]
      %v2528 = vld [vmem:[#allocation3 + $0x150] sm:$0xff]
      %v2529 = vld [vmem:[#allocation3 + $0x158] sm:$0xff]
      %v2530 = vld [vmem:[#allocation3 + $0x168] sm:$0xff]
      %v2531 = vld [vmem:[#allocation3 + $0x170] sm:$0xff]
      %2532 = vst.msk [vmem:[#allocation5] sm:$0xff] %vm335, %v2500
      %2533 = vst.msk [vmem:[#allocation5 + $0x8] sm:$0xff] %vm335, %v2501
      %2534 = vst.msk [vmem:[#allocation5 + $0x10] sm:$0xff] %vm335, %v2502
      %2535 = vst.msk [vmem:[#allocation5 + $0x18] sm:$0xff] %vm335, %v2503
      %2536 = vst.msk [vmem:[#allocation5 + $0x20] sm:$0xff] %vm335, %v2504
      %2537 = vst.msk [vmem:[#allocation5 + $0x28] sm:$0xff] %vm335, %v2505
      %2538 = vst.msk [vmem:[#allocation5 + $0x30] sm:$0xff] %vm335, %v2506
      %2539 = vst.msk [vmem:[#allocation5 + $0x38] sm:$0xff] %vm335, %v2507
      %2540 = vst.msk [vmem:[#allocation5 + $0x40] sm:$0xff] %vm335, %v2508
      %2541 = vst.msk [vmem:[#allocation5 + $0x48] sm:$0xff] %vm335, %v2509
      %2542 = vst.msk [vmem:[#allocation5 + $0x50] sm:$0xff] %vm335, %v2510
      %2543 = vst.msk [vmem:[#allocation5 + $0x58] sm:$0xff] %vm335, %v2511
      %2544 = vst.msk [vmem:[#allocation5 + $0x60] sm:$0xff] %vm335, %v2512
      %2545 = vst.msk [vmem:[#allocation5 + $0x68] sm:$0xff] %vm335, %v2513
      %2546 = vst.msk [vmem:[#allocation5 + $0x70] sm:$0xff] %vm335, %v2514
      %2547 = vst.msk [vmem:[#allocation5 + $0x78] sm:$0xff] %vm335, %v2515
      %2548 = vst.msk [vmem:[#allocation5 + $0x80] sm:$0xff] %vm335, %v2516
      %2549 = vst.msk [vmem:[#allocation5 + $0x88] sm:$0xff] %vm335, %v2517
      %2550 = vst.msk [vmem:[#allocation5 + $0x90] sm:$0xff] %vm335, %v2518
      %2551 = vst.msk [vmem:[#allocation5 + $0x98] sm:$0xff] %vm335, %v2519
      %2552 = vst.msk [vmem:[#allocation5 + $0xa0] sm:$0xff] %vm335, %v2520
      %2553 = vst.msk [vmem:[#allocation5 + $0xa8] sm:$0xff] %vm335, %v2521
      %2554 = vst.msk [vmem:[#allocation5 + $0xb0] sm:$0xff] %vm335, %v2522
      %2555 = vst.msk [vmem:[#allocation5 + $0xb8] sm:$0xff] %vm335, %v2523
      %2556 = vst.msk [vmem:[#allocation5 + $0xc0] sm:$0xff] %vm335, %v2524
      %2557 = vst.msk [vmem:[#allocation5 + $0xc8] sm:$0xff] %vm335, %v2525
      %2558 = vst.msk [vmem:[#allocation5 + $0xd0] sm:$0xff] %vm335, %v2526
      %2559 = vst.msk [vmem:[#allocation5 + $0xd8] sm:$0xff] %vm335, %v2527
      %2560 = vst.msk [vmem:[#allocation5 + $0xe0] sm:$0xff] %vm335, %v2528
      %2561 = vst.msk [vmem:[#allocation5 + $0xe8] sm:$0xff] %vm335, %v2529
      %2562 = vst.msk [vmem:[#allocation5 + $0xf0] sm:$0xff] %vm335, %v2530
      %2563 = vst.msk [vmem:[#allocation5 + $0xf8] sm:$0xff] %vm335, %v2531
      %v2564 = vld [vmem:[#allocation3 + $0x1] sm:$0xff]
      %v2565 = vld [vmem:[#allocation3 + $0x9] sm:$0xff]
      %v2566 = vld [vmem:[#allocation3 + $0x19] sm:$0xff]
      %v2567 = vld [vmem:[#allocation3 + $0x21] sm:$0xff]
      %v2568 = vld [vmem:[#allocation3 + $0x31] sm:$0xff]
      %v2569 = vld [vmem:[#allocation3 + $0x39] sm:$0xff]
      %v2570 = vld [vmem:[#allocation3 + $0x49] sm:$0xff]
      %v2571 = vld [vmem:[#allocation3 + $0x51] sm:$0xff]
      %v2572 = vld [vmem:[#allocation3 + $0x61] sm:$0xff]
      %v2573 = vld [vmem:[#allocation3 + $0x69] sm:$0xff]
      %v2574 = vld [vmem:[#allocation3 + $0x79] sm:$0xff]
      %v2575 = vld [vmem:[#allocation3 + $0x81] sm:$0xff]
      %v2576 = vld [vmem:[#allocation3 + $0x91] sm:$0xff]
      %v2577 = vld [vmem:[#allocation3 + $0x99] sm:$0xff]
      %v2578 = vld [vmem:[#allocation3 + $0xa9] sm:$0xff]
      %v2579 = vld [vmem:[#allocation3 + $0xb1] sm:$0xff]
      %v2580 = vld [vmem:[#allocation3 + $0xc1] sm:$0xff]
      %v2581 = vld [vmem:[#allocation3 + $0xc9] sm:$0xff]
      %v2582 = vld [vmem:[#allocation3 + $0xd9] sm:$0xff]
      %v2583 = vld [vmem:[#allocation3 + $0xe1] sm:$0xff]
      %v2584 = vld [vmem:[#allocation3 + $0xf1] sm:$0xff]
      %v2585 = vld [vmem:[#allocation3 + $0xf9] sm:$0xff]
      %v2586 = vld [vmem:[#allocation3 + $0x109] sm:$0xff]
      %v2587 = vld [vmem:[#allocation3 + $0x111] sm:$0xff]
      %v2588 = vld [vmem:[#allocation3 + $0x121] sm:$0xff]
      %v2589 = vld [vmem:[#allocation3 + $0x129] sm:$0xff]
      %v2590 = vld [vmem:[#allocation3 + $0x139] sm:$0xff]
      %v2591 = vld [vmem:[#allocation3 + $0x141] sm:$0xff]
      %v2592 = vld [vmem:[#allocation3 + $0x151] sm:$0xff]
      %v2593 = vld [vmem:[#allocation3 + $0x159] sm:$0xff]
      %v2594 = vld [vmem:[#allocation3 + $0x169] sm:$0xff]
      %v2595 = vld [vmem:[#allocation3 + $0x171] sm:$0xff]
      %2628 = vrot.lane.b32.xlu0 %v2564, 8
      %v2629 = vpop.permute.xlu0 %2628
      %2630 = vrot.lane.b32.xlu0 %v2565, 8
      %v2631 = vpop.permute.xlu0 %2630
      %2632 = vrot.lane.b32.xlu0 %v2566, 8
      %v2633 = vpop.permute.xlu0 %2632
      %2634 = vrot.lane.b32.xlu0 %v2567, 8
      %v2635 = vpop.permute.xlu0 %2634
      %2636 = vrot.lane.b32.xlu0 %v2568, 8
      %v2637 = vpop.permute.xlu0 %2636
      %2638 = vrot.lane.b32.xlu0 %v2569, 8
      %v2639 = vpop.permute.xlu0 %2638
      %2640 = vrot.lane.b32.xlu0 %v2570, 8
      %v2641 = vpop.permute.xlu0 %2640
      %2642 = vrot.lane.b32.xlu0 %v2571, 8
      %v2643 = vpop.permute.xlu0 %2642
      %2644 = vrot.lane.b32.xlu0 %v2572, 8
      %v2645 = vpop.permute.xlu0 %2644
      %2646 = vrot.lane.b32.xlu0 %v2573, 8
      %v2647 = vpop.permute.xlu0 %2646
      %2648 = vrot.lane.b32.xlu0 %v2574, 8
      %v2649 = vpop.permute.xlu0 %2648
      %2650 = vrot.lane.b32.xlu0 %v2575, 8
      %v2651 = vpop.permute.xlu0 %2650
      %2652 = vrot.lane.b32.xlu0 %v2576, 8
      %v2653 = vpop.permute.xlu0 %2652
      %2654 = vrot.lane.b32.xlu0 %v2577, 8
      %v2655 = vpop.permute.xlu0 %2654
      %2656 = vrot.lane.b32.xlu0 %v2578, 8
      %v2657 = vpop.permute.xlu0 %2656
      %2658 = vrot.lane.b32.xlu0 %v2579, 8
      %v2659 = vpop.permute.xlu0 %2658
      %2660 = vrot.lane.b32.xlu0 %v2580, 8
      %v2661 = vpop.permute.xlu0 %2660
      %2662 = vrot.lane.b32.xlu0 %v2581, 8
      %v2663 = vpop.permute.xlu0 %2662
      %2664 = vrot.lane.b32.xlu0 %v2582, 8
      %v2665 = vpop.permute.xlu0 %2664
      %2666 = vrot.lane.b32.xlu0 %v2583, 8
      %v2667 = vpop.permute.xlu0 %2666
      %2668 = vrot.lane.b32.xlu0 %v2584, 8
      %v2669 = vpop.permute.xlu0 %2668
      %2670 = vrot.lane.b32.xlu0 %v2585, 8
      %v2671 = vpop.permute.xlu0 %2670
      %2672 = vrot.lane.b32.xlu0 %v2586, 8
      %v2673 = vpop.permute.xlu0 %2672
      %2674 = vrot.lane.b32.xlu0 %v2587, 8
      %v2675 = vpop.permute.xlu0 %2674
      %2676 = vrot.lane.b32.xlu0 %v2588, 8
      %v2677 = vpop.permute.xlu0 %2676
      %2678 = vrot.lane.b32.xlu0 %v2589, 8
      %v2679 = vpop.permute.xlu0 %2678
      %2680 = vrot.lane.b32.xlu0 %v2590, 8
      %v2681 = vpop.permute.xlu0 %2680
      %2682 = vrot.lane.b32.xlu0 %v2591, 8
      %v2683 = vpop.permute.xlu0 %2682
      %2684 = vrot.lane.b32.xlu0 %v2592, 8
      %v2685 = vpop.permute.xlu0 %2684
      %2686 = vrot.lane.b32.xlu0 %v2593, 8
      %v2687 = vpop.permute.xlu0 %2686
      %2688 = vrot.lane.b32.xlu0 %v2594, 8
      %v2689 = vpop.permute.xlu0 %2688
      %2690 = vrot.lane.b32.xlu0 %v2595, 8
      %v2691 = vpop.permute.xlu0 %2690
      %vm2724 = vcmask 130112
      %2725 = vst.msk [vmem:[#allocation5] sm:$0xff] %vm2724, %v2629
      %2726 = vst.msk [vmem:[#allocation5 + $0x8] sm:$0xff] %vm2724, %v2631
      %2727 = vst.msk [vmem:[#allocation5 + $0x10] sm:$0xff] %vm2724, %v2633
      %2728 = vst.msk [vmem:[#allocation5 + $0x18] sm:$0xff] %vm2724, %v2635
      %2729 = vst.msk [vmem:[#allocation5 + $0x20] sm:$0xff] %vm2724, %v2637
      %2730 = vst.msk [vmem:[#allocation5 + $0x28] sm:$0xff] %vm2724, %v2639
      %2731 = vst.msk [vmem:[#allocation5 + $0x30] sm:$0xff] %vm2724, %v2641
      %2732 = vst.msk [vmem:[#allocation5 + $0x38] sm:$0xff] %vm2724, %v2643
      %2733 = vst.msk [vmem:[#allocation5 + $0x40] sm:$0xff] %vm2724, %v2645
      %2734 = vst.msk [vmem:[#allocation5 + $0x48] sm:$0xff] %vm2724, %v2647
      %2735 = vst.msk [vmem:[#allocation5 + $0x50] sm:$0xff] %vm2724, %v2649
      %2736 = vst.msk [vmem:[#allocation5 + $0x58] sm:$0xff] %vm2724, %v2651
      %2737 = vst.msk [vmem:[#allocation5 + $0x60] sm:$0xff] %vm2724, %v2653
      %2738 = vst.msk [vmem:[#allocation5 + $0x68] sm:$0xff] %vm2724, %v2655
      %2739 = vst.msk [vmem:[#allocation5 + $0x70] sm:$0xff] %vm2724, %v2657
      %2740 = vst.msk [vmem:[#allocation5 + $0x78] sm:$0xff] %vm2724, %v2659
      %2741 = vst.msk [vmem:[#allocation5 + $0x80] sm:$0xff] %vm2724, %v2661
      %2742 = vst.msk [vmem:[#allocation5 + $0x88] sm:$0xff] %vm2724, %v2663
      %2743 = vst.msk [vmem:[#allocation5 + $0x90] sm:$0xff] %vm2724, %v2665
      %2744 = vst.msk [vmem:[#allocation5 + $0x98] sm:$0xff] %vm2724, %v2667
      %2745 = vst.msk [vmem:[#allocation5 + $0xa0] sm:$0xff] %vm2724, %v2669
      %2746 = vst.msk [vmem:[#allocation5 + $0xa8] sm:$0xff] %vm2724, %v2671
      %2747 = vst.msk [vmem:[#allocation5 + $0xb0] sm:$0xff] %vm2724, %v2673
      %2748 = vst.msk [vmem:[#allocation5 + $0xb8] sm:$0xff] %vm2724, %v2675
      %2749 = vst.msk [vmem:[#allocation5 + $0xc0] sm:$0xff] %vm2724, %v2677
      %2750 = vst.msk [vmem:[#allocation5 + $0xc8] sm:$0xff] %vm2724, %v2679
      %2751 = vst.msk [vmem:[#allocation5 + $0xd0] sm:$0xff] %vm2724, %v2681
      %2752 = vst.msk [vmem:[#allocation5 + $0xd8] sm:$0xff] %vm2724, %v2683
      %2753 = vst.msk [vmem:[#allocation5 + $0xe0] sm:$0xff] %vm2724, %v2685
      %2754 = vst.msk [vmem:[#allocation5 + $0xe8] sm:$0xff] %vm2724, %v2687
      %2755 = vst.msk [vmem:[#allocation5 + $0xf0] sm:$0xff] %vm2724, %v2689
      %2756 = vst.msk [vmem:[#allocation5 + $0xf8] sm:$0xff] %vm2724, %v2691
      %v2757 = vld [vmem:[#allocation3 + $0x2] sm:$0xff]
      %v2758 = vld [vmem:[#allocation3 + $0xa] sm:$0xff]
      %v2759 = vld [vmem:[#allocation3 + $0x1a] sm:$0xff]
      %v2760 = vld [vmem:[#allocation3 + $0x22] sm:$0xff]
      %v2761 = vld [vmem:[#allocation3 + $0x32] sm:$0xff]
      %v2762 = vld [vmem:[#allocation3 + $0x3a] sm:$0xff]
      %v2763 = vld [vmem:[#allocation3 + $0x4a] sm:$0xff]
      %v2764 = vld [vmem:[#allocation3 + $0x52] sm:$0xff]
      %v2765 = vld [vmem:[#allocation3 + $0x62] sm:$0xff]
      %v2766 = vld [vmem:[#allocation3 + $0x6a] sm:$0xff]
      %v2767 = vld [vmem:[#allocation3 + $0x7a] sm:$0xff]
      %v2768 = vld [vmem:[#allocation3 + $0x82] sm:$0xff]
      %v2769 = vld [vmem:[#allocation3 + $0x92] sm:$0xff]
      %v2770 = vld [vmem:[#allocation3 + $0x9a] sm:$0xff]
      %v2771 = vld [vmem:[#allocation3 + $0xaa] sm:$0xff]
      %v2772 = vld [vmem:[#allocation3 + $0xb2] sm:$0xff]
      %v2773 = vld [vmem:[#allocation3 + $0xc2] sm:$0xff]
      %v2774 = vld [vmem:[#allocation3 + $0xca] sm:$0xff]
      %v2775 = vld [vmem:[#allocation3 + $0xda] sm:$0xff]
      %v2776 = vld [vmem:[#allocation3 + $0xe2] sm:$0xff]
      %v2777 = vld [vmem:[#allocation3 + $0xf2] sm:$0xff]
      %v2778 = vld [vmem:[#allocation3 + $0xfa] sm:$0xff]
      %v2779 = vld [vmem:[#allocation3 + $0x10a] sm:$0xff]
      %v2780 = vld [vmem:[#allocation3 + $0x112] sm:$0xff]
      %v2781 = vld [vmem:[#allocation3 + $0x122] sm:$0xff]
      %v2782 = vld [vmem:[#allocation3 + $0x12a] sm:$0xff]
      %v2783 = vld [vmem:[#allocation3 + $0x13a] sm:$0xff]
      %v2784 = vld [vmem:[#allocation3 + $0x142] sm:$0xff]
      %v2785 = vld [vmem:[#allocation3 + $0x152] sm:$0xff]
      %v2786 = vld [vmem:[#allocation3 + $0x15a] sm:$0xff]
      %v2787 = vld [vmem:[#allocation3 + $0x16a] sm:$0xff]
      %v2788 = vld [vmem:[#allocation3 + $0x172] sm:$0xff]
      %2821 = vrot.lane.b32.xlu0 %v2757, 16
      %v2822 = vpop.permute.xlu0 %2821
      %2823 = vrot.lane.b32.xlu0 %v2758, 16
      %v2824 = vpop.permute.xlu0 %2823
      %2825 = vrot.lane.b32.xlu0 %v2759, 16
      %v2826 = vpop.permute.xlu0 %2825
      %2827 = vrot.lane.b32.xlu0 %v2760, 16
      %v2828 = vpop.permute.xlu0 %2827
      %2829 = vrot.lane.b32.xlu0 %v2761, 16
      %v2830 = vpop.permute.xlu0 %2829
      %2831 = vrot.lane.b32.xlu0 %v2762, 16
      %v2832 = vpop.permute.xlu0 %2831
      %2833 = vrot.lane.b32.xlu0 %v2763, 16
      %v2834 = vpop.permute.xlu0 %2833
      %2835 = vrot.lane.b32.xlu0 %v2764, 16
      %v2836 = vpop.permute.xlu0 %2835
      %2837 = vrot.lane.b32.xlu0 %v2765, 16
      %v2838 = vpop.permute.xlu0 %2837
      %2839 = vrot.lane.b32.xlu0 %v2766, 16
      %v2840 = vpop.permute.xlu0 %2839
      %2841 = vrot.lane.b32.xlu0 %v2767, 16
      %v2842 = vpop.permute.xlu0 %2841
      %2843 = vrot.lane.b32.xlu0 %v2768, 16
      %v2844 = vpop.permute.xlu0 %2843
      %2845 = vrot.lane.b32.xlu0 %v2769, 16
      %v2846 = vpop.permute.xlu0 %2845
      %2847 = vrot.lane.b32.xlu0 %v2770, 16
      %v2848 = vpop.permute.xlu0 %2847
      %2849 = vrot.lane.b32.xlu0 %v2771, 16
      %v2850 = vpop.permute.xlu0 %2849
      %2851 = vrot.lane.b32.xlu0 %v2772, 16
      %v2852 = vpop.permute.xlu0 %2851
      %2853 = vrot.lane.b32.xlu0 %v2773, 16
      %v2854 = vpop.permute.xlu0 %2853
      %2855 = vrot.lane.b32.xlu0 %v2774, 16
      %v2856 = vpop.permute.xlu0 %2855
      %2857 = vrot.lane.b32.xlu0 %v2775, 16
      %v2858 = vpop.permute.xlu0 %2857
      %2859 = vrot.lane.b32.xlu0 %v2776, 16
      %v2860 = vpop.permute.xlu0 %2859
      %2861 = vrot.lane.b32.xlu0 %v2777, 16
      %v2862 = vpop.permute.xlu0 %2861
      %2863 = vrot.lane.b32.xlu0 %v2778, 16
      %v2864 = vpop.permute.xlu0 %2863
      %2865 = vrot.lane.b32.xlu0 %v2779, 16
      %v2866 = vpop.permute.xlu0 %2865
      %2867 = vrot.lane.b32.xlu0 %v2780, 16
      %v2868 = vpop.permute.xlu0 %2867
      %2869 = vrot.lane.b32.xlu0 %v2781, 16
      %v2870 = vpop.permute.xlu0 %2869
      %2871 = vrot.lane.b32.xlu0 %v2782, 16
      %v2872 = vpop.permute.xlu0 %2871
      %2873 = vrot.lane.b32.xlu0 %v2783, 16
      %v2874 = vpop.permute.xlu0 %2873
      %2875 = vrot.lane.b32.xlu0 %v2784, 16
      %v2876 = vpop.permute.xlu0 %2875
      %2877 = vrot.lane.b32.xlu0 %v2785, 16
      %v2878 = vpop.permute.xlu0 %2877
      %2879 = vrot.lane.b32.xlu0 %v2786, 16
      %v2880 = vpop.permute.xlu0 %2879
      %2881 = vrot.lane.b32.xlu0 %v2787, 16
      %v2882 = vpop.permute.xlu0 %2881
      %2883 = vrot.lane.b32.xlu0 %v2788, 16
      %v2884 = vpop.permute.xlu0 %2883
      %vm2917 = vcmask 195712
      %2918 = vst.msk [vmem:[#allocation5] sm:$0xff] %vm2917, %v2822
      %2919 = vst.msk [vmem:[#allocation5 + $0x8] sm:$0xff] %vm2917, %v2824
      %2920 = vst.msk [vmem:[#allocation5 + $0x10] sm:$0xff] %vm2917, %v2826
      %2921 = vst.msk [vmem:[#allocation5 + $0x18] sm:$0xff] %vm2917, %v2828
      %2922 = vst.msk [vmem:[#allocation5 + $0x20] sm:$0xff] %vm2917, %v2830
      %2923 = vst.msk [vmem:[#allocation5 + $0x28] sm:$0xff] %vm2917, %v2832
      %2924 = vst.msk [vmem:[#allocation5 + $0x30] sm:$0xff] %vm2917, %v2834
      %2925 = vst.msk [vmem:[#allocation5 + $0x38] sm:$0xff] %vm2917, %v2836
      %2926 = vst.msk [vmem:[#allocation5 + $0x40] sm:$0xff] %vm2917, %v2838
      %2927 = vst.msk [vmem:[#allocation5 + $0x48] sm:$0xff] %vm2917, %v2840
      %2928 = vst.msk [vmem:[#allocation5 + $0x50] sm:$0xff] %vm2917, %v2842
      %2929 = vst.msk [vmem:[#allocation5 + $0x58] sm:$0xff] %vm2917, %v2844
      %2930 = vst.msk [vmem:[#allocation5 + $0x60] sm:$0xff] %vm2917, %v2846
      %2931 = vst.msk [vmem:[#allocation5 + $0x68] sm:$0xff] %vm2917, %v2848
      %2932 = vst.msk [vmem:[#allocation5 + $0x70] sm:$0xff] %vm2917, %v2850
      %2933 = vst.msk [vmem:[#allocation5 + $0x78] sm:$0xff] %vm2917, %v2852
      %2934 = vst.msk [vmem:[#allocation5 + $0x80] sm:$0xff] %vm2917, %v2854
      %2935 = vst.msk [vmem:[#allocation5 + $0x88] sm:$0xff] %vm2917, %v2856
      %2936 = vst.msk [vmem:[#allocation5 + $0x90] sm:$0xff] %vm2917, %v2858
      %2937 = vst.msk [vmem:[#allocation5 + $0x98] sm:$0xff] %vm2917, %v2860
      %2938 = vst.msk [vmem:[#allocation5 + $0xa0] sm:$0xff] %vm2917, %v2862
      %2939 = vst.msk [vmem:[#allocation5 + $0xa8] sm:$0xff] %vm2917, %v2864
      %2940 = vst.msk [vmem:[#allocation5 + $0xb0] sm:$0xff] %vm2917, %v2866
      %2941 = vst.msk [vmem:[#allocation5 + $0xb8] sm:$0xff] %vm2917, %v2868
      %2942 = vst.msk [vmem:[#allocation5 + $0xc0] sm:$0xff] %vm2917, %v2870
      %2943 = vst.msk [vmem:[#allocation5 + $0xc8] sm:$0xff] %vm2917, %v2872
      %2944 = vst.msk [vmem:[#allocation5 + $0xd0] sm:$0xff] %vm2917, %v2874
      %2945 = vst.msk [vmem:[#allocation5 + $0xd8] sm:$0xff] %vm2917, %v2876
      %2946 = vst.msk [vmem:[#allocation5 + $0xe0] sm:$0xff] %vm2917, %v2878
      %2947 = vst.msk [vmem:[#allocation5 + $0xe8] sm:$0xff] %vm2917, %v2880
      %2948 = vst.msk [vmem:[#allocation5 + $0xf0] sm:$0xff] %vm2917, %v2882
      %2949 = vst.msk [vmem:[#allocation5 + $0xf8] sm:$0xff] %vm2917, %v2884
      %v2950 = vld [vmem:[%s2467] sm:$0xff]
      %v2951 = vld [vmem:[%s2467 + $0x8] sm:$0xff]
      %v2952 = vld [vmem:[%s2467 + $0x18] sm:$0xff]
      %v2953 = vld [vmem:[%s2467 + $0x20] sm:$0xff]
      %v2954 = vld [vmem:[%s2467 + $0x30] sm:$0xff]
      %v2955 = vld [vmem:[%s2467 + $0x38] sm:$0xff]
      %v2956 = vld [vmem:[%s2467 + $0x48] sm:$0xff]
      %v2957 = vld [vmem:[%s2467 + $0x50] sm:$0xff]
      %v2958 = vld [vmem:[%s2467 + $0x60] sm:$0xff]
      %v2959 = vld [vmem:[%s2467 + $0x68] sm:$0xff]
      %v2960 = vld [vmem:[%s2467 + $0x78] sm:$0xff]
      %v2961 = vld [vmem:[%s2467 + $0x80] sm:$0xff]
      %v2962 = vld [vmem:[%s2467 + $0x90] sm:$0xff]
      %v2963 = vld [vmem:[%s2467 + $0x98] sm:$0xff]
      %v2964 = vld [vmem:[%s2467 + $0xa8] sm:$0xff]
      %v2965 = vld [vmem:[%s2467 + $0xb0] sm:$0xff]
      %v2966 = vld [vmem:[%s2467 + $0xc0] sm:$0xff]
      %v2967 = vld [vmem:[%s2467 + $0xc8] sm:$0xff]
      %v2968 = vld [vmem:[%s2467 + $0xd8] sm:$0xff]
      %v2969 = vld [vmem:[%s2467 + $0xe0] sm:$0xff]
      %v2970 = vld [vmem:[%s2467 + $0xf0] sm:$0xff]
      %v2971 = vld [vmem:[%s2467 + $0xf8] sm:$0xff]
      %v2972 = vld [vmem:[%s2467 + $0x108] sm:$0xff]
      %v2973 = vld [vmem:[%s2467 + $0x110] sm:$0xff]
      %v2974 = vld [vmem:[%s2467 + $0x120] sm:$0xff]
      %v2975 = vld [vmem:[%s2467 + $0x128] sm:$0xff]
      %v2976 = vld [vmem:[%s2467 + $0x138] sm:$0xff]
      %v2977 = vld [vmem:[%s2467 + $0x140] sm:$0xff]
      %v2978 = vld [vmem:[%s2467 + $0x150] sm:$0xff]
      %v2979 = vld [vmem:[%s2467 + $0x158] sm:$0xff]
      %v2980 = vld [vmem:[%s2467 + $0x168] sm:$0xff]
      %v2981 = vld [vmem:[%s2467 + $0x170] sm:$0xff]
      %3014 = vrot.lane.b32.xlu0 %v2950, 24
      %v3015 = vpop.permute.xlu0 %3014
      %3016 = vrot.lane.b32.xlu0 %v2951, 24
      %v3017 = vpop.permute.xlu0 %3016
      %3018 = vrot.lane.b32.xlu0 %v2952, 24
      %v3019 = vpop.permute.xlu0 %3018
      %3020 = vrot.lane.b32.xlu0 %v2953, 24
      %v3021 = vpop.permute.xlu0 %3020
      %3022 = vrot.lane.b32.xlu0 %v2954, 24
      %v3023 = vpop.permute.xlu0 %3022
      %3024 = vrot.lane.b32.xlu0 %v2955, 24
      %v3025 = vpop.permute.xlu0 %3024
      %3026 = vrot.lane.b32.xlu0 %v2956, 24
      %v3027 = vpop.permute.xlu0 %3026
      %3028 = vrot.lane.b32.xlu0 %v2957, 24
      %v3029 = vpop.permute.xlu0 %3028
      %3030 = vrot.lane.b32.xlu0 %v2958, 24
      %v3031 = vpop.permute.xlu0 %3030
      %3032 = vrot.lane.b32.xlu0 %v2959, 24
      %v3033 = vpop.permute.xlu0 %3032
      %3034 = vrot.lane.b32.xlu0 %v2960, 24
      %v3035 = vpop.permute.xlu0 %3034
      %3036 = vrot.lane.b32.xlu0 %v2961, 24
      %v3037 = vpop.permute.xlu0 %3036
      %3038 = vrot.lane.b32.xlu0 %v2962, 24
      %v3039 = vpop.permute.xlu0 %3038
      %3040 = vrot.lane.b32.xlu0 %v2963, 24
      %v3041 = vpop.permute.xlu0 %3040
      %3042 = vrot.lane.b32.xlu0 %v2964, 24
      %v3043 = vpop.permute.xlu0 %3042
      %3044 = vrot.lane.b32.xlu0 %v2965, 24
      %v3045 = vpop.permute.xlu0 %3044
      %3046 = vrot.lane.b32.xlu0 %v2966, 24
      %v3047 = vpop.permute.xlu0 %3046
      %3048 = vrot.lane.b32.xlu0 %v2967, 24
      %v3049 = vpop.permute.xlu0 %3048
      %3050 = vrot.lane.b32.xlu0 %v2968, 24
      %v3051 = vpop.permute.xlu0 %3050
      %3052 = vrot.lane.b32.xlu0 %v2969, 24
      %v3053 = vpop.permute.xlu0 %3052
      %3054 = vrot.lane.b32.xlu0 %v2970, 24
      %v3055 = vpop.permute.xlu0 %3054
      %3056 = vrot.lane.b32.xlu0 %v2971, 24
      %v3057 = vpop.permute.xlu0 %3056
      %3058 = vrot.lane.b32.xlu0 %v2972, 24
      %v3059 = vpop.permute.xlu0 %3058
      %3060 = vrot.lane.b32.xlu0 %v2973, 24
      %v3061 = vpop.permute.xlu0 %3060
      %3062 = vrot.lane.b32.xlu0 %v2974, 24
      %v3063 = vpop.permute.xlu0 %3062
      %3064 = vrot.lane.b32.xlu0 %v2975, 24
      %v3065 = vpop.permute.xlu0 %3064
      %3066 = vrot.lane.b32.xlu0 %v2976, 24
      %v3067 = vpop.permute.xlu0 %3066
      %3068 = vrot.lane.b32.xlu0 %v2977, 24
      %v3069 = vpop.permute.xlu0 %3068
      %3070 = vrot.lane.b32.xlu0 %v2978, 24
      %v3071 = vpop.permute.xlu0 %3070
      %3072 = vrot.lane.b32.xlu0 %v2979, 24
      %v3073 = vpop.permute.xlu0 %3072
      %3074 = vrot.lane.b32.xlu0 %v2980, 24
      %v3075 = vpop.permute.xlu0 %3074
      %3076 = vrot.lane.b32.xlu0 %v2981, 24
      %v3077 = vpop.permute.xlu0 %3076
      %vm3110 = vcmask 261312
      %3111 = vst.msk [vmem:[#allocation5] sm:$0xff] %vm3110, %v3015
      %3112 = vst.msk [vmem:[#allocation5 + $0x8] sm:$0xff] %vm3110, %v3017
      %3113 = vst.msk [vmem:[#allocation5 + $0x10] sm:$0xff] %vm3110, %v3019
      %3114 = vst.msk [vmem:[#allocation5 + $0x18] sm:$0xff] %vm3110, %v3021
      %3115 = vst.msk [vmem:[#allocation5 + $0x20] sm:$0xff] %vm3110, %v3023
      %3116 = vst.msk [vmem:[#allocation5 + $0x28] sm:$0xff] %vm3110, %v3025
      %3117 = vst.msk [vmem:[#allocation5 + $0x30] sm:$0xff] %vm3110, %v3027
      %3118 = vst.msk [vmem:[#allocation5 + $0x38] sm:$0xff] %vm3110, %v3029
      %3119 = vst.msk [vmem:[#allocation5 + $0x40] sm:$0xff] %vm3110, %v3031
      %3120 = vst.msk [vmem:[#allocation5 + $0x48] sm:$0xff] %vm3110, %v3033
      %3121 = vst.msk [vmem:[#allocation5 + $0x50] sm:$0xff] %vm3110, %v3035
      %3122 = vst.msk [vmem:[#allocation5 + $0x58] sm:$0xff] %vm3110, %v3037
      %3123 = vst.msk [vmem:[#allocation5 + $0x60] sm:$0xff] %vm3110, %v3039
      %3124 = vst.msk [vmem:[#allocation5 + $0x68] sm:$0xff] %vm3110, %v3041
      %3125 = vst.msk [vmem:[#allocation5 + $0x70] sm:$0xff] %vm3110, %v3043
      %3126 = vst.msk [vmem:[#allocation5 + $0x78] sm:$0xff] %vm3110, %v3045
      %3127 = vst.msk [vmem:[#allocation5 + $0x80] sm:$0xff] %vm3110, %v3047
      %3128 = vst.msk [vmem:[#allocation5 + $0x88] sm:$0xff] %vm3110, %v3049
      %3129 = vst.msk [vmem:[#allocation5 + $0x90] sm:$0xff] %vm3110, %v3051
      %3130 = vst.msk [vmem:[#allocation5 + $0x98] sm:$0xff] %vm3110, %v3053
      %3131 = vst.msk [vmem:[#allocation5 + $0xa0] sm:$0xff] %vm3110, %v3055
      %3132 = vst.msk [vmem:[#allocation5 + $0xa8] sm:$0xff] %vm3110, %v3057
      %3133 = vst.msk [vmem:[#allocation5 + $0xb0] sm:$0xff] %vm3110, %v3059
      %3134 = vst.msk [vmem:[#allocation5 + $0xb8] sm:$0xff] %vm3110, %v3061
      %3135 = vst.msk [vmem:[#allocation5 + $0xc0] sm:$0xff] %vm3110, %v3063
      %3136 = vst.msk [vmem:[#allocation5 + $0xc8] sm:$0xff] %vm3110, %v3065
      %3137 = vst.msk [vmem:[#allocation5 + $0xd0] sm:$0xff] %vm3110, %v3067
      %3138 = vst.msk [vmem:[#allocation5 + $0xd8] sm:$0xff] %vm3110, %v3069
      %3139 = vst.msk [vmem:[#allocation5 + $0xe0] sm:$0xff] %vm3110, %v3071
      %3140 = vst.msk [vmem:[#allocation5 + $0xe8] sm:$0xff] %vm3110, %v3073
      %3141 = vst.msk [vmem:[#allocation5 + $0xf0] sm:$0xff] %vm3110, %v3075
      %3142 = vst.msk [vmem:[#allocation5 + $0xf8] sm:$0xff] %vm3110, %v3077
      %v3143 = vld [vmem:[%s2467 + $0x1] sm:$0xff]
      %v3144 = vld [vmem:[%s2467 + $0x9] sm:$0xff]
      %v3145 = vld [vmem:[%s2467 + $0x19] sm:$0xff]
      %v3146 = vld [vmem:[%s2467 + $0x21] sm:$0xff]
      %v3147 = vld [vmem:[%s2467 + $0x31] sm:$0xff]
      %v3148 = vld [vmem:[%s2467 + $0x39] sm:$0xff]
      %v3149 = vld [vmem:[%s2467 + $0x49] sm:$0xff]
      %v3150 = vld [vmem:[%s2467 + $0x51] sm:$0xff]
      %v3151 = vld [vmem:[%s2467 + $0x61] sm:$0xff]
      %v3152 = vld [vmem:[%s2467 + $0x69] sm:$0xff]
      %v3153 = vld [vmem:[%s2467 + $0x79] sm:$0xff]
      %v3154 = vld [vmem:[%s2467 + $0x81] sm:$0xff]
      %v3155 = vld [vmem:[%s2467 + $0x91] sm:$0xff]
      %v3156 = vld [vmem:[%s2467 + $0x99] sm:$0xff]
      %v3157 = vld [vmem:[%s2467 + $0xa9] sm:$0xff]
      %v3158 = vld [vmem:[%s2467 + $0xb1] sm:$0xff]
      %v3159 = vld [vmem:[%s2467 + $0xc1] sm:$0xff]
      %v3160 = vld [vmem:[%s2467 + $0xc9] sm:$0xff]
      %v3161 = vld [vmem:[%s2467 + $0xd9] sm:$0xff]
      %v3162 = vld [vmem:[%s2467 + $0xe1] sm:$0xff]
      %v3163 = vld [vmem:[%s2467 + $0xf1] sm:$0xff]
      %v3164 = vld [vmem:[%s2467 + $0xf9] sm:$0xff]
      %v3165 = vld [vmem:[%s2467 + $0x109] sm:$0xff]
      %v3166 = vld [vmem:[%s2467 + $0x111] sm:$0xff]
      %v3167 = vld [vmem:[%s2467 + $0x121] sm:$0xff]
      %v3168 = vld [vmem:[%s2467 + $0x129] sm:$0xff]
      %v3169 = vld [vmem:[%s2467 + $0x139] sm:$0xff]
      %v3170 = vld [vmem:[%s2467 + $0x141] sm:$0xff]
      %v3171 = vld [vmem:[%s2467 + $0x151] sm:$0xff]
      %v3172 = vld [vmem:[%s2467 + $0x159] sm:$0xff]
      %v3173 = vld [vmem:[%s2467 + $0x169] sm:$0xff]
      %v3174 = vld [vmem:[%s2467 + $0x171] sm:$0xff]
      %3207 = vrot.lane.b32.xlu0 %v3143, 32
      %v3208 = vpop.permute.xlu0 %3207
      %3209 = vrot.lane.b32.xlu0 %v3144, 32
      %v3210 = vpop.permute.xlu0 %3209
      %3211 = vrot.lane.b32.xlu0 %v3145, 32
      %v3212 = vpop.permute.xlu0 %3211
      %3213 = vrot.lane.b32.xlu0 %v3146, 32
      %v3214 = vpop.permute.xlu0 %3213
      %3215 = vrot.lane.b32.xlu0 %v3147, 32
      %v3216 = vpop.permute.xlu0 %3215
      %3217 = vrot.lane.b32.xlu0 %v3148, 32
      %v3218 = vpop.permute.xlu0 %3217
      %3219 = vrot.lane.b32.xlu0 %v3149, 32
      %v3220 = vpop.permute.xlu0 %3219
      %3221 = vrot.lane.b32.xlu0 %v3150, 32
      %v3222 = vpop.permute.xlu0 %3221
      %3223 = vrot.lane.b32.xlu0 %v3151, 32
      %v3224 = vpop.permute.xlu0 %3223
      %3225 = vrot.lane.b32.xlu0 %v3152, 32
      %v3226 = vpop.permute.xlu0 %3225
      %3227 = vrot.lane.b32.xlu0 %v3153, 32
      %v3228 = vpop.permute.xlu0 %3227
      %3229 = vrot.lane.b32.xlu0 %v3154, 32
      %v3230 = vpop.permute.xlu0 %3229
      %3231 = vrot.lane.b32.xlu0 %v3155, 32
      %v3232 = vpop.permute.xlu0 %3231
      %3233 = vrot.lane.b32.xlu0 %v3156, 32
      %v3234 = vpop.permute.xlu0 %3233
      %3235 = vrot.lane.b32.xlu0 %v3157, 32
      %v3236 = vpop.permute.xlu0 %3235
      %3237 = vrot.lane.b32.xlu0 %v3158, 32
      %v3238 = vpop.permute.xlu0 %3237
      %3239 = vrot.lane.b32.xlu0 %v3159, 32
      %v3240 = vpop.permute.xlu0 %3239
      %3241 = vrot.lane.b32.xlu0 %v3160, 32
      %v3242 = vpop.permute.xlu0 %3241
      %3243 = vrot.lane.b32.xlu0 %v3161, 32
      %v3244 = vpop.permute.xlu0 %3243
      %3245 = vrot.lane.b32.xlu0 %v3162, 32
      %v3246 = vpop.permute.xlu0 %3245
      %3247 = vrot.lane.b32.xlu0 %v3163, 32
      %v3248 = vpop.permute.xlu0 %3247
      %3249 = vrot.lane.b32.xlu0 %v3164, 32
      %v3250 = vpop.permute.xlu0 %3249
      %3251 = vrot.lane.b32.xlu0 %v3165, 32
      %v3252 = vpop.permute.xlu0 %3251
      %3253 = vrot.lane.b32.xlu0 %v3166, 32
      %v3254 = vpop.permute.xlu0 %3253
      %3255 = vrot.lane.b32.xlu0 %v3167, 32
      %v3256 = vpop.permute.xlu0 %3255
      %3257 = vrot.lane.b32.xlu0 %v3168, 32
      %v3258 = vpop.permute.xlu0 %3257
      %3259 = vrot.lane.b32.xlu0 %v3169, 32
      %v3260 = vpop.permute.xlu0 %3259
      %3261 = vrot.lane.b32.xlu0 %v3170, 32
      %v3262 = vpop.permute.xlu0 %3261
      %3263 = vrot.lane.b32.xlu0 %v3171, 32
      %v3264 = vpop.permute.xlu0 %3263
      %3265 = vrot.lane.b32.xlu0 %v3172, 32
      %v3266 = vpop.permute.xlu0 %3265
      %3267 = vrot.lane.b32.xlu0 %v3173, 32
      %v3268 = vpop.permute.xlu0 %3267
      %3269 = vrot.lane.b32.xlu0 %v3174, 32
      %v3270 = vpop.permute.xlu0 %3269
      %vm3303 = vcmask 326912
      %3304 = vst.msk [vmem:[#allocation5] sm:$0xff] %vm3303, %v3208
      %3305 = vst.msk [vmem:[#allocation5 + $0x8] sm:$0xff] %vm3303, %v3210
      %3306 = vst.msk [vmem:[#allocation5 + $0x10] sm:$0xff] %vm3303, %v3212
      %3307 = vst.msk [vmem:[#allocation5 + $0x18] sm:$0xff] %vm3303, %v3214
      %3308 = vst.msk [vmem:[#allocation5 + $0x20] sm:$0xff] %vm3303, %v3216
      %3309 = vst.msk [vmem:[#allocation5 + $0x28] sm:$0xff] %vm3303, %v3218
      %3310 = vst.msk [vmem:[#allocation5 + $0x30] sm:$0xff] %vm3303, %v3220
      %3311 = vst.msk [vmem:[#allocation5 + $0x38] sm:$0xff] %vm3303, %v3222
      %3312 = vst.msk [vmem:[#allocation5 + $0x40] sm:$0xff] %vm3303, %v3224
      %3313 = vst.msk [vmem:[#allocation5 + $0x48] sm:$0xff] %vm3303, %v3226
      %3314 = vst.msk [vmem:[#allocation5 + $0x50] sm:$0xff] %vm3303, %v3228
      %3315 = vst.msk [vmem:[#allocation5 + $0x58] sm:$0xff] %vm3303, %v3230
      %3316 = vst.msk [vmem:[#allocation5 + $0x60] sm:$0xff] %vm3303, %v3232
      %3317 = vst.msk [vmem:[#allocation5 + $0x68] sm:$0xff] %vm3303, %v3234
      %3318 = vst.msk [vmem:[#allocation5 + $0x70] sm:$0xff] %vm3303, %v3236
      %3319 = vst.msk [vmem:[#allocation5 + $0x78] sm:$0xff] %vm3303, %v3238
      %3320 = vst.msk [vmem:[#allocation5 + $0x80] sm:$0xff] %vm3303, %v3240
      %3321 = vst.msk [vmem:[#allocation5 + $0x88] sm:$0xff] %vm3303, %v3242
      %3322 = vst.msk [vmem:[#allocation5 + $0x90] sm:$0xff] %vm3303, %v3244
      %3323 = vst.msk [vmem:[#allocation5 + $0x98] sm:$0xff] %vm3303, %v3246
      %3324 = vst.msk [vmem:[#allocation5 + $0xa0] sm:$0xff] %vm3303, %v3248
      %3325 = vst.msk [vmem:[#allocation5 + $0xa8] sm:$0xff] %vm3303, %v3250
      %3326 = vst.msk [vmem:[#allocation5 + $0xb0] sm:$0xff] %vm3303, %v3252
      %3327 = vst.msk [vmem:[#allocation5 + $0xb8] sm:$0xff] %vm3303, %v3254
      %3328 = vst.msk [vmem:[#allocation5 + $0xc0] sm:$0xff] %vm3303, %v3256
      %3329 = vst.msk [vmem:[#allocation5 + $0xc8] sm:$0xff] %vm3303, %v3258
      %3330 = vst.msk [vmem:[#allocation5 + $0xd0] sm:$0xff] %vm3303, %v3260
      %3331 = vst.msk [vmem:[#allocation5 + $0xd8] sm:$0xff] %vm3303, %v3262
      %3332 = vst.msk [vmem:[#allocation5 + $0xe0] sm:$0xff] %vm3303, %v3264
      %3333 = vst.msk [vmem:[#allocation5 + $0xe8] sm:$0xff] %vm3303, %v3266
      %3334 = vst.msk [vmem:[#allocation5 + $0xf0] sm:$0xff] %vm3303, %v3268
      %3335 = vst.msk [vmem:[#allocation5 + $0xf8] sm:$0xff] %vm3303, %v3270
      %v3336 = vld [vmem:[%s2467 + $0x2] sm:$0xff]
      %v3337 = vld [vmem:[%s2467 + $0xa] sm:$0xff]
      %v3338 = vld [vmem:[%s2467 + $0x1a] sm:$0xff]
      %v3339 = vld [vmem:[%s2467 + $0x22] sm:$0xff]
      %v3340 = vld [vmem:[%s2467 + $0x32] sm:$0xff]
      %v3341 = vld [vmem:[%s2467 + $0x3a] sm:$0xff]
      %v3342 = vld [vmem:[%s2467 + $0x4a] sm:$0xff]
      %v3343 = vld [vmem:[%s2467 + $0x52] sm:$0xff]
      %v3344 = vld [vmem:[%s2467 + $0x62] sm:$0xff]
      %v3345 = vld [vmem:[%s2467 + $0x6a] sm:$0xff]
      %v3346 = vld [vmem:[%s2467 + $0x7a] sm:$0xff]
      %v3347 = vld [vmem:[%s2467 + $0x82] sm:$0xff]
      %v3348 = vld [vmem:[%s2467 + $0x92] sm:$0xff]
      %v3349 = vld [vmem:[%s2467 + $0x9a] sm:$0xff]
      %v3350 = vld [vmem:[%s2467 + $0xaa] sm:$0xff]
      %v3351 = vld [vmem:[%s2467 + $0xb2] sm:$0xff]
      %v3352 = vld [vmem:[%s2467 + $0xc2] sm:$0xff]
      %v3353 = vld [vmem:[%s2467 + $0xca] sm:$0xff]
      %v3354 = vld [vmem:[%s2467 + $0xda] sm:$0xff]
      %v3355 = vld [vmem:[%s2467 + $0xe2] sm:$0xff]
      %v3356 = vld [vmem:[%s2467 + $0xf2] sm:$0xff]
      %v3357 = vld [vmem:[%s2467 + $0xfa] sm:$0xff]
      %v3358 = vld [vmem:[%s2467 + $0x10a] sm:$0xff]
      %v3359 = vld [vmem:[%s2467 + $0x112] sm:$0xff]
      %v3360 = vld [vmem:[%s2467 + $0x122] sm:$0xff]
      %v3361 = vld [vmem:[%s2467 + $0x12a] sm:$0xff]
      %v3362 = vld [vmem:[%s2467 + $0x13a] sm:$0xff]
      %v3363 = vld [vmem:[%s2467 + $0x142] sm:$0xff]
      %v3364 = vld [vmem:[%s2467 + $0x152] sm:$0xff]
      %v3365 = vld [vmem:[%s2467 + $0x15a] sm:$0xff]
      %v3366 = vld [vmem:[%s2467 + $0x16a] sm:$0xff]
      %v3367 = vld [vmem:[%s2467 + $0x172] sm:$0xff]
      %3400 = vrot.lane.b32.xlu0 %v3336, 40
      %v3401 = vpop.permute.xlu0 %3400
      %3402 = vrot.lane.b32.xlu0 %v3337, 40
      %v3403 = vpop.permute.xlu0 %3402
      %3404 = vrot.lane.b32.xlu0 %v3338, 40
      %v3405 = vpop.permute.xlu0 %3404
      %3406 = vrot.lane.b32.xlu0 %v3339, 40
      %v3407 = vpop.permute.xlu0 %3406
      %3408 = vrot.lane.b32.xlu0 %v3340, 40
      %v3409 = vpop.permute.xlu0 %3408
      %3410 = vrot.lane.b32.xlu0 %v3341, 40
      %v3411 = vpop.permute.xlu0 %3410
      %3412 = vrot.lane.b32.xlu0 %v3342, 40
      %v3413 = vpop.permute.xlu0 %3412
      %3414 = vrot.lane.b32.xlu0 %v3343, 40
      %v3415 = vpop.permute.xlu0 %3414
      %3416 = vrot.lane.b32.xlu0 %v3344, 40
      %v3417 = vpop.permute.xlu0 %3416
      %3418 = vrot.lane.b32.xlu0 %v3345, 40
      %v3419 = vpop.permute.xlu0 %3418
      %3420 = vrot.lane.b32.xlu0 %v3346, 40
      %v3421 = vpop.permute.xlu0 %3420
      %3422 = vrot.lane.b32.xlu0 %v3347, 40
      %v3423 = vpop.permute.xlu0 %3422
      %3424 = vrot.lane.b32.xlu0 %v3348, 40
      %v3425 = vpop.permute.xlu0 %3424
      %3426 = vrot.lane.b32.xlu0 %v3349, 40
      %v3427 = vpop.permute.xlu0 %3426
      %3428 = vrot.lane.b32.xlu0 %v3350, 40
      %v3429 = vpop.permute.xlu0 %3428
      %3430 = vrot.lane.b32.xlu0 %v3351, 40
      %v3431 = vpop.permute.xlu0 %3430
      %3432 = vrot.lane.b32.xlu0 %v3352, 40
      %v3433 = vpop.permute.xlu0 %3432
      %3434 = vrot.lane.b32.xlu0 %v3353, 40
      %v3435 = vpop.permute.xlu0 %3434
      %3436 = vrot.lane.b32.xlu0 %v3354, 40
      %v3437 = vpop.permute.xlu0 %3436
      %3438 = vrot.lane.b32.xlu0 %v3355, 40
      %v3439 = vpop.permute.xlu0 %3438
      %3440 = vrot.lane.b32.xlu0 %v3356, 40
      %v3441 = vpop.permute.xlu0 %3440
      %3442 = vrot.lane.b32.xlu0 %v3357, 40
      %v3443 = vpop.permute.xlu0 %3442
      %3444 = vrot.lane.b32.xlu0 %v3358, 40
      %v3445 = vpop.permute.xlu0 %3444
      %3446 = vrot.lane.b32.xlu0 %v3359, 40
      %v3447 = vpop.permute.xlu0 %3446
      %3448 = vrot.lane.b32.xlu0 %v3360, 40
      %v3449 = vpop.permute.xlu0 %3448
      %3450 = vrot.lane.b32.xlu0 %v3361, 40
      %v3451 = vpop.permute.xlu0 %3450
      %3452 = vrot.lane.b32.xlu0 %v3362, 40
      %v3453 = vpop.permute.xlu0 %3452
      %3454 = vrot.lane.b32.xlu0 %v3363, 40
      %v3455 = vpop.permute.xlu0 %3454
      %3456 = vrot.lane.b32.xlu0 %v3364, 40
      %v3457 = vpop.permute.xlu0 %3456
      %3458 = vrot.lane.b32.xlu0 %v3365, 40
      %v3459 = vpop.permute.xlu0 %3458
      %3460 = vrot.lane.b32.xlu0 %v3366, 40
      %v3461 = vpop.permute.xlu0 %3460
      %3462 = vrot.lane.b32.xlu0 %v3367, 40
      %v3463 = vpop.permute.xlu0 %3462
      %vm3496 = vcmask 392512
      %3497 = vst.msk [vmem:[#allocation5] sm:$0xff] %vm3496, %v3401
      %3498 = vst.msk [vmem:[#allocation5 + $0x8] sm:$0xff] %vm3496, %v3403
      %3499 = vst.msk [vmem:[#allocation5 + $0x10] sm:$0xff] %vm3496, %v3405
      %3500 = vst.msk [vmem:[#allocation5 + $0x18] sm:$0xff] %vm3496, %v3407
      %3501 = vst.msk [vmem:[#allocation5 + $0x20] sm:$0xff] %vm3496, %v3409
      %3502 = vst.msk [vmem:[#allocation5 + $0x28] sm:$0xff] %vm3496, %v3411
      %3503 = vst.msk [vmem:[#allocation5 + $0x30] sm:$0xff] %vm3496, %v3413
      %3504 = vst.msk [vmem:[#allocation5 + $0x38] sm:$0xff] %vm3496, %v3415
      %3505 = vst.msk [vmem:[#allocation5 + $0x40] sm:$0xff] %vm3496, %v3417
      %3506 = vst.msk [vmem:[#allocation5 + $0x48] sm:$0xff] %vm3496, %v3419
      %3507 = vst.msk [vmem:[#allocation5 + $0x50] sm:$0xff] %vm3496, %v3421
      %3508 = vst.msk [vmem:[#allocation5 + $0x58] sm:$0xff] %vm3496, %v3423
      %3509 = vst.msk [vmem:[#allocation5 + $0x60] sm:$0xff] %vm3496, %v3425
      %3510 = vst.msk [vmem:[#allocation5 + $0x68] sm:$0xff] %vm3496, %v3427
      %3511 = vst.msk [vmem:[#allocation5 + $0x70] sm:$0xff] %vm3496, %v3429
      %3512 = vst.msk [vmem:[#allocation5 + $0x78] sm:$0xff] %vm3496, %v3431
      %3513 = vst.msk [vmem:[#allocation5 + $0x80] sm:$0xff] %vm3496, %v3433
      %3514 = vst.msk [vmem:[#allocation5 + $0x88] sm:$0xff] %vm3496, %v3435
      %3515 = vst.msk [vmem:[#allocation5 + $0x90] sm:$0xff] %vm3496, %v3437
      %3516 = vst.msk [vmem:[#allocation5 + $0x98] sm:$0xff] %vm3496, %v3439
      %3517 = vst.msk [vmem:[#allocation5 + $0xa0] sm:$0xff] %vm3496, %v3441
      %3518 = vst.msk [vmem:[#allocation5 + $0xa8] sm:$0xff] %vm3496, %v3443
      %3519 = vst.msk [vmem:[#allocation5 + $0xb0] sm:$0xff] %vm3496, %v3445
      %3520 = vst.msk [vmem:[#allocation5 + $0xb8] sm:$0xff] %vm3496, %v3447
      %3521 = vst.msk [vmem:[#allocation5 + $0xc0] sm:$0xff] %vm3496, %v3449
      %3522 = vst.msk [vmem:[#allocation5 + $0xc8] sm:$0xff] %vm3496, %v3451
      %3523 = vst.msk [vmem:[#allocation5 + $0xd0] sm:$0xff] %vm3496, %v3453
      %3524 = vst.msk [vmem:[#allocation5 + $0xd8] sm:$0xff] %vm3496, %v3455
      %3525 = vst.msk [vmem:[#allocation5 + $0xe0] sm:$0xff] %vm3496, %v3457
      %3526 = vst.msk [vmem:[#allocation5 + $0xe8] sm:$0xff] %vm3496, %v3459
      %3527 = vst.msk [vmem:[#allocation5 + $0xf0] sm:$0xff] %vm3496, %v3461
      %3528 = vst.msk [vmem:[#allocation5 + $0xf8] sm:$0xff] %vm3496, %v3463
      %s3529 = scalar_lea.vmem [#allocation3], 48
      %v3530 = vld [vmem:[%s3529] sm:$0xff]
      %v3531 = vld [vmem:[%s3529 + $0x8] sm:$0xff]
      %v3532 = vld [vmem:[%s3529 + $0x18] sm:$0xff]
      %v3533 = vld [vmem:[%s3529 + $0x20] sm:$0xff]
      %v3534 = vld [vmem:[%s3529 + $0x30] sm:$0xff]
      %v3535 = vld [vmem:[%s3529 + $0x38] sm:$0xff]
      %v3536 = vld [vmem:[%s3529 + $0x48] sm:$0xff]
      %v3537 = vld [vmem:[%s3529 + $0x50] sm:$0xff]
      %v3538 = vld [vmem:[%s3529 + $0x60] sm:$0xff]
      %v3539 = vld [vmem:[%s3529 + $0x68] sm:$0xff]
      %v3540 = vld [vmem:[%s3529 + $0x78] sm:$0xff]
      %v3541 = vld [vmem:[%s3529 + $0x80] sm:$0xff]
      %v3542 = vld [vmem:[%s3529 + $0x90] sm:$0xff]
      %v3543 = vld [vmem:[%s3529 + $0x98] sm:$0xff]
      %v3544 = vld [vmem:[%s3529 + $0xa8] sm:$0xff]
      %v3545 = vld [vmem:[%s3529 + $0xb0] sm:$0xff]
      %v3546 = vld [vmem:[%s3529 + $0xc0] sm:$0xff]
      %v3547 = vld [vmem:[%s3529 + $0xc8] sm:$0xff]
      %v3548 = vld [vmem:[%s3529 + $0xd8] sm:$0xff]
      %v3549 = vld [vmem:[%s3529 + $0xe0] sm:$0xff]
      %v3550 = vld [vmem:[%s3529 + $0xf0] sm:$0xff]
      %v3551 = vld [vmem:[%s3529 + $0xf8] sm:$0xff]
      %v3552 = vld [vmem:[%s3529 + $0x108] sm:$0xff]
      %v3553 = vld [vmem:[%s3529 + $0x110] sm:$0xff]
      %v3554 = vld [vmem:[%s3529 + $0x120] sm:$0xff]
      %v3555 = vld [vmem:[%s3529 + $0x128] sm:$0xff]
      %v3556 = vld [vmem:[%s3529 + $0x138] sm:$0xff]
      %v3557 = vld [vmem:[%s3529 + $0x140] sm:$0xff]
      %v3558 = vld [vmem:[%s3529 + $0x150] sm:$0xff]
      %v3559 = vld [vmem:[%s3529 + $0x158] sm:$0xff]
      %v3560 = vld [vmem:[%s3529 + $0x168] sm:$0xff]
      %v3561 = vld [vmem:[%s3529 + $0x170] sm:$0xff]
      %3594 = vrot.lane.b32.xlu0 %v3530, 48
      %v3595 = vpop.permute.xlu0 %3594
      %3596 = vrot.lane.b32.xlu0 %v3531, 48
      %v3597 = vpop.permute.xlu0 %3596
      %3598 = vrot.lane.b32.xlu0 %v3532, 48
      %v3599 = vpop.permute.xlu0 %3598
      %3600 = vrot.lane.b32.xlu0 %v3533, 48
      %v3601 = vpop.permute.xlu0 %3600
      %3602 = vrot.lane.b32.xlu0 %v3534, 48
      %v3603 = vpop.permute.xlu0 %3602
      %3604 = vrot.lane.b32.xlu0 %v3535, 48
      %v3605 = vpop.permute.xlu0 %3604
      %3606 = vrot.lane.b32.xlu0 %v3536, 48
      %v3607 = vpop.permute.xlu0 %3606
      %3608 = vrot.lane.b32.xlu0 %v3537, 48
      %v3609 = vpop.permute.xlu0 %3608
      %3610 = vrot.lane.b32.xlu0 %v3538, 48
      %v3611 = vpop.permute.xlu0 %3610
      %3612 = vrot.lane.b32.xlu0 %v3539, 48
      %v3613 = vpop.permute.xlu0 %3612
      %3614 = vrot.lane.b32.xlu0 %v3540, 48
      %v3615 = vpop.permute.xlu0 %3614
      %3616 = vrot.lane.b32.xlu0 %v3541, 48
      %v3617 = vpop.permute.xlu0 %3616
      %3618 = vrot.lane.b32.xlu0 %v3542, 48
      %v3619 = vpop.permute.xlu0 %3618
      %3620 = vrot.lane.b32.xlu0 %v3543, 48
      %v3621 = vpop.permute.xlu0 %3620
      %3622 = vrot.lane.b32.xlu0 %v3544, 48
      %v3623 = vpop.permute.xlu0 %3622
      %3624 = vrot.lane.b32.xlu0 %v3545, 48
      %v3625 = vpop.permute.xlu0 %3624
      %3626 = vrot.lane.b32.xlu0 %v3546, 48
      %v3627 = vpop.permute.xlu0 %3626
      %3628 = vrot.lane.b32.xlu0 %v3547, 48
      %v3629 = vpop.permute.xlu0 %3628
      %3630 = vrot.lane.b32.xlu0 %v3548, 48
      %v3631 = vpop.permute.xlu0 %3630
      %3632 = vrot.lane.b32.xlu0 %v3549, 48
      %v3633 = vpop.permute.xlu0 %3632
      %3634 = vrot.lane.b32.xlu0 %v3550, 48
      %v3635 = vpop.permute.xlu0 %3634
      %3636 = vrot.lane.b32.xlu0 %v3551, 48
      %v3637 = vpop.permute.xlu0 %3636
      %3638 = vrot.lane.b32.xlu0 %v3552, 48
      %v3639 = vpop.permute.xlu0 %3638
      %3640 = vrot.lane.b32.xlu0 %v3553, 48
      %v3641 = vpop.permute.xlu0 %3640
      %3642 = vrot.lane.b32.xlu0 %v3554, 48
      %v3643 = vpop.permute.xlu0 %3642
      %3644 = vrot.lane.b32.xlu0 %v3555, 48
      %v3645 = vpop.permute.xlu0 %3644
      %3646 = vrot.lane.b32.xlu0 %v3556, 48
      %v3647 = vpop.permute.xlu0 %3646
      %3648 = vrot.lane.b32.xlu0 %v3557, 48
      %v3649 = vpop.permute.xlu0 %3648
      %3650 = vrot.lane.b32.xlu0 %v3558, 48
      %v3651 = vpop.permute.xlu0 %3650
      %3652 = vrot.lane.b32.xlu0 %v3559, 48
      %v3653 = vpop.permute.xlu0 %3652
      %3654 = vrot.lane.b32.xlu0 %v3560, 48
      %v3655 = vpop.permute.xlu0 %3654
      %3656 = vrot.lane.b32.xlu0 %v3561, 48
      %v3657 = vpop.permute.xlu0 %3656
      %vm3690 = vcmask 458112
      %3691 = vst.msk [vmem:[#allocation5] sm:$0xff] %vm3690, %v3595
      %3692 = vst.msk [vmem:[#allocation5 + $0x8] sm:$0xff] %vm3690, %v3597
      %3693 = vst.msk [vmem:[#allocation5 + $0x10] sm:$0xff] %vm3690, %v3599
      %3694 = vst.msk [vmem:[#allocation5 + $0x18] sm:$0xff] %vm3690, %v3601
      %3695 = vst.msk [vmem:[#allocation5 + $0x20] sm:$0xff] %vm3690, %v3603
      %3696 = vst.msk [vmem:[#allocation5 + $0x28] sm:$0xff] %vm3690, %v3605
      %3697 = vst.msk [vmem:[#allocation5 + $0x30] sm:$0xff] %vm3690, %v3607
      %3698 = vst.msk [vmem:[#allocation5 + $0x38] sm:$0xff] %vm3690, %v3609
      %3699 = vst.msk [vmem:[#allocation5 + $0x40] sm:$0xff] %vm3690, %v3611
      %3700 = vst.msk [vmem:[#allocation5 + $0x48] sm:$0xff] %vm3690, %v3613
      %3701 = vst.msk [vmem:[#allocation5 + $0x50] sm:$0xff] %vm3690, %v3615
      %3702 = vst.msk [vmem:[#allocation5 + $0x58] sm:$0xff] %vm3690, %v3617
      %3703 = vst.msk [vmem:[#allocation5 + $0x60] sm:$0xff] %vm3690, %v3619
      %3704 = vst.msk [vmem:[#allocation5 + $0x68] sm:$0xff] %vm3690, %v3621
      %3705 = vst.msk [vmem:[#allocation5 + $0x70] sm:$0xff] %vm3690, %v3623
      %3706 = vst.msk [vmem:[#allocation5 + $0x78] sm:$0xff] %vm3690, %v3625
      %3707 = vst.msk [vmem:[#allocation5 + $0x80] sm:$0xff] %vm3690, %v3627
      %3708 = vst.msk [vmem:[#allocation5 + $0x88] sm:$0xff] %vm3690, %v3629
      %3709 = vst.msk [vmem:[#allocation5 + $0x90] sm:$0xff] %vm3690, %v3631
      %3710 = vst.msk [vmem:[#allocation5 + $0x98] sm:$0xff] %vm3690, %v3633
      %3711 = vst.msk [vmem:[#allocation5 + $0xa0] sm:$0xff] %vm3690, %v3635
      %3712 = vst.msk [vmem:[#allocation5 + $0xa8] sm:$0xff] %vm3690, %v3637
      %3713 = vst.msk [vmem:[#allocation5 + $0xb0] sm:$0xff] %vm3690, %v3639
      %3714 = vst.msk [vmem:[#allocation5 + $0xb8] sm:$0xff] %vm3690, %v3641
      %3715 = vst.msk [vmem:[#allocation5 + $0xc0] sm:$0xff] %vm3690, %v3643
      %3716 = vst.msk [vmem:[#allocation5 + $0xc8] sm:$0xff] %vm3690, %v3645
      %3717 = vst.msk [vmem:[#allocation5 + $0xd0] sm:$0xff] %vm3690, %v3647
      %3718 = vst.msk [vmem:[#allocation5 + $0xd8] sm:$0xff] %vm3690, %v3649
      %3719 = vst.msk [vmem:[#allocation5 + $0xe0] sm:$0xff] %vm3690, %v3651
      %3720 = vst.msk [vmem:[#allocation5 + $0xe8] sm:$0xff] %vm3690, %v3653
      %3721 = vst.msk [vmem:[#allocation5 + $0xf0] sm:$0xff] %vm3690, %v3655
      %3722 = vst.msk [vmem:[#allocation5 + $0xf8] sm:$0xff] %vm3690, %v3657
      %v3723 = vld [vmem:[%s3529 + $0x1] sm:$0xff]
      %v3724 = vld [vmem:[%s3529 + $0x9] sm:$0xff]
      %v3725 = vld [vmem:[%s3529 + $0x19] sm:$0xff]
      %v3726 = vld [vmem:[%s3529 + $0x21] sm:$0xff]
      %v3727 = vld [vmem:[%s3529 + $0x31] sm:$0xff]
      %v3728 = vld [vmem:[%s3529 + $0x39] sm:$0xff]
      %v3729 = vld [vmem:[%s3529 + $0x49] sm:$0xff]
      %v3730 = vld [vmem:[%s3529 + $0x51] sm:$0xff]
      %v3731 = vld [vmem:[%s3529 + $0x61] sm:$0xff]
      %v3732 = vld [vmem:[%s3529 + $0x69] sm:$0xff]
      %v3733 = vld [vmem:[%s3529 + $0x79] sm:$0xff]
      %v3734 = vld [vmem:[%s3529 + $0x81] sm:$0xff]
      %v3735 = vld [vmem:[%s3529 + $0x91] sm:$0xff]
      %v3736 = vld [vmem:[%s3529 + $0x99] sm:$0xff]
      %v3737 = vld [vmem:[%s3529 + $0xa9] sm:$0xff]
      %v3738 = vld [vmem:[%s3529 + $0xb1] sm:$0xff]
      %v3739 = vld [vmem:[%s3529 + $0xc1] sm:$0xff]
      %v3740 = vld [vmem:[%s3529 + $0xc9] sm:$0xff]
      %v3741 = vld [vmem:[%s3529 + $0xd9] sm:$0xff]
      %v3742 = vld [vmem:[%s3529 + $0xe1] sm:$0xff]
      %v3743 = vld [vmem:[%s3529 + $0xf1] sm:$0xff]
      %v3744 = vld [vmem:[%s3529 + $0xf9] sm:$0xff]
      %v3745 = vld [vmem:[%s3529 + $0x109] sm:$0xff]
      %v3746 = vld [vmem:[%s3529 + $0x111] sm:$0xff]
      %v3747 = vld [vmem:[%s3529 + $0x121] sm:$0xff]
      %v3748 = vld [vmem:[%s3529 + $0x129] sm:$0xff]
      %v3749 = vld [vmem:[%s3529 + $0x139] sm:$0xff]
      %v3750 = vld [vmem:[%s3529 + $0x141] sm:$0xff]
      %v3751 = vld [vmem:[%s3529 + $0x151] sm:$0xff]
      %v3752 = vld [vmem:[%s3529 + $0x159] sm:$0xff]
      %v3753 = vld [vmem:[%s3529 + $0x169] sm:$0xff]
      %v3754 = vld [vmem:[%s3529 + $0x171] sm:$0xff]
      %3787 = vrot.lane.b32.xlu0 %v3723, 56
      %v3788 = vpop.permute.xlu0 %3787
      %3789 = vrot.lane.b32.xlu0 %v3724, 56
      %v3790 = vpop.permute.xlu0 %3789
      %3791 = vrot.lane.b32.xlu0 %v3725, 56
      %v3792 = vpop.permute.xlu0 %3791
      %3793 = vrot.lane.b32.xlu0 %v3726, 56
      %v3794 = vpop.permute.xlu0 %3793
      %3795 = vrot.lane.b32.xlu0 %v3727, 56
      %v3796 = vpop.permute.xlu0 %3795
      %3797 = vrot.lane.b32.xlu0 %v3728, 56
      %v3798 = vpop.permute.xlu0 %3797
      %3799 = vrot.lane.b32.xlu0 %v3729, 56
      %v3800 = vpop.permute.xlu0 %3799
      %3801 = vrot.lane.b32.xlu0 %v3730, 56
      %v3802 = vpop.permute.xlu0 %3801
      %3803 = vrot.lane.b32.xlu0 %v3731, 56
      %v3804 = vpop.permute.xlu0 %3803
      %3805 = vrot.lane.b32.xlu0 %v3732, 56
      %v3806 = vpop.permute.xlu0 %3805
      %3807 = vrot.lane.b32.xlu0 %v3733, 56
      %v3808 = vpop.permute.xlu0 %3807
      %3809 = vrot.lane.b32.xlu0 %v3734, 56
      %v3810 = vpop.permute.xlu0 %3809
      %3811 = vrot.lane.b32.xlu0 %v3735, 56
      %v3812 = vpop.permute.xlu0 %3811
      %3813 = vrot.lane.b32.xlu0 %v3736, 56
      %v3814 = vpop.permute.xlu0 %3813
      %3815 = vrot.lane.b32.xlu0 %v3737, 56
      %v3816 = vpop.permute.xlu0 %3815
      %3817 = vrot.lane.b32.xlu0 %v3738, 56
      %v3818 = vpop.permute.xlu0 %3817
      %3819 = vrot.lane.b32.xlu0 %v3739, 56
      %v3820 = vpop.permute.xlu0 %3819
      %3821 = vrot.lane.b32.xlu0 %v3740, 56
      %v3822 = vpop.permute.xlu0 %3821
      %3823 = vrot.lane.b32.xlu0 %v3741, 56
      %v3824 = vpop.permute.xlu0 %3823
      %3825 = vrot.lane.b32.xlu0 %v3742, 56
      %v3826 = vpop.permute.xlu0 %3825
      %3827 = vrot.lane.b32.xlu0 %v3743, 56
      %v3828 = vpop.permute.xlu0 %3827
      %3829 = vrot.lane.b32.xlu0 %v3744, 56
      %v3830 = vpop.permute.xlu0 %3829
      %3831 = vrot.lane.b32.xlu0 %v3745, 56
      %v3832 = vpop.permute.xlu0 %3831
      %3833 = vrot.lane.b32.xlu0 %v3746, 56
      %v3834 = vpop.permute.xlu0 %3833
      %3835 = vrot.lane.b32.xlu0 %v3747, 56
      %v3836 = vpop.permute.xlu0 %3835
      %3837 = vrot.lane.b32.xlu0 %v3748, 56
      %v3838 = vpop.permute.xlu0 %3837
      %3839 = vrot.lane.b32.xlu0 %v3749, 56
      %v3840 = vpop.permute.xlu0 %3839
      %3841 = vrot.lane.b32.xlu0 %v3750, 56
      %v3842 = vpop.permute.xlu0 %3841
      %3843 = vrot.lane.b32.xlu0 %v3751, 56
      %v3844 = vpop.permute.xlu0 %3843
      %3845 = vrot.lane.b32.xlu0 %v3752, 56
      %v3846 = vpop.permute.xlu0 %3845
      %3847 = vrot.lane.b32.xlu0 %v3753, 56
      %v3848 = vpop.permute.xlu0 %3847
      %3849 = vrot.lane.b32.xlu0 %v3754, 56
      %v3850 = vpop.permute.xlu0 %3849
      %vm3883 = vcmask 523712
      %3884 = vst.msk [vmem:[#allocation5] sm:$0xff] %vm3883, %v3788
      %3885 = vst.msk [vmem:[#allocation5 + $0x8] sm:$0xff] %vm3883, %v3790
      %3886 = vst.msk [vmem:[#allocation5 + $0x10] sm:$0xff] %vm3883, %v3792
      %3887 = vst.msk [vmem:[#allocation5 + $0x18] sm:$0xff] %vm3883, %v3794
      %3888 = vst.msk [vmem:[#allocation5 + $0x20] sm:$0xff] %vm3883, %v3796
      %3889 = vst.msk [vmem:[#allocation5 + $0x28] sm:$0xff] %vm3883, %v3798
      %3890 = vst.msk [vmem:[#allocation5 + $0x30] sm:$0xff] %vm3883, %v3800
      %3891 = vst.msk [vmem:[#allocation5 + $0x38] sm:$0xff] %vm3883, %v3802
      %3892 = vst.msk [vmem:[#allocation5 + $0x40] sm:$0xff] %vm3883, %v3804
      %3893 = vst.msk [vmem:[#allocation5 + $0x48] sm:$0xff] %vm3883, %v3806
      %3894 = vst.msk [vmem:[#allocation5 + $0x50] sm:$0xff] %vm3883, %v3808
      %3895 = vst.msk [vmem:[#allocation5 + $0x58] sm:$0xff] %vm3883, %v3810
      %3896 = vst.msk [vmem:[#allocation5 + $0x60] sm:$0xff] %vm3883, %v3812
      %3897 = vst.msk [vmem:[#allocation5 + $0x68] sm:$0xff] %vm3883, %v3814
      %3898 = vst.msk [vmem:[#allocation5 + $0x70] sm:$0xff] %vm3883, %v3816
      %3899 = vst.msk [vmem:[#allocation5 + $0x78] sm:$0xff] %vm3883, %v3818
      %3900 = vst.msk [vmem:[#allocation5 + $0x80] sm:$0xff] %vm3883, %v3820
      %3901 = vst.msk [vmem:[#allocation5 + $0x88] sm:$0xff] %vm3883, %v3822
      %3902 = vst.msk [vmem:[#allocation5 + $0x90] sm:$0xff] %vm3883, %v3824
      %3903 = vst.msk [vmem:[#allocation5 + $0x98] sm:$0xff] %vm3883, %v3826
      %3904 = vst.msk [vmem:[#allocation5 + $0xa0] sm:$0xff] %vm3883, %v3828
      %3905 = vst.msk [vmem:[#allocation5 + $0xa8] sm:$0xff] %vm3883, %v3830
      %3906 = vst.msk [vmem:[#allocation5 + $0xb0] sm:$0xff] %vm3883, %v3832
      %3907 = vst.msk [vmem:[#allocation5 + $0xb8] sm:$0xff] %vm3883, %v3834
      %3908 = vst.msk [vmem:[#allocation5 + $0xc0] sm:$0xff] %vm3883, %v3836
      %3909 = vst.msk [vmem:[#allocation5 + $0xc8] sm:$0xff] %vm3883, %v3838
      %3910 = vst.msk [vmem:[#allocation5 + $0xd0] sm:$0xff] %vm3883, %v3840
      %3911 = vst.msk [vmem:[#allocation5 + $0xd8] sm:$0xff] %vm3883, %v3842
      %3912 = vst.msk [vmem:[#allocation5 + $0xe0] sm:$0xff] %vm3883, %v3844
      %3913 = vst.msk [vmem:[#allocation5 + $0xe8] sm:$0xff] %vm3883, %v3846
      %3914 = vst.msk [vmem:[#allocation5 + $0xf0] sm:$0xff] %vm3883, %v3848
      %3915 = vst.msk [vmem:[#allocation5 + $0xf8] sm:$0xff] %vm3883, %v3850
      %v3916 = vld [vmem:[%s3529 + $0x2] sm:$0xff]
      %v3917 = vld [vmem:[%s3529 + $0xa] sm:$0xff]
      %v3918 = vld [vmem:[%s3529 + $0x1a] sm:$0xff]
      %v3919 = vld [vmem:[%s3529 + $0x22] sm:$0xff]
      %v3920 = vld [vmem:[%s3529 + $0x32] sm:$0xff]
      %v3921 = vld [vmem:[%s3529 + $0x3a] sm:$0xff]
      %v3922 = vld [vmem:[%s3529 + $0x4a] sm:$0xff]
      %v3923 = vld [vmem:[%s3529 + $0x52] sm:$0xff]
      %v3924 = vld [vmem:[%s3529 + $0x62] sm:$0xff]
      %v3925 = vld [vmem:[%s3529 + $0x6a] sm:$0xff]
      %v3926 = vld [vmem:[%s3529 + $0x7a] sm:$0xff]
      %v3927 = vld [vmem:[%s3529 + $0x82] sm:$0xff]
      %v3928 = vld [vmem:[%s3529 + $0x92] sm:$0xff]
      %v3929 = vld [vmem:[%s3529 + $0x9a] sm:$0xff]
      %v3930 = vld [vmem:[%s3529 + $0xaa] sm:$0xff]
      %v3931 = vld [vmem:[%s3529 + $0xb2] sm:$0xff]
      %v3932 = vld [vmem:[%s3529 + $0xc2] sm:$0xff]
      %v3933 = vld [vmem:[%s3529 + $0xca] sm:$0xff]
      %v3934 = vld [vmem:[%s3529 + $0xda] sm:$0xff]
      %v3935 = vld [vmem:[%s3529 + $0xe2] sm:$0xff]
      %v3936 = vld [vmem:[%s3529 + $0xf2] sm:$0xff]
      %v3937 = vld [vmem:[%s3529 + $0xfa] sm:$0xff]
      %v3938 = vld [vmem:[%s3529 + $0x10a] sm:$0xff]
      %v3939 = vld [vmem:[%s3529 + $0x112] sm:$0xff]
      %v3940 = vld [vmem:[%s3529 + $0x122] sm:$0xff]
      %v3941 = vld [vmem:[%s3529 + $0x12a] sm:$0xff]
      %v3942 = vld [vmem:[%s3529 + $0x13a] sm:$0xff]
      %v3943 = vld [vmem:[%s3529 + $0x142] sm:$0xff]
      %v3944 = vld [vmem:[%s3529 + $0x152] sm:$0xff]
      %v3945 = vld [vmem:[%s3529 + $0x15a] sm:$0xff]
      %v3946 = vld [vmem:[%s3529 + $0x16a] sm:$0xff]
      %v3947 = vld [vmem:[%s3529 + $0x172] sm:$0xff]
      %3980 = vrot.lane.b32.xlu0 %v3916, 64
      %v3981 = vpop.permute.xlu0 %3980
      %3982 = vrot.lane.b32.xlu0 %v3917, 64
      %v3983 = vpop.permute.xlu0 %3982
      %3984 = vrot.lane.b32.xlu0 %v3918, 64
      %v3985 = vpop.permute.xlu0 %3984
      %3986 = vrot.lane.b32.xlu0 %v3919, 64
      %v3987 = vpop.permute.xlu0 %3986
      %3988 = vrot.lane.b32.xlu0 %v3920, 64
      %v3989 = vpop.permute.xlu0 %3988
      %3990 = vrot.lane.b32.xlu0 %v3921, 64
      %v3991 = vpop.permute.xlu0 %3990
      %3992 = vrot.lane.b32.xlu0 %v3922, 64
      %v3993 = vpop.permute.xlu0 %3992
      %3994 = vrot.lane.b32.xlu0 %v3923, 64
      %v3995 = vpop.permute.xlu0 %3994
      %3996 = vrot.lane.b32.xlu0 %v3924, 64
      %v3997 = vpop.permute.xlu0 %3996
      %3998 = vrot.lane.b32.xlu0 %v3925, 64
      %v3999 = vpop.permute.xlu0 %3998
      %4000 = vrot.lane.b32.xlu0 %v3926, 64
      %v4001 = vpop.permute.xlu0 %4000
      %4002 = vrot.lane.b32.xlu0 %v3927, 64
      %v4003 = vpop.permute.xlu0 %4002
      %4004 = vrot.lane.b32.xlu0 %v3928, 64
      %v4005 = vpop.permute.xlu0 %4004
      %4006 = vrot.lane.b32.xlu0 %v3929, 64
      %v4007 = vpop.permute.xlu0 %4006
      %4008 = vrot.lane.b32.xlu0 %v3930, 64
      %v4009 = vpop.permute.xlu0 %4008
      %4010 = vrot.lane.b32.xlu0 %v3931, 64
      %v4011 = vpop.permute.xlu0 %4010
      %4012 = vrot.lane.b32.xlu0 %v3932, 64
      %v4013 = vpop.permute.xlu0 %4012
      %4014 = vrot.lane.b32.xlu0 %v3933, 64
      %v4015 = vpop.permute.xlu0 %4014
      %4016 = vrot.lane.b32.xlu0 %v3934, 64
      %v4017 = vpop.permute.xlu0 %4016
      %4018 = vrot.lane.b32.xlu0 %v3935, 64
      %v4019 = vpop.permute.xlu0 %4018
      %4020 = vrot.lane.b32.xlu0 %v3936, 64
      %v4021 = vpop.permute.xlu0 %4020
      %4022 = vrot.lane.b32.xlu0 %v3937, 64
      %v4023 = vpop.permute.xlu0 %4022
      %4024 = vrot.lane.b32.xlu0 %v3938, 64
      %v4025 = vpop.permute.xlu0 %4024
      %4026 = vrot.lane.b32.xlu0 %v3939, 64
      %v4027 = vpop.permute.xlu0 %4026
      %4028 = vrot.lane.b32.xlu0 %v3940, 64
      %v4029 = vpop.permute.xlu0 %4028
      %4030 = vrot.lane.b32.xlu0 %v3941, 64
      %v4031 = vpop.permute.xlu0 %4030
      %4032 = vrot.lane.b32.xlu0 %v3942, 64
      %v4033 = vpop.permute.xlu0 %4032
      %4034 = vrot.lane.b32.xlu0 %v3943, 64
      %v4035 = vpop.permute.xlu0 %4034
      %4036 = vrot.lane.b32.xlu0 %v3944, 64
      %v4037 = vpop.permute.xlu0 %4036
      %4038 = vrot.lane.b32.xlu0 %v3945, 64
      %v4039 = vpop.permute.xlu0 %4038
      %4040 = vrot.lane.b32.xlu0 %v3946, 64
      %v4041 = vpop.permute.xlu0 %4040
      %4042 = vrot.lane.b32.xlu0 %v3947, 64
      %v4043 = vpop.permute.xlu0 %4042
      %vm4076 = vcmask 589312
      %4077 = vst.msk [vmem:[#allocation5] sm:$0xff] %vm4076, %v3981
      %4078 = vst.msk [vmem:[#allocation5 + $0x8] sm:$0xff] %vm4076, %v3983
      %4079 = vst.msk [vmem:[#allocation5 + $0x10] sm:$0xff] %vm4076, %v3985
      %4080 = vst.msk [vmem:[#allocation5 + $0x18] sm:$0xff] %vm4076, %v3987
      %4081 = vst.msk [vmem:[#allocation5 + $0x20] sm:$0xff] %vm4076, %v3989
      %4082 = vst.msk [vmem:[#allocation5 + $0x28] sm:$0xff] %vm4076, %v3991
      %4083 = vst.msk [vmem:[#allocation5 + $0x30] sm:$0xff] %vm4076, %v3993
      %4084 = vst.msk [vmem:[#allocation5 + $0x38] sm:$0xff] %vm4076, %v3995
      %4085 = vst.msk [vmem:[#allocation5 + $0x40] sm:$0xff] %vm4076, %v3997
      %4086 = vst.msk [vmem:[#allocation5 + $0x48] sm:$0xff] %vm4076, %v3999
      %4087 = vst.msk [vmem:[#allocation5 + $0x50] sm:$0xff] %vm4076, %v4001
      %4088 = vst.msk [vmem:[#allocation5 + $0x58] sm:$0xff] %vm4076, %v4003
      %4089 = vst.msk [vmem:[#allocation5 + $0x60] sm:$0xff] %vm4076, %v4005
      %4090 = vst.msk [vmem:[#allocation5 + $0x68] sm:$0xff] %vm4076, %v4007
      %4091 = vst.msk [vmem:[#allocation5 + $0x70] sm:$0xff] %vm4076, %v4009
      %4092 = vst.msk [vmem:[#allocation5 + $0x78] sm:$0xff] %vm4076, %v4011
      %4093 = vst.msk [vmem:[#allocation5 + $0x80] sm:$0xff] %vm4076, %v4013
      %4094 = vst.msk [vmem:[#allocation5 + $0x88] sm:$0xff] %vm4076, %v4015
      %4095 = vst.msk [vmem:[#allocation5 + $0x90] sm:$0xff] %vm4076, %v4017
      %4096 = vst.msk [vmem:[#allocation5 + $0x98] sm:$0xff] %vm4076, %v4019
      %4097 = vst.msk [vmem:[#allocation5 + $0xa0] sm:$0xff] %vm4076, %v4021
      %4098 = vst.msk [vmem:[#allocation5 + $0xa8] sm:$0xff] %vm4076, %v4023
      %4099 = vst.msk [vmem:[#allocation5 + $0xb0] sm:$0xff] %vm4076, %v4025
      %4100 = vst.msk [vmem:[#allocation5 + $0xb8] sm:$0xff] %vm4076, %v4027
      %4101 = vst.msk [vmem:[#allocation5 + $0xc0] sm:$0xff] %vm4076, %v4029
      %4102 = vst.msk [vmem:[#allocation5 + $0xc8] sm:$0xff] %vm4076, %v4031
      %4103 = vst.msk [vmem:[#allocation5 + $0xd0] sm:$0xff] %vm4076, %v4033
      %4104 = vst.msk [vmem:[#allocation5 + $0xd8] sm:$0xff] %vm4076, %v4035
      %4105 = vst.msk [vmem:[#allocation5 + $0xe0] sm:$0xff] %vm4076, %v4037
      %4106 = vst.msk [vmem:[#allocation5 + $0xe8] sm:$0xff] %vm4076, %v4039
      %4107 = vst.msk [vmem:[#allocation5 + $0xf0] sm:$0xff] %vm4076, %v4041
      %4108 = vst.msk [vmem:[#allocation5 + $0xf8] sm:$0xff] %vm4076, %v4043
      %v4109 = vld [vmem:[#allocation5] sm:$0xff]
      %v4110 = vld [vmem:[#allocation5 + $0x8] sm:$0xff]
      %v4111 = vld [vmem:[#allocation5 + $0x10] sm:$0xff]
      %v4112 = vld [vmem:[#allocation5 + $0x18] sm:$0xff]
      %v4113 = vld [vmem:[#allocation5 + $0x20] sm:$0xff]
      %v4114 = vld [vmem:[#allocation5 + $0x28] sm:$0xff]
      %v4115 = vld [vmem:[#allocation5 + $0x30] sm:$0xff]
      %v4116 = vld [vmem:[#allocation5 + $0x38] sm:$0xff]
      %v4117 = vld [vmem:[#allocation5 + $0x40] sm:$0xff]
      %v4118 = vld [vmem:[#allocation5 + $0x48] sm:$0xff]
      %v4119 = vld [vmem:[#allocation5 + $0x50] sm:$0xff]
      %v4120 = vld [vmem:[#allocation5 + $0x58] sm:$0xff]
      %v4121 = vld [vmem:[#allocation5 + $0x60] sm:$0xff]
      %v4122 = vld [vmem:[#allocation5 + $0x68] sm:$0xff]
      %v4123 = vld [vmem:[#allocation5 + $0x70] sm:$0xff]
      %v4124 = vld [vmem:[#allocation5 + $0x78] sm:$0xff]
      %v4125 = vld [vmem:[#allocation5 + $0x80] sm:$0xff]
      %v4126 = vld [vmem:[#allocation5 + $0x88] sm:$0xff]
      %v4127 = vld [vmem:[#allocation5 + $0x90] sm:$0xff]
      %v4128 = vld [vmem:[#allocation5 + $0x98] sm:$0xff]
      %v4129 = vld [vmem:[#allocation5 + $0xa0] sm:$0xff]
      %v4130 = vld [vmem:[#allocation5 + $0xa8] sm:$0xff]
      %v4131 = vld [vmem:[#allocation5 + $0xb0] sm:$0xff]
      %v4132 = vld [vmem:[#allocation5 + $0xb8] sm:$0xff]
      %v4133 = vld [vmem:[#allocation5 + $0xc0] sm:$0xff]
      %v4134 = vld [vmem:[#allocation5 + $0xc8] sm:$0xff]
      %v4135 = vld [vmem:[#allocation5 + $0xd0] sm:$0xff]
      %v4136 = vld [vmem:[#allocation5 + $0xd8] sm:$0xff]
      %v4137 = vld [vmem:[#allocation5 + $0xe0] sm:$0xff]
      %v4138 = vld [vmem:[#allocation5 + $0xe8] sm:$0xff]
      %v4139 = vld [vmem:[#allocation5 + $0xf0] sm:$0xff]
      %v4140 = vld [vmem:[#allocation5 + $0xf8] sm:$0xff]
      %v4141 = vld [vmem:[%s3] sm:$0xff]
      %v4142 = vld [vmem:[%s3 + $0x8] sm:$0xff]
      %v4143 = vld [vmem:[%s3 + $0x10] sm:$0xff]
      %v4144 = vld [vmem:[%s3 + $0x18] sm:$0xff]
      %v4145 = vld [vmem:[%s3 + $0x20] sm:$0xff]
      %v4146 = vld [vmem:[%s3 + $0x28] sm:$0xff]
      %v4147 = vld [vmem:[%s3 + $0x30] sm:$0xff]
      %v4148 = vld [vmem:[%s3 + $0x38] sm:$0xff]
      %v4149 = vld [vmem:[%s3 + $0x40] sm:$0xff]
      %v4150 = vld [vmem:[%s4] sm:$0x1]
      %v4152 = vlaneseq
      %v4153 = vshrl.u32 %v4152, 7
      %v4154 = vsub.s32 0, %v4153
      %v4155 = vrot.slane %v4150, %v4154
      %vm4157 = vcmask 588800
      %v4159 = vsel %vm4157, %v4109, 0
      %v4162 = vsel %vm4157, %v4110, 0
      %v4165 = vsel %vm4157, %v4111, 0
      %v4168 = vsel %vm4157, %v4112, 0
      %v4171 = vsel %vm4157, %v4113, 0
      %v4174 = vsel %vm4157, %v4114, 0
      %v4177 = vsel %vm4157, %v4115, 0
      %v4180 = vsel %vm4157, %v4116, 0
      %v4183 = vsel %vm4157, %v4117, 0
      %v4186 = vsel %vm4157, %v4118, 0
      %v4189 = vsel %vm4157, %v4119, 0
      %v4192 = vsel %vm4157, %v4120, 0
      %v4195 = vsel %vm4157, %v4121, 0
      %v4198 = vsel %vm4157, %v4122, 0
      %v4201 = vsel %vm4157, %v4123, 0
      %v4204 = vsel %vm4157, %v4124, 0
      %v4207 = vsel %vm4157, %v4125, 0
      %v4210 = vsel %vm4157, %v4126, 0
      %v4213 = vsel %vm4157, %v4127, 0
      %v4216 = vsel %vm4157, %v4128, 0
      %v4219 = vsel %vm4157, %v4129, 0
      %v4222 = vsel %vm4157, %v4130, 0
      %v4225 = vsel %vm4157, %v4131, 0
      %v4228 = vsel %vm4157, %v4132, 0
      %v4231 = vsel %vm4157, %v4133, 0
      %v4234 = vsel %vm4157, %v4134, 0
      %v4237 = vsel %vm4157, %v4135, 0
      %v4240 = vsel %vm4157, %v4136, 0
      %v4243 = vsel %vm4157, %v4137, 0
      %v4246 = vsel %vm4157, %v4138, 0
      %v4249 = vsel %vm4157, %v4139, 0
      %v4252 = vsel %vm4157, %v4140, 0
      %4254 = vmatprep.subr.mxu0 0.0
      %4255 = vmatpush1.msra.mxu0 %v4141
      %4256 = vmatprep.subr.mxu0 0.0
      %4257 = vmatpush1.msra.mxu0 %v4142
      %4258 = vmatprep.subr.mxu0 0.0
      %4259 = vmatpush1.msra.mxu0 %v4143
      %4260 = vmatprep.subr.mxu0 0.0
      %4261 = vmatpush1.msra.mxu0 %v4144
      %4262 = vmatprep.subr.mxu0 0.0
      %4263 = vmatpush1.msra.mxu0 %v4145
      %4264 = vmatprep.subr.mxu0 0.0
      %4265 = vmatpush1.msra.mxu0 %v4146
      %4266 = vmatprep.subr.mxu0 0.0
      %4267 = vmatpush1.msra.mxu0 %v4147
      %4268 = vmatprep.subr.mxu0 0.0
      %4269 = vmatpush1.msra.mxu0 %v4148
      %4270 = vmatprep.subr.mxu0 0.0
      %4271 = vmatpush1.msra.mxu0 %v4149
      %4272 = vmatprep.subr.mxu0 0.0
      %4273 = vmatpush1.msra.mxu0 0.0
      %4274 = vmatprep.subr.mxu0 0.0
      %4275 = vmatpush1.msra.mxu0 0.0
      %4276 = vmatprep.subr.mxu0 0.0
      %4277 = vmatpush1.msra.mxu0 0.0
      %4278 = vmatprep.subr.mxu0 0.0
      %4279 = vmatpush1.msra.mxu0 0.0
      %4280 = vmatprep.subr.mxu0 0.0
      %4281 = vmatpush1.msra.mxu0 0.0
      %4282 = vmatprep.subr.mxu0 0.0
      %4283 = vmatpush1.msra.mxu0 0.0
      %4284 = vmatprep.subr.mxu0 0.0
      %4285 = vmatpush1.msra.mxu0 0.0
      %4286 = vmatprep.subr.mxu0 0.0
      %4287 = vmatpush1.msra.mxu0 0.0
      %4288 = vmatprep.subr.mxu0 0.0
      %4289 = vmatpush1.msra.mxu0 0.0
      %4290 = vmatprep.subr.mxu0 0.0
      %4291 = vmatpush1.msra.mxu0 0.0
      %4292 = vmatprep.subr.mxu0 0.0
      %4293 = vmatpush1.msra.mxu0 0.0
      %4294 = vmatprep.subr.mxu0 0.0
      %4295 = vmatpush1.msra.mxu0 0.0
      %4296 = vmatprep.subr.mxu0 0.0
      %4297 = vmatpush1.msra.mxu0 0.0
      %4298 = vmatprep.subr.mxu0 0.0
      %4299 = vmatpush1.msra.mxu0 0.0
      %4300 = vmatprep.subr.mxu0 0.0
      %4301 = vmatpush1.msra.mxu0 0.0
      %4302 = vmatprep.subr.mxu0 0.0
      %4303 = vmatpush1.msra.mxu0 0.0
      %4304 = vmatprep.subr.mxu0 0.0
      %4305 = vmatpush1.msra.mxu0 0.0
      %4306 = vmatprep.subr.mxu0 0.0
      %4307 = vmatpush1.msra.mxu0 0.0
      %4308 = vmatprep.subr.mxu0 0.0
      %4309 = vmatpush1.msra.mxu0 0.0
      %4310 = vmatprep.subr.mxu0 0.0
      %4311 = vmatpush1.msra.mxu0 0.0
      %4312 = vmatprep.subr.mxu0 0.0
      %4313 = vmatpush1.msra.mxu0 0.0
      %4314 = vmatprep.subr.mxu0 0.0
      %4315 = vmatpush1.msra.mxu0 0.0
      %4316 = vmatprep.subr.mxu0 0.0
      %4317 = vmatpush1.msra.mxu0 0.0
      %4318 = vmatprep.mubr.f32.mxu0 0.0
      %4319 = vmatmul.mubr.f32.gmra.mrb[0].mxu0 %v4159
      %v4320 = vpop.f32.mrb[0].mxu0
      %v4321 = vadd.f32 %v4155, %v4320
      %v4322 = vpop.f32.mrb[0].mxu0
      %4323 = vmatprep.mubr.f32.mxu0 0.0
      %4324 = vmatmul.mubr.f32.gmra.mrb[0].mxu0 %v4162
      %v4325 = vpop.f32.mrb[0].mxu0
      %v4326 = vadd.f32 %v4155, %v4325
      %v4327 = vpop.f32.mrb[0].mxu0
      %4328 = vmatprep.mubr.f32.mxu0 0.0
      %4329 = vmatmul.mubr.f32.gmra.mrb[0].mxu0 %v4165
      %v4330 = vpop.f32.mrb[0].mxu0
      %v4331 = vadd.f32 %v4155, %v4330
      %v4332 = vpop.f32.mrb[0].mxu0
      %4333 = vmatprep.mubr.f32.mxu0 0.0
      %4334 = vmatmul.mubr.f32.gmra.mrb[0].mxu0 %v4168
      %v4335 = vpop.f32.mrb[0].mxu0
      %v4336 = vadd.f32 %v4155, %v4335
      %v4337 = vpop.f32.mrb[0].mxu0
      %4338 = vmatprep.mubr.f32.mxu0 0.0
      %4339 = vmatmul.mubr.f32.gmra.mrb[0].mxu0 %v4171
      %v4340 = vpop.f32.mrb[0].mxu0
      %v4341 = vadd.f32 %v4155, %v4340
      %v4342 = vpop.f32.mrb[0].mxu0
      %4343 = vmatprep.mubr.f32.mxu0 0.0
      %4344 = vmatmul.mubr.f32.gmra.mrb[0].mxu0 %v4174
      %v4345 = vpop.f32.mrb[0].mxu0
      %v4346 = vadd.f32 %v4155, %v4345
      %v4347 = vpop.f32.mrb[0].mxu0
      %4348 = vmatprep.mubr.f32.mxu0 0.0
      %4349 = vmatmul.mubr.f32.gmra.mrb[0].mxu0 %v4177
      %v4350 = vpop.f32.mrb[0].mxu0
      %v4351 = vadd.f32 %v4155, %v4350
      %v4352 = vpop.f32.mrb[0].mxu0
      %4353 = vmatprep.mubr.f32.mxu0 0.0
      %4354 = vmatmul.mubr.f32.gmra.mrb[0].mxu0 %v4180
      %v4355 = vpop.f32.mrb[0].mxu0
      %v4356 = vadd.f32 %v4155, %v4355
      %v4357 = vpop.f32.mrb[0].mxu0
      %4358 = vmatprep.mubr.f32.mxu0 0.0
      %4359 = vmatmul.mubr.f32.gmra.mrb[0].mxu0 %v4183
      %v4360 = vpop.f32.mrb[0].mxu0
      %v4361 = vadd.f32 %v4155, %v4360
      %v4362 = vpop.f32.mrb[0].mxu0
      %4363 = vmatprep.mubr.f32.mxu0 0.0
      %4364 = vmatmul.mubr.f32.gmra.mrb[0].mxu0 %v4186
      %v4365 = vpop.f32.mrb[0].mxu0
      %v4366 = vadd.f32 %v4155, %v4365
      %v4367 = vpop.f32.mrb[0].mxu0
      %4368 = vmatprep.mubr.f32.mxu0 0.0
      %4369 = vmatmul.mubr.f32.gmra.mrb[0].mxu0 %v4189
      %v4370 = vpop.f32.mrb[0].mxu0
      %v4371 = vadd.f32 %v4155, %v4370
      %v4372 = vpop.f32.mrb[0].mxu0
      %4373 = vmatprep.mubr.f32.mxu0 0.0
      %4374 = vmatmul.mubr.f32.gmra.mrb[0].mxu0 %v4192
      %v4375 = vpop.f32.mrb[0].mxu0
      %v4376 = vadd.f32 %v4155, %v4375
      %v4377 = vpop.f32.mrb[0].mxu0
      %4378 = vmatprep.mubr.f32.mxu0 0.0
      %4379 = vmatmul.mubr.f32.gmra.mrb[0].mxu0 %v4195
      %v4380 = vpop.f32.mrb[0].mxu0
      %v4381 = vadd.f32 %v4155, %v4380
      %v4382 = vpop.f32.mrb[0].mxu0
      %4383 = vmatprep.mubr.f32.mxu0 0.0
      %4384 = vmatmul.mubr.f32.gmra.mrb[0].mxu0 %v4198
      %v4385 = vpop.f32.mrb[0].mxu0
      %v4386 = vadd.f32 %v4155, %v4385
      %v4387 = vpop.f32.mrb[0].mxu0
      %4388 = vmatprep.mubr.f32.mxu0 0.0
      %4389 = vmatmul.mubr.f32.gmra.mrb[0].mxu0 %v4201
      %v4390 = vpop.f32.mrb[0].mxu0
      %v4391 = vadd.f32 %v4155, %v4390
      %v4392 = vpop.f32.mrb[0].mxu0
      %4393 = vmatprep.mubr.f32.mxu0 0.0
      %4394 = vmatmul.mubr.f32.gmra.mrb[0].mxu0 %v4204
      %v4395 = vpop.f32.mrb[0].mxu0
      %v4396 = vadd.f32 %v4155, %v4395
      %v4397 = vpop.f32.mrb[0].mxu0
      %4398 = vmatprep.mubr.f32.mxu0 0.0
      %4399 = vmatmul.mubr.f32.gmra.mrb[0].mxu0 %v4207
      %v4400 = vpop.f32.mrb[0].mxu0
      %v4401 = vadd.f32 %v4155, %v4400
      %v4402 = vpop.f32.mrb[0].mxu0
      %4403 = vmatprep.mubr.f32.mxu0 0.0
      %4404 = vmatmul.mubr.f32.gmra.mrb[0].mxu0 %v4210
      %v4405 = vpop.f32.mrb[0].mxu0
      %v4406 = vadd.f32 %v4155, %v4405
      %v4407 = vpop.f32.mrb[0].mxu0
      %4408 = vmatprep.mubr.f32.mxu0 0.0
      %4409 = vmatmul.mubr.f32.gmra.mrb[0].mxu0 %v4213
      %v4410 = vpop.f32.mrb[0].mxu0
      %v4411 = vadd.f32 %v4155, %v4410
      %v4412 = vpop.f32.mrb[0].mxu0
      %4413 = vmatprep.mubr.f32.mxu0 0.0
      %4414 = vmatmul.mubr.f32.gmra.mrb[0].mxu0 %v4216
      %v4415 = vpop.f32.mrb[0].mxu0
      %v4416 = vadd.f32 %v4155, %v4415
      %v4417 = vpop.f32.mrb[0].mxu0
      %4418 = vmatprep.mubr.f32.mxu0 0.0
      %4419 = vmatmul.mubr.f32.gmra.mrb[0].mxu0 %v4219
      %v4420 = vpop.f32.mrb[0].mxu0
      %v4421 = vadd.f32 %v4155, %v4420
      %v4422 = vpop.f32.mrb[0].mxu0
      %4423 = vmatprep.mubr.f32.mxu0 0.0
      %4424 = vmatmul.mubr.f32.gmra.mrb[0].mxu0 %v4222
      %v4425 = vpop.f32.mrb[0].mxu0
      %v4426 = vadd.f32 %v4155, %v4425
      %v4427 = vpop.f32.mrb[0].mxu0
      %4428 = vmatprep.mubr.f32.mxu0 0.0
      %4429 = vmatmul.mubr.f32.gmra.mrb[0].mxu0 %v4225
      %v4430 = vpop.f32.mrb[0].mxu0
      %v4431 = vadd.f32 %v4155, %v4430
      %v4432 = vpop.f32.mrb[0].mxu0
      %4433 = vmatprep.mubr.f32.mxu0 0.0
      %4434 = vmatmul.mubr.f32.gmra.mrb[0].mxu0 %v4228
      %v4435 = vpop.f32.mrb[0].mxu0
      %v4436 = vadd.f32 %v4155, %v4435
      %v4437 = vpop.f32.mrb[0].mxu0
      %4438 = vmatprep.mubr.f32.mxu0 0.0
      %4439 = vmatmul.mubr.f32.gmra.mrb[0].mxu0 %v4231
      %v4440 = vpop.f32.mrb[0].mxu0
      %v4441 = vadd.f32 %v4155, %v4440
      %v4442 = vpop.f32.mrb[0].mxu0
      %4443 = vmatprep.mubr.f32.mxu0 0.0
      %4444 = vmatmul.mubr.f32.gmra.mrb[0].mxu0 %v4234
      %v4445 = vpop.f32.mrb[0].mxu0
      %v4446 = vadd.f32 %v4155, %v4445
      %v4447 = vpop.f32.mrb[0].mxu0
      %4448 = vmatprep.mubr.f32.mxu0 0.0
      %4449 = vmatmul.mubr.f32.gmra.mrb[0].mxu0 %v4237
      %v4450 = vpop.f32.mrb[0].mxu0
      %v4451 = vadd.f32 %v4155, %v4450
      %v4452 = vpop.f32.mrb[0].mxu0
      %4453 = vmatprep.mubr.f32.mxu0 0.0
      %4454 = vmatmul.mubr.f32.gmra.mrb[0].mxu0 %v4240
      %v4455 = vpop.f32.mrb[0].mxu0
      %v4456 = vadd.f32 %v4155, %v4455
      %v4457 = vpop.f32.mrb[0].mxu0
      %4458 = vmatprep.mubr.f32.mxu0 0.0
      %4459 = vmatmul.mubr.f32.gmra.mrb[0].mxu0 %v4243
      %v4460 = vpop.f32.mrb[0].mxu0
      %v4461 = vadd.f32 %v4155, %v4460
      %v4462 = vpop.f32.mrb[0].mxu0
      %4463 = vmatprep.mubr.f32.mxu0 0.0
      %4464 = vmatmul.mubr.f32.gmra.mrb[0].mxu0 %v4246
      %v4465 = vpop.f32.mrb[0].mxu0
      %v4466 = vadd.f32 %v4155, %v4465
      %v4467 = vpop.f32.mrb[0].mxu0
      %4468 = vmatprep.mubr.f32.mxu0 0.0
      %4469 = vmatmul.mubr.f32.gmra.mrb[0].mxu0 %v4249
      %v4470 = vpop.f32.mrb[0].mxu0
      %v4471 = vadd.f32 %v4155, %v4470
      %v4472 = vpop.f32.mrb[0].mxu0
      %4473 = vmatprep.mubr.f32.mxu0 0.0
      %4474 = vmatmul.mubr.f32.gmra.mrb[0].mxu0 %v4252
      %v4475 = vpop.f32.mrb[0].mxu0
      %v4476 = vadd.f32 %v4155, %v4475
      %v4477 = vpop.f32.mrb[0].mxu0
      %4478 = vdwg.mxu0
      %v4479 = vmax.f32 %v4321, 0.0
      %v4480 = vmax.f32 %v4326, 0.0
      %v4481 = vmax.f32 %v4331, 0.0
      %v4482 = vmax.f32 %v4336, 0.0
      %v4483 = vmax.f32 %v4341, 0.0
      %v4484 = vmax.f32 %v4346, 0.0
      %v4485 = vmax.f32 %v4351, 0.0
      %v4486 = vmax.f32 %v4356, 0.0
      %v4487 = vmax.f32 %v4361, 0.0
      %v4488 = vmax.f32 %v4366, 0.0
      %v4489 = vmax.f32 %v4371, 0.0
      %v4490 = vmax.f32 %v4376, 0.0
      %v4491 = vmax.f32 %v4381, 0.0
      %v4492 = vmax.f32 %v4386, 0.0
      %v4493 = vmax.f32 %v4391, 0.0
      %v4494 = vmax.f32 %v4396, 0.0
      %v4495 = vmax.f32 %v4401, 0.0
      %v4496 = vmax.f32 %v4406, 0.0
      %v4497 = vmax.f32 %v4411, 0.0
      %v4498 = vmax.f32 %v4416, 0.0
      %v4499 = vmax.f32 %v4421, 0.0
      %v4500 = vmax.f32 %v4426, 0.0
      %v4501 = vmax.f32 %v4431, 0.0
      %v4502 = vmax.f32 %v4436, 0.0
      %v4503 = vmax.f32 %v4441, 0.0
      %v4504 = vmax.f32 %v4446, 0.0
      %v4505 = vmax.f32 %v4451, 0.0
      %v4506 = vmax.f32 %v4456, 0.0
      %v4507 = vmax.f32 %v4461, 0.0
      %v4508 = vmax.f32 %v4466, 0.0
      %v4509 = vmax.f32 %v4471, 0.0
      %v4510 = vmax.f32 %v4476, 0.0
      %4511 = vst.msk [vmem:[%s2467 + $0x1] sm:$0xff] %vm335, %v4479
      %4512 = vst.msk [vmem:[%s2467 + $0x9] sm:$0xff] %vm335, %v4480
      %4513 = vst.msk [vmem:[%s2467 + $0x19] sm:$0xff] %vm335, %v4481
      %4514 = vst.msk [vmem:[%s2467 + $0x21] sm:$0xff] %vm335, %v4482
      %4515 = vst.msk [vmem:[%s2467 + $0x31] sm:$0xff] %vm335, %v4483
      %4516 = vst.msk [vmem:[%s2467 + $0x39] sm:$0xff] %vm335, %v4484
      %4517 = vst.msk [vmem:[%s2467 + $0x49] sm:$0xff] %vm335, %v4485
      %4518 = vst.msk [vmem:[%s2467 + $0x51] sm:$0xff] %vm335, %v4486
      %4519 = vst.msk [vmem:[%s2467 + $0x61] sm:$0xff] %vm335, %v4487
      %4520 = vst.msk [vmem:[%s2467 + $0x69] sm:$0xff] %vm335, %v4488
      %4521 = vst.msk [vmem:[%s2467 + $0x79] sm:$0xff] %vm335, %v4489
      %4522 = vst.msk [vmem:[%s2467 + $0x81] sm:$0xff] %vm335, %v4490
      %4523 = vst.msk [vmem:[%s2467 + $0x91] sm:$0xff] %vm335, %v4491
      %4524 = vst.msk [vmem:[%s2467 + $0x99] sm:$0xff] %vm335, %v4492
      %4525 = vst.msk [vmem:[%s2467 + $0xa9] sm:$0xff] %vm335, %v4493
      %4526 = vst.msk [vmem:[%s2467 + $0xb1] sm:$0xff] %vm335, %v4494
      %4527 = vst.msk [vmem:[%s2467 + $0xc1] sm:$0xff] %vm335, %v4495
      %4528 = vst.msk [vmem:[%s2467 + $0xc9] sm:$0xff] %vm335, %v4496
      %4529 = vst.msk [vmem:[%s2467 + $0xd9] sm:$0xff] %vm335, %v4497
      %4530 = vst.msk [vmem:[%s2467 + $0xe1] sm:$0xff] %vm335, %v4498
      %4531 = vst.msk [vmem:[%s2467 + $0xf1] sm:$0xff] %vm335, %v4499
      %4532 = vst.msk [vmem:[%s2467 + $0xf9] sm:$0xff] %vm335, %v4500
      %4533 = vst.msk [vmem:[%s2467 + $0x109] sm:$0xff] %vm335, %v4501
      %4534 = vst.msk [vmem:[%s2467 + $0x111] sm:$0xff] %vm335, %v4502
      %4535 = vst.msk [vmem:[%s2467 + $0x121] sm:$0xff] %vm335, %v4503
      %4536 = vst.msk [vmem:[%s2467 + $0x129] sm:$0xff] %vm335, %v4504
      %4537 = vst.msk [vmem:[%s2467 + $0x139] sm:$0xff] %vm335, %v4505
      %4538 = vst.msk [vmem:[%s2467 + $0x141] sm:$0xff] %vm335, %v4506
      %4539 = vst.msk [vmem:[%s2467 + $0x151] sm:$0xff] %vm335, %v4507
      %4540 = vst.msk [vmem:[%s2467 + $0x159] sm:$0xff] %vm335, %v4508
      %4541 = vst.msk [vmem:[%s2467 + $0x169] sm:$0xff] %vm335, %v4509
      %4542 = vst.msk [vmem:[%s2467 + $0x171] sm:$0xff] %vm335, %v4510
      %v4543 = vld [vmem:[#allocation3] sm:$0xff]
      %v4544 = vld [vmem:[#allocation3 + $0x8] sm:$0xff]
      %v4545 = vld [vmem:[#allocation3 + $0x18] sm:$0xff]
      %v4546 = vld [vmem:[#allocation3 + $0x20] sm:$0xff]
      %v4547 = vld [vmem:[#allocation3 + $0x30] sm:$0xff]
      %v4548 = vld [vmem:[#allocation3 + $0x38] sm:$0xff]
      %v4549 = vld [vmem:[#allocation3 + $0x48] sm:$0xff]
      %v4550 = vld [vmem:[#allocation3 + $0x50] sm:$0xff]
      %v4551 = vld [vmem:[#allocation3 + $0x60] sm:$0xff]
      %v4552 = vld [vmem:[#allocation3 + $0x68] sm:$0xff]
      %v4553 = vld [vmem:[#allocation3 + $0x78] sm:$0xff]
      %v4554 = vld [vmem:[#allocation3 + $0x80] sm:$0xff]
      %v4555 = vld [vmem:[#allocation3 + $0x90] sm:$0xff]
      %v4556 = vld [vmem:[#allocation3 + $0x98] sm:$0xff]
      %v4557 = vld [vmem:[#allocation3 + $0xa8] sm:$0xff]
      %v4558 = vld [vmem:[#allocation3 + $0xb0] sm:$0xff]
      %v4559 = vld [vmem:[#allocation3 + $0xc0] sm:$0xff]
      %v4560 = vld [vmem:[#allocation3 + $0xc8] sm:$0xff]
      %v4561 = vld [vmem:[#allocation3 + $0xd8] sm:$0xff]
      %v4562 = vld [vmem:[#allocation3 + $0xe0] sm:$0xff]
      %v4563 = vld [vmem:[#allocation3 + $0xf0] sm:$0xff]
      %v4564 = vld [vmem:[#allocation3 + $0xf8] sm:$0xff]
      %v4565 = vld [vmem:[#allocation3 + $0x108] sm:$0xff]
      %v4566 = vld [vmem:[#allocation3 + $0x110] sm:$0xff]
      %v4567 = vld [vmem:[#allocation3 + $0x120] sm:$0xff]
      %v4568 = vld [vmem:[#allocation3 + $0x128] sm:$0xff]
      %v4569 = vld [vmem:[#allocation3 + $0x138] sm:$0xff]
      %v4570 = vld [vmem:[#allocation3 + $0x140] sm:$0xff]
      %v4571 = vld [vmem:[#allocation3 + $0x150] sm:$0xff]
      %v4572 = vld [vmem:[#allocation3 + $0x158] sm:$0xff]
      %v4573 = vld [vmem:[#allocation3 + $0x168] sm:$0xff]
      %v4574 = vld [vmem:[#allocation3 + $0x170] sm:$0xff]
      %4575 = vst.msk [vmem:[#allocation5] sm:$0xff] %vm335, %v4543
      %4576 = vst.msk [vmem:[#allocation5 + $0x8] sm:$0xff] %vm335, %v4544
      %4577 = vst.msk [vmem:[#allocation5 + $0x10] sm:$0xff] %vm335, %v4545
      %4578 = vst.msk [vmem:[#allocation5 + $0x18] sm:$0xff] %vm335, %v4546
      %4579 = vst.msk [vmem:[#allocation5 + $0x20] sm:$0xff] %vm335, %v4547
      %4580 = vst.msk [vmem:[#allocation5 + $0x28] sm:$0xff] %vm335, %v4548
      %4581 = vst.msk [vmem:[#allocation5 + $0x30] sm:$0xff] %vm335, %v4549
      %4582 = vst.msk [vmem:[#allocation5 + $0x38] sm:$0xff] %vm335, %v4550
      %4583 = vst.msk [vmem:[#allocation5 + $0x40] sm:$0xff] %vm335, %v4551
      %4584 = vst.msk [vmem:[#allocation5 + $0x48] sm:$0xff] %vm335, %v4552
      %4585 = vst.msk [vmem:[#allocation5 + $0x50] sm:$0xff] %vm335, %v4553
      %4586 = vst.msk [vmem:[#allocation5 + $0x58] sm:$0xff] %vm335, %v4554
      %4587 = vst.msk [vmem:[#allocation5 + $0x60] sm:$0xff] %vm335, %v4555
      %4588 = vst.msk [vmem:[#allocation5 + $0x68] sm:$0xff] %vm335, %v4556
      %4589 = vst.msk [vmem:[#allocation5 + $0x70] sm:$0xff] %vm335, %v4557
      %4590 = vst.msk [vmem:[#allocation5 + $0x78] sm:$0xff] %vm335, %v4558
      %4591 = vst.msk [vmem:[#allocation5 + $0x80] sm:$0xff] %vm335, %v4559
      %4592 = vst.msk [vmem:[#allocation5 + $0x88] sm:$0xff] %vm335, %v4560
      %4593 = vst.msk [vmem:[#allocation5 + $0x90] sm:$0xff] %vm335, %v4561
      %4594 = vst.msk [vmem:[#allocation5 + $0x98] sm:$0xff] %vm335, %v4562
      %4595 = vst.msk [vmem:[#allocation5 + $0xa0] sm:$0xff] %vm335, %v4563
      %4596 = vst.msk [vmem:[#allocation5 + $0xa8] sm:$0xff] %vm335, %v4564
      %4597 = vst.msk [vmem:[#allocation5 + $0xb0] sm:$0xff] %vm335, %v4565
      %4598 = vst.msk [vmem:[#allocation5 + $0xb8] sm:$0xff] %vm335, %v4566
      %4599 = vst.msk [vmem:[#allocation5 + $0xc0] sm:$0xff] %vm335, %v4567
      %4600 = vst.msk [vmem:[#allocation5 + $0xc8] sm:$0xff] %vm335, %v4568
      %4601 = vst.msk [vmem:[#allocation5 + $0xd0] sm:$0xff] %vm335, %v4569
      %4602 = vst.msk [vmem:[#allocation5 + $0xd8] sm:$0xff] %vm335, %v4570
      %4603 = vst.msk [vmem:[#allocation5 + $0xe0] sm:$0xff] %vm335, %v4571
      %4604 = vst.msk [vmem:[#allocation5 + $0xe8] sm:$0xff] %vm335, %v4572
      %4605 = vst.msk [vmem:[#allocation5 + $0xf0] sm:$0xff] %vm335, %v4573
      %4606 = vst.msk [vmem:[#allocation5 + $0xf8] sm:$0xff] %vm335, %v4574
      %v4607 = vld [vmem:[#allocation3 + $0x1] sm:$0xff]
      %v4608 = vld [vmem:[#allocation3 + $0x9] sm:$0xff]
      %v4609 = vld [vmem:[#allocation3 + $0x19] sm:$0xff]
      %v4610 = vld [vmem:[#allocation3 + $0x21] sm:$0xff]
      %v4611 = vld [vmem:[#allocation3 + $0x31] sm:$0xff]
      %v4612 = vld [vmem:[#allocation3 + $0x39] sm:$0xff]
      %v4613 = vld [vmem:[#allocation3 + $0x49] sm:$0xff]
      %v4614 = vld [vmem:[#allocation3 + $0x51] sm:$0xff]
      %v4615 = vld [vmem:[#allocation3 + $0x61] sm:$0xff]
      %v4616 = vld [vmem:[#allocation3 + $0x69] sm:$0xff]
      %v4617 = vld [vmem:[#allocation3 + $0x79] sm:$0xff]
      %v4618 = vld [vmem:[#allocation3 + $0x81] sm:$0xff]
      %v4619 = vld [vmem:[#allocation3 + $0x91] sm:$0xff]
      %v4620 = vld [vmem:[#allocation3 + $0x99] sm:$0xff]
      %v4621 = vld [vmem:[#allocation3 + $0xa9] sm:$0xff]
      %v4622 = vld [vmem:[#allocation3 + $0xb1] sm:$0xff]
      %v4623 = vld [vmem:[#allocation3 + $0xc1] sm:$0xff]
      %v4624 = vld [vmem:[#allocation3 + $0xc9] sm:$0xff]
      %v4625 = vld [vmem:[#allocation3 + $0xd9] sm:$0xff]
      %v4626 = vld [vmem:[#allocation3 + $0xe1] sm:$0xff]
      %v4627 = vld [vmem:[#allocation3 + $0xf1] sm:$0xff]
      %v4628 = vld [vmem:[#allocation3 + $0xf9] sm:$0xff]
      %v4629 = vld [vmem:[#allocation3 + $0x109] sm:$0xff]
      %v4630 = vld [vmem:[#allocation3 + $0x111] sm:$0xff]
      %v4631 = vld [vmem:[#allocation3 + $0x121] sm:$0xff]
      %v4632 = vld [vmem:[#allocation3 + $0x129] sm:$0xff]
      %v4633 = vld [vmem:[#allocation3 + $0x139] sm:$0xff]
      %v4634 = vld [vmem:[#allocation3 + $0x141] sm:$0xff]
      %v4635 = vld [vmem:[#allocation3 + $0x151] sm:$0xff]
      %v4636 = vld [vmem:[#allocation3 + $0x159] sm:$0xff]
      %v4637 = vld [vmem:[#allocation3 + $0x169] sm:$0xff]
      %v4638 = vld [vmem:[#allocation3 + $0x171] sm:$0xff]
      %4671 = vrot.lane.b32.xlu0 %v4607, 8
      %v4672 = vpop.permute.xlu0 %4671
      %4673 = vrot.lane.b32.xlu0 %v4608, 8
      %v4674 = vpop.permute.xlu0 %4673
      %4675 = vrot.lane.b32.xlu0 %v4609, 8
      %v4676 = vpop.permute.xlu0 %4675
      %4677 = vrot.lane.b32.xlu0 %v4610, 8
      %v4678 = vpop.permute.xlu0 %4677
      %4679 = vrot.lane.b32.xlu0 %v4611, 8
      %v4680 = vpop.permute.xlu0 %4679
      %4681 = vrot.lane.b32.xlu0 %v4612, 8
      %v4682 = vpop.permute.xlu0 %4681
      %4683 = vrot.lane.b32.xlu0 %v4613, 8
      %v4684 = vpop.permute.xlu0 %4683
      %4685 = vrot.lane.b32.xlu0 %v4614, 8
      %v4686 = vpop.permute.xlu0 %4685
      %4687 = vrot.lane.b32.xlu0 %v4615, 8
      %v4688 = vpop.permute.xlu0 %4687
      %4689 = vrot.lane.b32.xlu0 %v4616, 8
      %v4690 = vpop.permute.xlu0 %4689
      %4691 = vrot.lane.b32.xlu0 %v4617, 8
      %v4692 = vpop.permute.xlu0 %4691
      %4693 = vrot.lane.b32.xlu0 %v4618, 8
      %v4694 = vpop.permute.xlu0 %4693
      %4695 = vrot.lane.b32.xlu0 %v4619, 8
      %v4696 = vpop.permute.xlu0 %4695
      %4697 = vrot.lane.b32.xlu0 %v4620, 8
      %v4698 = vpop.permute.xlu0 %4697
      %4699 = vrot.lane.b32.xlu0 %v4621, 8
      %v4700 = vpop.permute.xlu0 %4699
      %4701 = vrot.lane.b32.xlu0 %v4622, 8
      %v4702 = vpop.permute.xlu0 %4701
      %4703 = vrot.lane.b32.xlu0 %v4623, 8
      %v4704 = vpop.permute.xlu0 %4703
      %4705 = vrot.lane.b32.xlu0 %v4624, 8
      %v4706 = vpop.permute.xlu0 %4705
      %4707 = vrot.lane.b32.xlu0 %v4625, 8
      %v4708 = vpop.permute.xlu0 %4707
      %4709 = vrot.lane.b32.xlu0 %v4626, 8
      %v4710 = vpop.permute.xlu0 %4709
      %4711 = vrot.lane.b32.xlu0 %v4627, 8
      %v4712 = vpop.permute.xlu0 %4711
      %4713 = vrot.lane.b32.xlu0 %v4628, 8
      %v4714 = vpop.permute.xlu0 %4713
      %4715 = vrot.lane.b32.xlu0 %v4629, 8
      %v4716 = vpop.permute.xlu0 %4715
      %4717 = vrot.lane.b32.xlu0 %v4630, 8
      %v4718 = vpop.permute.xlu0 %4717
      %4719 = vrot.lane.b32.xlu0 %v4631, 8
      %v4720 = vpop.permute.xlu0 %4719
      %4721 = vrot.lane.b32.xlu0 %v4632, 8
      %v4722 = vpop.permute.xlu0 %4721
      %4723 = vrot.lane.b32.xlu0 %v4633, 8
      %v4724 = vpop.permute.xlu0 %4723
      %4725 = vrot.lane.b32.xlu0 %v4634, 8
      %v4726 = vpop.permute.xlu0 %4725
      %4727 = vrot.lane.b32.xlu0 %v4635, 8
      %v4728 = vpop.permute.xlu0 %4727
      %4729 = vrot.lane.b32.xlu0 %v4636, 8
      %v4730 = vpop.permute.xlu0 %4729
      %4731 = vrot.lane.b32.xlu0 %v4637, 8
      %v4732 = vpop.permute.xlu0 %4731
      %4733 = vrot.lane.b32.xlu0 %v4638, 8
      %v4734 = vpop.permute.xlu0 %4733
      %4767 = vst.msk [vmem:[#allocation5] sm:$0xff] %vm2724, %v4672
      %4768 = vst.msk [vmem:[#allocation5 + $0x8] sm:$0xff] %vm2724, %v4674
      %4769 = vst.msk [vmem:[#allocation5 + $0x10] sm:$0xff] %vm2724, %v4676
      %4770 = vst.msk [vmem:[#allocation5 + $0x18] sm:$0xff] %vm2724, %v4678
      %4771 = vst.msk [vmem:[#allocation5 + $0x20] sm:$0xff] %vm2724, %v4680
      %4772 = vst.msk [vmem:[#allocation5 + $0x28] sm:$0xff] %vm2724, %v4682
      %4773 = vst.msk [vmem:[#allocation5 + $0x30] sm:$0xff] %vm2724, %v4684
      %4774 = vst.msk [vmem:[#allocation5 + $0x38] sm:$0xff] %vm2724, %v4686
      %4775 = vst.msk [vmem:[#allocation5 + $0x40] sm:$0xff] %vm2724, %v4688
      %4776 = vst.msk [vmem:[#allocation5 + $0x48] sm:$0xff] %vm2724, %v4690
      %4777 = vst.msk [vmem:[#allocation5 + $0x50] sm:$0xff] %vm2724, %v4692
      %4778 = vst.msk [vmem:[#allocation5 + $0x58] sm:$0xff] %vm2724, %v4694
      %4779 = vst.msk [vmem:[#allocation5 + $0x60] sm:$0xff] %vm2724, %v4696
      %4780 = vst.msk [vmem:[#allocation5 + $0x68] sm:$0xff] %vm2724, %v4698
      %4781 = vst.msk [vmem:[#allocation5 + $0x70] sm:$0xff] %vm2724, %v4700
      %4782 = vst.msk [vmem:[#allocation5 + $0x78] sm:$0xff] %vm2724, %v4702
      %4783 = vst.msk [vmem:[#allocation5 + $0x80] sm:$0xff] %vm2724, %v4704
      %4784 = vst.msk [vmem:[#allocation5 + $0x88] sm:$0xff] %vm2724, %v4706
      %4785 = vst.msk [vmem:[#allocation5 + $0x90] sm:$0xff] %vm2724, %v4708
      %4786 = vst.msk [vmem:[#allocation5 + $0x98] sm:$0xff] %vm2724, %v4710
      %4787 = vst.msk [vmem:[#allocation5 + $0xa0] sm:$0xff] %vm2724, %v4712
      %4788 = vst.msk [vmem:[#allocation5 + $0xa8] sm:$0xff] %vm2724, %v4714
      %4789 = vst.msk [vmem:[#allocation5 + $0xb0] sm:$0xff] %vm2724, %v4716
      %4790 = vst.msk [vmem:[#allocation5 + $0xb8] sm:$0xff] %vm2724, %v4718
      %4791 = vst.msk [vmem:[#allocation5 + $0xc0] sm:$0xff] %vm2724, %v4720
      %4792 = vst.msk [vmem:[#allocation5 + $0xc8] sm:$0xff] %vm2724, %v4722
      %4793 = vst.msk [vmem:[#allocation5 + $0xd0] sm:$0xff] %vm2724, %v4724
      %4794 = vst.msk [vmem:[#allocation5 + $0xd8] sm:$0xff] %vm2724, %v4726
      %4795 = vst.msk [vmem:[#allocation5 + $0xe0] sm:$0xff] %vm2724, %v4728
      %4796 = vst.msk [vmem:[#allocation5 + $0xe8] sm:$0xff] %vm2724, %v4730
      %4797 = vst.msk [vmem:[#allocation5 + $0xf0] sm:$0xff] %vm2724, %v4732
      %4798 = vst.msk [vmem:[#allocation5 + $0xf8] sm:$0xff] %vm2724, %v4734
      %v4799 = vld [vmem:[#allocation3 + $0x2] sm:$0xff]
      %v4800 = vld [vmem:[#allocation3 + $0xa] sm:$0xff]
      %v4801 = vld [vmem:[#allocation3 + $0x1a] sm:$0xff]
      %v4802 = vld [vmem:[#allocation3 + $0x22] sm:$0xff]
      %v4803 = vld [vmem:[#allocation3 + $0x32] sm:$0xff]
      %v4804 = vld [vmem:[#allocation3 + $0x3a] sm:$0xff]
      %v4805 = vld [vmem:[#allocation3 + $0x4a] sm:$0xff]
      %v4806 = vld [vmem:[#allocation3 + $0x52] sm:$0xff]
      %v4807 = vld [vmem:[#allocation3 + $0x62] sm:$0xff]
      %v4808 = vld [vmem:[#allocation3 + $0x6a] sm:$0xff]
      %v4809 = vld [vmem:[#allocation3 + $0x7a] sm:$0xff]
      %v4810 = vld [vmem:[#allocation3 + $0x82] sm:$0xff]
      %v4811 = vld [vmem:[#allocation3 + $0x92] sm:$0xff]
      %v4812 = vld [vmem:[#allocation3 + $0x9a] sm:$0xff]
      %v4813 = vld [vmem:[#allocation3 + $0xaa] sm:$0xff]
      %v4814 = vld [vmem:[#allocation3 + $0xb2] sm:$0xff]
      %v4815 = vld [vmem:[#allocation3 + $0xc2] sm:$0xff]
      %v4816 = vld [vmem:[#allocation3 + $0xca] sm:$0xff]
      %v4817 = vld [vmem:[#allocation3 + $0xda] sm:$0xff]
      %v4818 = vld [vmem:[#allocation3 + $0xe2] sm:$0xff]
      %v4819 = vld [vmem:[#allocation3 + $0xf2] sm:$0xff]
      %v4820 = vld [vmem:[#allocation3 + $0xfa] sm:$0xff]
      %v4821 = vld [vmem:[#allocation3 + $0x10a] sm:$0xff]
      %v4822 = vld [vmem:[#allocation3 + $0x112] sm:$0xff]
      %v4823 = vld [vmem:[#allocation3 + $0x122] sm:$0xff]
      %v4824 = vld [vmem:[#allocation3 + $0x12a] sm:$0xff]
      %v4825 = vld [vmem:[#allocation3 + $0x13a] sm:$0xff]
      %v4826 = vld [vmem:[#allocation3 + $0x142] sm:$0xff]
      %v4827 = vld [vmem:[#allocation3 + $0x152] sm:$0xff]
      %v4828 = vld [vmem:[#allocation3 + $0x15a] sm:$0xff]
      %v4829 = vld [vmem:[#allocation3 + $0x16a] sm:$0xff]
      %v4830 = vld [vmem:[#allocation3 + $0x172] sm:$0xff]
      %4863 = vrot.lane.b32.xlu0 %v4799, 16
      %v4864 = vpop.permute.xlu0 %4863
      %4865 = vrot.lane.b32.xlu0 %v4800, 16
      %v4866 = vpop.permute.xlu0 %4865
      %4867 = vrot.lane.b32.xlu0 %v4801, 16
      %v4868 = vpop.permute.xlu0 %4867
      %4869 = vrot.lane.b32.xlu0 %v4802, 16
      %v4870 = vpop.permute.xlu0 %4869
      %4871 = vrot.lane.b32.xlu0 %v4803, 16
      %v4872 = vpop.permute.xlu0 %4871
      %4873 = vrot.lane.b32.xlu0 %v4804, 16
      %v4874 = vpop.permute.xlu0 %4873
      %4875 = vrot.lane.b32.xlu0 %v4805, 16
      %v4876 = vpop.permute.xlu0 %4875
      %4877 = vrot.lane.b32.xlu0 %v4806, 16
      %v4878 = vpop.permute.xlu0 %4877
      %4879 = vrot.lane.b32.xlu0 %v4807, 16
      %v4880 = vpop.permute.xlu0 %4879
      %4881 = vrot.lane.b32.xlu0 %v4808, 16
      %v4882 = vpop.permute.xlu0 %4881
      %4883 = vrot.lane.b32.xlu0 %v4809, 16
      %v4884 = vpop.permute.xlu0 %4883
      %4885 = vrot.lane.b32.xlu0 %v4810, 16
      %v4886 = vpop.permute.xlu0 %4885
      %4887 = vrot.lane.b32.xlu0 %v4811, 16
      %v4888 = vpop.permute.xlu0 %4887
      %4889 = vrot.lane.b32.xlu0 %v4812, 16
      %v4890 = vpop.permute.xlu0 %4889
      %4891 = vrot.lane.b32.xlu0 %v4813, 16
      %v4892 = vpop.permute.xlu0 %4891
      %4893 = vrot.lane.b32.xlu0 %v4814, 16
      %v4894 = vpop.permute.xlu0 %4893
      %4895 = vrot.lane.b32.xlu0 %v4815, 16
      %v4896 = vpop.permute.xlu0 %4895
      %4897 = vrot.lane.b32.xlu0 %v4816, 16
      %v4898 = vpop.permute.xlu0 %4897
      %4899 = vrot.lane.b32.xlu0 %v4817, 16
      %v4900 = vpop.permute.xlu0 %4899
      %4901 = vrot.lane.b32.xlu0 %v4818, 16
      %v4902 = vpop.permute.xlu0 %4901
      %4903 = vrot.lane.b32.xlu0 %v4819, 16
      %v4904 = vpop.permute.xlu0 %4903
      %4905 = vrot.lane.b32.xlu0 %v4820, 16
      %v4906 = vpop.permute.xlu0 %4905
      %4907 = vrot.lane.b32.xlu0 %v4821, 16
      %v4908 = vpop.permute.xlu0 %4907
      %4909 = vrot.lane.b32.xlu0 %v4822, 16
      %v4910 = vpop.permute.xlu0 %4909
      %4911 = vrot.lane.b32.xlu0 %v4823, 16
      %v4912 = vpop.permute.xlu0 %4911
      %4913 = vrot.lane.b32.xlu0 %v4824, 16
      %v4914 = vpop.permute.xlu0 %4913
      %4915 = vrot.lane.b32.xlu0 %v4825, 16
      %v4916 = vpop.permute.xlu0 %4915
      %4917 = vrot.lane.b32.xlu0 %v4826, 16
      %v4918 = vpop.permute.xlu0 %4917
      %4919 = vrot.lane.b32.xlu0 %v4827, 16
      %v4920 = vpop.permute.xlu0 %4919
      %4921 = vrot.lane.b32.xlu0 %v4828, 16
      %v4922 = vpop.permute.xlu0 %4921
      %4923 = vrot.lane.b32.xlu0 %v4829, 16
      %v4924 = vpop.permute.xlu0 %4923
      %4925 = vrot.lane.b32.xlu0 %v4830, 16
      %v4926 = vpop.permute.xlu0 %4925
      %4959 = vst.msk [vmem:[#allocation5] sm:$0xff] %vm2917, %v4864
      %4960 = vst.msk [vmem:[#allocation5 + $0x8] sm:$0xff] %vm2917, %v4866
      %4961 = vst.msk [vmem:[#allocation5 + $0x10] sm:$0xff] %vm2917, %v4868
      %4962 = vst.msk [vmem:[#allocation5 + $0x18] sm:$0xff] %vm2917, %v4870
      %4963 = vst.msk [vmem:[#allocation5 + $0x20] sm:$0xff] %vm2917, %v4872
      %4964 = vst.msk [vmem:[#allocation5 + $0x28] sm:$0xff] %vm2917, %v4874
      %4965 = vst.msk [vmem:[#allocation5 + $0x30] sm:$0xff] %vm2917, %v4876
      %4966 = vst.msk [vmem:[#allocation5 + $0x38] sm:$0xff] %vm2917, %v4878
      %4967 = vst.msk [vmem:[#allocation5 + $0x40] sm:$0xff] %vm2917, %v4880
      %4968 = vst.msk [vmem:[#allocation5 + $0x48] sm:$0xff] %vm2917, %v4882
      %4969 = vst.msk [vmem:[#allocation5 + $0x50] sm:$0xff] %vm2917, %v4884
      %4970 = vst.msk [vmem:[#allocation5 + $0x58] sm:$0xff] %vm2917, %v4886
      %4971 = vst.msk [vmem:[#allocation5 + $0x60] sm:$0xff] %vm2917, %v4888
      %4972 = vst.msk [vmem:[#allocation5 + $0x68] sm:$0xff] %vm2917, %v4890
      %4973 = vst.msk [vmem:[#allocation5 + $0x70] sm:$0xff] %vm2917, %v4892
      %4974 = vst.msk [vmem:[#allocation5 + $0x78] sm:$0xff] %vm2917, %v4894
      %4975 = vst.msk [vmem:[#allocation5 + $0x80] sm:$0xff] %vm2917, %v4896
      %4976 = vst.msk [vmem:[#allocation5 + $0x88] sm:$0xff] %vm2917, %v4898
      %4977 = vst.msk [vmem:[#allocation5 + $0x90] sm:$0xff] %vm2917, %v4900
      %4978 = vst.msk [vmem:[#allocation5 + $0x98] sm:$0xff] %vm2917, %v4902
      %4979 = vst.msk [vmem:[#allocation5 + $0xa0] sm:$0xff] %vm2917, %v4904
      %4980 = vst.msk [vmem:[#allocation5 + $0xa8] sm:$0xff] %vm2917, %v4906
      %4981 = vst.msk [vmem:[#allocation5 + $0xb0] sm:$0xff] %vm2917, %v4908
      %4982 = vst.msk [vmem:[#allocation5 + $0xb8] sm:$0xff] %vm2917, %v4910
      %4983 = vst.msk [vmem:[#allocation5 + $0xc0] sm:$0xff] %vm2917, %v4912
      %4984 = vst.msk [vmem:[#allocation5 + $0xc8] sm:$0xff] %vm2917, %v4914
      %4985 = vst.msk [vmem:[#allocation5 + $0xd0] sm:$0xff] %vm2917, %v4916
      %4986 = vst.msk [vmem:[#allocation5 + $0xd8] sm:$0xff] %vm2917, %v4918
      %4987 = vst.msk [vmem:[#allocation5 + $0xe0] sm:$0xff] %vm2917, %v4920
      %4988 = vst.msk [vmem:[#allocation5 + $0xe8] sm:$0xff] %vm2917, %v4922
      %4989 = vst.msk [vmem:[#allocation5 + $0xf0] sm:$0xff] %vm2917, %v4924
      %4990 = vst.msk [vmem:[#allocation5 + $0xf8] sm:$0xff] %vm2917, %v4926
      %v4991 = vld [vmem:[%s2467] sm:$0xff]
      %v4992 = vld [vmem:[%s2467 + $0x8] sm:$0xff]
      %v4993 = vld [vmem:[%s2467 + $0x18] sm:$0xff]
      %v4994 = vld [vmem:[%s2467 + $0x20] sm:$0xff]
      %v4995 = vld [vmem:[%s2467 + $0x30] sm:$0xff]
      %v4996 = vld [vmem:[%s2467 + $0x38] sm:$0xff]
      %v4997 = vld [vmem:[%s2467 + $0x48] sm:$0xff]
      %v4998 = vld [vmem:[%s2467 + $0x50] sm:$0xff]
      %v4999 = vld [vmem:[%s2467 + $0x60] sm:$0xff]
      %v5000 = vld [vmem:[%s2467 + $0x68] sm:$0xff]
      %v5001 = vld [vmem:[%s2467 + $0x78] sm:$0xff]
      %v5002 = vld [vmem:[%s2467 + $0x80] sm:$0xff]
      %v5003 = vld [vmem:[%s2467 + $0x90] sm:$0xff]
      %v5004 = vld [vmem:[%s2467 + $0x98] sm:$0xff]
      %v5005 = vld [vmem:[%s2467 + $0xa8] sm:$0xff]
      %v5006 = vld [vmem:[%s2467 + $0xb0] sm:$0xff]
      %v5007 = vld [vmem:[%s2467 + $0xc0] sm:$0xff]
      %v5008 = vld [vmem:[%s2467 + $0xc8] sm:$0xff]
      %v5009 = vld [vmem:[%s2467 + $0xd8] sm:$0xff]
      %v5010 = vld [vmem:[%s2467 + $0xe0] sm:$0xff]
      %v5011 = vld [vmem:[%s2467 + $0xf0] sm:$0xff]
      %v5012 = vld [vmem:[%s2467 + $0xf8] sm:$0xff]
      %v5013 = vld [vmem:[%s2467 + $0x108] sm:$0xff]
      %v5014 = vld [vmem:[%s2467 + $0x110] sm:$0xff]
      %v5015 = vld [vmem:[%s2467 + $0x120] sm:$0xff]
      %v5016 = vld [vmem:[%s2467 + $0x128] sm:$0xff]
      %v5017 = vld [vmem:[%s2467 + $0x138] sm:$0xff]
      %v5018 = vld [vmem:[%s2467 + $0x140] sm:$0xff]
      %v5019 = vld [vmem:[%s2467 + $0x150] sm:$0xff]
      %v5020 = vld [vmem:[%s2467 + $0x158] sm:$0xff]
      %v5021 = vld [vmem:[%s2467 + $0x168] sm:$0xff]
      %v5022 = vld [vmem:[%s2467 + $0x170] sm:$0xff]
      %5055 = vrot.lane.b32.xlu0 %v4991, 24
      %v5056 = vpop.permute.xlu0 %5055
      %5057 = vrot.lane.b32.xlu0 %v4992, 24
      %v5058 = vpop.permute.xlu0 %5057
      %5059 = vrot.lane.b32.xlu0 %v4993, 24
      %v5060 = vpop.permute.xlu0 %5059
      %5061 = vrot.lane.b32.xlu0 %v4994, 24
      %v5062 = vpop.permute.xlu0 %5061
      %5063 = vrot.lane.b32.xlu0 %v4995, 24
      %v5064 = vpop.permute.xlu0 %5063
      %5065 = vrot.lane.b32.xlu0 %v4996, 24
      %v5066 = vpop.permute.xlu0 %5065
      %5067 = vrot.lane.b32.xlu0 %v4997, 24
      %v5068 = vpop.permute.xlu0 %5067
      %5069 = vrot.lane.b32.xlu0 %v4998, 24
      %v5070 = vpop.permute.xlu0 %5069
      %5071 = vrot.lane.b32.xlu0 %v4999, 24
      %v5072 = vpop.permute.xlu0 %5071
      %5073 = vrot.lane.b32.xlu0 %v5000, 24
      %v5074 = vpop.permute.xlu0 %5073
      %5075 = vrot.lane.b32.xlu0 %v5001, 24
      %v5076 = vpop.permute.xlu0 %5075
      %5077 = vrot.lane.b32.xlu0 %v5002, 24
      %v5078 = vpop.permute.xlu0 %5077
      %5079 = vrot.lane.b32.xlu0 %v5003, 24
      %v5080 = vpop.permute.xlu0 %5079
      %5081 = vrot.lane.b32.xlu0 %v5004, 24
      %v5082 = vpop.permute.xlu0 %5081
      %5083 = vrot.lane.b32.xlu0 %v5005, 24
      %v5084 = vpop.permute.xlu0 %5083
      %5085 = vrot.lane.b32.xlu0 %v5006, 24
      %v5086 = vpop.permute.xlu0 %5085
      %5087 = vrot.lane.b32.xlu0 %v5007, 24
      %v5088 = vpop.permute.xlu0 %5087
      %5089 = vrot.lane.b32.xlu0 %v5008, 24
      %v5090 = vpop.permute.xlu0 %5089
      %5091 = vrot.lane.b32.xlu0 %v5009, 24
      %v5092 = vpop.permute.xlu0 %5091
      %5093 = vrot.lane.b32.xlu0 %v5010, 24
      %v5094 = vpop.permute.xlu0 %5093
      %5095 = vrot.lane.b32.xlu0 %v5011, 24
      %v5096 = vpop.permute.xlu0 %5095
      %5097 = vrot.lane.b32.xlu0 %v5012, 24
      %v5098 = vpop.permute.xlu0 %5097
      %5099 = vrot.lane.b32.xlu0 %v5013, 24
      %v5100 = vpop.permute.xlu0 %5099
      %5101 = vrot.lane.b32.xlu0 %v5014, 24
      %v5102 = vpop.permute.xlu0 %5101
      %5103 = vrot.lane.b32.xlu0 %v5015, 24
      %v5104 = vpop.permute.xlu0 %5103
      %5105 = vrot.lane.b32.xlu0 %v5016, 24
      %v5106 = vpop.permute.xlu0 %5105
      %5107 = vrot.lane.b32.xlu0 %v5017, 24
      %v5108 = vpop.permute.xlu0 %5107
      %5109 = vrot.lane.b32.xlu0 %v5018, 24
      %v5110 = vpop.permute.xlu0 %5109
      %5111 = vrot.lane.b32.xlu0 %v5019, 24
      %v5112 = vpop.permute.xlu0 %5111
      %5113 = vrot.lane.b32.xlu0 %v5020, 24
      %v5114 = vpop.permute.xlu0 %5113
      %5115 = vrot.lane.b32.xlu0 %v5021, 24
      %v5116 = vpop.permute.xlu0 %5115
      %5117 = vrot.lane.b32.xlu0 %v5022, 24
      %v5118 = vpop.permute.xlu0 %5117
      %5151 = vst.msk [vmem:[#allocation5] sm:$0xff] %vm3110, %v5056
      %5152 = vst.msk [vmem:[#allocation5 + $0x8] sm:$0xff] %vm3110, %v5058
      %5153 = vst.msk [vmem:[#allocation5 + $0x10] sm:$0xff] %vm3110, %v5060
      %5154 = vst.msk [vmem:[#allocation5 + $0x18] sm:$0xff] %vm3110, %v5062
      %5155 = vst.msk [vmem:[#allocation5 + $0x20] sm:$0xff] %vm3110, %v5064
      %5156 = vst.msk [vmem:[#allocation5 + $0x28] sm:$0xff] %vm3110, %v5066
      %5157 = vst.msk [vmem:[#allocation5 + $0x30] sm:$0xff] %vm3110, %v5068
      %5158 = vst.msk [vmem:[#allocation5 + $0x38] sm:$0xff] %vm3110, %v5070
      %5159 = vst.msk [vmem:[#allocation5 + $0x40] sm:$0xff] %vm3110, %v5072
      %5160 = vst.msk [vmem:[#allocation5 + $0x48] sm:$0xff] %vm3110, %v5074
      %5161 = vst.msk [vmem:[#allocation5 + $0x50] sm:$0xff] %vm3110, %v5076
      %5162 = vst.msk [vmem:[#allocation5 + $0x58] sm:$0xff] %vm3110, %v5078
      %5163 = vst.msk [vmem:[#allocation5 + $0x60] sm:$0xff] %vm3110, %v5080
      %5164 = vst.msk [vmem:[#allocation5 + $0x68] sm:$0xff] %vm3110, %v5082
      %5165 = vst.msk [vmem:[#allocation5 + $0x70] sm:$0xff] %vm3110, %v5084
      %5166 = vst.msk [vmem:[#allocation5 + $0x78] sm:$0xff] %vm3110, %v5086
      %5167 = vst.msk [vmem:[#allocation5 + $0x80] sm:$0xff] %vm3110, %v5088
      %5168 = vst.msk [vmem:[#allocation5 + $0x88] sm:$0xff] %vm3110, %v5090
      %5169 = vst.msk [vmem:[#allocation5 + $0x90] sm:$0xff] %vm3110, %v5092
      %5170 = vst.msk [vmem:[#allocation5 + $0x98] sm:$0xff] %vm3110, %v5094
      %5171 = vst.msk [vmem:[#allocation5 + $0xa0] sm:$0xff] %vm3110, %v5096
      %5172 = vst.msk [vmem:[#allocation5 + $0xa8] sm:$0xff] %vm3110, %v5098
      %5173 = vst.msk [vmem:[#allocation5 + $0xb0] sm:$0xff] %vm3110, %v5100
      %5174 = vst.msk [vmem:[#allocation5 + $0xb8] sm:$0xff] %vm3110, %v5102
      %5175 = vst.msk [vmem:[#allocation5 + $0xc0] sm:$0xff] %vm3110, %v5104
      %5176 = vst.msk [vmem:[#allocation5 + $0xc8] sm:$0xff] %vm3110, %v5106
      %5177 = vst.msk [vmem:[#allocation5 + $0xd0] sm:$0xff] %vm3110, %v5108
      %5178 = vst.msk [vmem:[#allocation5 + $0xd8] sm:$0xff] %vm3110, %v5110
      %5179 = vst.msk [vmem:[#allocation5 + $0xe0] sm:$0xff] %vm3110, %v5112
      %5180 = vst.msk [vmem:[#allocation5 + $0xe8] sm:$0xff] %vm3110, %v5114
      %5181 = vst.msk [vmem:[#allocation5 + $0xf0] sm:$0xff] %vm3110, %v5116
      %5182 = vst.msk [vmem:[#allocation5 + $0xf8] sm:$0xff] %vm3110, %v5118
      %v5183 = vld [vmem:[%s2467 + $0x1] sm:$0xff]
      %v5184 = vld [vmem:[%s2467 + $0x9] sm:$0xff]
      %v5185 = vld [vmem:[%s2467 + $0x19] sm:$0xff]
      %v5186 = vld [vmem:[%s2467 + $0x21] sm:$0xff]
      %v5187 = vld [vmem:[%s2467 + $0x31] sm:$0xff]
      %v5188 = vld [vmem:[%s2467 + $0x39] sm:$0xff]
      %v5189 = vld [vmem:[%s2467 + $0x49] sm:$0xff]
      %v5190 = vld [vmem:[%s2467 + $0x51] sm:$0xff]
      %v5191 = vld [vmem:[%s2467 + $0x61] sm:$0xff]
      %v5192 = vld [vmem:[%s2467 + $0x69] sm:$0xff]
      %v5193 = vld [vmem:[%s2467 + $0x79] sm:$0xff]
      %v5194 = vld [vmem:[%s2467 + $0x81] sm:$0xff]
      %v5195 = vld [vmem:[%s2467 + $0x91] sm:$0xff]
      %v5196 = vld [vmem:[%s2467 + $0x99] sm:$0xff]
      %v5197 = vld [vmem:[%s2467 + $0xa9] sm:$0xff]
      %v5198 = vld [vmem:[%s2467 + $0xb1] sm:$0xff]
      %v5199 = vld [vmem:[%s2467 + $0xc1] sm:$0xff]
      %v5200 = vld [vmem:[%s2467 + $0xc9] sm:$0xff]
      %v5201 = vld [vmem:[%s2467 + $0xd9] sm:$0xff]
      %v5202 = vld [vmem:[%s2467 + $0xe1] sm:$0xff]
      %v5203 = vld [vmem:[%s2467 + $0xf1] sm:$0xff]
      %v5204 = vld [vmem:[%s2467 + $0xf9] sm:$0xff]
      %v5205 = vld [vmem:[%s2467 + $0x109] sm:$0xff]
      %v5206 = vld [vmem:[%s2467 + $0x111] sm:$0xff]
      %v5207 = vld [vmem:[%s2467 + $0x121] sm:$0xff]
      %v5208 = vld [vmem:[%s2467 + $0x129] sm:$0xff]
      %v5209 = vld [vmem:[%s2467 + $0x139] sm:$0xff]
      %v5210 = vld [vmem:[%s2467 + $0x141] sm:$0xff]
      %v5211 = vld [vmem:[%s2467 + $0x151] sm:$0xff]
      %v5212 = vld [vmem:[%s2467 + $0x159] sm:$0xff]
      %v5213 = vld [vmem:[%s2467 + $0x169] sm:$0xff]
      %v5214 = vld [vmem:[%s2467 + $0x171] sm:$0xff]
      %5247 = vrot.lane.b32.xlu0 %v5183, 32
      %v5248 = vpop.permute.xlu0 %5247
      %5249 = vrot.lane.b32.xlu0 %v5184, 32
      %v5250 = vpop.permute.xlu0 %5249
      %5251 = vrot.lane.b32.xlu0 %v5185, 32
      %v5252 = vpop.permute.xlu0 %5251
      %5253 = vrot.lane.b32.xlu0 %v5186, 32
      %v5254 = vpop.permute.xlu0 %5253
      %5255 = vrot.lane.b32.xlu0 %v5187, 32
      %v5256 = vpop.permute.xlu0 %5255
      %5257 = vrot.lane.b32.xlu0 %v5188, 32
      %v5258 = vpop.permute.xlu0 %5257
      %5259 = vrot.lane.b32.xlu0 %v5189, 32
      %v5260 = vpop.permute.xlu0 %5259
      %5261 = vrot.lane.b32.xlu0 %v5190, 32
      %v5262 = vpop.permute.xlu0 %5261
      %5263 = vrot.lane.b32.xlu0 %v5191, 32
      %v5264 = vpop.permute.xlu0 %5263
      %5265 = vrot.lane.b32.xlu0 %v5192, 32
      %v5266 = vpop.permute.xlu0 %5265
      %5267 = vrot.lane.b32.xlu0 %v5193, 32
      %v5268 = vpop.permute.xlu0 %5267
      %5269 = vrot.lane.b32.xlu0 %v5194, 32
      %v5270 = vpop.permute.xlu0 %5269
      %5271 = vrot.lane.b32.xlu0 %v5195, 32
      %v5272 = vpop.permute.xlu0 %5271
      %5273 = vrot.lane.b32.xlu0 %v5196, 32
      %v5274 = vpop.permute.xlu0 %5273
      %5275 = vrot.lane.b32.xlu0 %v5197, 32
      %v5276 = vpop.permute.xlu0 %5275
      %5277 = vrot.lane.b32.xlu0 %v5198, 32
      %v5278 = vpop.permute.xlu0 %5277
      %5279 = vrot.lane.b32.xlu0 %v5199, 32
      %v5280 = vpop.permute.xlu0 %5279
      %5281 = vrot.lane.b32.xlu0 %v5200, 32
      %v5282 = vpop.permute.xlu0 %5281
      %5283 = vrot.lane.b32.xlu0 %v5201, 32
      %v5284 = vpop.permute.xlu0 %5283
      %5285 = vrot.lane.b32.xlu0 %v5202, 32
      %v5286 = vpop.permute.xlu0 %5285
      %5287 = vrot.lane.b32.xlu0 %v5203, 32
      %v5288 = vpop.permute.xlu0 %5287
      %5289 = vrot.lane.b32.xlu0 %v5204, 32
      %v5290 = vpop.permute.xlu0 %5289
      %5291 = vrot.lane.b32.xlu0 %v5205, 32
      %v5292 = vpop.permute.xlu0 %5291
      %5293 = vrot.lane.b32.xlu0 %v5206, 32
      %v5294 = vpop.permute.xlu0 %5293
      %5295 = vrot.lane.b32.xlu0 %v5207, 32
      %v5296 = vpop.permute.xlu0 %5295
      %5297 = vrot.lane.b32.xlu0 %v5208, 32
      %v5298 = vpop.permute.xlu0 %5297
      %5299 = vrot.lane.b32.xlu0 %v5209, 32
      %v5300 = vpop.permute.xlu0 %5299
      %5301 = vrot.lane.b32.xlu0 %v5210, 32
      %v5302 = vpop.permute.xlu0 %5301
      %5303 = vrot.lane.b32.xlu0 %v5211, 32
      %v5304 = vpop.permute.xlu0 %5303
      %5305 = vrot.lane.b32.xlu0 %v5212, 32
      %v5306 = vpop.permute.xlu0 %5305
      %5307 = vrot.lane.b32.xlu0 %v5213, 32
      %v5308 = vpop.permute.xlu0 %5307
      %5309 = vrot.lane.b32.xlu0 %v5214, 32
      %v5310 = vpop.permute.xlu0 %5309
      %5343 = vst.msk [vmem:[#allocation5] sm:$0xff] %vm3303, %v5248
      %5344 = vst.msk [vmem:[#allocation5 + $0x8] sm:$0xff] %vm3303, %v5250
      %5345 = vst.msk [vmem:[#allocation5 + $0x10] sm:$0xff] %vm3303, %v5252
      %5346 = vst.msk [vmem:[#allocation5 + $0x18] sm:$0xff] %vm3303, %v5254
      %5347 = vst.msk [vmem:[#allocation5 + $0x20] sm:$0xff] %vm3303, %v5256
      %5348 = vst.msk [vmem:[#allocation5 + $0x28] sm:$0xff] %vm3303, %v5258
      %5349 = vst.msk [vmem:[#allocation5 + $0x30] sm:$0xff] %vm3303, %v5260
      %5350 = vst.msk [vmem:[#allocation5 + $0x38] sm:$0xff] %vm3303, %v5262
      %5351 = vst.msk [vmem:[#allocation5 + $0x40] sm:$0xff] %vm3303, %v5264
      %5352 = vst.msk [vmem:[#allocation5 + $0x48] sm:$0xff] %vm3303, %v5266
      %5353 = vst.msk [vmem:[#allocation5 + $0x50] sm:$0xff] %vm3303, %v5268
      %5354 = vst.msk [vmem:[#allocation5 + $0x58] sm:$0xff] %vm3303, %v5270
      %5355 = vst.msk [vmem:[#allocation5 + $0x60] sm:$0xff] %vm3303, %v5272
      %5356 = vst.msk [vmem:[#allocation5 + $0x68] sm:$0xff] %vm3303, %v5274
      %5357 = vst.msk [vmem:[#allocation5 + $0x70] sm:$0xff] %vm3303, %v5276
      %5358 = vst.msk [vmem:[#allocation5 + $0x78] sm:$0xff] %vm3303, %v5278
      %5359 = vst.msk [vmem:[#allocation5 + $0x80] sm:$0xff] %vm3303, %v5280
      %5360 = vst.msk [vmem:[#allocation5 + $0x88] sm:$0xff] %vm3303, %v5282
      %5361 = vst.msk [vmem:[#allocation5 + $0x90] sm:$0xff] %vm3303, %v5284
      %5362 = vst.msk [vmem:[#allocation5 + $0x98] sm:$0xff] %vm3303, %v5286
      %5363 = vst.msk [vmem:[#allocation5 + $0xa0] sm:$0xff] %vm3303, %v5288
      %5364 = vst.msk [vmem:[#allocation5 + $0xa8] sm:$0xff] %vm3303, %v5290
      %5365 = vst.msk [vmem:[#allocation5 + $0xb0] sm:$0xff] %vm3303, %v5292
      %5366 = vst.msk [vmem:[#allocation5 + $0xb8] sm:$0xff] %vm3303, %v5294
      %5367 = vst.msk [vmem:[#allocation5 + $0xc0] sm:$0xff] %vm3303, %v5296
      %5368 = vst.msk [vmem:[#allocation5 + $0xc8] sm:$0xff] %vm3303, %v5298
      %5369 = vst.msk [vmem:[#allocation5 + $0xd0] sm:$0xff] %vm3303, %v5300
      %5370 = vst.msk [vmem:[#allocation5 + $0xd8] sm:$0xff] %vm3303, %v5302
      %5371 = vst.msk [vmem:[#allocation5 + $0xe0] sm:$0xff] %vm3303, %v5304
      %5372 = vst.msk [vmem:[#allocation5 + $0xe8] sm:$0xff] %vm3303, %v5306
      %5373 = vst.msk [vmem:[#allocation5 + $0xf0] sm:$0xff] %vm3303, %v5308
      %5374 = vst.msk [vmem:[#allocation5 + $0xf8] sm:$0xff] %vm3303, %v5310
      %v5375 = vld [vmem:[%s2467 + $0x2] sm:$0xff]
      %v5376 = vld [vmem:[%s2467 + $0xa] sm:$0xff]
      %v5377 = vld [vmem:[%s2467 + $0x1a] sm:$0xff]
      %v5378 = vld [vmem:[%s2467 + $0x22] sm:$0xff]
      %v5379 = vld [vmem:[%s2467 + $0x32] sm:$0xff]
      %v5380 = vld [vmem:[%s2467 + $0x3a] sm:$0xff]
      %v5381 = vld [vmem:[%s2467 + $0x4a] sm:$0xff]
      %v5382 = vld [vmem:[%s2467 + $0x52] sm:$0xff]
      %v5383 = vld [vmem:[%s2467 + $0x62] sm:$0xff]
      %v5384 = vld [vmem:[%s2467 + $0x6a] sm:$0xff]
      %v5385 = vld [vmem:[%s2467 + $0x7a] sm:$0xff]
      %v5386 = vld [vmem:[%s2467 + $0x82] sm:$0xff]
      %v5387 = vld [vmem:[%s2467 + $0x92] sm:$0xff]
      %v5388 = vld [vmem:[%s2467 + $0x9a] sm:$0xff]
      %v5389 = vld [vmem:[%s2467 + $0xaa] sm:$0xff]
      %v5390 = vld [vmem:[%s2467 + $0xb2] sm:$0xff]
      %v5391 = vld [vmem:[%s2467 + $0xc2] sm:$0xff]
      %v5392 = vld [vmem:[%s2467 + $0xca] sm:$0xff]
      %v5393 = vld [vmem:[%s2467 + $0xda] sm:$0xff]
      %v5394 = vld [vmem:[%s2467 + $0xe2] sm:$0xff]
      %v5395 = vld [vmem:[%s2467 + $0xf2] sm:$0xff]
      %v5396 = vld [vmem:[%s2467 + $0xfa] sm:$0xff]
      %v5397 = vld [vmem:[%s2467 + $0x10a] sm:$0xff]
      %v5398 = vld [vmem:[%s2467 + $0x112] sm:$0xff]
      %v5399 = vld [vmem:[%s2467 + $0x122] sm:$0xff]
      %v5400 = vld [vmem:[%s2467 + $0x12a] sm:$0xff]
      %v5401 = vld [vmem:[%s2467 + $0x13a] sm:$0xff]
      %v5402 = vld [vmem:[%s2467 + $0x142] sm:$0xff]
      %v5403 = vld [vmem:[%s2467 + $0x152] sm:$0xff]
      %v5404 = vld [vmem:[%s2467 + $0x15a] sm:$0xff]
      %v5405 = vld [vmem:[%s2467 + $0x16a] sm:$0xff]
      %v5406 = vld [vmem:[%s2467 + $0x172] sm:$0xff]
      %5439 = vrot.lane.b32.xlu0 %v5375, 40
      %v5440 = vpop.permute.xlu0 %5439
      %5441 = vrot.lane.b32.xlu0 %v5376, 40
      %v5442 = vpop.permute.xlu0 %5441
      %5443 = vrot.lane.b32.xlu0 %v5377, 40
      %v5444 = vpop.permute.xlu0 %5443
      %5445 = vrot.lane.b32.xlu0 %v5378, 40
      %v5446 = vpop.permute.xlu0 %5445
      %5447 = vrot.lane.b32.xlu0 %v5379, 40
      %v5448 = vpop.permute.xlu0 %5447
      %5449 = vrot.lane.b32.xlu0 %v5380, 40
      %v5450 = vpop.permute.xlu0 %5449
      %5451 = vrot.lane.b32.xlu0 %v5381, 40
      %v5452 = vpop.permute.xlu0 %5451
      %5453 = vrot.lane.b32.xlu0 %v5382, 40
      %v5454 = vpop.permute.xlu0 %5453
      %5455 = vrot.lane.b32.xlu0 %v5383, 40
      %v5456 = vpop.permute.xlu0 %5455
      %5457 = vrot.lane.b32.xlu0 %v5384, 40
      %v5458 = vpop.permute.xlu0 %5457
      %5459 = vrot.lane.b32.xlu0 %v5385, 40
      %v5460 = vpop.permute.xlu0 %5459
      %5461 = vrot.lane.b32.xlu0 %v5386, 40
      %v5462 = vpop.permute.xlu0 %5461
      %5463 = vrot.lane.b32.xlu0 %v5387, 40
      %v5464 = vpop.permute.xlu0 %5463
      %5465 = vrot.lane.b32.xlu0 %v5388, 40
      %v5466 = vpop.permute.xlu0 %5465
      %5467 = vrot.lane.b32.xlu0 %v5389, 40
      %v5468 = vpop.permute.xlu0 %5467
      %5469 = vrot.lane.b32.xlu0 %v5390, 40
      %v5470 = vpop.permute.xlu0 %5469
      %5471 = vrot.lane.b32.xlu0 %v5391, 40
      %v5472 = vpop.permute.xlu0 %5471
      %5473 = vrot.lane.b32.xlu0 %v5392, 40
      %v5474 = vpop.permute.xlu0 %5473
      %5475 = vrot.lane.b32.xlu0 %v5393, 40
      %v5476 = vpop.permute.xlu0 %5475
      %5477 = vrot.lane.b32.xlu0 %v5394, 40
      %v5478 = vpop.permute.xlu0 %5477
      %5479 = vrot.lane.b32.xlu0 %v5395, 40
      %v5480 = vpop.permute.xlu0 %5479
      %5481 = vrot.lane.b32.xlu0 %v5396, 40
      %v5482 = vpop.permute.xlu0 %5481
      %5483 = vrot.lane.b32.xlu0 %v5397, 40
      %v5484 = vpop.permute.xlu0 %5483
      %5485 = vrot.lane.b32.xlu0 %v5398, 40
      %v5486 = vpop.permute.xlu0 %5485
      %5487 = vrot.lane.b32.xlu0 %v5399, 40
      %v5488 = vpop.permute.xlu0 %5487
      %5489 = vrot.lane.b32.xlu0 %v5400, 40
      %v5490 = vpop.permute.xlu0 %5489
      %5491 = vrot.lane.b32.xlu0 %v5401, 40
      %v5492 = vpop.permute.xlu0 %5491
      %5493 = vrot.lane.b32.xlu0 %v5402, 40
      %v5494 = vpop.permute.xlu0 %5493
      %5495 = vrot.lane.b32.xlu0 %v5403, 40
      %v5496 = vpop.permute.xlu0 %5495
      %5497 = vrot.lane.b32.xlu0 %v5404, 40
      %v5498 = vpop.permute.xlu0 %5497
      %5499 = vrot.lane.b32.xlu0 %v5405, 40
      %v5500 = vpop.permute.xlu0 %5499
      %5501 = vrot.lane.b32.xlu0 %v5406, 40
      %v5502 = vpop.permute.xlu0 %5501
      %5535 = vst.msk [vmem:[#allocation5] sm:$0xff] %vm3496, %v5440
      %5536 = vst.msk [vmem:[#allocation5 + $0x8] sm:$0xff] %vm3496, %v5442
      %5537 = vst.msk [vmem:[#allocation5 + $0x10] sm:$0xff] %vm3496, %v5444
      %5538 = vst.msk [vmem:[#allocation5 + $0x18] sm:$0xff] %vm3496, %v5446
      %5539 = vst.msk [vmem:[#allocation5 + $0x20] sm:$0xff] %vm3496, %v5448
      %5540 = vst.msk [vmem:[#allocation5 + $0x28] sm:$0xff] %vm3496, %v5450
      %5541 = vst.msk [vmem:[#allocation5 + $0x30] sm:$0xff] %vm3496, %v5452
      %5542 = vst.msk [vmem:[#allocation5 + $0x38] sm:$0xff] %vm3496, %v5454
      %5543 = vst.msk [vmem:[#allocation5 + $0x40] sm:$0xff] %vm3496, %v5456
      %5544 = vst.msk [vmem:[#allocation5 + $0x48] sm:$0xff] %vm3496, %v5458
      %5545 = vst.msk [vmem:[#allocation5 + $0x50] sm:$0xff] %vm3496, %v5460
      %5546 = vst.msk [vmem:[#allocation5 + $0x58] sm:$0xff] %vm3496, %v5462
      %5547 = vst.msk [vmem:[#allocation5 + $0x60] sm:$0xff] %vm3496, %v5464
      %5548 = vst.msk [vmem:[#allocation5 + $0x68] sm:$0xff] %vm3496, %v5466
      %5549 = vst.msk [vmem:[#allocation5 + $0x70] sm:$0xff] %vm3496, %v5468
      %5550 = vst.msk [vmem:[#allocation5 + $0x78] sm:$0xff] %vm3496, %v5470
      %5551 = vst.msk [vmem:[#allocation5 + $0x80] sm:$0xff] %vm3496, %v5472
      %5552 = vst.msk [vmem:[#allocation5 + $0x88] sm:$0xff] %vm3496, %v5474
      %5553 = vst.msk [vmem:[#allocation5 + $0x90] sm:$0xff] %vm3496, %v5476
      %5554 = vst.msk [vmem:[#allocation5 + $0x98] sm:$0xff] %vm3496, %v5478
      %5555 = vst.msk [vmem:[#allocation5 + $0xa0] sm:$0xff] %vm3496, %v5480
      %5556 = vst.msk [vmem:[#allocation5 + $0xa8] sm:$0xff] %vm3496, %v5482
      %5557 = vst.msk [vmem:[#allocation5 + $0xb0] sm:$0xff] %vm3496, %v5484
      %5558 = vst.msk [vmem:[#allocation5 + $0xb8] sm:$0xff] %vm3496, %v5486
      %5559 = vst.msk [vmem:[#allocation5 + $0xc0] sm:$0xff] %vm3496, %v5488
      %5560 = vst.msk [vmem:[#allocation5 + $0xc8] sm:$0xff] %vm3496, %v5490
      %5561 = vst.msk [vmem:[#allocation5 + $0xd0] sm:$0xff] %vm3496, %v5492
      %5562 = vst.msk [vmem:[#allocation5 + $0xd8] sm:$0xff] %vm3496, %v5494
      %5563 = vst.msk [vmem:[#allocation5 + $0xe0] sm:$0xff] %vm3496, %v5496
      %5564 = vst.msk [vmem:[#allocation5 + $0xe8] sm:$0xff] %vm3496, %v5498
      %5565 = vst.msk [vmem:[#allocation5 + $0xf0] sm:$0xff] %vm3496, %v5500
      %5566 = vst.msk [vmem:[#allocation5 + $0xf8] sm:$0xff] %vm3496, %v5502
      %v5567 = vld [vmem:[%s3529] sm:$0xff]
      %v5568 = vld [vmem:[%s3529 + $0x8] sm:$0xff]
      %v5569 = vld [vmem:[%s3529 + $0x18] sm:$0xff]
      %v5570 = vld [vmem:[%s3529 + $0x20] sm:$0xff]
      %v5571 = vld [vmem:[%s3529 + $0x30] sm:$0xff]
      %v5572 = vld [vmem:[%s3529 + $0x38] sm:$0xff]
      %v5573 = vld [vmem:[%s3529 + $0x48] sm:$0xff]
      %v5574 = vld [vmem:[%s3529 + $0x50] sm:$0xff]
      %v5575 = vld [vmem:[%s3529 + $0x60] sm:$0xff]
      %v5576 = vld [vmem:[%s3529 + $0x68] sm:$0xff]
      %v5577 = vld [vmem:[%s3529 + $0x78] sm:$0xff]
      %v5578 = vld [vmem:[%s3529 + $0x80] sm:$0xff]
      %v5579 = vld [vmem:[%s3529 + $0x90] sm:$0xff]
      %v5580 = vld [vmem:[%s3529 + $0x98] sm:$0xff]
      %v5581 = vld [vmem:[%s3529 + $0xa8] sm:$0xff]
      %v5582 = vld [vmem:[%s3529 + $0xb0] sm:$0xff]
      %v5583 = vld [vmem:[%s3529 + $0xc0] sm:$0xff]
      %v5584 = vld [vmem:[%s3529 + $0xc8] sm:$0xff]
      %v5585 = vld [vmem:[%s3529 + $0xd8] sm:$0xff]
      %v5586 = vld [vmem:[%s3529 + $0xe0] sm:$0xff]
      %v5587 = vld [vmem:[%s3529 + $0xf0] sm:$0xff]
      %v5588 = vld [vmem:[%s3529 + $0xf8] sm:$0xff]
      %v5589 = vld [vmem:[%s3529 + $0x108] sm:$0xff]
      %v5590 = vld [vmem:[%s3529 + $0x110] sm:$0xff]
      %v5591 = vld [vmem:[%s3529 + $0x120] sm:$0xff]
      %v5592 = vld [vmem:[%s3529 + $0x128] sm:$0xff]
      %v5593 = vld [vmem:[%s3529 + $0x138] sm:$0xff]
      %v5594 = vld [vmem:[%s3529 + $0x140] sm:$0xff]
      %v5595 = vld [vmem:[%s3529 + $0x150] sm:$0xff]
      %v5596 = vld [vmem:[%s3529 + $0x158] sm:$0xff]
      %v5597 = vld [vmem:[%s3529 + $0x168] sm:$0xff]
      %v5598 = vld [vmem:[%s3529 + $0x170] sm:$0xff]
      %5631 = vrot.lane.b32.xlu0 %v5567, 48
      %v5632 = vpop.permute.xlu0 %5631
      %5633 = vrot.lane.b32.xlu0 %v5568, 48
      %v5634 = vpop.permute.xlu0 %5633
      %5635 = vrot.lane.b32.xlu0 %v5569, 48
      %v5636 = vpop.permute.xlu0 %5635
      %5637 = vrot.lane.b32.xlu0 %v5570, 48
      %v5638 = vpop.permute.xlu0 %5637
      %5639 = vrot.lane.b32.xlu0 %v5571, 48
      %v5640 = vpop.permute.xlu0 %5639
      %5641 = vrot.lane.b32.xlu0 %v5572, 48
      %v5642 = vpop.permute.xlu0 %5641
      %5643 = vrot.lane.b32.xlu0 %v5573, 48
      %v5644 = vpop.permute.xlu0 %5643
      %5645 = vrot.lane.b32.xlu0 %v5574, 48
      %v5646 = vpop.permute.xlu0 %5645
      %5647 = vrot.lane.b32.xlu0 %v5575, 48
      %v5648 = vpop.permute.xlu0 %5647
      %5649 = vrot.lane.b32.xlu0 %v5576, 48
      %v5650 = vpop.permute.xlu0 %5649
      %5651 = vrot.lane.b32.xlu0 %v5577, 48
      %v5652 = vpop.permute.xlu0 %5651
      %5653 = vrot.lane.b32.xlu0 %v5578, 48
      %v5654 = vpop.permute.xlu0 %5653
      %5655 = vrot.lane.b32.xlu0 %v5579, 48
      %v5656 = vpop.permute.xlu0 %5655
      %5657 = vrot.lane.b32.xlu0 %v5580, 48
      %v5658 = vpop.permute.xlu0 %5657
      %5659 = vrot.lane.b32.xlu0 %v5581, 48
      %v5660 = vpop.permute.xlu0 %5659
      %5661 = vrot.lane.b32.xlu0 %v5582, 48
      %v5662 = vpop.permute.xlu0 %5661
      %5663 = vrot.lane.b32.xlu0 %v5583, 48
      %v5664 = vpop.permute.xlu0 %5663
      %5665 = vrot.lane.b32.xlu0 %v5584, 48
      %v5666 = vpop.permute.xlu0 %5665
      %5667 = vrot.lane.b32.xlu0 %v5585, 48
      %v5668 = vpop.permute.xlu0 %5667
      %5669 = vrot.lane.b32.xlu0 %v5586, 48
      %v5670 = vpop.permute.xlu0 %5669
      %5671 = vrot.lane.b32.xlu0 %v5587, 48
      %v5672 = vpop.permute.xlu0 %5671
      %5673 = vrot.lane.b32.xlu0 %v5588, 48
      %v5674 = vpop.permute.xlu0 %5673
      %5675 = vrot.lane.b32.xlu0 %v5589, 48
      %v5676 = vpop.permute.xlu0 %5675
      %5677 = vrot.lane.b32.xlu0 %v5590, 48
      %v5678 = vpop.permute.xlu0 %5677
      %5679 = vrot.lane.b32.xlu0 %v5591, 48
      %v5680 = vpop.permute.xlu0 %5679
      %5681 = vrot.lane.b32.xlu0 %v5592, 48
      %v5682 = vpop.permute.xlu0 %5681
      %5683 = vrot.lane.b32.xlu0 %v5593, 48
      %v5684 = vpop.permute.xlu0 %5683
      %5685 = vrot.lane.b32.xlu0 %v5594, 48
      %v5686 = vpop.permute.xlu0 %5685
      %5687 = vrot.lane.b32.xlu0 %v5595, 48
      %v5688 = vpop.permute.xlu0 %5687
      %5689 = vrot.lane.b32.xlu0 %v5596, 48
      %v5690 = vpop.permute.xlu0 %5689
      %5691 = vrot.lane.b32.xlu0 %v5597, 48
      %v5692 = vpop.permute.xlu0 %5691
      %5693 = vrot.lane.b32.xlu0 %v5598, 48
      %v5694 = vpop.permute.xlu0 %5693
      %5727 = vst.msk [vmem:[#allocation5] sm:$0xff] %vm3690, %v5632
      %5728 = vst.msk [vmem:[#allocation5 + $0x8] sm:$0xff] %vm3690, %v5634
      %5729 = vst.msk [vmem:[#allocation5 + $0x10] sm:$0xff] %vm3690, %v5636
      %5730 = vst.msk [vmem:[#allocation5 + $0x18] sm:$0xff] %vm3690, %v5638
      %5731 = vst.msk [vmem:[#allocation5 + $0x20] sm:$0xff] %vm3690, %v5640
      %5732 = vst.msk [vmem:[#allocation5 + $0x28] sm:$0xff] %vm3690, %v5642
      %5733 = vst.msk [vmem:[#allocation5 + $0x30] sm:$0xff] %vm3690, %v5644
      %5734 = vst.msk [vmem:[#allocation5 + $0x38] sm:$0xff] %vm3690, %v5646
      %5735 = vst.msk [vmem:[#allocation5 + $0x40] sm:$0xff] %vm3690, %v5648
      %5736 = vst.msk [vmem:[#allocation5 + $0x48] sm:$0xff] %vm3690, %v5650
      %5737 = vst.msk [vmem:[#allocation5 + $0x50] sm:$0xff] %vm3690, %v5652
      %5738 = vst.msk [vmem:[#allocation5 + $0x58] sm:$0xff] %vm3690, %v5654
      %5739 = vst.msk [vmem:[#allocation5 + $0x60] sm:$0xff] %vm3690, %v5656
      %5740 = vst.msk [vmem:[#allocation5 + $0x68] sm:$0xff] %vm3690, %v5658
      %5741 = vst.msk [vmem:[#allocation5 + $0x70] sm:$0xff] %vm3690, %v5660
      %5742 = vst.msk [vmem:[#allocation5 + $0x78] sm:$0xff] %vm3690, %v5662
      %5743 = vst.msk [vmem:[#allocation5 + $0x80] sm:$0xff] %vm3690, %v5664
      %5744 = vst.msk [vmem:[#allocation5 + $0x88] sm:$0xff] %vm3690, %v5666
      %5745 = vst.msk [vmem:[#allocation5 + $0x90] sm:$0xff] %vm3690, %v5668
      %5746 = vst.msk [vmem:[#allocation5 + $0x98] sm:$0xff] %vm3690, %v5670
      %5747 = vst.msk [vmem:[#allocation5 + $0xa0] sm:$0xff] %vm3690, %v5672
      %5748 = vst.msk [vmem:[#allocation5 + $0xa8] sm:$0xff] %vm3690, %v5674
      %5749 = vst.msk [vmem:[#allocation5 + $0xb0] sm:$0xff] %vm3690, %v5676
      %5750 = vst.msk [vmem:[#allocation5 + $0xb8] sm:$0xff] %vm3690, %v5678
      %5751 = vst.msk [vmem:[#allocation5 + $0xc0] sm:$0xff] %vm3690, %v5680
      %5752 = vst.msk [vmem:[#allocation5 + $0xc8] sm:$0xff] %vm3690, %v5682
      %5753 = vst.msk [vmem:[#allocation5 + $0xd0] sm:$0xff] %vm3690, %v5684
      %5754 = vst.msk [vmem:[#allocation5 + $0xd8] sm:$0xff] %vm3690, %v5686
      %5755 = vst.msk [vmem:[#allocation5 + $0xe0] sm:$0xff] %vm3690, %v5688
      %5756 = vst.msk [vmem:[#allocation5 + $0xe8] sm:$0xff] %vm3690, %v5690
      %5757 = vst.msk [vmem:[#allocation5 + $0xf0] sm:$0xff] %vm3690, %v5692
      %5758 = vst.msk [vmem:[#allocation5 + $0xf8] sm:$0xff] %vm3690, %v5694
      %v5759 = vld [vmem:[%s3529 + $0x1] sm:$0xff]
      %v5760 = vld [vmem:[%s3529 + $0x9] sm:$0xff]
      %v5761 = vld [vmem:[%s3529 + $0x19] sm:$0xff]
      %v5762 = vld [vmem:[%s3529 + $0x21] sm:$0xff]
      %v5763 = vld [vmem:[%s3529 + $0x31] sm:$0xff]
      %v5764 = vld [vmem:[%s3529 + $0x39] sm:$0xff]
      %v5765 = vld [vmem:[%s3529 + $0x49] sm:$0xff]
      %v5766 = vld [vmem:[%s3529 + $0x51] sm:$0xff]
      %v5767 = vld [vmem:[%s3529 + $0x61] sm:$0xff]
      %v5768 = vld [vmem:[%s3529 + $0x69] sm:$0xff]
      %v5769 = vld [vmem:[%s3529 + $0x79] sm:$0xff]
      %v5770 = vld [vmem:[%s3529 + $0x81] sm:$0xff]
      %v5771 = vld [vmem:[%s3529 + $0x91] sm:$0xff]
      %v5772 = vld [vmem:[%s3529 + $0x99] sm:$0xff]
      %v5773 = vld [vmem:[%s3529 + $0xa9] sm:$0xff]
      %v5774 = vld [vmem:[%s3529 + $0xb1] sm:$0xff]
      %v5775 = vld [vmem:[%s3529 + $0xc1] sm:$0xff]
      %v5776 = vld [vmem:[%s3529 + $0xc9] sm:$0xff]
      %v5777 = vld [vmem:[%s3529 + $0xd9] sm:$0xff]
      %v5778 = vld [vmem:[%s3529 + $0xe1] sm:$0xff]
      %v5779 = vld [vmem:[%s3529 + $0xf1] sm:$0xff]
      %v5780 = vld [vmem:[%s3529 + $0xf9] sm:$0xff]
      %v5781 = vld [vmem:[%s3529 + $0x109] sm:$0xff]
      %v5782 = vld [vmem:[%s3529 + $0x111] sm:$0xff]
      %v5783 = vld [vmem:[%s3529 + $0x121] sm:$0xff]
      %v5784 = vld [vmem:[%s3529 + $0x129] sm:$0xff]
      %v5785 = vld [vmem:[%s3529 + $0x139] sm:$0xff]
      %v5786 = vld [vmem:[%s3529 + $0x141] sm:$0xff]
      %v5787 = vld [vmem:[%s3529 + $0x151] sm:$0xff]
      %v5788 = vld [vmem:[%s3529 + $0x159] sm:$0xff]
      %v5789 = vld [vmem:[%s3529 + $0x169] sm:$0xff]
      %v5790 = vld [vmem:[%s3529 + $0x171] sm:$0xff]
      %5823 = vrot.lane.b32.xlu0 %v5759, 56
      %v5824 = vpop.permute.xlu0 %5823
      %5825 = vrot.lane.b32.xlu0 %v5760, 56
      %v5826 = vpop.permute.xlu0 %5825
      %5827 = vrot.lane.b32.xlu0 %v5761, 56
      %v5828 = vpop.permute.xlu0 %5827
      %5829 = vrot.lane.b32.xlu0 %v5762, 56
      %v5830 = vpop.permute.xlu0 %5829
      %5831 = vrot.lane.b32.xlu0 %v5763, 56
      %v5832 = vpop.permute.xlu0 %5831
      %5833 = vrot.lane.b32.xlu0 %v5764, 56
      %v5834 = vpop.permute.xlu0 %5833
      %5835 = vrot.lane.b32.xlu0 %v5765, 56
      %v5836 = vpop.permute.xlu0 %5835
      %5837 = vrot.lane.b32.xlu0 %v5766, 56
      %v5838 = vpop.permute.xlu0 %5837
      %5839 = vrot.lane.b32.xlu0 %v5767, 56
      %v5840 = vpop.permute.xlu0 %5839
      %5841 = vrot.lane.b32.xlu0 %v5768, 56
      %v5842 = vpop.permute.xlu0 %5841
      %5843 = vrot.lane.b32.xlu0 %v5769, 56
      %v5844 = vpop.permute.xlu0 %5843
      %5845 = vrot.lane.b32.xlu0 %v5770, 56
      %v5846 = vpop.permute.xlu0 %5845
      %5847 = vrot.lane.b32.xlu0 %v5771, 56
      %v5848 = vpop.permute.xlu0 %5847
      %5849 = vrot.lane.b32.xlu0 %v5772, 56
      %v5850 = vpop.permute.xlu0 %5849
      %5851 = vrot.lane.b32.xlu0 %v5773, 56
      %v5852 = vpop.permute.xlu0 %5851
      %5853 = vrot.lane.b32.xlu0 %v5774, 56
      %v5854 = vpop.permute.xlu0 %5853
      %5855 = vrot.lane.b32.xlu0 %v5775, 56
      %v5856 = vpop.permute.xlu0 %5855
      %5857 = vrot.lane.b32.xlu0 %v5776, 56
      %v5858 = vpop.permute.xlu0 %5857
      %5859 = vrot.lane.b32.xlu0 %v5777, 56
      %v5860 = vpop.permute.xlu0 %5859
      %5861 = vrot.lane.b32.xlu0 %v5778, 56
      %v5862 = vpop.permute.xlu0 %5861
      %5863 = vrot.lane.b32.xlu0 %v5779, 56
      %v5864 = vpop.permute.xlu0 %5863
      %5865 = vrot.lane.b32.xlu0 %v5780, 56
      %v5866 = vpop.permute.xlu0 %5865
      %5867 = vrot.lane.b32.xlu0 %v5781, 56
      %v5868 = vpop.permute.xlu0 %5867
      %5869 = vrot.lane.b32.xlu0 %v5782, 56
      %v5870 = vpop.permute.xlu0 %5869
      %5871 = vrot.lane.b32.xlu0 %v5783, 56
      %v5872 = vpop.permute.xlu0 %5871
      %5873 = vrot.lane.b32.xlu0 %v5784, 56
      %v5874 = vpop.permute.xlu0 %5873
      %5875 = vrot.lane.b32.xlu0 %v5785, 56
      %v5876 = vpop.permute.xlu0 %5875
      %5877 = vrot.lane.b32.xlu0 %v5786, 56
      %v5878 = vpop.permute.xlu0 %5877
      %5879 = vrot.lane.b32.xlu0 %v5787, 56
      %v5880 = vpop.permute.xlu0 %5879
      %5881 = vrot.lane.b32.xlu0 %v5788, 56
      %v5882 = vpop.permute.xlu0 %5881
      %5883 = vrot.lane.b32.xlu0 %v5789, 56
      %v5884 = vpop.permute.xlu0 %5883
      %5885 = vrot.lane.b32.xlu0 %v5790, 56
      %v5886 = vpop.permute.xlu0 %5885
      %5919 = vst.msk [vmem:[#allocation5] sm:$0xff] %vm3883, %v5824
      %5920 = vst.msk [vmem:[#allocation5 + $0x8] sm:$0xff] %vm3883, %v5826
      %5921 = vst.msk [vmem:[#allocation5 + $0x10] sm:$0xff] %vm3883, %v5828
      %5922 = vst.msk [vmem:[#allocation5 + $0x18] sm:$0xff] %vm3883, %v5830
      %5923 = vst.msk [vmem:[#allocation5 + $0x20] sm:$0xff] %vm3883, %v5832
      %5924 = vst.msk [vmem:[#allocation5 + $0x28] sm:$0xff] %vm3883, %v5834
      %5925 = vst.msk [vmem:[#allocation5 + $0x30] sm:$0xff] %vm3883, %v5836
      %5926 = vst.msk [vmem:[#allocation5 + $0x38] sm:$0xff] %vm3883, %v5838
      %5927 = vst.msk [vmem:[#allocation5 + $0x40] sm:$0xff] %vm3883, %v5840
      %5928 = vst.msk [vmem:[#allocation5 + $0x48] sm:$0xff] %vm3883, %v5842
      %5929 = vst.msk [vmem:[#allocation5 + $0x50] sm:$0xff] %vm3883, %v5844
      %5930 = vst.msk [vmem:[#allocation5 + $0x58] sm:$0xff] %vm3883, %v5846
      %5931 = vst.msk [vmem:[#allocation5 + $0x60] sm:$0xff] %vm3883, %v5848
      %5932 = vst.msk [vmem:[#allocation5 + $0x68] sm:$0xff] %vm3883, %v5850
      %5933 = vst.msk [vmem:[#allocation5 + $0x70] sm:$0xff] %vm3883, %v5852
      %5934 = vst.msk [vmem:[#allocation5 + $0x78] sm:$0xff] %vm3883, %v5854
      %5935 = vst.msk [vmem:[#allocation5 + $0x80] sm:$0xff] %vm3883, %v5856
      %5936 = vst.msk [vmem:[#allocation5 + $0x88] sm:$0xff] %vm3883, %v5858
      %5937 = vst.msk [vmem:[#allocation5 + $0x90] sm:$0xff] %vm3883, %v5860
      %5938 = vst.msk [vmem:[#allocation5 + $0x98] sm:$0xff] %vm3883, %v5862
      %5939 = vst.msk [vmem:[#allocation5 + $0xa0] sm:$0xff] %vm3883, %v5864
      %5940 = vst.msk [vmem:[#allocation5 + $0xa8] sm:$0xff] %vm3883, %v5866
      %5941 = vst.msk [vmem:[#allocation5 + $0xb0] sm:$0xff] %vm3883, %v5868
      %5942 = vst.msk [vmem:[#allocation5 + $0xb8] sm:$0xff] %vm3883, %v5870
      %5943 = vst.msk [vmem:[#allocation5 + $0xc0] sm:$0xff] %vm3883, %v5872
      %5944 = vst.msk [vmem:[#allocation5 + $0xc8] sm:$0xff] %vm3883, %v5874
      %5945 = vst.msk [vmem:[#allocation5 + $0xd0] sm:$0xff] %vm3883, %v5876
      %5946 = vst.msk [vmem:[#allocation5 + $0xd8] sm:$0xff] %vm3883, %v5878
      %5947 = vst.msk [vmem:[#allocation5 + $0xe0] sm:$0xff] %vm3883, %v5880
      %5948 = vst.msk [vmem:[#allocation5 + $0xe8] sm:$0xff] %vm3883, %v5882
      %5949 = vst.msk [vmem:[#allocation5 + $0xf0] sm:$0xff] %vm3883, %v5884
      %5950 = vst.msk [vmem:[#allocation5 + $0xf8] sm:$0xff] %vm3883, %v5886
      %v5951 = vld [vmem:[%s3529 + $0x2] sm:$0xff]
      %v5952 = vld [vmem:[%s3529 + $0xa] sm:$0xff]
      %v5953 = vld [vmem:[%s3529 + $0x1a] sm:$0xff]
      %v5954 = vld [vmem:[%s3529 + $0x22] sm:$0xff]
      %v5955 = vld [vmem:[%s3529 + $0x32] sm:$0xff]
      %v5956 = vld [vmem:[%s3529 + $0x3a] sm:$0xff]
      %v5957 = vld [vmem:[%s3529 + $0x4a] sm:$0xff]
      %v5958 = vld [vmem:[%s3529 + $0x52] sm:$0xff]
      %v5959 = vld [vmem:[%s3529 + $0x62] sm:$0xff]
      %v5960 = vld [vmem:[%s3529 + $0x6a] sm:$0xff]
      %v5961 = vld [vmem:[%s3529 + $0x7a] sm:$0xff]
      %v5962 = vld [vmem:[%s3529 + $0x82] sm:$0xff]
      %v5963 = vld [vmem:[%s3529 + $0x92] sm:$0xff]
      %v5964 = vld [vmem:[%s3529 + $0x9a] sm:$0xff]
      %v5965 = vld [vmem:[%s3529 + $0xaa] sm:$0xff]
      %v5966 = vld [vmem:[%s3529 + $0xb2] sm:$0xff]
      %v5967 = vld [vmem:[%s3529 + $0xc2] sm:$0xff]
      %v5968 = vld [vmem:[%s3529 + $0xca] sm:$0xff]
      %v5969 = vld [vmem:[%s3529 + $0xda] sm:$0xff]
      %v5970 = vld [vmem:[%s3529 + $0xe2] sm:$0xff]
      %v5971 = vld [vmem:[%s3529 + $0xf2] sm:$0xff]
      %v5972 = vld [vmem:[%s3529 + $0xfa] sm:$0xff]
      %v5973 = vld [vmem:[%s3529 + $0x10a] sm:$0xff]
      %v5974 = vld [vmem:[%s3529 + $0x112] sm:$0xff]
      %v5975 = vld [vmem:[%s3529 + $0x122] sm:$0xff]
      %v5976 = vld [vmem:[%s3529 + $0x12a] sm:$0xff]
      %v5977 = vld [vmem:[%s3529 + $0x13a] sm:$0xff]
      %v5978 = vld [vmem:[%s3529 + $0x142] sm:$0xff]
      %v5979 = vld [vmem:[%s3529 + $0x152] sm:$0xff]
      %v5980 = vld [vmem:[%s3529 + $0x15a] sm:$0xff]
      %v5981 = vld [vmem:[%s3529 + $0x16a] sm:$0xff]
      %v5982 = vld [vmem:[%s3529 + $0x172] sm:$0xff]
      %6015 = vrot.lane.b32.xlu0 %v5951, 64
      %v6016 = vpop.permute.xlu0 %6015
      %6017 = vrot.lane.b32.xlu0 %v5952, 64
      %v6018 = vpop.permute.xlu0 %6017
      %6019 = vrot.lane.b32.xlu0 %v5953, 64
      %v6020 = vpop.permute.xlu0 %6019
      %6021 = vrot.lane.b32.xlu0 %v5954, 64
      %v6022 = vpop.permute.xlu0 %6021
      %6023 = vrot.lane.b32.xlu0 %v5955, 64
      %v6024 = vpop.permute.xlu0 %6023
      %6025 = vrot.lane.b32.xlu0 %v5956, 64
      %v6026 = vpop.permute.xlu0 %6025
      %6027 = vrot.lane.b32.xlu0 %v5957, 64
      %v6028 = vpop.permute.xlu0 %6027
      %6029 = vrot.lane.b32.xlu0 %v5958, 64
      %v6030 = vpop.permute.xlu0 %6029
      %6031 = vrot.lane.b32.xlu0 %v5959, 64
      %v6032 = vpop.permute.xlu0 %6031
      %6033 = vrot.lane.b32.xlu0 %v5960, 64
      %v6034 = vpop.permute.xlu0 %6033
      %6035 = vrot.lane.b32.xlu0 %v5961, 64
      %v6036 = vpop.permute.xlu0 %6035
      %6037 = vrot.lane.b32.xlu0 %v5962, 64
      %v6038 = vpop.permute.xlu0 %6037
      %6039 = vrot.lane.b32.xlu0 %v5963, 64
      %v6040 = vpop.permute.xlu0 %6039
      %6041 = vrot.lane.b32.xlu0 %v5964, 64
      %v6042 = vpop.permute.xlu0 %6041
      %6043 = vrot.lane.b32.xlu0 %v5965, 64
      %v6044 = vpop.permute.xlu0 %6043
      %6045 = vrot.lane.b32.xlu0 %v5966, 64
      %v6046 = vpop.permute.xlu0 %6045
      %6047 = vrot.lane.b32.xlu0 %v5967, 64
      %v6048 = vpop.permute.xlu0 %6047
      %6049 = vrot.lane.b32.xlu0 %v5968, 64
      %v6050 = vpop.permute.xlu0 %6049
      %6051 = vrot.lane.b32.xlu0 %v5969, 64
      %v6052 = vpop.permute.xlu0 %6051
      %6053 = vrot.lane.b32.xlu0 %v5970, 64
      %v6054 = vpop.permute.xlu0 %6053
      %6055 = vrot.lane.b32.xlu0 %v5971, 64
      %v6056 = vpop.permute.xlu0 %6055
      %6057 = vrot.lane.b32.xlu0 %v5972, 64
      %v6058 = vpop.permute.xlu0 %6057
      %6059 = vrot.lane.b32.xlu0 %v5973, 64
      %v6060 = vpop.permute.xlu0 %6059
      %6061 = vrot.lane.b32.xlu0 %v5974, 64
      %v6062 = vpop.permute.xlu0 %6061
      %6063 = vrot.lane.b32.xlu0 %v5975, 64
      %v6064 = vpop.permute.xlu0 %6063
      %6065 = vrot.lane.b32.xlu0 %v5976, 64
      %v6066 = vpop.permute.xlu0 %6065
      %6067 = vrot.lane.b32.xlu0 %v5977, 64
      %v6068 = vpop.permute.xlu0 %6067
      %6069 = vrot.lane.b32.xlu0 %v5978, 64
      %v6070 = vpop.permute.xlu0 %6069
      %6071 = vrot.lane.b32.xlu0 %v5979, 64
      %v6072 = vpop.permute.xlu0 %6071
      %6073 = vrot.lane.b32.xlu0 %v5980, 64
      %v6074 = vpop.permute.xlu0 %6073
      %6075 = vrot.lane.b32.xlu0 %v5981, 64
      %v6076 = vpop.permute.xlu0 %6075
      %6077 = vrot.lane.b32.xlu0 %v5982, 64
      %v6078 = vpop.permute.xlu0 %6077
      %6111 = vst.msk [vmem:[#allocation5] sm:$0xff] %vm4076, %v6016
      %6112 = vst.msk [vmem:[#allocation5 + $0x8] sm:$0xff] %vm4076, %v6018
      %6113 = vst.msk [vmem:[#allocation5 + $0x10] sm:$0xff] %vm4076, %v6020
      %6114 = vst.msk [vmem:[#allocation5 + $0x18] sm:$0xff] %vm4076, %v6022
      %6115 = vst.msk [vmem:[#allocation5 + $0x20] sm:$0xff] %vm4076, %v6024
      %6116 = vst.msk [vmem:[#allocation5 + $0x28] sm:$0xff] %vm4076, %v6026
      %6117 = vst.msk [vmem:[#allocation5 + $0x30] sm:$0xff] %vm4076, %v6028
      %6118 = vst.msk [vmem:[#allocation5 + $0x38] sm:$0xff] %vm4076, %v6030
      %6119 = vst.msk [vmem:[#allocation5 + $0x40] sm:$0xff] %vm4076, %v6032
      %6120 = vst.msk [vmem:[#allocation5 + $0x48] sm:$0xff] %vm4076, %v6034
      %6121 = vst.msk [vmem:[#allocation5 + $0x50] sm:$0xff] %vm4076, %v6036
      %6122 = vst.msk [vmem:[#allocation5 + $0x58] sm:$0xff] %vm4076, %v6038
      %6123 = vst.msk [vmem:[#allocation5 + $0x60] sm:$0xff] %vm4076, %v6040
      %6124 = vst.msk [vmem:[#allocation5 + $0x68] sm:$0xff] %vm4076, %v6042
      %6125 = vst.msk [vmem:[#allocation5 + $0x70] sm:$0xff] %vm4076, %v6044
      %6126 = vst.msk [vmem:[#allocation5 + $0x78] sm:$0xff] %vm4076, %v6046
      %6127 = vst.msk [vmem:[#allocation5 + $0x80] sm:$0xff] %vm4076, %v6048
      %6128 = vst.msk [vmem:[#allocation5 + $0x88] sm:$0xff] %vm4076, %v6050
      %6129 = vst.msk [vmem:[#allocation5 + $0x90] sm:$0xff] %vm4076, %v6052
      %6130 = vst.msk [vmem:[#allocation5 + $0x98] sm:$0xff] %vm4076, %v6054
      %6131 = vst.msk [vmem:[#allocation5 + $0xa0] sm:$0xff] %vm4076, %v6056
      %6132 = vst.msk [vmem:[#allocation5 + $0xa8] sm:$0xff] %vm4076, %v6058
      %6133 = vst.msk [vmem:[#allocation5 + $0xb0] sm:$0xff] %vm4076, %v6060
      %6134 = vst.msk [vmem:[#allocation5 + $0xb8] sm:$0xff] %vm4076, %v6062
      %6135 = vst.msk [vmem:[#allocation5 + $0xc0] sm:$0xff] %vm4076, %v6064
      %6136 = vst.msk [vmem:[#allocation5 + $0xc8] sm:$0xff] %vm4076, %v6066
      %6137 = vst.msk [vmem:[#allocation5 + $0xd0] sm:$0xff] %vm4076, %v6068
      %6138 = vst.msk [vmem:[#allocation5 + $0xd8] sm:$0xff] %vm4076, %v6070
      %6139 = vst.msk [vmem:[#allocation5 + $0xe0] sm:$0xff] %vm4076, %v6072
      %6140 = vst.msk [vmem:[#allocation5 + $0xe8] sm:$0xff] %vm4076, %v6074
      %6141 = vst.msk [vmem:[#allocation5 + $0xf0] sm:$0xff] %vm4076, %v6076
      %6142 = vst.msk [vmem:[#allocation5 + $0xf8] sm:$0xff] %vm4076, %v6078
      %v6143 = vld [vmem:[#allocation5] sm:$0xff]
      %v6144 = vld [vmem:[#allocation5 + $0x8] sm:$0xff]
      %v6145 = vld [vmem:[#allocation5 + $0x10] sm:$0xff]
      %v6146 = vld [vmem:[#allocation5 + $0x18] sm:$0xff]
      %v6147 = vld [vmem:[#allocation5 + $0x20] sm:$0xff]
      %v6148 = vld [vmem:[#allocation5 + $0x28] sm:$0xff]
      %v6149 = vld [vmem:[#allocation5 + $0x30] sm:$0xff]
      %v6150 = vld [vmem:[#allocation5 + $0x38] sm:$0xff]
      %v6151 = vld [vmem:[#allocation5 + $0x40] sm:$0xff]
      %v6152 = vld [vmem:[#allocation5 + $0x48] sm:$0xff]
      %v6153 = vld [vmem:[#allocation5 + $0x50] sm:$0xff]
      %v6154 = vld [vmem:[#allocation5 + $0x58] sm:$0xff]
      %v6155 = vld [vmem:[#allocation5 + $0x60] sm:$0xff]
      %v6156 = vld [vmem:[#allocation5 + $0x68] sm:$0xff]
      %v6157 = vld [vmem:[#allocation5 + $0x70] sm:$0xff]
      %v6158 = vld [vmem:[#allocation5 + $0x78] sm:$0xff]
      %v6159 = vld [vmem:[#allocation5 + $0x80] sm:$0xff]
      %v6160 = vld [vmem:[#allocation5 + $0x88] sm:$0xff]
      %v6161 = vld [vmem:[#allocation5 + $0x90] sm:$0xff]
      %v6162 = vld [vmem:[#allocation5 + $0x98] sm:$0xff]
      %v6163 = vld [vmem:[#allocation5 + $0xa0] sm:$0xff]
      %v6164 = vld [vmem:[#allocation5 + $0xa8] sm:$0xff]
      %v6165 = vld [vmem:[#allocation5 + $0xb0] sm:$0xff]
      %v6166 = vld [vmem:[#allocation5 + $0xb8] sm:$0xff]
      %v6167 = vld [vmem:[#allocation5 + $0xc0] sm:$0xff]
      %v6168 = vld [vmem:[#allocation5 + $0xc8] sm:$0xff]
      %v6169 = vld [vmem:[#allocation5 + $0xd0] sm:$0xff]
      %v6170 = vld [vmem:[#allocation5 + $0xd8] sm:$0xff]
      %v6171 = vld [vmem:[#allocation5 + $0xe0] sm:$0xff]
      %v6172 = vld [vmem:[#allocation5 + $0xe8] sm:$0xff]
      %v6173 = vld [vmem:[#allocation5 + $0xf0] sm:$0xff]
      %v6174 = vld [vmem:[#allocation5 + $0xf8] sm:$0xff]
      %v6175 = vld [vmem:[%s5] sm:$0xff]
      %v6176 = vld [vmem:[%s5 + $0x8] sm:$0xff]
      %v6177 = vld [vmem:[%s5 + $0x10] sm:$0xff]
      %v6178 = vld [vmem:[%s5 + $0x18] sm:$0xff]
      %v6179 = vld [vmem:[%s5 + $0x20] sm:$0xff]
      %v6180 = vld [vmem:[%s5 + $0x28] sm:$0xff]
      %v6181 = vld [vmem:[%s5 + $0x30] sm:$0xff]
      %v6182 = vld [vmem:[%s5 + $0x38] sm:$0xff]
      %v6183 = vld [vmem:[%s5 + $0x40] sm:$0xff]
      %v6184 = vld [vmem:[%s6] sm:$0x1]
      %v6186 = vlaneseq
      %v6187 = vshrl.u32 %v6186, 7
      %v6188 = vsub.s32 0, %v6187
      %v6189 = vrot.slane %v6184, %v6188
      %v6192 = vsel %vm4157, %v6143, 0
      %v6195 = vsel %vm4157, %v6144, 0
      %v6198 = vsel %vm4157, %v6145, 0
      %v6201 = vsel %vm4157, %v6146, 0
      %v6204 = vsel %vm4157, %v6147, 0
      %v6207 = vsel %vm4157, %v6148, 0
      %v6210 = vsel %vm4157, %v6149, 0
      %v6213 = vsel %vm4157, %v6150, 0
      %v6216 = vsel %vm4157, %v6151, 0
      %v6219 = vsel %vm4157, %v6152, 0
      %v6222 = vsel %vm4157, %v6153, 0
      %v6225 = vsel %vm4157, %v6154, 0
      %v6228 = vsel %vm4157, %v6155, 0
      %v6231 = vsel %vm4157, %v6156, 0
      %v6234 = vsel %vm4157, %v6157, 0
      %v6237 = vsel %vm4157, %v6158, 0
      %v6240 = vsel %vm4157, %v6159, 0
      %v6243 = vsel %vm4157, %v6160, 0
      %v6246 = vsel %vm4157, %v6161, 0
      %v6249 = vsel %vm4157, %v6162, 0
      %v6252 = vsel %vm4157, %v6163, 0
      %v6255 = vsel %vm4157, %v6164, 0
      %v6258 = vsel %vm4157, %v6165, 0
      %v6261 = vsel %vm4157, %v6166, 0
      %v6264 = vsel %vm4157, %v6167, 0
      %v6267 = vsel %vm4157, %v6168, 0
      %v6270 = vsel %vm4157, %v6169, 0
      %v6273 = vsel %vm4157, %v6170, 0
      %v6276 = vsel %vm4157, %v6171, 0
      %v6279 = vsel %vm4157, %v6172, 0
      %v6282 = vsel %vm4157, %v6173, 0
      %v6285 = vsel %vm4157, %v6174, 0
      %6287 = vmatprep.subr.mxu0 0.0
      %6288 = vmatpush1.msra.mxu0 %v6175
      %6289 = vmatprep.subr.mxu0 0.0
      %6290 = vmatpush1.msra.mxu0 %v6176
      %6291 = vmatprep.subr.mxu0 0.0
      %6292 = vmatpush1.msra.mxu0 %v6177
      %6293 = vmatprep.subr.mxu0 0.0
      %6294 = vmatpush1.msra.mxu0 %v6178
      %6295 = vmatprep.subr.mxu0 0.0
      %6296 = vmatpush1.msra.mxu0 %v6179
      %6297 = vmatprep.subr.mxu0 0.0
      %6298 = vmatpush1.msra.mxu0 %v6180
      %6299 = vmatprep.subr.mxu0 0.0
      %6300 = vmatpush1.msra.mxu0 %v6181
      %6301 = vmatprep.subr.mxu0 0.0
      %6302 = vmatpush1.msra.mxu0 %v6182
      %6303 = vmatprep.subr.mxu0 0.0
      %6304 = vmatpush1.msra.mxu0 %v6183
      %6305 = vmatprep.subr.mxu0 0.0
      %6306 = vmatpush1.msra.mxu0 0.0
      %6307 = vmatprep.subr.mxu0 0.0
      %6308 = vmatpush1.msra.mxu0 0.0
      %6309 = vmatprep.subr.mxu0 0.0
      %6310 = vmatpush1.msra.mxu0 0.0
      %6311 = vmatprep.subr.mxu0 0.0
      %6312 = vmatpush1.msra.mxu0 0.0
      %6313 = vmatprep.subr.mxu0 0.0
      %6314 = vmatpush1.msra.mxu0 0.0
      %6315 = vmatprep.subr.mxu0 0.0
      %6316 = vmatpush1.msra.mxu0 0.0
      %6317 = vmatprep.subr.mxu0 0.0
      %6318 = vmatpush1.msra.mxu0 0.0
      %6319 = vmatprep.subr.mxu0 0.0
      %6320 = vmatpush1.msra.mxu0 0.0
      %6321 = vmatprep.subr.mxu0 0.0
      %6322 = vmatpush1.msra.mxu0 0.0
      %6323 = vmatprep.subr.mxu0 0.0
      %6324 = vmatpush1.msra.mxu0 0.0
      %6325 = vmatprep.subr.mxu0 0.0
      %6326 = vmatpush1.msra.mxu0 0.0
      %6327 = vmatprep.subr.mxu0 0.0
      %6328 = vmatpush1.msra.mxu0 0.0
      %6329 = vmatprep.subr.mxu0 0.0
      %6330 = vmatpush1.msra.mxu0 0.0
      %6331 = vmatprep.subr.mxu0 0.0
      %6332 = vmatpush1.msra.mxu0 0.0
      %6333 = vmatprep.subr.mxu0 0.0
      %6334 = vmatpush1.msra.mxu0 0.0
      %6335 = vmatprep.subr.mxu0 0.0
      %6336 = vmatpush1.msra.mxu0 0.0
      %6337 = vmatprep.subr.mxu0 0.0
      %6338 = vmatpush1.msra.mxu0 0.0
      %6339 = vmatprep.subr.mxu0 0.0
      %6340 = vmatpush1.msra.mxu0 0.0
      %6341 = vmatprep.subr.mxu0 0.0
      %6342 = vmatpush1.msra.mxu0 0.0
      %6343 = vmatprep.subr.mxu0 0.0
      %6344 = vmatpush1.msra.mxu0 0.0
      %6345 = vmatprep.subr.mxu0 0.0
      %6346 = vmatpush1.msra.mxu0 0.0
      %6347 = vmatprep.subr.mxu0 0.0
      %6348 = vmatpush1.msra.mxu0 0.0
      %6349 = vmatprep.subr.mxu0 0.0
      %6350 = vmatpush1.msra.mxu0 0.0
      %6351 = vmatprep.mubr.f32.mxu0 0.0
      %6352 = vmatmul.mubr.f32.gmra.mrb[0].mxu0 %v6192
      %v6353 = vpop.f32.mrb[0].mxu0
      %v6354 = vadd.f32 %v6189, %v6353
      %v6355 = vpop.f32.mrb[0].mxu0
      %6356 = vmatprep.mubr.f32.mxu0 0.0
      %6357 = vmatmul.mubr.f32.gmra.mrb[0].mxu0 %v6195
      %v6358 = vpop.f32.mrb[0].mxu0
      %v6359 = vadd.f32 %v6189, %v6358
      %v6360 = vpop.f32.mrb[0].mxu0
      %6361 = vmatprep.mubr.f32.mxu0 0.0
      %6362 = vmatmul.mubr.f32.gmra.mrb[0].mxu0 %v6198
      %v6363 = vpop.f32.mrb[0].mxu0
      %v6364 = vadd.f32 %v6189, %v6363
      %v6365 = vpop.f32.mrb[0].mxu0
      %6366 = vmatprep.mubr.f32.mxu0 0.0
      %6367 = vmatmul.mubr.f32.gmra.mrb[0].mxu0 %v6201
      %v6368 = vpop.f32.mrb[0].mxu0
      %v6369 = vadd.f32 %v6189, %v6368
      %v6370 = vpop.f32.mrb[0].mxu0
      %6371 = vmatprep.mubr.f32.mxu0 0.0
      %6372 = vmatmul.mubr.f32.gmra.mrb[0].mxu0 %v6204
      %v6373 = vpop.f32.mrb[0].mxu0
      %v6374 = vadd.f32 %v6189, %v6373
      %v6375 = vpop.f32.mrb[0].mxu0
      %6376 = vmatprep.mubr.f32.mxu0 0.0
      %6377 = vmatmul.mubr.f32.gmra.mrb[0].mxu0 %v6207
      %v6378 = vpop.f32.mrb[0].mxu0
      %v6379 = vadd.f32 %v6189, %v6378
      %v6380 = vpop.f32.mrb[0].mxu0
      %6381 = vmatprep.mubr.f32.mxu0 0.0
      %6382 = vmatmul.mubr.f32.gmra.mrb[0].mxu0 %v6210
      %v6383 = vpop.f32.mrb[0].mxu0
      %v6384 = vadd.f32 %v6189, %v6383
      %v6385 = vpop.f32.mrb[0].mxu0
      %6386 = vmatprep.mubr.f32.mxu0 0.0
      %6387 = vmatmul.mubr.f32.gmra.mrb[0].mxu0 %v6213
      %v6388 = vpop.f32.mrb[0].mxu0
      %v6389 = vadd.f32 %v6189, %v6388
      %v6390 = vpop.f32.mrb[0].mxu0
      %6391 = vmatprep.mubr.f32.mxu0 0.0
      %6392 = vmatmul.mubr.f32.gmra.mrb[0].mxu0 %v6216
      %v6393 = vpop.f32.mrb[0].mxu0
      %v6394 = vadd.f32 %v6189, %v6393
      %v6395 = vpop.f32.mrb[0].mxu0
      %6396 = vmatprep.mubr.f32.mxu0 0.0
      %6397 = vmatmul.mubr.f32.gmra.mrb[0].mxu0 %v6219
      %v6398 = vpop.f32.mrb[0].mxu0
      %v6399 = vadd.f32 %v6189, %v6398
      %v6400 = vpop.f32.mrb[0].mxu0
      %6401 = vmatprep.mubr.f32.mxu0 0.0
      %6402 = vmatmul.mubr.f32.gmra.mrb[0].mxu0 %v6222
      %v6403 = vpop.f32.mrb[0].mxu0
      %v6404 = vadd.f32 %v6189, %v6403
      %v6405 = vpop.f32.mrb[0].mxu0
      %6406 = vmatprep.mubr.f32.mxu0 0.0
      %6407 = vmatmul.mubr.f32.gmra.mrb[0].mxu0 %v6225
      %v6408 = vpop.f32.mrb[0].mxu0
      %v6409 = vadd.f32 %v6189, %v6408
      %v6410 = vpop.f32.mrb[0].mxu0
      %6411 = vmatprep.mubr.f32.mxu0 0.0
      %6412 = vmatmul.mubr.f32.gmra.mrb[0].mxu0 %v6228
      %v6413 = vpop.f32.mrb[0].mxu0
      %v6414 = vadd.f32 %v6189, %v6413
      %v6415 = vpop.f32.mrb[0].mxu0
      %6416 = vmatprep.mubr.f32.mxu0 0.0
      %6417 = vmatmul.mubr.f32.gmra.mrb[0].mxu0 %v6231
      %v6418 = vpop.f32.mrb[0].mxu0
      %v6419 = vadd.f32 %v6189, %v6418
      %v6420 = vpop.f32.mrb[0].mxu0
      %6421 = vmatprep.mubr.f32.mxu0 0.0
      %6422 = vmatmul.mubr.f32.gmra.mrb[0].mxu0 %v6234
      %v6423 = vpop.f32.mrb[0].mxu0
      %v6424 = vadd.f32 %v6189, %v6423
      %v6425 = vpop.f32.mrb[0].mxu0
      %6426 = vmatprep.mubr.f32.mxu0 0.0
      %6427 = vmatmul.mubr.f32.gmra.mrb[0].mxu0 %v6237
      %v6428 = vpop.f32.mrb[0].mxu0
      %v6429 = vadd.f32 %v6189, %v6428
      %v6430 = vpop.f32.mrb[0].mxu0
      %6431 = vmatprep.mubr.f32.mxu0 0.0
      %6432 = vmatmul.mubr.f32.gmra.mrb[0].mxu0 %v6240
      %v6433 = vpop.f32.mrb[0].mxu0
      %v6434 = vadd.f32 %v6189, %v6433
      %v6435 = vpop.f32.mrb[0].mxu0
      %6436 = vmatprep.mubr.f32.mxu0 0.0
      %6437 = vmatmul.mubr.f32.gmra.mrb[0].mxu0 %v6243
      %v6438 = vpop.f32.mrb[0].mxu0
      %v6439 = vadd.f32 %v6189, %v6438
      %v6440 = vpop.f32.mrb[0].mxu0
      %6441 = vmatprep.mubr.f32.mxu0 0.0
      %6442 = vmatmul.mubr.f32.gmra.mrb[0].mxu0 %v6246
      %v6443 = vpop.f32.mrb[0].mxu0
      %v6444 = vadd.f32 %v6189, %v6443
      %v6445 = vpop.f32.mrb[0].mxu0
      %6446 = vmatprep.mubr.f32.mxu0 0.0
      %6447 = vmatmul.mubr.f32.gmra.mrb[0].mxu0 %v6249
      %v6448 = vpop.f32.mrb[0].mxu0
      %v6449 = vadd.f32 %v6189, %v6448
      %v6450 = vpop.f32.mrb[0].mxu0
      %6451 = vmatprep.mubr.f32.mxu0 0.0
      %6452 = vmatmul.mubr.f32.gmra.mrb[0].mxu0 %v6252
      %v6453 = vpop.f32.mrb[0].mxu0
      %v6454 = vadd.f32 %v6189, %v6453
      %v6455 = vpop.f32.mrb[0].mxu0
      %6456 = vmatprep.mubr.f32.mxu0 0.0
      %6457 = vmatmul.mubr.f32.gmra.mrb[0].mxu0 %v6255
      %v6458 = vpop.f32.mrb[0].mxu0
      %v6459 = vadd.f32 %v6189, %v6458
      %v6460 = vpop.f32.mrb[0].mxu0
      %6461 = vmatprep.mubr.f32.mxu0 0.0
      %6462 = vmatmul.mubr.f32.gmra.mrb[0].mxu0 %v6258
      %v6463 = vpop.f32.mrb[0].mxu0
      %v6464 = vadd.f32 %v6189, %v6463
      %v6465 = vpop.f32.mrb[0].mxu0
      %6466 = vmatprep.mubr.f32.mxu0 0.0
      %6467 = vmatmul.mubr.f32.gmra.mrb[0].mxu0 %v6261
      %v6468 = vpop.f32.mrb[0].mxu0
      %v6469 = vadd.f32 %v6189, %v6468
      %v6470 = vpop.f32.mrb[0].mxu0
      %6471 = vmatprep.mubr.f32.mxu0 0.0
      %6472 = vmatmul.mubr.f32.gmra.mrb[0].mxu0 %v6264
      %v6473 = vpop.f32.mrb[0].mxu0
      %v6474 = vadd.f32 %v6189, %v6473
      %v6475 = vpop.f32.mrb[0].mxu0
      %6476 = vmatprep.mubr.f32.mxu0 0.0
      %6477 = vmatmul.mubr.f32.gmra.mrb[0].mxu0 %v6267
      %v6478 = vpop.f32.mrb[0].mxu0
      %v6479 = vadd.f32 %v6189, %v6478
      %v6480 = vpop.f32.mrb[0].mxu0
      %6481 = vmatprep.mubr.f32.mxu0 0.0
      %6482 = vmatmul.mubr.f32.gmra.mrb[0].mxu0 %v6270
      %v6483 = vpop.f32.mrb[0].mxu0
      %v6484 = vadd.f32 %v6189, %v6483
      %v6485 = vpop.f32.mrb[0].mxu0
      %6486 = vmatprep.mubr.f32.mxu0 0.0
      %6487 = vmatmul.mubr.f32.gmra.mrb[0].mxu0 %v6273
      %v6488 = vpop.f32.mrb[0].mxu0
      %v6489 = vadd.f32 %v6189, %v6488
      %v6490 = vpop.f32.mrb[0].mxu0
      %6491 = vmatprep.mubr.f32.mxu0 0.0
      %6492 = vmatmul.mubr.f32.gmra.mrb[0].mxu0 %v6276
      %v6493 = vpop.f32.mrb[0].mxu0
      %v6494 = vadd.f32 %v6189, %v6493
      %v6495 = vpop.f32.mrb[0].mxu0
      %6496 = vmatprep.mubr.f32.mxu0 0.0
      %6497 = vmatmul.mubr.f32.gmra.mrb[0].mxu0 %v6279
      %v6498 = vpop.f32.mrb[0].mxu0
      %v6499 = vadd.f32 %v6189, %v6498
      %v6500 = vpop.f32.mrb[0].mxu0
      %6501 = vmatprep.mubr.f32.mxu0 0.0
      %6502 = vmatmul.mubr.f32.gmra.mrb[0].mxu0 %v6282
      %v6503 = vpop.f32.mrb[0].mxu0
      %v6504 = vadd.f32 %v6189, %v6503
      %v6505 = vpop.f32.mrb[0].mxu0
      %6506 = vmatprep.mubr.f32.mxu0 0.0
      %6507 = vmatmul.mubr.f32.gmra.mrb[0].mxu0 %v6285
      %v6508 = vpop.f32.mrb[0].mxu0
      %v6509 = vadd.f32 %v6189, %v6508
      %v6510 = vpop.f32.mrb[0].mxu0
      %6511 = vdwg.mxu0
      %v6512 = vadd.f32 %v6354, %v2435
      %v6513 = vadd.f32 %v6359, %v2436
      %v6514 = vadd.f32 %v6364, %v2437
      %v6515 = vadd.f32 %v6369, %v2438
      %v6516 = vadd.f32 %v6374, %v2439
      %v6517 = vadd.f32 %v6379, %v2440
      %v6518 = vadd.f32 %v6384, %v2441
      %v6519 = vadd.f32 %v6389, %v2442
      %v6520 = vadd.f32 %v6394, %v2443
      %v6521 = vadd.f32 %v6399, %v2444
      %v6522 = vadd.f32 %v6404, %v2445
      %v6523 = vadd.f32 %v6409, %v2446
      %v6524 = vadd.f32 %v6414, %v2447
      %v6525 = vadd.f32 %v6419, %v2448
      %v6526 = vadd.f32 %v6424, %v2449
      %v6527 = vadd.f32 %v6429, %v2450
      %v6528 = vadd.f32 %v6434, %v2451
      %v6529 = vadd.f32 %v6439, %v2452
      %v6530 = vadd.f32 %v6444, %v2453
      %v6531 = vadd.f32 %v6449, %v2454
      %v6532 = vadd.f32 %v6454, %v2455
      %v6533 = vadd.f32 %v6459, %v2456
      %v6534 = vadd.f32 %v6464, %v2457
      %v6535 = vadd.f32 %v6469, %v2458
      %v6536 = vadd.f32 %v6474, %v2459
      %v6537 = vadd.f32 %v6479, %v2460
      %v6538 = vadd.f32 %v6484, %v2461
      %v6539 = vadd.f32 %v6489, %v2462
      %v6540 = vadd.f32 %v6494, %v2463
      %v6541 = vadd.f32 %v6499, %v2464
      %v6542 = vadd.f32 %v6504, %v2465
      %v6543 = vadd.f32 %v6509, %v2466
      %v6544 = vmax.f32 %v6512, 0.0
      %v6545 = vmax.f32 %v6513, 0.0
      %v6546 = vmax.f32 %v6514, 0.0
      %v6547 = vmax.f32 %v6515, 0.0
      %v6548 = vmax.f32 %v6516, 0.0
      %v6549 = vmax.f32 %v6517, 0.0
      %v6550 = vmax.f32 %v6518, 0.0
      %v6551 = vmax.f32 %v6519, 0.0
      %v6552 = vmax.f32 %v6520, 0.0
      %v6553 = vmax.f32 %v6521, 0.0
      %v6554 = vmax.f32 %v6522, 0.0
      %v6555 = vmax.f32 %v6523, 0.0
      %v6556 = vmax.f32 %v6524, 0.0
      %v6557 = vmax.f32 %v6525, 0.0
      %v6558 = vmax.f32 %v6526, 0.0
      %v6559 = vmax.f32 %v6527, 0.0
      %v6560 = vmax.f32 %v6528, 0.0
      %v6561 = vmax.f32 %v6529, 0.0
      %v6562 = vmax.f32 %v6530, 0.0
      %v6563 = vmax.f32 %v6531, 0.0
      %v6564 = vmax.f32 %v6532, 0.0
      %v6565 = vmax.f32 %v6533, 0.0
      %v6566 = vmax.f32 %v6534, 0.0
      %v6567 = vmax.f32 %v6535, 0.0
      %v6568 = vmax.f32 %v6536, 0.0
      %v6569 = vmax.f32 %v6537, 0.0
      %v6570 = vmax.f32 %v6538, 0.0
      %v6571 = vmax.f32 %v6539, 0.0
      %v6572 = vmax.f32 %v6540, 0.0
      %v6573 = vmax.f32 %v6541, 0.0
      %v6574 = vmax.f32 %v6542, 0.0
      %v6575 = vmax.f32 %v6543, 0.0
      %6576 = vst.msk [vmem:[%s278] sm:$0xff] %vm335, %v6544
      %6577 = vst.msk [vmem:[%s278 + $0x8] sm:$0xff] %vm335, %v6545
      %6578 = vst.msk [vmem:[%s278 + $0x10] sm:$0xff] %vm335, %v6546
      %6579 = vst.msk [vmem:[%s278 + $0x18] sm:$0xff] %vm335, %v6547
      %6580 = vst.msk [vmem:[%s278 + $0x20] sm:$0xff] %vm335, %v6548
      %6581 = vst.msk [vmem:[%s278 + $0x28] sm:$0xff] %vm335, %v6549
      %6582 = vst.msk [vmem:[%s278 + $0x30] sm:$0xff] %vm335, %v6550
      %6583 = vst.msk [vmem:[%s278 + $0x38] sm:$0xff] %vm335, %v6551
      %6584 = vst.msk [vmem:[%s278 + $0x40] sm:$0xff] %vm335, %v6552
      %6585 = vst.msk [vmem:[%s278 + $0x48] sm:$0xff] %vm335, %v6553
      %6586 = vst.msk [vmem:[%s278 + $0x50] sm:$0xff] %vm335, %v6554
      %6587 = vst.msk [vmem:[%s278 + $0x58] sm:$0xff] %vm335, %v6555
      %6588 = vst.msk [vmem:[%s278 + $0x60] sm:$0xff] %vm335, %v6556
      %6589 = vst.msk [vmem:[%s278 + $0x68] sm:$0xff] %vm335, %v6557
      %6590 = vst.msk [vmem:[%s278 + $0x70] sm:$0xff] %vm335, %v6558
      %6591 = vst.msk [vmem:[%s278 + $0x78] sm:$0xff] %vm335, %v6559
      %6592 = vst.msk [vmem:[%s278 + $0x80] sm:$0xff] %vm335, %v6560
      %6593 = vst.msk [vmem:[%s278 + $0x88] sm:$0xff] %vm335, %v6561
      %6594 = vst.msk [vmem:[%s278 + $0x90] sm:$0xff] %vm335, %v6562
      %6595 = vst.msk [vmem:[%s278 + $0x98] sm:$0xff] %vm335, %v6563
      %6596 = vst.msk [vmem:[%s278 + $0xa0] sm:$0xff] %vm335, %v6564
      %6597 = vst.msk [vmem:[%s278 + $0xa8] sm:$0xff] %vm335, %v6565
      %6598 = vst.msk [vmem:[%s278 + $0xb0] sm:$0xff] %vm335, %v6566
      %6599 = vst.msk [vmem:[%s278 + $0xb8] sm:$0xff] %vm335, %v6567
      %6600 = vst.msk [vmem:[%s278 + $0xc0] sm:$0xff] %vm335, %v6568
      %6601 = vst.msk [vmem:[%s278 + $0xc8] sm:$0xff] %vm335, %v6569
      %6602 = vst.msk [vmem:[%s278 + $0xd0] sm:$0xff] %vm335, %v6570
      %6603 = vst.msk [vmem:[%s278 + $0xd8] sm:$0xff] %vm335, %v6571
      %6604 = vst.msk [vmem:[%s278 + $0xe0] sm:$0xff] %vm335, %v6572
      %6605 = vst.msk [vmem:[%s278 + $0xe8] sm:$0xff] %vm335, %v6573
      %6606 = vst.msk [vmem:[%s278 + $0xf0] sm:$0xff] %vm335, %v6574
      %6607 = vst.msk [vmem:[%s278 + $0xf8] sm:$0xff] %vm335, %v6575
      %p6608 = scmp.lt.s32.totalorder %s18, 1
      %s6609 = scalar_select %p6608, %s18, 1
      %s6610 = smul.addr %s6609, 32
      %s6611 = smul.addr %s6610, 8
      %s6612 = scalar_lea.vmem %s7, %s6611
      // Predicated region
      $region49: #{encoder_forward.1} parent=47 // pred_check
        %p6613 = pneg %p188
      $region50: #{encoder_forward.1} parent=47 // pred_check_branch
        %6615 = sbr.rel (%p6613) target = $region52
      $region51: #{encoder_forward.1} parent=47 // pred_region
        _
      $region52: #{encoder_forward.1} parent=47 // pred_fallthru
        _
    $region48: #{encoder_forward.1} parent=5 // pred_fallthru
      _
    %p6616 = scmp.le.s32.totalorder 2, %s13
    // Predicated region
    $region53: #{encoder_forward.1} parent=5 // pred_check
      %p6617 = pneg %p6616
    $region54: #{encoder_forward.1} parent=5 // pred_check_branch
      %6619 = sbr.rel (%p6617) target = $region56
    $region55: #{encoder_forward.1} parent=5 // pred_region
      %s6620 = ssub.s32 %s13, 2
      // Predicated region
      $region57: #{encoder_forward.1} parent=55 // pred_check
        %p6621 = pneg %p194
      $region58: #{encoder_forward.1} parent=55 // pred_check_branch
        %6623 = sbr.rel (%p6621) target = $region60
      $region59: #{encoder_forward.1} parent=55 // pred_region
        %p6624 = scmp.lt.s32.totalorder %s19, 1
        %s6625 = scalar_select %p6624, %s19, 1
        %s6626 = smul.addr %s6625, 32
        %s6627 = smul.addr %s6626, 8
        %s6628 = scalar_lea.vmem %s7, %s6627
      $region60: #{encoder_forward.1} parent=55 // pred_fallthru
        _
    $region56: #{encoder_forward.1} parent=5 // pred_fallthru
      _
  $region6: #{encoder_forward.1} parent=0 // loop_footer
    %s17 = sadd.s32 1, %s13
  $region7: #{encoder_forward.1} parent=0 // loop_footer_branch
    %12 = sbr.rel target = $region3
  $region8: #{encoder_forward.1} parent=0 // loop_exit
    _

</llo_original>
